<compile_context>
chip_gen: v6e
topology: v6e:2x2x1
jax: 0.10.0
libtpu: 0.0.40
codegen_flags: <defaults>
</compile_context>

<pallas_src>
import jax
import jax.numpy as jnp
from jax.experimental import pallas as pl
from jax.experimental.pallas import tpu as pltpu


def _round_up(v, m):
    return ((v + m - 1) // m) * m


def _pad2d(arr, rows, cols):
    r, c = arr.shape
    if r == rows and c == cols:
        return arr
    return jnp.pad(arr, ((0, rows - r), (0, cols - c)))


def _vmem_capacity_bytes():
    try:
        return int(pltpu.get_tpu_info().vmem_capacity_bytes)
    except Exception:
        return 64 * 1024 * 1024  # conservative (v7x per-core capacity)


# ------------------------- GCN-encode + pool kernel ------------------------ #

def gcn_encode_and_pool(adj, x, w, b, node, *, compute_dtype=jnp.bfloat16,
                        tb_cap=256, tk_cap=1024):
    """relu((adj[node, :] @ x) @ w + b)  ->  (len(node), emb_dim), f32.

    The pool-from-node gather is pushed in front of the GCN so only B rows are
    ever computed; the gather itself is done in-kernel by per-row DMA from HBM.
    """
    n, n_cols = adj.shape
    f = x.shape[1]
    e = w.shape[1]
    bsz = node.shape[0]

    f_pad = _round_up(f, 128)
    e_pad = _round_up(e, 128)

    # bf16 packs 2 rows per sublane -> align row blocks to 16 for bf16 MXU feeds.
    sub = {1: 32, 2: 16, 4: 8}.get(jnp.dtype(compute_dtype).itemsize, 8)
    tb = min(_round_up(bsz, sub), tb_cap)
    b_pad = _round_up(bsz, tb)
    grid_i = b_pad // tb                      # == 1 whenever bsz <= tb_cap

    adj_itm = jnp.dtype(adj.dtype).itemsize
    x_itm = jnp.dtype(x.dtype).itemsize

    cap = _vmem_capacity_bytes()
    budget = (cap * 45) // 100                # <= ~29 MiB on v7x, ~57 MiB on v5e/v6e

    def footprint(tk_):
        return (2 * tk_ * f_pad * x_itm           # X (double-buffered, source dtype)
                + 2 * f_pad * e_pad * 4           # W (conservative: 2 buffers)
                + 2 * 8 * e_pad * 4               # bias (sublane-padded)
                + tb * tk_ * adj_itm              # A staging buffer
                + tb * f_pad * 4                  # f32 accumulator
                + 2 * tb * e_pad * 4)             # output (double-buffered)

    n_lane = _round_up(n, 128)
    tk = max(128, (min(tk_cap, n_lane) // 128) * 128)
    while tk > 128 and footprint(tk) > budget:
        tk -= 128
    grid_k = -(-n // tk)
    n_k = grid_k * tk

    # TODO(synk): when n % tk != 0 the adjacency/X get a one-time zero-pad pass
    # here; cache the padded (and f32) copies across calls if the graph is reused.
    adj_p = _pad2d(adj, n, n_k) if n_k != n_cols else adj
    x_p = _pad2d(x, n_k, f_pad)                                   # f32, cast in-kernel
    w_p = _pad2d(w.astype(jnp.float32), f_pad, e_pad)             # f32 epilogue matmul
    b_p = _pad2d(b.reshape(1, e).astype(jnp.float32), 1, e_pad)
    node_pad = jnp.pad(node.astype(jnp.int32), (0, b_pad - bsz))

    def kernel(node_ref, adj_hbm, x_ref, w_ref, b_ref, o_ref,
               a_buf, sem, acc_ref):
        i = pl.program_id(0)
        k = pl.program_id(1)
        col0 = pl.multiple_of(k * tk, 128)

        # In-kernel gather of the tb adjacency-row slices for this k block.
        for r in range(tb):
            idx = node_ref[i * tb + r]
            idx = jnp.minimum(jnp.maximum(idx, 0), n - 1)         # OOB-safe clamp
            pltpu.make_async_copy(
                adj_hbm.at[pl.ds(idx, 1), pl.ds(col0, tk)],
                a_buf.at[pl.ds(r, 1)],
                sem.at[0]).start()

        @pl.when(k == 0)
        def _init():
            acc_ref[...] = jnp.zeros_like(acc_ref)

        for r in range(tb):
            pltpu.make_async_copy(
                adj_hbm.at[pl.ds(0, 1), pl.ds(0, tk)],
                a_buf.at[pl.ds(r, 1)],
                sem.at[0]).wait()

        # First matmul on the MXU in bf16 (casts happen in-kernel, on the VPU).
        acc_ref[...] += jnp.dot(a_buf[...].astype(compute_dtype),
                                x_ref[...].astype(compute_dtype),
                                preferred_element_type=jnp.float32)

        @pl.when(k == pl.num_programs(1) - 1)
        def _finalize():
            # Second matmul + bias + ReLU, fully in f32, once per row block.
            h = jnp.dot(acc_ref[...], w_ref[...],
                        preferred_element_type=jnp.float32)
            o_ref[...] = jnp.maximum(h + b_ref[...], 0.0)

    fp = footprint(tk)
    vmem_limit = int(min(max(min(budget, fp + (4 << 20)), fp + (2 << 20)), cap))

    cost = pl.CostEstimate(
        flops=int(2 * b_pad * n_k * f_pad + 2 * b_pad * f_pad * e_pad),
        transcendentals=0,
        bytes_accessed=int(grid_i * n_k * f_pad * x_itm      # X re-read per row block
                           + b_pad * n_k * adj_itm           # gathered A rows
                           + f_pad * e_pad * 4 + e_pad * 4   # W + bias
                           + b_pad * e_pad * 4))             # output

    def _call(single_buffer_const):
        const_map = lambda i, k, nd: (0, 0)
        if single_buffer_const:
            w_spec = pl.BlockSpec((f_pad, e_pad), const_map,
                                  pipeline_mode=pl.Buffered(1))
            bias_spec = pl.BlockSpec((1, e_pad), const_map,
                                     pipeline_mode=pl.Buffered(1))
        else:
            w_spec = pl.BlockSpec((f_pad, e_pad), const_map)
            bias_spec = pl.BlockSpec((1, e_pad), const_map)
        return pl.pallas_call(
            kernel,
            out_shape=jax.ShapeDtypeStruct((b_pad, e_pad), jnp.float32),
            grid_spec=pltpu.PrefetchScalarGridSpec(
                num_scalar_prefetch=1,                       # node indices -> SMEM
                grid=(grid_i, grid_k),
                in_specs=[
                    pl.BlockSpec(memory_space=pl.ANY),               # adjacency (HBM)
                    pl.BlockSpec((tk, f_pad), lambda i, k, nd: (k, 0)),  # X streamed over k
                    w_spec,
                    bias_spec,
                ],
                out_specs=pl.BlockSpec((tb, e_pad), lambda i, k, nd: (i, 0)),
                scratch_shapes=[
                    pltpu.VMEM((tb, tk), adj.dtype),         # gathered A rows (src dtype)
                    pltpu.SemaphoreType.DMA((1,)),
                    pltpu.VMEM((tb, f_pad), jnp.float32),    # A@X accumulator
                ],
            ),
            compiler_params=pltpu.CompilerParams(
                dimension_semantics=("parallel", "arbitrary"),
                vmem_limit_bytes=vmem_limit),
            cost_estimate=cost,
        )(node_pad, adj_p, x_p, w_p, b_p)

    try:
        out = _call(True)
    except Exception:
        # pipeline_mode=pl.Buffered(1) not supported by this jax version.
        out = _call(False)
    return out[:bsz, :e]


# ------------------- embedding-only pooling (DMA gather) ------------------- #

_POOL_TB = 32  # rows gathered per grid step (double-buffered across steps)


def pool_only(repr_, node, *, block_rows=_POOL_TB):
    """o[i] = repr[node[i]] : pure DMA row gather, repr stays in HBM."""
    n, e = repr_.shape
    bsz = node.shape[0]
    tb = min(block_rows, _round_up(bsz, 8))
    b_pad = _round_up(bsz, tb)
    node_pad = jnp.pad(node.astype(jnp.int32), (0, b_pad - bsz))

    def kernel(node_ref, repr_hbm, o_ref, vbuf, sems):
        i = pl.program_id(0)
        nsteps = pl.num_programs(0)

        def start_block(blk, s):                 # s: Python int (slot)
            for r in range(tb):
                idx = node_ref[blk * tb + r]
                idx = jnp.minimum(jnp.maximum(idx, 0), n - 1)
                pltpu.make_async_copy(repr_hbm.at[pl.ds(idx, 1)],
                                      vbuf.at[s, pl.ds(r, 1)],
                                      sems.at[s]).start()

        def wait_block(s):
            for r in range(tb):
                pltpu.make_async_copy(repr_hbm.at[pl.ds(0, 1)],
                                      vbuf.at[s, pl.ds(r, 1)],
                                      sems.at[s]).wait()

        def step(s):
            @pl.when(i == 0)
            def _prologue():                      # prime block 0 into slot 0
                start_block(i, s)

            @pl.when(i + 1 < nsteps)
            def _prefetch():                      # issue next block before waiting
                start_block(i + 1, 1 - s)

            wait_block(s)
            o_ref[...] = vbuf[s]

        @pl.when(i % 2 == 0)
        def _even():
            step(0)

        @pl.when(i % 2 == 1)
        def _odd():
            step(1)

    out = pl.pallas_call(
        kernel,
        out_shape=jax.ShapeDtypeStruct((b_pad, e), repr_.dtype),
        grid_spec=pltpu.PrefetchScalarGridSpec(
            num_scalar_prefetch=1,                           # node indices -> SMEM
            grid=(b_pad // tb,),
            in_specs=[pl.BlockSpec(memory_space=pl.ANY)],    # repr stays in HBM
            out_specs=pl.BlockSpec((tb, e), lambda i, nd: (i, 0)),
            scratch_shapes=[pltpu.VMEM((2, tb, e), repr_.dtype),   # 2 slots
                            pltpu.SemaphoreType.DMA((2,))],        # 1 sem per slot
        ),
        # cross-step prefetch requires sequential ordering -> "arbitrary"
        compiler_params=pltpu.CompilerParams(
            dimension_semantics=("arbitrary",)),
        cost_estimate=pl.CostEstimate(
            flops=0, transcendentals=0,
            bytes_accessed=int(2 * b_pad * e * jnp.dtype(repr_.dtype).itemsize)),
    )(node_pad, repr_)
    return out[:bsz]


# ------------------------------ module mirror ------------------------------ #

class BaseNodeEncoderPallas:
    """Mirrors BaseNodeEncoder.forward semantics with Pallas kernels."""

    def __init__(self, emb_dim, gnn_params, compute_dtype=jnp.bfloat16,
                 tb_cap=256, tk_cap=1024):
        self.emb_dim = emb_dim
        self.gnn_params = gnn_params        # dict with 'w', 'b'
        self.compute_dtype = compute_dtype
        self.tb_cap = tb_cap
        self.tk_cap = tk_cap
        self.use_only_embedding = False

    def embedding_only_mode(self, state=True):
        self.use_only_embedding = state

    def get_out_dim(self):
        return self.emb_dim

    def forward(self, g, node, input, gnn_kwargs=None):
        if self.use_only_embedding:
            return pool_only(g["repr"], node)
        # gnn(g) fused with pool_from_node: only `node` rows are computed.
        return gcn_encode_and_pool(
            g["adj"], g["x"], self.gnn_params["w"], self.gnn_params["b"],
            node, compute_dtype=self.compute_dtype,
            tb_cap=self.tb_cap, tk_cap=self.tk_cap)


# --------------------------------- main ------------------------------------ #

if __name__ == "__main__":
    key = jax.random.PRNGKey(0)
    k_adj, k_x, k_w, k_b, k_node = jax.random.split(key, 5)

    N = 512        # number of graph nodes
    F_IN = 64      # input node feature dim
    EMB = 32       # emb_dim
    B = 40         # number of query nodes (pool path runs 2 grid steps)

    # Random symmetric graph with self-loops, symmetric normalization.
    a = (jax.random.uniform(k_adj, (N, N)) > 0.9).astype(jnp.float32)
    a = jnp.maximum(a, a.T) + jnp.eye(N, dtype=jnp.float32)
    a = jnp.minimum(a, 1.0)
    deg = jnp.sum(a, axis=1)
    d_inv_sqrt = 1.0 / jnp.sqrt(deg)
    adj = a * d_inv_sqrt[:, None] * d_inv_sqrt[None, :]

    x = jax.random.normal(k_x, (N, F_IN), dtype=jnp.float32)
    w = jax.random.normal(k_w, (F_IN, EMB), dtype=jnp.float32) * 0.1
    bias = jax.random.normal(k_b, (EMB,), dtype=jnp.float32) * 0.01
    node = jax.random.randint(k_node, (B,), 0, N, dtype=jnp.int32)
    inp = jnp.zeros((B, EMB), dtype=jnp.float32)   # `input` arg (unused)

    # Precomputed embedding for embedding-only mode (g.ndata['repr']).
    repr_precomp = jnp.maximum(adj @ x @ w + bias[None, :], 0.0)
    g = {"adj": adj, "x": x, "repr": repr_precomp}

    # tk_cap=256 so the demo exercises the K-accumulation path (grid_k == 2).
    enc = BaseNodeEncoderPallas(EMB, {"w": w, "b": bias}, tk_cap=256)

    # Default path: in-kernel row-gather GCN + pool fused in one tiled kernel.
    out = jax.block_until_ready(enc.forward(g, node, inp, gnn_kwargs={}))

    # Embedding-only path: double-buffered DMA gather of precomputed repr rows.
    enc.embedding_only_mode(True)
    out_emb = jax.block_until_ready(enc.forward(g, node, inp, gnn_kwargs={}))

    # References.
    bf16 = jnp.bfloat16
    ref_f32 = jnp.maximum(adj @ x @ w + bias[None, :], 0.0)[node]
    ax_ref = jnp.dot(adj[node].astype(bf16), x.astype(bf16),
                     preferred_element_type=jnp.float32)
    ref_match = jnp.maximum(
        jnp.dot(ax_ref, w.astype(jnp.float32),
                preferred_element_type=jnp.float32) + bias[None, :], 0.0)

    assert out.shape == (B, EMB) and out_emb.shape == (B, EMB)
    assert jnp.allclose(out, ref_match, atol=2e-2, rtol=2e-2), \
        "gcn path mismatch (bf16-matched reference)"
    assert jnp.allclose(out, ref_f32, atol=2e-1, rtol=1e-1), \
        "gcn path drift vs f32 reference"
    assert jnp.allclose(out_emb, ref_f32, atol=1e-5), \
        "embedding-only pooling mismatch"

    print("KERNEL_OK")
</pallas_src>

<mosaic_0001>
module attributes {stable_mosaic.version = 11 : i64} {
  func.func @kernel(%arg0: i32, %arg1: i32, %arg2: memref<48xi32, #tpu.memory_space<smem>>, %arg3: memref<512x512xf32, #tpu.memory_space<any>>, %arg4: memref<256x128xf32, #tpu.memory_space<vmem>>, %arg5: memref<128x128xf32, #tpu.memory_space<vmem>>, %arg6: memref<1x128xf32, #tpu.memory_space<vmem>>, %arg7: memref<48x128xf32, #tpu.memory_space<vmem>>, %arg8: memref<48x256xf32, #tpu.memory_space<vmem>>, %arg9: memref<1x!tpu.dma_semaphore, #tpu.memory_space<semaphore_mem>>, %arg10: memref<48x128xf32, #tpu.memory_space<vmem>>) attributes {dimension_semantics = [#tpu.dimension_semantics<parallel>, #tpu.dimension_semantics<arbitrary>], iteration_bounds = array<i64: 1, 2>, scalar_prefetch = 1 : i64, scratch_operands = 3 : i64, tpu.core_type = #tpu.core_type<tc>, window_params = [{}, {transform_indices = @transform_1, window_bounds = array<i64: 256, 128>}, {pipeline_mode = #tpu.pipeline_mode<synchronous>, transform_indices = @transform_2, window_bounds = array<i64: 128, 128>}, {pipeline_mode = #tpu.pipeline_mode<synchronous>, transform_indices = @transform_3, window_bounds = array<i64: 1, 128>}, {transform_indices = @transform_4, window_bounds = array<i64: 48, 128>}]} {
    %c256_i32 = arith.constant 256 : i32
    %0 = arith.muli %arg1, %c256_i32 : i32
    %1 = tpu.assume_multiple %0, 128 : i32
    %c48_i32 = arith.constant 48 : i32
    %2 = arith.muli %arg0, %c48_i32 : i32
    %c0_i32 = arith.constant 0 : i32
    %3 = arith.addi %2, %c0_i32 : i32
    %4 = arith.index_cast %3 : i32 to index
    %5 = memref.load %arg2[%4] : memref<48xi32, #tpu.memory_space<smem>>
    %c0_i32_0 = arith.constant 0 : i32
    %6 = arith.maxsi %5, %c0_i32_0 : i32
    %c511_i32 = arith.constant 511 : i32
    %7 = arith.minsi %6, %c511_i32 : i32
    %c0_i32_1 = arith.constant 0 : i32
    %8 = tpu.memref_slice %arg3[%7, %1] : memref<512x512xf32, #tpu.memory_space<any>> -> memref<1x256xf32, #tpu.memory_space<any>>
    %c0_i32_2 = arith.constant 0 : i32
    %c0_i32_3 = arith.constant 0 : i32
    %9 = tpu.memref_slice %arg8[%c0_i32_2, %c0_i32_3] : memref<48x256xf32, #tpu.memory_space<vmem>> -> memref<1x256xf32, #tpu.memory_space<vmem>>
    %10 = tpu.memref_slice %arg9[%c0_i32_1] : memref<1x!tpu.dma_semaphore, #tpu.memory_space<semaphore_mem>> -> memref<1x!tpu.dma_semaphore, #tpu.memory_space<semaphore_mem>>
    %11 = tpu.memref_squeeze %10 : memref<1x!tpu.dma_semaphore, #tpu.memory_space<semaphore_mem>> -> memref<!tpu.dma_semaphore, #tpu.memory_space<semaphore_mem>>
    tpu.enqueue_dma source(%8 : memref<1x256xf32, #tpu.memory_space<any>>) target(%9 : memref<1x256xf32, #tpu.memory_space<vmem>>) target_semaphore(%11 : memref<!tpu.dma_semaphore, #tpu.memory_space<semaphore_mem>>)
    %c48_i32_4 = arith.constant 48 : i32
    %12 = arith.muli %arg0, %c48_i32_4 : i32
    %c1_i32 = arith.constant 1 : i32
    %13 = arith.addi %12, %c1_i32 : i32
    %14 = arith.index_cast %13 : i32 to index
    %15 = memref.load %arg2[%14] : memref<48xi32, #tpu.memory_space<smem>>
    %c0_i32_5 = arith.constant 0 : i32
    %16 = arith.maxsi %15, %c0_i32_5 : i32
    %c511_i32_6 = arith.constant 511 : i32
    %17 = arith.minsi %16, %c511_i32_6 : i32
    %c0_i32_7 = arith.constant 0 : i32
    %18 = tpu.memref_slice %arg3[%17, %1] : memref<512x512xf32, #tpu.memory_space<any>> -> memref<1x256xf32, #tpu.memory_space<any>>
    %c1_i32_8 = arith.constant 1 : i32
    %c0_i32_9 = arith.constant 0 : i32
    %19 = tpu.memref_slice %arg8[%c1_i32_8, %c0_i32_9] : memref<48x256xf32, #tpu.memory_space<vmem>> -> memref<1x256xf32, #tpu.memory_space<vmem>>
    %20 = tpu.memref_slice %arg9[%c0_i32_7] : memref<1x!tpu.dma_semaphore, #tpu.memory_space<semaphore_mem>> -> memref<1x!tpu.dma_semaphore, #tpu.memory_space<semaphore_mem>>
    %21 = tpu.memref_squeeze %20 : memref<1x!tpu.dma_semaphore, #tpu.memory_space<semaphore_mem>> -> memref<!tpu.dma_semaphore, #tpu.memory_space<semaphore_mem>>
    tpu.enqueue_dma source(%18 : memref<1x256xf32, #tpu.memory_space<any>>) target(%19 : memref<1x256xf32, #tpu.memory_space<vmem>>) target_semaphore(%21 : memref<!tpu.dma_semaphore, #tpu.memory_space<semaphore_mem>>)
    %c48_i32_10 = arith.constant 48 : i32
    %22 = arith.muli %arg0, %c48_i32_10 : i32
    %c2_i32 = arith.constant 2 : i32
    %23 = arith.addi %22, %c2_i32 : i32
    %24 = arith.index_cast %23 : i32 to index
    %25 = memref.load %arg2[%24] : memref<48xi32, #tpu.memory_space<smem>>
    %c0_i32_11 = arith.constant 0 : i32
    %26 = arith.maxsi %25, %c0_i32_11 : i32
    %c511_i32_12 = arith.constant 511 : i32
    %27 = arith.minsi %26, %c511_i32_12 : i32
    %c0_i32_13 = arith.constant 0 : i32
    %28 = tpu.memref_slice %arg3[%27, %1] : memref<512x512xf32, #tpu.memory_space<any>> -> memref<1x256xf32, #tpu.memory_space<any>>
    %c2_i32_14 = arith.constant 2 : i32
    %c0_i32_15 = arith.constant 0 : i32
    %29 = tpu.memref_slice %arg8[%c2_i32_14, %c0_i32_15] : memref<48x256xf32, #tpu.memory_space<vmem>> -> memref<1x256xf32, #tpu.memory_space<vmem>>
    %30 = tpu.memref_slice %arg9[%c0_i32_13] : memref<1x!tpu.dma_semaphore, #tpu.memory_space<semaphore_mem>> -> memref<1x!tpu.dma_semaphore, #tpu.memory_space<semaphore_mem>>
    %31 = tpu.memref_squeeze %30 : memref<1x!tpu.dma_semaphore, #tpu.memory_space<semaphore_mem>> -> memref<!tpu.dma_semaphore, #tpu.memory_space<semaphore_mem>>
    tpu.enqueue_dma source(%28 : memref<1x256xf32, #tpu.memory_space<any>>) target(%29 : memref<1x256xf32, #tpu.memory_space<vmem>>) target_semaphore(%31 : memref<!tpu.dma_semaphore, #tpu.memory_space<semaphore_mem>>)
    %c48_i32_16 = arith.constant 48 : i32
    %32 = arith.muli %arg0, %c48_i32_16 : i32
    %c3_i32 = arith.constant 3 : i32
    %33 = arith.addi %32, %c3_i32 : i32
    %34 = arith.index_cast %33 : i32 to index
    %35 = memref.load %arg2[%34] : memref<48xi32, #tpu.memory_space<smem>>
    %c0_i32_17 = arith.constant 0 : i32
    %36 = arith.maxsi %35, %c0_i32_17 : i32
    %c511_i32_18 = arith.constant 511 : i32
    %37 = arith.minsi %36, %c511_i32_18 : i32
    %c0_i32_19 = arith.constant 0 : i32
    %38 = tpu.memref_slice %arg3[%37, %1] : memref<512x512xf32, #tpu.memory_space<any>> -> memref<1x256xf32, #tpu.memory_space<any>>
    %c3_i32_20 = arith.constant 3 : i32
    %c0_i32_21 = arith.constant 0 : i32
    %39 = tpu.memref_slice %arg8[%c3_i32_20, %c0_i32_21] : memref<48x256xf32, #tpu.memory_space<vmem>> -> memref<1x256xf32, #tpu.memory_space<vmem>>
    %40 = tpu.memref_slice %arg9[%c0_i32_19] : memref<1x!tpu.dma_semaphore, #tpu.memory_space<semaphore_mem>> -> memref<1x!tpu.dma_semaphore, #tpu.memory_space<semaphore_mem>>
    %41 = tpu.memref_squeeze %40 : memref<1x!tpu.dma_semaphore, #tpu.memory_space<semaphore_mem>> -> memref<!tpu.dma_semaphore, #tpu.memory_space<semaphore_mem>>
    tpu.enqueue_dma source(%38 : memref<1x256xf32, #tpu.memory_space<any>>) target(%39 : memref<1x256xf32, #tpu.memory_space<vmem>>) target_semaphore(%41 : memref<!tpu.dma_semaphore, #tpu.memory_space<semaphore_mem>>)
    %c48_i32_22 = arith.constant 48 : i32
    %42 = arith.muli %arg0, %c48_i32_22 : i32
    %c4_i32 = arith.constant 4 : i32
    %43 = arith.addi %42, %c4_i32 : i32
    %44 = arith.index_cast %43 : i32 to index
    %45 = memref.load %arg2[%44] : memref<48xi32, #tpu.memory_space<smem>>
    %c0_i32_23 = arith.constant 0 : i32
    %46 = arith.maxsi %45, %c0_i32_23 : i32
    %c511_i32_24 = arith.constant 511 : i32
    %47 = arith.minsi %46, %c511_i32_24 : i32
    %c0_i32_25 = arith.constant 0 : i32
    %48 = tpu.memref_slice %arg3[%47, %1] : memref<512x512xf32, #tpu.memory_space<any>> -> memref<1x256xf32, #tpu.memory_space<any>>
    %c4_i32_26 = arith.constant 4 : i32
    %c0_i32_27 = arith.constant 0 : i32
    %49 = tpu.memref_slice %arg8[%c4_i32_26, %c0_i32_27] : memref<48x256xf32, #tpu.memory_space<vmem>> -> memref<1x256xf32, #tpu.memory_space<vmem>>
    %50 = tpu.memref_slice %arg9[%c0_i32_25] : memref<1x!tpu.dma_semaphore, #tpu.memory_space<semaphore_mem>> -> memref<1x!tpu.dma_semaphore, #tpu.memory_space<semaphore_mem>>
    %51 = tpu.memref_squeeze %50 : memref<1x!tpu.dma_semaphore, #tpu.memory_space<semaphore_mem>> -> memref<!tpu.dma_semaphore, #tpu.memory_space<semaphore_mem>>
    tpu.enqueue_dma source(%48 : memref<1x256xf32, #tpu.memory_space<any>>) target(%49 : memref<1x256xf32, #tpu.memory_space<vmem>>) target_semaphore(%51 : memref<!tpu.dma_semaphore, #tpu.memory_space<semaphore_mem>>)
    %c48_i32_28 = arith.constant 48 : i32
    %52 = arith.muli %arg0, %c48_i32_28 : i32
    %c5_i32 = arith.constant 5 : i32
    %53 = arith.addi %52, %c5_i32 : i32
    %54 = arith.index_cast %53 : i32 to index
    %55 = memref.load %arg2[%54] : memref<48xi32, #tpu.memory_space<smem>>
    %c0_i32_29 = arith.constant 0 : i32
    %56 = arith.maxsi %55, %c0_i32_29 : i32
    %c511_i32_30 = arith.constant 511 : i32
    %57 = arith.minsi %56, %c511_i32_30 : i32
    %c0_i32_31 = arith.constant 0 : i32
    %58 = tpu.memref_slice %arg3[%57, %1] : memref<512x512xf32, #tpu.memory_space<any>> -> memref<1x256xf32, #tpu.memory_space<any>>
    %c5_i32_32 = arith.constant 5 : i32
    %c0_i32_33 = arith.constant 0 : i32
    %59 = tpu.memref_slice %arg8[%c5_i32_32, %c0_i32_33] : memref<48x256xf32, #tpu.memory_space<vmem>> -> memref<1x256xf32, #tpu.memory_space<vmem>>
    %60 = tpu.memref_slice %arg9[%c0_i32_31] : memref<1x!tpu.dma_semaphore, #tpu.memory_space<semaphore_mem>> -> memref<1x!tpu.dma_semaphore, #tpu.memory_space<semaphore_mem>>
    %61 = tpu.memref_squeeze %60 : memref<1x!tpu.dma_semaphore, #tpu.memory_space<semaphore_mem>> -> memref<!tpu.dma_semaphore, #tpu.memory_space<semaphore_mem>>
    tpu.enqueue_dma source(%58 : memref<1x256xf32, #tpu.memory_space<any>>) target(%59 : memref<1x256xf32, #tpu.memory_space<vmem>>) target_semaphore(%61 : memref<!tpu.dma_semaphore, #tpu.memory_space<semaphore_mem>>)
    %c48_i32_34 = arith.constant 48 : i32
    %62 = arith.muli %arg0, %c48_i32_34 : i32
    %c6_i32 = arith.constant 6 : i32
    %63 = arith.addi %62, %c6_i32 : i32
    %64 = arith.index_cast %63 : i32 to index
    %65 = memref.load %arg2[%64] : memref<48xi32, #tpu.memory_space<smem>>
    %c0_i32_35 = arith.constant 0 : i32
    %66 = arith.maxsi %65, %c0_i32_35 : i32
    %c511_i32_36 = arith.constant 511 : i32
    %67 = arith.minsi %66, %c511_i32_36 : i32
    %c0_i32_37 = arith.constant 0 : i32
    %68 = tpu.memref_slice %arg3[%67, %1] : memref<512x512xf32, #tpu.memory_space<any>> -> memref<1x256xf32, #tpu.memory_space<any>>
    %c6_i32_38 = arith.constant 6 : i32
    %c0_i32_39 = arith.constant 0 : i32
    %69 = tpu.memref_slice %arg8[%c6_i32_38, %c0_i32_39] : memref<48x256xf32, #tpu.memory_space<vmem>> -> memref<1x256xf32, #tpu.memory_space<vmem>>
    %70 = tpu.memref_slice %arg9[%c0_i32_37] : memref<1x!tpu.dma_semaphore, #tpu.memory_space<semaphore_mem>> -> memref<1x!tpu.dma_semaphore, #tpu.memory_space<semaphore_mem>>
    %71 = tpu.memref_squeeze %70 : memref<1x!tpu.dma_semaphore, #tpu.memory_space<semaphore_mem>> -> memref<!tpu.dma_semaphore, #tpu.memory_space<semaphore_mem>>
    tpu.enqueue_dma source(%68 : memref<1x256xf32, #tpu.memory_space<any>>) target(%69 : memref<1x256xf32, #tpu.memory_space<vmem>>) target_semaphore(%71 : memref<!tpu.dma_semaphore, #tpu.memory_space<semaphore_mem>>)
    %c48_i32_40 = arith.constant 48 : i32
    %72 = arith.muli %arg0, %c48_i32_40 : i32
    %c7_i32 = arith.constant 7 : i32
    %73 = arith.addi %72, %c7_i32 : i32
    %74 = arith.index_cast %73 : i32 to index
    %75 = memref.load %arg2[%74] : memref<48xi32, #tpu.memory_space<smem>>
    %c0_i32_41 = arith.constant 0 : i32
    %76 = arith.maxsi %75, %c0_i32_41 : i32
    %c511_i32_42 = arith.constant 511 : i32
    %77 = arith.minsi %76, %c511_i32_42 : i32
    %c0_i32_43 = arith.constant 0 : i32
    %78 = tpu.memref_slice %arg3[%77, %1] : memref<512x512xf32, #tpu.memory_space<any>> -> memref<1x256xf32, #tpu.memory_space<any>>
    %c7_i32_44 = arith.constant 7 : i32
    %c0_i32_45 = arith.constant 0 : i32
    %79 = tpu.memref_slice %arg8[%c7_i32_44, %c0_i32_45] : memref<48x256xf32, #tpu.memory_space<vmem>> -> memref<1x256xf32, #tpu.memory_space<vmem>>
    %80 = tpu.memref_slice %arg9[%c0_i32_43] : memref<1x!tpu.dma_semaphore, #tpu.memory_space<semaphore_mem>> -> memref<1x!tpu.dma_semaphore, #tpu.memory_space<semaphore_mem>>
    %81 = tpu.memref_squeeze %80 : memref<1x!tpu.dma_semaphore, #tpu.memory_space<semaphore_mem>> -> memref<!tpu.dma_semaphore, #tpu.memory_space<semaphore_mem>>
    tpu.enqueue_dma source(%78 : memref<1x256xf32, #tpu.memory_space<any>>) target(%79 : memref<1x256xf32, #tpu.memory_space<vmem>>) target_semaphore(%81 : memref<!tpu.dma_semaphore, #tpu.memory_space<semaphore_mem>>)
    %c48_i32_46 = arith.constant 48 : i32
    %82 = arith.muli %arg0, %c48_i32_46 : i32
    %c8_i32 = arith.constant 8 : i32
    %83 = arith.addi %82, %c8_i32 : i32
    %84 = arith.index_cast %83 : i32 to index
    %85 = memref.load %arg2[%84] : memref<48xi32, #tpu.memory_space<smem>>
    %c0_i32_47 = arith.constant 0 : i32
    %86 = arith.maxsi %85, %c0_i32_47 : i32
    %c511_i32_48 = arith.constant 511 : i32
    %87 = arith.minsi %86, %c511_i32_48 : i32
    %c0_i32_49 = arith.constant 0 : i32
    %88 = tpu.memref_slice %arg3[%87, %1] : memref<512x512xf32, #tpu.memory_space<any>> -> memref<1x256xf32, #tpu.memory_space<any>>
    %c8_i32_50 = arith.constant 8 : i32
    %c0_i32_51 = arith.constant 0 : i32
    %89 = tpu.memref_slice %arg8[%c8_i32_50, %c0_i32_51] : memref<48x256xf32, #tpu.memory_space<vmem>> -> memref<1x256xf32, #tpu.memory_space<vmem>>
    %90 = tpu.memref_slice %arg9[%c0_i32_49] : memref<1x!tpu.dma_semaphore, #tpu.memory_space<semaphore_mem>> -> memref<1x!tpu.dma_semaphore, #tpu.memory_space<semaphore_mem>>
    %91 = tpu.memref_squeeze %90 : memref<1x!tpu.dma_semaphore, #tpu.memory_space<semaphore_mem>> -> memref<!tpu.dma_semaphore, #tpu.memory_space<semaphore_mem>>
    tpu.enqueue_dma source(%88 : memref<1x256xf32, #tpu.memory_space<any>>) target(%89 : memref<1x256xf32, #tpu.memory_space<vmem>>) target_semaphore(%91 : memref<!tpu.dma_semaphore, #tpu.memory_space<semaphore_mem>>)
    %c48_i32_52 = arith.constant 48 : i32
    %92 = arith.muli %arg0, %c48_i32_52 : i32
    %c9_i32 = arith.constant 9 : i32
    %93 = arith.addi %92, %c9_i32 : i32
    %94 = arith.index_cast %93 : i32 to index
    %95 = memref.load %arg2[%94] : memref<48xi32, #tpu.memory_space<smem>>
    %c0_i32_53 = arith.constant 0 : i32
    %96 = arith.maxsi %95, %c0_i32_53 : i32
    %c511_i32_54 = arith.constant 511 : i32
    %97 = arith.minsi %96, %c511_i32_54 : i32
    %c0_i32_55 = arith.constant 0 : i32
    %98 = tpu.memref_slice %arg3[%97, %1] : memref<512x512xf32, #tpu.memory_space<any>> -> memref<1x256xf32, #tpu.memory_space<any>>
    %c9_i32_56 = arith.constant 9 : i32
    %c0_i32_57 = arith.constant 0 : i32
    %99 = tpu.memref_slice %arg8[%c9_i32_56, %c0_i32_57] : memref<48x256xf32, #tpu.memory_space<vmem>> -> memref<1x256xf32, #tpu.memory_space<vmem>>
    %100 = tpu.memref_slice %arg9[%c0_i32_55] : memref<1x!tpu.dma_semaphore, #tpu.memory_space<semaphore_mem>> -> memref<1x!tpu.dma_semaphore, #tpu.memory_space<semaphore_mem>>
    %101 = tpu.memref_squeeze %100 : memref<1x!tpu.dma_semaphore, #tpu.memory_space<semaphore_mem>> -> memref<!tpu.dma_semaphore, #tpu.memory_space<semaphore_mem>>
    tpu.enqueue_dma source(%98 : memref<1x256xf32, #tpu.memory_space<any>>) target(%99 : memref<1x256xf32, #tpu.memory_space<vmem>>) target_semaphore(%101 : memref<!tpu.dma_semaphore, #tpu.memory_space<semaphore_mem>>)
    %c48_i32_58 = arith.constant 48 : i32
    %102 = arith.muli %arg0, %c48_i32_58 : i32
    %c10_i32 = arith.constant 10 : i32
    %103 = arith.addi %102, %c10_i32 : i32
    %104 = arith.index_cast %103 : i32 to index
    %105 = memref.load %arg2[%104] : memref<48xi32, #tpu.memory_space<smem>>
    %c0_i32_59 = arith.constant 0 : i32
    %106 = arith.maxsi %105, %c0_i32_59 : i32
    %c511_i32_60 = arith.constant 511 : i32
    %107 = arith.minsi %106, %c511_i32_60 : i32
    %c0_i32_61 = arith.constant 0 : i32
    %108 = tpu.memref_slice %arg3[%107, %1] : memref<512x512xf32, #tpu.memory_space<any>> -> memref<1x256xf32, #tpu.memory_space<any>>
    %c10_i32_62 = arith.constant 10 : i32
    %c0_i32_63 = arith.constant 0 : i32
    %109 = tpu.memref_slice %arg8[%c10_i32_62, %c0_i32_63] : memref<48x256xf32, #tpu.memory_space<vmem>> -> memref<1x256xf32, #tpu.memory_space<vmem>>
    %110 = tpu.memref_slice %arg9[%c0_i32_61] : memref<1x!tpu.dma_semaphore, #tpu.memory_space<semaphore_mem>> -> memref<1x!tpu.dma_semaphore, #tpu.memory_space<semaphore_mem>>
    %111 = tpu.memref_squeeze %110 : memref<1x!tpu.dma_semaphore, #tpu.memory_space<semaphore_mem>> -> memref<!tpu.dma_semaphore, #tpu.memory_space<semaphore_mem>>
    tpu.enqueue_dma source(%108 : memref<1x256xf32, #tpu.memory_space<any>>) target(%109 : memref<1x256xf32, #tpu.memory_space<vmem>>) target_semaphore(%111 : memref<!tpu.dma_semaphore, #tpu.memory_space<semaphore_mem>>)
    %c48_i32_64 = arith.constant 48 : i32
    %112 = arith.muli %arg0, %c48_i32_64 : i32
    %c11_i32 = arith.constant 11 : i32
    %113 = arith.addi %112, %c11_i32 : i32
    %114 = arith.index_cast %113 : i32 to index
    %115 = memref.load %arg2[%114] : memref<48xi32, #tpu.memory_space<smem>>
    %c0_i32_65 = arith.constant 0 : i32
    %116 = arith.maxsi %115, %c0_i32_65 : i32
    %c511_i32_66 = arith.constant 511 : i32
    %117 = arith.minsi %116, %c511_i32_66 : i32
    %c0_i32_67 = arith.constant 0 : i32
    %118 = tpu.memref_slice %arg3[%117, %1] : memref<512x512xf32, #tpu.memory_space<any>> -> memref<1x256xf32, #tpu.memory_space<any>>
    %c11_i32_68 = arith.constant 11 : i32
    %c0_i32_69 = arith.constant 0 : i32
    %119 = tpu.memref_slice %arg8[%c11_i32_68, %c0_i32_69] : memref<48x256xf32, #tpu.memory_space<vmem>> -> memref<1x256xf32, #tpu.memory_space<vmem>>
    %120 = tpu.memref_slice %arg9[%c0_i32_67] : memref<1x!tpu.dma_semaphore, #tpu.memory_space<semaphore_mem>> -> memref<1x!tpu.dma_semaphore, #tpu.memory_space<semaphore_mem>>
    %121 = tpu.memref_squeeze %120 : memref<1x!tpu.dma_semaphore, #tpu.memory_space<semaphore_mem>> -> memref<!tpu.dma_semaphore, #tpu.memory_space<semaphore_mem>>
    tpu.enqueue_dma source(%118 : memref<1x256xf32, #tpu.memory_space<any>>) target(%119 : memref<1x256xf32, #tpu.memory_space<vmem>>) target_semaphore(%121 : memref<!tpu.dma_semaphore, #tpu.memory_space<semaphore_mem>>)
    %c48_i32_70 = arith.constant 48 : i32
    %122 = arith.muli %arg0, %c48_i32_70 : i32
    %c12_i32 = arith.constant 12 : i32
    %123 = arith.addi %122, %c12_i32 : i32
    %124 = arith.index_cast %123 : i32 to index
    %125 = memref.load %arg2[%124] : memref<48xi32, #tpu.memory_space<smem>>
    %c0_i32_71 = arith.constant 0 : i32
    %126 = arith.maxsi %125, %c0_i32_71 : i32
    %c511_i32_72 = arith.constant 511 : i32
    %127 = arith.minsi %126, %c511_i32_72 : i32
    %c0_i32_73 = arith.constant 0 : i32
    %128 = tpu.memref_slice %arg3[%127, %1] : memref<512x512xf32, #tpu.memory_space<any>> -> memref<1x256xf32, #tpu.memory_space<any>>
    %c12_i32_74 = arith.constant 12 : i32
    %c0_i32_75 = arith.constant 0 : i32
    %129 = tpu.memref_slice %arg8[%c12_i32_74, %c0_i32_75] : memref<48x256xf32, #tpu.memory_space<vmem>> -> memref<1x256xf32, #tpu.memory_space<vmem>>
    %130 = tpu.memref_slice %arg9[%c0_i32_73] : memref<1x!tpu.dma_semaphore, #tpu.memory_space<semaphore_mem>> -> memref<1x!tpu.dma_semaphore, #tpu.memory_space<semaphore_mem>>
    %131 = tpu.memref_squeeze %130 : memref<1x!tpu.dma_semaphore, #tpu.memory_space<semaphore_mem>> -> memref<!tpu.dma_semaphore, #tpu.memory_space<semaphore_mem>>
    tpu.enqueue_dma source(%128 : memref<1x256xf32, #tpu.memory_space<any>>) target(%129 : memref<1x256xf32, #tpu.memory_space<vmem>>) target_semaphore(%131 : memref<!tpu.dma_semaphore, #tpu.memory_space<semaphore_mem>>)
    %c48_i32_76 = arith.constant 48 : i32
    %132 = arith.muli %arg0, %c48_i32_76 : i32
    %c13_i32 = arith.constant 13 : i32
    %133 = arith.addi %132, %c13_i32 : i32
    %134 = arith.index_cast %133 : i32 to index
    %135 = memref.load %arg2[%134] : memref<48xi32, #tpu.memory_space<smem>>
    %c0_i32_77 = arith.constant 0 : i32
    %136 = arith.maxsi %135, %c0_i32_77 : i32
    %c511_i32_78 = arith.constant 511 : i32
    %137 = arith.minsi %136, %c511_i32_78 : i32
    %c0_i32_79 = arith.constant 0 : i32
    %138 = tpu.memref_slice %arg3[%137, %1] : memref<512x512xf32, #tpu.memory_space<any>> -> memref<1x256xf32, #tpu.memory_space<any>>
    %c13_i32_80 = arith.constant 13 : i32
    %c0_i32_81 = arith.constant 0 : i32
    %139 = tpu.memref_slice %arg8[%c13_i32_80, %c0_i32_81] : memref<48x256xf32, #tpu.memory_space<vmem>> -> memref<1x256xf32, #tpu.memory_space<vmem>>
    %140 = tpu.memref_slice %arg9[%c0_i32_79] : memref<1x!tpu.dma_semaphore, #tpu.memory_space<semaphore_mem>> -> memref<1x!tpu.dma_semaphore, #tpu.memory_space<semaphore_mem>>
    %141 = tpu.memref_squeeze %140 : memref<1x!tpu.dma_semaphore, #tpu.memory_space<semaphore_mem>> -> memref<!tpu.dma_semaphore, #tpu.memory_space<semaphore_mem>>
    tpu.enqueue_dma source(%138 : memref<1x256xf32, #tpu.memory_space<any>>) target(%139 : memref<1x256xf32, #tpu.memory_space<vmem>>) target_semaphore(%141 : memref<!tpu.dma_semaphore, #tpu.memory_space<semaphore_mem>>)
    %c48_i32_82 = arith.constant 48 : i32
    %142 = arith.muli %arg0, %c48_i32_82 : i32
    %c14_i32 = arith.constant 14 : i32
    %143 = arith.addi %142, %c14_i32 : i32
    %144 = arith.index_cast %143 : i32 to index
    %145 = memref.load %arg2[%144] : memref<48xi32, #tpu.memory_space<smem>>
    %c0_i32_83 = arith.constant 0 : i32
    %146 = arith.maxsi %145, %c0_i32_83 : i32
    %c511_i32_84 = arith.constant 511 : i32
    %147 = arith.minsi %146, %c511_i32_84 : i32
    %c0_i32_85 = arith.constant 0 : i32
    %148 = tpu.memref_slice %arg3[%147, %1] : memref<512x512xf32, #tpu.memory_space<any>> -> memref<1x256xf32, #tpu.memory_space<any>>
    %c14_i32_86 = arith.constant 14 : i32
    %c0_i32_87 = arith.constant 0 : i32
    %149 = tpu.memref_slice %arg8[%c14_i32_86, %c0_i32_87] : memref<48x256xf32, #tpu.memory_space<vmem>> -> memref<1x256xf32, #tpu.memory_space<vmem>>
    %150 = tpu.memref_slice %arg9[%c0_i32_85] : memref<1x!tpu.dma_semaphore, #tpu.memory_space<semaphore_mem>> -> memref<1x!tpu.dma_semaphore, #tpu.memory_space<semaphore_mem>>
    %151 = tpu.memref_squeeze %150 : memref<1x!tpu.dma_semaphore, #tpu.memory_space<semaphore_mem>> -> memref<!tpu.dma_semaphore, #tpu.memory_space<semaphore_mem>>
    tpu.enqueue_dma source(%148 : memref<1x256xf32, #tpu.memory_space<any>>) target(%149 : memref<1x256xf32, #tpu.memory_space<vmem>>) target_semaphore(%151 : memref<!tpu.dma_semaphore, #tpu.memory_space<semaphore_mem>>)
    %c48_i32_88 = arith.constant 48 : i32
    %152 = arith.muli %arg0, %c48_i32_88 : i32
    %c15_i32 = arith.constant 15 : i32
    %153 = arith.addi %152, %c15_i32 : i32
    %154 = arith.index_cast %153 : i32 to index
    %155 = memref.load %arg2[%154] : memref<48xi32, #tpu.memory_space<smem>>
    %c0_i32_89 = arith.constant 0 : i32
    %156 = arith.maxsi %155, %c0_i32_89 : i32
    %c511_i32_90 = arith.constant 511 : i32
    %157 = arith.minsi %156, %c511_i32_90 : i32
    %c0_i32_91 = arith.constant 0 : i32
    %158 = tpu.memref_slice %arg3[%157, %1] : memref<512x512xf32, #tpu.memory_space<any>> -> memref<1x256xf32, #tpu.memory_space<any>>
    %c15_i32_92 = arith.constant 15 : i32
    %c0_i32_93 = arith.constant 0 : i32
    %159 = tpu.memref_slice %arg8[%c15_i32_92, %c0_i32_93] : memref<48x256xf32, #tpu.memory_space<vmem>> -> memref<1x256xf32, #tpu.memory_space<vmem>>
    %160 = tpu.memref_slice %arg9[%c0_i32_91] : memref<1x!tpu.dma_semaphore, #tpu.memory_space<semaphore_mem>> -> memref<1x!tpu.dma_semaphore, #tpu.memory_space<semaphore_mem>>
    %161 = tpu.memref_squeeze %160 : memref<1x!tpu.dma_semaphore, #tpu.memory_space<semaphore_mem>> -> memref<!tpu.dma_semaphore, #tpu.memory_space<semaphore_mem>>
    tpu.enqueue_dma source(%158 : memref<1x256xf32, #tpu.memory_space<any>>) target(%159 : memref<1x256xf32, #tpu.memory_space<vmem>>) target_semaphore(%161 : memref<!tpu.dma_semaphore, #tpu.memory_space<semaphore_mem>>)
    %c48_i32_94 = arith.constant 48 : i32
    %162 = arith.muli %arg0, %c48_i32_94 : i32
    %c16_i32 = arith.constant 16 : i32
    %163 = arith.addi %162, %c16_i32 : i32
    %164 = arith.index_cast %163 : i32 to index
    %165 = memref.load %arg2[%164] : memref<48xi32, #tpu.memory_space<smem>>
    %c0_i32_95 = arith.constant 0 : i32
    %166 = arith.maxsi %165, %c0_i32_95 : i32
    %c511_i32_96 = arith.constant 511 : i32
    %167 = arith.minsi %166, %c511_i32_96 : i32
    %c0_i32_97 = arith.constant 0 : i32
    %168 = tpu.memref_slice %arg3[%167, %1] : memref<512x512xf32, #tpu.memory_space<any>> -> memref<1x256xf32, #tpu.memory_space<any>>
    %c16_i32_98 = arith.constant 16 : i32
    %c0_i32_99 = arith.constant 0 : i32
    %169 = tpu.memref_slice %arg8[%c16_i32_98, %c0_i32_99] : memref<48x256xf32, #tpu.memory_space<vmem>> -> memref<1x256xf32, #tpu.memory_space<vmem>>
    %170 = tpu.memref_slice %arg9[%c0_i32_97] : memref<1x!tpu.dma_semaphore, #tpu.memory_space<semaphore_mem>> -> memref<1x!tpu.dma_semaphore, #tpu.memory_space<semaphore_mem>>
    %171 = tpu.memref_squeeze %170 : memref<1x!tpu.dma_semaphore, #tpu.memory_space<semaphore_mem>> -> memref<!tpu.dma_semaphore, #tpu.memory_space<semaphore_mem>>
    tpu.enqueue_dma source(%168 : memref<1x256xf32, #tpu.memory_space<any>>) target(%169 : memref<1x256xf32, #tpu.memory_space<vmem>>) target_semaphore(%171 : memref<!tpu.dma_semaphore, #tpu.memory_space<semaphore_mem>>)
    %c48_i32_100 = arith.constant 48 : i32
    %172 = arith.muli %arg0, %c48_i32_100 : i32
    %c17_i32 = arith.constant 17 : i32
    %173 = arith.addi %172, %c17_i32 : i32
    %174 = arith.index_cast %173 : i32 to index
    %175 = memref.load %arg2[%174] : memref<48xi32, #tpu.memory_space<smem>>
    %c0_i32_101 = arith.constant 0 : i32
    %176 = arith.maxsi %175, %c0_i32_101 : i32
    %c511_i32_102 = arith.constant 511 : i32
    %177 = arith.minsi %176, %c511_i32_102 : i32
    %c0_i32_103 = arith.constant 0 : i32
    %178 = tpu.memref_slice %arg3[%177, %1] : memref<512x512xf32, #tpu.memory_space<any>> -> memref<1x256xf32, #tpu.memory_space<any>>
    %c17_i32_104 = arith.constant 17 : i32
    %c0_i32_105 = arith.constant 0 : i32
    %179 = tpu.memref_slice %arg8[%c17_i32_104, %c0_i32_105] : memref<48x256xf32, #tpu.memory_space<vmem>> -> memref<1x256xf32, #tpu.memory_space<vmem>>
    %180 = tpu.memref_slice %arg9[%c0_i32_103] : memref<1x!tpu.dma_semaphore, #tpu.memory_space<semaphore_mem>> -> memref<1x!tpu.dma_semaphore, #tpu.memory_space<semaphore_mem>>
    %181 = tpu.memref_squeeze %180 : memref<1x!tpu.dma_semaphore, #tpu.memory_space<semaphore_mem>> -> memref<!tpu.dma_semaphore, #tpu.memory_space<semaphore_mem>>
    tpu.enqueue_dma source(%178 : memref<1x256xf32, #tpu.memory_space<any>>) target(%179 : memref<1x256xf32, #tpu.memory_space<vmem>>) target_semaphore(%181 : memref<!tpu.dma_semaphore, #tpu.memory_space<semaphore_mem>>)
    %c48_i32_106 = arith.constant 48 : i32
    %182 = arith.muli %arg0, %c48_i32_106 : i32
    %c18_i32 = arith.constant 18 : i32
    %183 = arith.addi %182, %c18_i32 : i32
    %184 = arith.index_cast %183 : i32 to index
    %185 = memref.load %arg2[%184] : memref<48xi32, #tpu.memory_space<smem>>
    %c0_i32_107 = arith.constant 0 : i32
    %186 = arith.maxsi %185, %c0_i32_107 : i32
    %c511_i32_108 = arith.constant 511 : i32
    %187 = arith.minsi %186, %c511_i32_108 : i32
    %c0_i32_109 = arith.constant 0 : i32
    %188 = tpu.memref_slice %arg3[%187, %1] : memref<512x512xf32, #tpu.memory_space<any>> -> memref<1x256xf32, #tpu.memory_space<any>>
    %c18_i32_110 = arith.constant 18 : i32
    %c0_i32_111 = arith.constant 0 : i32
    %189 = tpu.memref_slice %arg8[%c18_i32_110, %c0_i32_111] : memref<48x256xf32, #tpu.memory_space<vmem>> -> memref<1x256xf32, #tpu.memory_space<vmem>>
    %190 = tpu.memref_slice %arg9[%c0_i32_109] : memref<1x!tpu.dma_semaphore, #tpu.memory_space<semaphore_mem>> -> memref<1x!tpu.dma_semaphore, #tpu.memory_space<semaphore_mem>>
    %191 = tpu.memref_squeeze %190 : memref<1x!tpu.dma_semaphore, #tpu.memory_space<semaphore_mem>> -> memref<!tpu.dma_semaphore, #tpu.memory_space<semaphore_mem>>
    tpu.enqueue_dma source(%188 : memref<1x256xf32, #tpu.memory_space<any>>) target(%189 : memref<1x256xf32, #tpu.memory_space<vmem>>) target_semaphore(%191 : memref<!tpu.dma_semaphore, #tpu.memory_space<semaphore_mem>>)
    %c48_i32_112 = arith.constant 48 : i32
    %192 = arith.muli %arg0, %c48_i32_112 : i32
    %c19_i32 = arith.constant 19 : i32
    %193 = arith.addi %192, %c19_i32 : i32
    %194 = arith.index_cast %193 : i32 to index
    %195 = memref.load %arg2[%194] : memref<48xi32, #tpu.memory_space<smem>>
    %c0_i32_113 = arith.constant 0 : i32
    %196 = arith.maxsi %195, %c0_i32_113 : i32
    %c511_i32_114 = arith.constant 511 : i32
    %197 = arith.minsi %196, %c511_i32_114 : i32
    %c0_i32_115 = arith.constant 0 : i32
    %198 = tpu.memref_slice %arg3[%197, %1] : memref<512x512xf32, #tpu.memory_space<any>> -> memref<1x256xf32, #tpu.memory_space<any>>
    %c19_i32_116 = arith.constant 19 : i32
    %c0_i32_117 = arith.constant 0 : i32
    %199 = tpu.memref_slice %arg8[%c19_i32_116, %c0_i32_117] : memref<48x256xf32, #tpu.memory_space<vmem>> -> memref<1x256xf32, #tpu.memory_space<vmem>>
    %200 = tpu.memref_slice %arg9[%c0_i32_115] : memref<1x!tpu.dma_semaphore, #tpu.memory_space<semaphore_mem>> -> memref<1x!tpu.dma_semaphore, #tpu.memory_space<semaphore_mem>>
    %201 = tpu.memref_squeeze %200 : memref<1x!tpu.dma_semaphore, #tpu.memory_space<semaphore_mem>> -> memref<!tpu.dma_semaphore, #tpu.memory_space<semaphore_mem>>
    tpu.enqueue_dma source(%198 : memref<1x256xf32, #tpu.memory_space<any>>) target(%199 : memref<1x256xf32, #tpu.memory_space<vmem>>) target_semaphore(%201 : memref<!tpu.dma_semaphore, #tpu.memory_space<semaphore_mem>>)
    %c48_i32_118 = arith.constant 48 : i32
    %202 = arith.muli %arg0, %c48_i32_118 : i32
    %c20_i32 = arith.constant 20 : i32
    %203 = arith.addi %202, %c20_i32 : i32
    %204 = arith.index_cast %203 : i32 to index
    %205 = memref.load %arg2[%204] : memref<48xi32, #tpu.memory_space<smem>>
    %c0_i32_119 = arith.constant 0 : i32
    %206 = arith.maxsi %205, %c0_i32_119 : i32
    %c511_i32_120 = arith.constant 511 : i32
    %207 = arith.minsi %206, %c511_i32_120 : i32
    %c0_i32_121 = arith.constant 0 : i32
    %208 = tpu.memref_slice %arg3[%207, %1] : memref<512x512xf32, #tpu.memory_space<any>> -> memref<1x256xf32, #tpu.memory_space<any>>
    %c20_i32_122 = arith.constant 20 : i32
    %c0_i32_123 = arith.constant 0 : i32
    %209 = tpu.memref_slice %arg8[%c20_i32_122, %c0_i32_123] : memref<48x256xf32, #tpu.memory_space<vmem>> -> memref<1x256xf32, #tpu.memory_space<vmem>>
    %210 = tpu.memref_slice %arg9[%c0_i32_121] : memref<1x!tpu.dma_semaphore, #tpu.memory_space<semaphore_mem>> -> memref<1x!tpu.dma_semaphore, #tpu.memory_space<semaphore_mem>>
    %211 = tpu.memref_squeeze %210 : memref<1x!tpu.dma_semaphore, #tpu.memory_space<semaphore_mem>> -> memref<!tpu.dma_semaphore, #tpu.memory_space<semaphore_mem>>
    tpu.enqueue_dma source(%208 : memref<1x256xf32, #tpu.memory_space<any>>) target(%209 : memref<1x256xf32, #tpu.memory_space<vmem>>) target_semaphore(%211 : memref<!tpu.dma_semaphore, #tpu.memory_space<semaphore_mem>>)
    %c48_i32_124 = arith.constant 48 : i32
    %212 = arith.muli %arg0, %c48_i32_124 : i32
    %c21_i32 = arith.constant 21 : i32
    %213 = arith.addi %212, %c21_i32 : i32
    %214 = arith.index_cast %213 : i32 to index
    %215 = memref.load %arg2[%214] : memref<48xi32, #tpu.memory_space<smem>>
    %c0_i32_125 = arith.constant 0 : i32
    %216 = arith.maxsi %215, %c0_i32_125 : i32
    %c511_i32_126 = arith.constant 511 : i32
    %217 = arith.minsi %216, %c511_i32_126 : i32
    %c0_i32_127 = arith.constant 0 : i32
    %218 = tpu.memref_slice %arg3[%217, %1] : memref<512x512xf32, #tpu.memory_space<any>> -> memref<1x256xf32, #tpu.memory_space<any>>
    %c21_i32_128 = arith.constant 21 : i32
    %c0_i32_129 = arith.constant 0 : i32
    %219 = tpu.memref_slice %arg8[%c21_i32_128, %c0_i32_129] : memref<48x256xf32, #tpu.memory_space<vmem>> -> memref<1x256xf32, #tpu.memory_space<vmem>>
    %220 = tpu.memref_slice %arg9[%c0_i32_127] : memref<1x!tpu.dma_semaphore, #tpu.memory_space<semaphore_mem>> -> memref<1x!tpu.dma_semaphore, #tpu.memory_space<semaphore_mem>>
    %221 = tpu.memref_squeeze %220 : memref<1x!tpu.dma_semaphore, #tpu.memory_space<semaphore_mem>> -> memref<!tpu.dma_semaphore, #tpu.memory_space<semaphore_mem>>
    tpu.enqueue_dma source(%218 : memref<1x256xf32, #tpu.memory_space<any>>) target(%219 : memref<1x256xf32, #tpu.memory_space<vmem>>) target_semaphore(%221 : memref<!tpu.dma_semaphore, #tpu.memory_space<semaphore_mem>>)
    %c48_i32_130 = arith.constant 48 : i32
    %222 = arith.muli %arg0, %c48_i32_130 : i32
    %c22_i32 = arith.constant 22 : i32
    %223 = arith.addi %222, %c22_i32 : i32
    %224 = arith.index_cast %223 : i32 to index
    %225 = memref.load %arg2[%224] : memref<48xi32, #tpu.memory_space<smem>>
    %c0_i32_131 = arith.constant 0 : i32
    %226 = arith.maxsi %225, %c0_i32_131 : i32
    %c511_i32_132 = arith.constant 511 : i32
    %227 = arith.minsi %226, %c511_i32_132 : i32
    %c0_i32_133 = arith.constant 0 : i32
    %228 = tpu.memref_slice %arg3[%227, %1] : memref<512x512xf32, #tpu.memory_space<any>> -> memref<1x256xf32, #tpu.memory_space<any>>
    %c22_i32_134 = arith.constant 22 : i32
    %c0_i32_135 = arith.constant 0 : i32
    %229 = tpu.memref_slice %arg8[%c22_i32_134, %c0_i32_135] : memref<48x256xf32, #tpu.memory_space<vmem>> -> memref<1x256xf32, #tpu.memory_space<vmem>>
    %230 = tpu.memref_slice %arg9[%c0_i32_133] : memref<1x!tpu.dma_semaphore, #tpu.memory_space<semaphore_mem>> -> memref<1x!tpu.dma_semaphore, #tpu.memory_space<semaphore_mem>>
    %231 = tpu.memref_squeeze %230 : memref<1x!tpu.dma_semaphore, #tpu.memory_space<semaphore_mem>> -> memref<!tpu.dma_semaphore, #tpu.memory_space<semaphore_mem>>
    tpu.enqueue_dma source(%228 : memref<1x256xf32, #tpu.memory_space<any>>) target(%229 : memref<1x256xf32, #tpu.memory_space<vmem>>) target_semaphore(%231 : memref<!tpu.dma_semaphore, #tpu.memory_space<semaphore_mem>>)
    %c48_i32_136 = arith.constant 48 : i32
    %232 = arith.muli %arg0, %c48_i32_136 : i32
    %c23_i32 = arith.constant 23 : i32
    %233 = arith.addi %232, %c23_i32 : i32
    %234 = arith.index_cast %233 : i32 to index
    %235 = memref.load %arg2[%234] : memref<48xi32, #tpu.memory_space<smem>>
    %c0_i32_137 = arith.constant 0 : i32
    %236 = arith.maxsi %235, %c0_i32_137 : i32
    %c511_i32_138 = arith.constant 511 : i32
    %237 = arith.minsi %236, %c511_i32_138 : i32
    %c0_i32_139 = arith.constant 0 : i32
    %238 = tpu.memref_slice %arg3[%237, %1] : memref<512x512xf32, #tpu.memory_space<any>> -> memref<1x256xf32, #tpu.memory_space<any>>
    %c23_i32_140 = arith.constant 23 : i32
    %c0_i32_141 = arith.constant 0 : i32
    %239 = tpu.memref_slice %arg8[%c23_i32_140, %c0_i32_141] : memref<48x256xf32, #tpu.memory_space<vmem>> -> memref<1x256xf32, #tpu.memory_space<vmem>>
    %240 = tpu.memref_slice %arg9[%c0_i32_139] : memref<1x!tpu.dma_semaphore, #tpu.memory_space<semaphore_mem>> -> memref<1x!tpu.dma_semaphore, #tpu.memory_space<semaphore_mem>>
    %241 = tpu.memref_squeeze %240 : memref<1x!tpu.dma_semaphore, #tpu.memory_space<semaphore_mem>> -> memref<!tpu.dma_semaphore, #tpu.memory_space<semaphore_mem>>
    tpu.enqueue_dma source(%238 : memref<1x256xf32, #tpu.memory_space<any>>) target(%239 : memref<1x256xf32, #tpu.memory_space<vmem>>) target_semaphore(%241 : memref<!tpu.dma_semaphore, #tpu.memory_space<semaphore_mem>>)
    %c48_i32_142 = arith.constant 48 : i32
    %242 = arith.muli %arg0, %c48_i32_142 : i32
    %c24_i32 = arith.constant 24 : i32
    %243 = arith.addi %242, %c24_i32 : i32
    %244 = arith.index_cast %243 : i32 to index
    %245 = memref.load %arg2[%244] : memref<48xi32, #tpu.memory_space<smem>>
    %c0_i32_143 = arith.constant 0 : i32
    %246 = arith.maxsi %245, %c0_i32_143 : i32
    %c511_i32_144 = arith.constant 511 : i32
    %247 = arith.minsi %246, %c511_i32_144 : i32
    %c0_i32_145 = arith.constant 0 : i32
    %248 = tpu.memref_slice %arg3[%247, %1] : memref<512x512xf32, #tpu.memory_space<any>> -> memref<1x256xf32, #tpu.memory_space<any>>
    %c24_i32_146 = arith.constant 24 : i32
    %c0_i32_147 = arith.constant 0 : i32
    %249 = tpu.memref_slice %arg8[%c24_i32_146, %c0_i32_147] : memref<48x256xf32, #tpu.memory_space<vmem>> -> memref<1x256xf32, #tpu.memory_space<vmem>>
    %250 = tpu.memref_slice %arg9[%c0_i32_145] : memref<1x!tpu.dma_semaphore, #tpu.memory_space<semaphore_mem>> -> memref<1x!tpu.dma_semaphore, #tpu.memory_space<semaphore_mem>>
    %251 = tpu.memref_squeeze %250 : memref<1x!tpu.dma_semaphore, #tpu.memory_space<semaphore_mem>> -> memref<!tpu.dma_semaphore, #tpu.memory_space<semaphore_mem>>
    tpu.enqueue_dma source(%248 : memref<1x256xf32, #tpu.memory_space<any>>) target(%249 : memref<1x256xf32, #tpu.memory_space<vmem>>) target_semaphore(%251 : memref<!tpu.dma_semaphore, #tpu.memory_space<semaphore_mem>>)
    %c48_i32_148 = arith.constant 48 : i32
    %252 = arith.muli %arg0, %c48_i32_148 : i32
    %c25_i32 = arith.constant 25 : i32
    %253 = arith.addi %252, %c25_i32 : i32
    %254 = arith.index_cast %253 : i32 to index
    %255 = memref.load %arg2[%254] : memref<48xi32, #tpu.memory_space<smem>>
    %c0_i32_149 = arith.constant 0 : i32
    %256 = arith.maxsi %255, %c0_i32_149 : i32
    %c511_i32_150 = arith.constant 511 : i32
    %257 = arith.minsi %256, %c511_i32_150 : i32
    %c0_i32_151 = arith.constant 0 : i32
    %258 = tpu.memref_slice %arg3[%257, %1] : memref<512x512xf32, #tpu.memory_space<any>> -> memref<1x256xf32, #tpu.memory_space<any>>
    %c25_i32_152 = arith.constant 25 : i32
    %c0_i32_153 = arith.constant 0 : i32
    %259 = tpu.memref_slice %arg8[%c25_i32_152, %c0_i32_153] : memref<48x256xf32, #tpu.memory_space<vmem>> -> memref<1x256xf32, #tpu.memory_space<vmem>>
    %260 = tpu.memref_slice %arg9[%c0_i32_151] : memref<1x!tpu.dma_semaphore, #tpu.memory_space<semaphore_mem>> -> memref<1x!tpu.dma_semaphore, #tpu.memory_space<semaphore_mem>>
    %261 = tpu.memref_squeeze %260 : memref<1x!tpu.dma_semaphore, #tpu.memory_space<semaphore_mem>> -> memref<!tpu.dma_semaphore, #tpu.memory_space<semaphore_mem>>
    tpu.enqueue_dma source(%258 : memref<1x256xf32, #tpu.memory_space<any>>) target(%259 : memref<1x256xf32, #tpu.memory_space<vmem>>) target_semaphore(%261 : memref<!tpu.dma_semaphore, #tpu.memory_space<semaphore_mem>>)
    %c48_i32_154 = arith.constant 48 : i32
    %262 = arith.muli %arg0, %c48_i32_154 : i32
    %c26_i32 = arith.constant 26 : i32
    %263 = arith.addi %262, %c26_i32 : i32
    %264 = arith.index_cast %263 : i32 to index
    %265 = memref.load %arg2[%264] : memref<48xi32, #tpu.memory_space<smem>>
    %c0_i32_155 = arith.constant 0 : i32
    %266 = arith.maxsi %265, %c0_i32_155 : i32
    %c511_i32_156 = arith.constant 511 : i32
    %267 = arith.minsi %266, %c511_i32_156 : i32
    %c0_i32_157 = arith.constant 0 : i32
    %268 = tpu.memref_slice %arg3[%267, %1] : memref<512x512xf32, #tpu.memory_space<any>> -> memref<1x256xf32, #tpu.memory_space<any>>
    %c26_i32_158 = arith.constant 26 : i32
    %c0_i32_159 = arith.constant 0 : i32
    %269 = tpu.memref_slice %arg8[%c26_i32_158, %c0_i32_159] : memref<48x256xf32, #tpu.memory_space<vmem>> -> memref<1x256xf32, #tpu.memory_space<vmem>>
    %270 = tpu.memref_slice %arg9[%c0_i32_157] : memref<1x!tpu.dma_semaphore, #tpu.memory_space<semaphore_mem>> -> memref<1x!tpu.dma_semaphore, #tpu.memory_space<semaphore_mem>>
    %271 = tpu.memref_squeeze %270 : memref<1x!tpu.dma_semaphore, #tpu.memory_space<semaphore_mem>> -> memref<!tpu.dma_semaphore, #tpu.memory_space<semaphore_mem>>
    tpu.enqueue_dma source(%268 : memref<1x256xf32, #tpu.memory_space<any>>) target(%269 : memref<1x256xf32, #tpu.memory_space<vmem>>) target_semaphore(%271 : memref<!tpu.dma_semaphore, #tpu.memory_space<semaphore_mem>>)
    %c48_i32_160 = arith.constant 48 : i32
    %272 = arith.muli %arg0, %c48_i32_160 : i32
    %c27_i32 = arith.constant 27 : i32
    %273 = arith.addi %272, %c27_i32 : i32
    %274 = arith.index_cast %273 : i32 to index
    %275 = memref.load %arg2[%274] : memref<48xi32, #tpu.memory_space<smem>>
    %c0_i32_161 = arith.constant 0 : i32
    %276 = arith.maxsi %275, %c0_i32_161 : i32
    %c511_i32_162 = arith.constant 511 : i32
    %277 = arith.minsi %276, %c511_i32_162 : i32
    %c0_i32_163 = arith.constant 0 : i32
    %278 = tpu.memref_slice %arg3[%277, %1] : memref<512x512xf32, #tpu.memory_space<any>> -> memref<1x256xf32, #tpu.memory_space<any>>
    %c27_i32_164 = arith.constant 27 : i32
    %c0_i32_165 = arith.constant 0 : i32
    %279 = tpu.memref_slice %arg8[%c27_i32_164, %c0_i32_165] : memref<48x256xf32, #tpu.memory_space<vmem>> -> memref<1x256xf32, #tpu.memory_space<vmem>>
    %280 = tpu.memref_slice %arg9[%c0_i32_163] : memref<1x!tpu.dma_semaphore, #tpu.memory_space<semaphore_mem>> -> memref<1x!tpu.dma_semaphore, #tpu.memory_space<semaphore_mem>>
    %281 = tpu.memref_squeeze %280 : memref<1x!tpu.dma_semaphore, #tpu.memory_space<semaphore_mem>> -> memref<!tpu.dma_semaphore, #tpu.memory_space<semaphore_mem>>
    tpu.enqueue_dma source(%278 : memref<1x256xf32, #tpu.memory_space<any>>) target(%279 : memref<1x256xf32, #tpu.memory_space<vmem>>) target_semaphore(%281 : memref<!tpu.dma_semaphore, #tpu.memory_space<semaphore_mem>>)
    %c48_i32_166 = arith.constant 48 : i32
    %282 = arith.muli %arg0, %c48_i32_166 : i32
    %c28_i32 = arith.constant 28 : i32
    %283 = arith.addi %282, %c28_i32 : i32
    %284 = arith.index_cast %283 : i32 to index
    %285 = memref.load %arg2[%284] : memref<48xi32, #tpu.memory_space<smem>>
    %c0_i32_167 = arith.constant 0 : i32
    %286 = arith.maxsi %285, %c0_i32_167 : i32
    %c511_i32_168 = arith.constant 511 : i32
    %287 = arith.minsi %286, %c511_i32_168 : i32
    %c0_i32_169 = arith.constant 0 : i32
    %288 = tpu.memref_slice %arg3[%287, %1] : memref<512x512xf32, #tpu.memory_space<any>> -> memref<1x256xf32, #tpu.memory_space<any>>
    %c28_i32_170 = arith.constant 28 : i32
    %c0_i32_171 = arith.constant 0 : i32
    %289 = tpu.memref_slice %arg8[%c28_i32_170, %c0_i32_171] : memref<48x256xf32, #tpu.memory_space<vmem>> -> memref<1x256xf32, #tpu.memory_space<vmem>>
    %290 = tpu.memref_slice %arg9[%c0_i32_169] : memref<1x!tpu.dma_semaphore, #tpu.memory_space<semaphore_mem>> -> memref<1x!tpu.dma_semaphore, #tpu.memory_space<semaphore_mem>>
    %291 = tpu.memref_squeeze %290 : memref<1x!tpu.dma_semaphore, #tpu.memory_space<semaphore_mem>> -> memref<!tpu.dma_semaphore, #tpu.memory_space<semaphore_mem>>
    tpu.enqueue_dma source(%288 : memref<1x256xf32, #tpu.memory_space<any>>) target(%289 : memref<1x256xf32, #tpu.memory_space<vmem>>) target_semaphore(%291 : memref<!tpu.dma_semaphore, #tpu.memory_space<semaphore_mem>>)
    %c48_i32_172 = arith.constant 48 : i32
    %292 = arith.muli %arg0, %c48_i32_172 : i32
    %c29_i32 = arith.constant 29 : i32
    %293 = arith.addi %292, %c29_i32 : i32
    %294 = arith.index_cast %293 : i32 to index
    %295 = memref.load %arg2[%294] : memref<48xi32, #tpu.memory_space<smem>>
    %c0_i32_173 = arith.constant 0 : i32
    %296 = arith.maxsi %295, %c0_i32_173 : i32
    %c511_i32_174 = arith.constant 511 : i32
    %297 = arith.minsi %296, %c511_i32_174 : i32
    %c0_i32_175 = arith.constant 0 : i32
    %298 = tpu.memref_slice %arg3[%297, %1] : memref<512x512xf32, #tpu.memory_space<any>> -> memref<1x256xf32, #tpu.memory_space<any>>
    %c29_i32_176 = arith.constant 29 : i32
    %c0_i32_177 = arith.constant 0 : i32
    %299 = tpu.memref_slice %arg8[%c29_i32_176, %c0_i32_177] : memref<48x256xf32, #tpu.memory_space<vmem>> -> memref<1x256xf32, #tpu.memory_space<vmem>>
    %300 = tpu.memref_slice %arg9[%c0_i32_175] : memref<1x!tpu.dma_semaphore, #tpu.memory_space<semaphore_mem>> -> memref<1x!tpu.dma_semaphore, #tpu.memory_space<semaphore_mem>>
    %301 = tpu.memref_squeeze %300 : memref<1x!tpu.dma_semaphore, #tpu.memory_space<semaphore_mem>> -> memref<!tpu.dma_semaphore, #tpu.memory_space<semaphore_mem>>
    tpu.enqueue_dma source(%298 : memref<1x256xf32, #tpu.memory_space<any>>) target(%299 : memref<1x256xf32, #tpu.memory_space<vmem>>) target_semaphore(%301 : memref<!tpu.dma_semaphore, #tpu.memory_space<semaphore_mem>>)
    %c48_i32_178 = arith.constant 48 : i32
    %302 = arith.muli %arg0, %c48_i32_178 : i32
    %c30_i32 = arith.constant 30 : i32
    %303 = arith.addi %302, %c30_i32 : i32
    %304 = arith.index_cast %303 : i32 to index
    %305 = memref.load %arg2[%304] : memref<48xi32, #tpu.memory_space<smem>>
    %c0_i32_179 = arith.constant 0 : i32
    %306 = arith.maxsi %305, %c0_i32_179 : i32
    %c511_i32_180 = arith.constant 511 : i32
    %307 = arith.minsi %306, %c511_i32_180 : i32
    %c0_i32_181 = arith.constant 0 : i32
    %308 = tpu.memref_slice %arg3[%307, %1] : memref<512x512xf32, #tpu.memory_space<any>> -> memref<1x256xf32, #tpu.memory_space<any>>
    %c30_i32_182 = arith.constant 30 : i32
    %c0_i32_183 = arith.constant 0 : i32
    %309 = tpu.memref_slice %arg8[%c30_i32_182, %c0_i32_183] : memref<48x256xf32, #tpu.memory_space<vmem>> -> memref<1x256xf32, #tpu.memory_space<vmem>>
    %310 = tpu.memref_slice %arg9[%c0_i32_181] : memref<1x!tpu.dma_semaphore, #tpu.memory_space<semaphore_mem>> -> memref<1x!tpu.dma_semaphore, #tpu.memory_space<semaphore_mem>>
    %311 = tpu.memref_squeeze %310 : memref<1x!tpu.dma_semaphore, #tpu.memory_space<semaphore_mem>> -> memref<!tpu.dma_semaphore, #tpu.memory_space<semaphore_mem>>
    tpu.enqueue_dma source(%308 : memref<1x256xf32, #tpu.memory_space<any>>) target(%309 : memref<1x256xf32, #tpu.memory_space<vmem>>) target_semaphore(%311 : memref<!tpu.dma_semaphore, #tpu.memory_space<semaphore_mem>>)
    %c48_i32_184 = arith.constant 48 : i32
    %312 = arith.muli %arg0, %c48_i32_184 : i32
    %c31_i32 = arith.constant 31 : i32
    %313 = arith.addi %312, %c31_i32 : i32
    %314 = arith.index_cast %313 : i32 to index
    %315 = memref.load %arg2[%314] : memref<48xi32, #tpu.memory_space<smem>>
    %c0_i32_185 = arith.constant 0 : i32
    %316 = arith.maxsi %315, %c0_i32_185 : i32
    %c511_i32_186 = arith.constant 511 : i32
    %317 = arith.minsi %316, %c511_i32_186 : i32
    %c0_i32_187 = arith.constant 0 : i32
    %318 = tpu.memref_slice %arg3[%317, %1] : memref<512x512xf32, #tpu.memory_space<any>> -> memref<1x256xf32, #tpu.memory_space<any>>
    %c31_i32_188 = arith.constant 31 : i32
    %c0_i32_189 = arith.constant 0 : i32
    %319 = tpu.memref_slice %arg8[%c31_i32_188, %c0_i32_189] : memref<48x256xf32, #tpu.memory_space<vmem>> -> memref<1x256xf32, #tpu.memory_space<vmem>>
    %320 = tpu.memref_slice %arg9[%c0_i32_187] : memref<1x!tpu.dma_semaphore, #tpu.memory_space<semaphore_mem>> -> memref<1x!tpu.dma_semaphore, #tpu.memory_space<semaphore_mem>>
    %321 = tpu.memref_squeeze %320 : memref<1x!tpu.dma_semaphore, #tpu.memory_space<semaphore_mem>> -> memref<!tpu.dma_semaphore, #tpu.memory_space<semaphore_mem>>
    tpu.enqueue_dma source(%318 : memref<1x256xf32, #tpu.memory_space<any>>) target(%319 : memref<1x256xf32, #tpu.memory_space<vmem>>) target_semaphore(%321 : memref<!tpu.dma_semaphore, #tpu.memory_space<semaphore_mem>>)
    %c48_i32_190 = arith.constant 48 : i32
    %322 = arith.muli %arg0, %c48_i32_190 : i32
    %c32_i32 = arith.constant 32 : i32
    %323 = arith.addi %322, %c32_i32 : i32
    %324 = arith.index_cast %323 : i32 to index
    %325 = memref.load %arg2[%324] : memref<48xi32, #tpu.memory_space<smem>>
    %c0_i32_191 = arith.constant 0 : i32
    %326 = arith.maxsi %325, %c0_i32_191 : i32
    %c511_i32_192 = arith.constant 511 : i32
    %327 = arith.minsi %326, %c511_i32_192 : i32
    %c0_i32_193 = arith.constant 0 : i32
    %328 = tpu.memref_slice %arg3[%327, %1] : memref<512x512xf32, #tpu.memory_space<any>> -> memref<1x256xf32, #tpu.memory_space<any>>
    %c32_i32_194 = arith.constant 32 : i32
    %c0_i32_195 = arith.constant 0 : i32
    %329 = tpu.memref_slice %arg8[%c32_i32_194, %c0_i32_195] : memref<48x256xf32, #tpu.memory_space<vmem>> -> memref<1x256xf32, #tpu.memory_space<vmem>>
    %330 = tpu.memref_slice %arg9[%c0_i32_193] : memref<1x!tpu.dma_semaphore, #tpu.memory_space<semaphore_mem>> -> memref<1x!tpu.dma_semaphore, #tpu.memory_space<semaphore_mem>>
    %331 = tpu.memref_squeeze %330 : memref<1x!tpu.dma_semaphore, #tpu.memory_space<semaphore_mem>> -> memref<!tpu.dma_semaphore, #tpu.memory_space<semaphore_mem>>
    tpu.enqueue_dma source(%328 : memref<1x256xf32, #tpu.memory_space<any>>) target(%329 : memref<1x256xf32, #tpu.memory_space<vmem>>) target_semaphore(%331 : memref<!tpu.dma_semaphore, #tpu.memory_space<semaphore_mem>>)
    %c48_i32_196 = arith.constant 48 : i32
    %332 = arith.muli %arg0, %c48_i32_196 : i32
    %c33_i32 = arith.constant 33 : i32
    %333 = arith.addi %332, %c33_i32 : i32
    %334 = arith.index_cast %333 : i32 to index
    %335 = memref.load %arg2[%334] : memref<48xi32, #tpu.memory_space<smem>>
    %c0_i32_197 = arith.constant 0 : i32
    %336 = arith.maxsi %335, %c0_i32_197 : i32
    %c511_i32_198 = arith.constant 511 : i32
    %337 = arith.minsi %336, %c511_i32_198 : i32
    %c0_i32_199 = arith.constant 0 : i32
    %338 = tpu.memref_slice %arg3[%337, %1] : memref<512x512xf32, #tpu.memory_space<any>> -> memref<1x256xf32, #tpu.memory_space<any>>
    %c33_i32_200 = arith.constant 33 : i32
    %c0_i32_201 = arith.constant 0 : i32
    %339 = tpu.memref_slice %arg8[%c33_i32_200, %c0_i32_201] : memref<48x256xf32, #tpu.memory_space<vmem>> -> memref<1x256xf32, #tpu.memory_space<vmem>>
    %340 = tpu.memref_slice %arg9[%c0_i32_199] : memref<1x!tpu.dma_semaphore, #tpu.memory_space<semaphore_mem>> -> memref<1x!tpu.dma_semaphore, #tpu.memory_space<semaphore_mem>>
    %341 = tpu.memref_squeeze %340 : memref<1x!tpu.dma_semaphore, #tpu.memory_space<semaphore_mem>> -> memref<!tpu.dma_semaphore, #tpu.memory_space<semaphore_mem>>
    tpu.enqueue_dma source(%338 : memref<1x256xf32, #tpu.memory_space<any>>) target(%339 : memref<1x256xf32, #tpu.memory_space<vmem>>) target_semaphore(%341 : memref<!tpu.dma_semaphore, #tpu.memory_space<semaphore_mem>>)
    %c48_i32_202 = arith.constant 48 : i32
    %342 = arith.muli %arg0, %c48_i32_202 : i32
    %c34_i32 = arith.constant 34 : i32
    %343 = arith.addi %342, %c34_i32 : i32
    %344 = arith.index_cast %343 : i32 to index
    %345 = memref.load %arg2[%344] : memref<48xi32, #tpu.memory_space<smem>>
    %c0_i32_203 = arith.constant 0 : i32
    %346 = arith.maxsi %345, %c0_i32_203 : i32
    %c511_i32_204 = arith.constant 511 : i32
    %347 = arith.minsi %346, %c511_i32_204 : i32
    %c0_i32_205 = arith.constant 0 : i32
    %348 = tpu.memref_slice %arg3[%347, %1] : memref<512x512xf32, #tpu.memory_space<any>> -> memref<1x256xf32, #tpu.memory_space<any>>
    %c34_i32_206 = arith.constant 34 : i32
    %c0_i32_207 = arith.constant 0 : i32
    %349 = tpu.memref_slice %arg8[%c34_i32_206, %c0_i32_207] : memref<48x256xf32, #tpu.memory_space<vmem>> -> memref<1x256xf32, #tpu.memory_space<vmem>>
    %350 = tpu.memref_slice %arg9[%c0_i32_205] : memref<1x!tpu.dma_semaphore, #tpu.memory_space<semaphore_mem>> -> memref<1x!tpu.dma_semaphore, #tpu.memory_space<semaphore_mem>>
    %351 = tpu.memref_squeeze %350 : memref<1x!tpu.dma_semaphore, #tpu.memory_space<semaphore_mem>> -> memref<!tpu.dma_semaphore, #tpu.memory_space<semaphore_mem>>
    tpu.enqueue_dma source(%348 : memref<1x256xf32, #tpu.memory_space<any>>) target(%349 : memref<1x256xf32, #tpu.memory_space<vmem>>) target_semaphore(%351 : memref<!tpu.dma_semaphore, #tpu.memory_space<semaphore_mem>>)
    %c48_i32_208 = arith.constant 48 : i32
    %352 = arith.muli %arg0, %c48_i32_208 : i32
    %c35_i32 = arith.constant 35 : i32
    %353 = arith.addi %352, %c35_i32 : i32
    %354 = arith.index_cast %353 : i32 to index
    %355 = memref.load %arg2[%354] : memref<48xi32, #tpu.memory_space<smem>>
    %c0_i32_209 = arith.constant 0 : i32
    %356 = arith.maxsi %355, %c0_i32_209 : i32
    %c511_i32_210 = arith.constant 511 : i32
    %357 = arith.minsi %356, %c511_i32_210 : i32
    %c0_i32_211 = arith.constant 0 : i32
    %358 = tpu.memref_slice %arg3[%357, %1] : memref<512x512xf32, #tpu.memory_space<any>> -> memref<1x256xf32, #tpu.memory_space<any>>
    %c35_i32_212 = arith.constant 35 : i32
    %c0_i32_213 = arith.constant 0 : i32
    %359 = tpu.memref_slice %arg8[%c35_i32_212, %c0_i32_213] : memref<48x256xf32, #tpu.memory_space<vmem>> -> memref<1x256xf32, #tpu.memory_space<vmem>>
    %360 = tpu.memref_slice %arg9[%c0_i32_211] : memref<1x!tpu.dma_semaphore, #tpu.memory_space<semaphore_mem>> -> memref<1x!tpu.dma_semaphore, #tpu.memory_space<semaphore_mem>>
    %361 = tpu.memref_squeeze %360 : memref<1x!tpu.dma_semaphore, #tpu.memory_space<semaphore_mem>> -> memref<!tpu.dma_semaphore, #tpu.memory_space<semaphore_mem>>
    tpu.enqueue_dma source(%358 : memref<1x256xf32, #tpu.memory_space<any>>) target(%359 : memref<1x256xf32, #tpu.memory_space<vmem>>) target_semaphore(%361 : memref<!tpu.dma_semaphore, #tpu.memory_space<semaphore_mem>>)
    %c48_i32_214 = arith.constant 48 : i32
    %362 = arith.muli %arg0, %c48_i32_214 : i32
    %c36_i32 = arith.constant 36 : i32
    %363 = arith.addi %362, %c36_i32 : i32
    %364 = arith.index_cast %363 : i32 to index
    %365 = memref.load %arg2[%364] : memref<48xi32, #tpu.memory_space<smem>>
    %c0_i32_215 = arith.constant 0 : i32
    %366 = arith.maxsi %365, %c0_i32_215 : i32
    %c511_i32_216 = arith.constant 511 : i32
    %367 = arith.minsi %366, %c511_i32_216 : i32
    %c0_i32_217 = arith.constant 0 : i32
    %368 = tpu.memref_slice %arg3[%367, %1] : memref<512x512xf32, #tpu.memory_space<any>> -> memref<1x256xf32, #tpu.memory_space<any>>
    %c36_i32_218 = arith.constant 36 : i32
    %c0_i32_219 = arith.constant 0 : i32
    %369 = tpu.memref_slice %arg8[%c36_i32_218, %c0_i32_219] : memref<48x256xf32, #tpu.memory_space<vmem>> -> memref<1x256xf32, #tpu.memory_space<vmem>>
    %370 = tpu.memref_slice %arg9[%c0_i32_217] : memref<1x!tpu.dma_semaphore, #tpu.memory_space<semaphore_mem>> -> memref<1x!tpu.dma_semaphore, #tpu.memory_space<semaphore_mem>>
    %371 = tpu.memref_squeeze %370 : memref<1x!tpu.dma_semaphore, #tpu.memory_space<semaphore_mem>> -> memref<!tpu.dma_semaphore, #tpu.memory_space<semaphore_mem>>
    tpu.enqueue_dma source(%368 : memref<1x256xf32, #tpu.memory_space<any>>) target(%369 : memref<1x256xf32, #tpu.memory_space<vmem>>) target_semaphore(%371 : memref<!tpu.dma_semaphore, #tpu.memory_space<semaphore_mem>>)
    %c48_i32_220 = arith.constant 48 : i32
    %372 = arith.muli %arg0, %c48_i32_220 : i32
    %c37_i32 = arith.constant 37 : i32
    %373 = arith.addi %372, %c37_i32 : i32
    %374 = arith.index_cast %373 : i32 to index
    %375 = memref.load %arg2[%374] : memref<48xi32, #tpu.memory_space<smem>>
    %c0_i32_221 = arith.constant 0 : i32
    %376 = arith.maxsi %375, %c0_i32_221 : i32
    %c511_i32_222 = arith.constant 511 : i32
    %377 = arith.minsi %376, %c511_i32_222 : i32
    %c0_i32_223 = arith.constant 0 : i32
    %378 = tpu.memref_slice %arg3[%377, %1] : memref<512x512xf32, #tpu.memory_space<any>> -> memref<1x256xf32, #tpu.memory_space<any>>
    %c37_i32_224 = arith.constant 37 : i32
    %c0_i32_225 = arith.constant 0 : i32
    %379 = tpu.memref_slice %arg8[%c37_i32_224, %c0_i32_225] : memref<48x256xf32, #tpu.memory_space<vmem>> -> memref<1x256xf32, #tpu.memory_space<vmem>>
    %380 = tpu.memref_slice %arg9[%c0_i32_223] : memref<1x!tpu.dma_semaphore, #tpu.memory_space<semaphore_mem>> -> memref<1x!tpu.dma_semaphore, #tpu.memory_space<semaphore_mem>>
    %381 = tpu.memref_squeeze %380 : memref<1x!tpu.dma_semaphore, #tpu.memory_space<semaphore_mem>> -> memref<!tpu.dma_semaphore, #tpu.memory_space<semaphore_mem>>
    tpu.enqueue_dma source(%378 : memref<1x256xf32, #tpu.memory_space<any>>) target(%379 : memref<1x256xf32, #tpu.memory_space<vmem>>) target_semaphore(%381 : memref<!tpu.dma_semaphore, #tpu.memory_space<semaphore_mem>>)
    %c48_i32_226 = arith.constant 48 : i32
    %382 = arith.muli %arg0, %c48_i32_226 : i32
    %c38_i32 = arith.constant 38 : i32
    %383 = arith.addi %382, %c38_i32 : i32
    %384 = arith.index_cast %383 : i32 to index
    %385 = memref.load %arg2[%384] : memref<48xi32, #tpu.memory_space<smem>>
    %c0_i32_227 = arith.constant 0 : i32
    %386 = arith.maxsi %385, %c0_i32_227 : i32
    %c511_i32_228 = arith.constant 511 : i32
    %387 = arith.minsi %386, %c511_i32_228 : i32
    %c0_i32_229 = arith.constant 0 : i32
    %388 = tpu.memref_slice %arg3[%387, %1] : memref<512x512xf32, #tpu.memory_space<any>> -> memref<1x256xf32, #tpu.memory_space<any>>
    %c38_i32_230 = arith.constant 38 : i32
    %c0_i32_231 = arith.constant 0 : i32
    %389 = tpu.memref_slice %arg8[%c38_i32_230, %c0_i32_231] : memref<48x256xf32, #tpu.memory_space<vmem>> -> memref<1x256xf32, #tpu.memory_space<vmem>>
    %390 = tpu.memref_slice %arg9[%c0_i32_229] : memref<1x!tpu.dma_semaphore, #tpu.memory_space<semaphore_mem>> -> memref<1x!tpu.dma_semaphore, #tpu.memory_space<semaphore_mem>>
    %391 = tpu.memref_squeeze %390 : memref<1x!tpu.dma_semaphore, #tpu.memory_space<semaphore_mem>> -> memref<!tpu.dma_semaphore, #tpu.memory_space<semaphore_mem>>
    tpu.enqueue_dma source(%388 : memref<1x256xf32, #tpu.memory_space<any>>) target(%389 : memref<1x256xf32, #tpu.memory_space<vmem>>) target_semaphore(%391 : memref<!tpu.dma_semaphore, #tpu.memory_space<semaphore_mem>>)
    %c48_i32_232 = arith.constant 48 : i32
    %392 = arith.muli %arg0, %c48_i32_232 : i32
    %c39_i32 = arith.constant 39 : i32
    %393 = arith.addi %392, %c39_i32 : i32
    %394 = arith.index_cast %393 : i32 to index
    %395 = memref.load %arg2[%394] : memref<48xi32, #tpu.memory_space<smem>>
    %c0_i32_233 = arith.constant 0 : i32
    %396 = arith.maxsi %395, %c0_i32_233 : i32
    %c511_i32_234 = arith.constant 511 : i32
    %397 = arith.minsi %396, %c511_i32_234 : i32
    %c0_i32_235 = arith.constant 0 : i32
    %398 = tpu.memref_slice %arg3[%397, %1] : memref<512x512xf32, #tpu.memory_space<any>> -> memref<1x256xf32, #tpu.memory_space<any>>
    %c39_i32_236 = arith.constant 39 : i32
    %c0_i32_237 = arith.constant 0 : i32
    %399 = tpu.memref_slice %arg8[%c39_i32_236, %c0_i32_237] : memref<48x256xf32, #tpu.memory_space<vmem>> -> memref<1x256xf32, #tpu.memory_space<vmem>>
    %400 = tpu.memref_slice %arg9[%c0_i32_235] : memref<1x!tpu.dma_semaphore, #tpu.memory_space<semaphore_mem>> -> memref<1x!tpu.dma_semaphore, #tpu.memory_space<semaphore_mem>>
    %401 = tpu.memref_squeeze %400 : memref<1x!tpu.dma_semaphore, #tpu.memory_space<semaphore_mem>> -> memref<!tpu.dma_semaphore, #tpu.memory_space<semaphore_mem>>
    tpu.enqueue_dma source(%398 : memref<1x256xf32, #tpu.memory_space<any>>) target(%399 : memref<1x256xf32, #tpu.memory_space<vmem>>) target_semaphore(%401 : memref<!tpu.dma_semaphore, #tpu.memory_space<semaphore_mem>>)
    %c48_i32_238 = arith.constant 48 : i32
    %402 = arith.muli %arg0, %c48_i32_238 : i32
    %c40_i32 = arith.constant 40 : i32
    %403 = arith.addi %402, %c40_i32 : i32
    %404 = arith.index_cast %403 : i32 to index
    %405 = memref.load %arg2[%404] : memref<48xi32, #tpu.memory_space<smem>>
    %c0_i32_239 = arith.constant 0 : i32
    %406 = arith.maxsi %405, %c0_i32_239 : i32
    %c511_i32_240 = arith.constant 511 : i32
    %407 = arith.minsi %406, %c511_i32_240 : i32
    %c0_i32_241 = arith.constant 0 : i32
    %408 = tpu.memref_slice %arg3[%407, %1] : memref<512x512xf32, #tpu.memory_space<any>> -> memref<1x256xf32, #tpu.memory_space<any>>
    %c40_i32_242 = arith.constant 40 : i32
    %c0_i32_243 = arith.constant 0 : i32
    %409 = tpu.memref_slice %arg8[%c40_i32_242, %c0_i32_243] : memref<48x256xf32, #tpu.memory_space<vmem>> -> memref<1x256xf32, #tpu.memory_space<vmem>>
    %410 = tpu.memref_slice %arg9[%c0_i32_241] : memref<1x!tpu.dma_semaphore, #tpu.memory_space<semaphore_mem>> -> memref<1x!tpu.dma_semaphore, #tpu.memory_space<semaphore_mem>>
    %411 = tpu.memref_squeeze %410 : memref<1x!tpu.dma_semaphore, #tpu.memory_space<semaphore_mem>> -> memref<!tpu.dma_semaphore, #tpu.memory_space<semaphore_mem>>
    tpu.enqueue_dma source(%408 : memref<1x256xf32, #tpu.memory_space<any>>) target(%409 : memref<1x256xf32, #tpu.memory_space<vmem>>) target_semaphore(%411 : memref<!tpu.dma_semaphore, #tpu.memory_space<semaphore_mem>>)
    %c48_i32_244 = arith.constant 48 : i32
    %412 = arith.muli %arg0, %c48_i32_244 : i32
    %c41_i32 = arith.constant 41 : i32
    %413 = arith.addi %412, %c41_i32 : i32
    %414 = arith.index_cast %413 : i32 to index
    %415 = memref.load %arg2[%414] : memref<48xi32, #tpu.memory_space<smem>>
    %c0_i32_245 = arith.constant 0 : i32
    %416 = arith.maxsi %415, %c0_i32_245 : i32
    %c511_i32_246 = arith.constant 511 : i32
    %417 = arith.minsi %416, %c511_i32_246 : i32
    %c0_i32_247 = arith.constant 0 : i32
    %418 = tpu.memref_slice %arg3[%417, %1] : memref<512x512xf32, #tpu.memory_space<any>> -> memref<1x256xf32, #tpu.memory_space<any>>
    %c41_i32_248 = arith.constant 41 : i32
    %c0_i32_249 = arith.constant 0 : i32
    %419 = tpu.memref_slice %arg8[%c41_i32_248, %c0_i32_249] : memref<48x256xf32, #tpu.memory_space<vmem>> -> memref<1x256xf32, #tpu.memory_space<vmem>>
    %420 = tpu.memref_slice %arg9[%c0_i32_247] : memref<1x!tpu.dma_semaphore, #tpu.memory_space<semaphore_mem>> -> memref<1x!tpu.dma_semaphore, #tpu.memory_space<semaphore_mem>>
    %421 = tpu.memref_squeeze %420 : memref<1x!tpu.dma_semaphore, #tpu.memory_space<semaphore_mem>> -> memref<!tpu.dma_semaphore, #tpu.memory_space<semaphore_mem>>
    tpu.enqueue_dma source(%418 : memref<1x256xf32, #tpu.memory_space<any>>) target(%419 : memref<1x256xf32, #tpu.memory_space<vmem>>) target_semaphore(%421 : memref<!tpu.dma_semaphore, #tpu.memory_space<semaphore_mem>>)
    %c48_i32_250 = arith.constant 48 : i32
    %422 = arith.muli %arg0, %c48_i32_250 : i32
    %c42_i32 = arith.constant 42 : i32
    %423 = arith.addi %422, %c42_i32 : i32
    %424 = arith.index_cast %423 : i32 to index
    %425 = memref.load %arg2[%424] : memref<48xi32, #tpu.memory_space<smem>>
    %c0_i32_251 = arith.constant 0 : i32
    %426 = arith.maxsi %425, %c0_i32_251 : i32
    %c511_i32_252 = arith.constant 511 : i32
    %427 = arith.minsi %426, %c511_i32_252 : i32
    %c0_i32_253 = arith.constant 0 : i32
    %428 = tpu.memref_slice %arg3[%427, %1] : memref<512x512xf32, #tpu.memory_space<any>> -> memref<1x256xf32, #tpu.memory_space<any>>
    %c42_i32_254 = arith.constant 42 : i32
    %c0_i32_255 = arith.constant 0 : i32
    %429 = tpu.memref_slice %arg8[%c42_i32_254, %c0_i32_255] : memref<48x256xf32, #tpu.memory_space<vmem>> -> memref<1x256xf32, #tpu.memory_space<vmem>>
    %430 = tpu.memref_slice %arg9[%c0_i32_253] : memref<1x!tpu.dma_semaphore, #tpu.memory_space<semaphore_mem>> -> memref<1x!tpu.dma_semaphore, #tpu.memory_space<semaphore_mem>>
    %431 = tpu.memref_squeeze %430 : memref<1x!tpu.dma_semaphore, #tpu.memory_space<semaphore_mem>> -> memref<!tpu.dma_semaphore, #tpu.memory_space<semaphore_mem>>
    tpu.enqueue_dma source(%428 : memref<1x256xf32, #tpu.memory_space<any>>) target(%429 : memref<1x256xf32, #tpu.memory_space<vmem>>) target_semaphore(%431 : memref<!tpu.dma_semaphore, #tpu.memory_space<semaphore_mem>>)
    %c48_i32_256 = arith.constant 48 : i32
    %432 = arith.muli %arg0, %c48_i32_256 : i32
    %c43_i32 = arith.constant 43 : i32
    %433 = arith.addi %432, %c43_i32 : i32
    %434 = arith.index_cast %433 : i32 to index
    %435 = memref.load %arg2[%434] : memref<48xi32, #tpu.memory_space<smem>>
    %c0_i32_257 = arith.constant 0 : i32
    %436 = arith.maxsi %435, %c0_i32_257 : i32
    %c511_i32_258 = arith.constant 511 : i32
    %437 = arith.minsi %436, %c511_i32_258 : i32
    %c0_i32_259 = arith.constant 0 : i32
    %438 = tpu.memref_slice %arg3[%437, %1] : memref<512x512xf32, #tpu.memory_space<any>> -> memref<1x256xf32, #tpu.memory_space<any>>
    %c43_i32_260 = arith.constant 43 : i32
    %c0_i32_261 = arith.constant 0 : i32
    %439 = tpu.memref_slice %arg8[%c43_i32_260, %c0_i32_261] : memref<48x256xf32, #tpu.memory_space<vmem>> -> memref<1x256xf32, #tpu.memory_space<vmem>>
    %440 = tpu.memref_slice %arg9[%c0_i32_259] : memref<1x!tpu.dma_semaphore, #tpu.memory_space<semaphore_mem>> -> memref<1x!tpu.dma_semaphore, #tpu.memory_space<semaphore_mem>>
    %441 = tpu.memref_squeeze %440 : memref<1x!tpu.dma_semaphore, #tpu.memory_space<semaphore_mem>> -> memref<!tpu.dma_semaphore, #tpu.memory_space<semaphore_mem>>
    tpu.enqueue_dma source(%438 : memref<1x256xf32, #tpu.memory_space<any>>) target(%439 : memref<1x256xf32, #tpu.memory_space<vmem>>) target_semaphore(%441 : memref<!tpu.dma_semaphore, #tpu.memory_space<semaphore_mem>>)
    %c48_i32_262 = arith.constant 48 : i32
    %442 = arith.muli %arg0, %c48_i32_262 : i32
    %c44_i32 = arith.constant 44 : i32
    %443 = arith.addi %442, %c44_i32 : i32
    %444 = arith.index_cast %443 : i32 to index
    %445 = memref.load %arg2[%444] : memref<48xi32, #tpu.memory_space<smem>>
    %c0_i32_263 = arith.constant 0 : i32
    %446 = arith.maxsi %445, %c0_i32_263 : i32
    %c511_i32_264 = arith.constant 511 : i32
    %447 = arith.minsi %446, %c511_i32_264 : i32
    %c0_i32_265 = arith.constant 0 : i32
    %448 = tpu.memref_slice %arg3[%447, %1] : memref<512x512xf32, #tpu.memory_space<any>> -> memref<1x256xf32, #tpu.memory_space<any>>
    %c44_i32_266 = arith.constant 44 : i32
    %c0_i32_267 = arith.constant 0 : i32
    %449 = tpu.memref_slice %arg8[%c44_i32_266, %c0_i32_267] : memref<48x256xf32, #tpu.memory_space<vmem>> -> memref<1x256xf32, #tpu.memory_space<vmem>>
    %450 = tpu.memref_slice %arg9[%c0_i32_265] : memref<1x!tpu.dma_semaphore, #tpu.memory_space<semaphore_mem>> -> memref<1x!tpu.dma_semaphore, #tpu.memory_space<semaphore_mem>>
    %451 = tpu.memref_squeeze %450 : memref<1x!tpu.dma_semaphore, #tpu.memory_space<semaphore_mem>> -> memref<!tpu.dma_semaphore, #tpu.memory_space<semaphore_mem>>
    tpu.enqueue_dma source(%448 : memref<1x256xf32, #tpu.memory_space<any>>) target(%449 : memref<1x256xf32, #tpu.memory_space<vmem>>) target_semaphore(%451 : memref<!tpu.dma_semaphore, #tpu.memory_space<semaphore_mem>>)
    %c48_i32_268 = arith.constant 48 : i32
    %452 = arith.muli %arg0, %c48_i32_268 : i32
    %c45_i32 = arith.constant 45 : i32
    %453 = arith.addi %452, %c45_i32 : i32
    %454 = arith.index_cast %453 : i32 to index
    %455 = memref.load %arg2[%454] : memref<48xi32, #tpu.memory_space<smem>>
    %c0_i32_269 = arith.constant 0 : i32
    %456 = arith.maxsi %455, %c0_i32_269 : i32
    %c511_i32_270 = arith.constant 511 : i32
    %457 = arith.minsi %456, %c511_i32_270 : i32
    %c0_i32_271 = arith.constant 0 : i32
    %458 = tpu.memref_slice %arg3[%457, %1] : memref<512x512xf32, #tpu.memory_space<any>> -> memref<1x256xf32, #tpu.memory_space<any>>
    %c45_i32_272 = arith.constant 45 : i32
    %c0_i32_273 = arith.constant 0 : i32
    %459 = tpu.memref_slice %arg8[%c45_i32_272, %c0_i32_273] : memref<48x256xf32, #tpu.memory_space<vmem>> -> memref<1x256xf32, #tpu.memory_space<vmem>>
    %460 = tpu.memref_slice %arg9[%c0_i32_271] : memref<1x!tpu.dma_semaphore, #tpu.memory_space<semaphore_mem>> -> memref<1x!tpu.dma_semaphore, #tpu.memory_space<semaphore_mem>>
    %461 = tpu.memref_squeeze %460 : memref<1x!tpu.dma_semaphore, #tpu.memory_space<semaphore_mem>> -> memref<!tpu.dma_semaphore, #tpu.memory_space<semaphore_mem>>
    tpu.enqueue_dma source(%458 : memref<1x256xf32, #tpu.memory_space<any>>) target(%459 : memref<1x256xf32, #tpu.memory_space<vmem>>) target_semaphore(%461 : memref<!tpu.dma_semaphore, #tpu.memory_space<semaphore_mem>>)
    %c48_i32_274 = arith.constant 48 : i32
    %462 = arith.muli %arg0, %c48_i32_274 : i32
    %c46_i32 = arith.constant 46 : i32
    %463 = arith.addi %462, %c46_i32 : i32
    %464 = arith.index_cast %463 : i32 to index
    %465 = memref.load %arg2[%464] : memref<48xi32, #tpu.memory_space<smem>>
    %c0_i32_275 = arith.constant 0 : i32
    %466 = arith.maxsi %465, %c0_i32_275 : i32
    %c511_i32_276 = arith.constant 511 : i32
    %467 = arith.minsi %466, %c511_i32_276 : i32
    %c0_i32_277 = arith.constant 0 : i32
    %468 = tpu.memref_slice %arg3[%467, %1] : memref<512x512xf32, #tpu.memory_space<any>> -> memref<1x256xf32, #tpu.memory_space<any>>
    %c46_i32_278 = arith.constant 46 : i32
    %c0_i32_279 = arith.constant 0 : i32
    %469 = tpu.memref_slice %arg8[%c46_i32_278, %c0_i32_279] : memref<48x256xf32, #tpu.memory_space<vmem>> -> memref<1x256xf32, #tpu.memory_space<vmem>>
    %470 = tpu.memref_slice %arg9[%c0_i32_277] : memref<1x!tpu.dma_semaphore, #tpu.memory_space<semaphore_mem>> -> memref<1x!tpu.dma_semaphore, #tpu.memory_space<semaphore_mem>>
    %471 = tpu.memref_squeeze %470 : memref<1x!tpu.dma_semaphore, #tpu.memory_space<semaphore_mem>> -> memref<!tpu.dma_semaphore, #tpu.memory_space<semaphore_mem>>
    tpu.enqueue_dma source(%468 : memref<1x256xf32, #tpu.memory_space<any>>) target(%469 : memref<1x256xf32, #tpu.memory_space<vmem>>) target_semaphore(%471 : memref<!tpu.dma_semaphore, #tpu.memory_space<semaphore_mem>>)
    %c48_i32_280 = arith.constant 48 : i32
    %472 = arith.muli %arg0, %c48_i32_280 : i32
    %c47_i32 = arith.constant 47 : i32
    %473 = arith.addi %472, %c47_i32 : i32
    %474 = arith.index_cast %473 : i32 to index
    %475 = memref.load %arg2[%474] : memref<48xi32, #tpu.memory_space<smem>>
    %c0_i32_281 = arith.constant 0 : i32
    %476 = arith.maxsi %475, %c0_i32_281 : i32
    %c511_i32_282 = arith.constant 511 : i32
    %477 = arith.minsi %476, %c511_i32_282 : i32
    %c0_i32_283 = arith.constant 0 : i32
    %478 = tpu.memref_slice %arg3[%477, %1] : memref<512x512xf32, #tpu.memory_space<any>> -> memref<1x256xf32, #tpu.memory_space<any>>
    %c47_i32_284 = arith.constant 47 : i32
    %c0_i32_285 = arith.constant 0 : i32
    %479 = tpu.memref_slice %arg8[%c47_i32_284, %c0_i32_285] : memref<48x256xf32, #tpu.memory_space<vmem>> -> memref<1x256xf32, #tpu.memory_space<vmem>>
    %480 = tpu.memref_slice %arg9[%c0_i32_283] : memref<1x!tpu.dma_semaphore, #tpu.memory_space<semaphore_mem>> -> memref<1x!tpu.dma_semaphore, #tpu.memory_space<semaphore_mem>>
    %481 = tpu.memref_squeeze %480 : memref<1x!tpu.dma_semaphore, #tpu.memory_space<semaphore_mem>> -> memref<!tpu.dma_semaphore, #tpu.memory_space<semaphore_mem>>
    tpu.enqueue_dma source(%478 : memref<1x256xf32, #tpu.memory_space<any>>) target(%479 : memref<1x256xf32, #tpu.memory_space<vmem>>) target_semaphore(%481 : memref<!tpu.dma_semaphore, #tpu.memory_space<semaphore_mem>>)
    %c0_i32_286 = arith.constant 0 : i32
    %482 = arith.cmpi eq, %arg1, %c0_i32_286 : i32
    %483 = arith.extui %482 : i1 to i32
    %c0_i32_287 = arith.constant 0 : i32
    %484 = arith.cmpi ne, %483, %c0_i32_287 : i32
    scf.if %484 {
      %cst_537 = arith.constant 0.000000e+00 : f32
      %688 = vector.broadcast %cst_537 : f32 to vector<48x128xf32>
      %c0_538 = arith.constant 0 : index
      %c0_539 = arith.constant 0 : index
      %689 = vector.load %arg10[%c0_538, %c0_539] : memref<48x128xf32, #tpu.memory_space<vmem>>, vector<48x128xf32>
      tpu.vector_store %arg10[%c0_538, %c0_539], %688 {strides = array<i32>} : memref<48x128xf32, #tpu.memory_space<vmem>>, vector<48x128xf32>,
    } else {
    }
    %c0_i32_288 = arith.constant 0 : i32
    %c0_i32_289 = arith.constant 0 : i32
    %c0_i32_290 = arith.constant 0 : i32
    %485 = tpu.memref_slice %arg3[%c0_i32_289, %c0_i32_290] : memref<512x512xf32, #tpu.memory_space<any>> -> memref<1x256xf32, #tpu.memory_space<any>>
    %c0_i32_291 = arith.constant 0 : i32
    %c0_i32_292 = arith.constant 0 : i32
    %486 = tpu.memref_slice %arg8[%c0_i32_291, %c0_i32_292] : memref<48x256xf32, #tpu.memory_space<vmem>> -> memref<1x256xf32, #tpu.memory_space<vmem>>
    %487 = tpu.memref_slice %arg9[%c0_i32_288] : memref<1x!tpu.dma_semaphore, #tpu.memory_space<semaphore_mem>> -> memref<1x!tpu.dma_semaphore, #tpu.memory_space<semaphore_mem>>
    %488 = tpu.memref_squeeze %487 : memref<1x!tpu.dma_semaphore, #tpu.memory_space<semaphore_mem>> -> memref<!tpu.dma_semaphore, #tpu.memory_space<semaphore_mem>>
    tpu.wait_dma2 semaphore(%488 : memref<!tpu.dma_semaphore, #tpu.memory_space<semaphore_mem>>) src(%485 : memref<1x256xf32, #tpu.memory_space<any>>) dst(%486 : memref<1x256xf32, #tpu.memory_space<vmem>>)
    %c0_i32_293 = arith.constant 0 : i32
    %c0_i32_294 = arith.constant 0 : i32
    %c0_i32_295 = arith.constant 0 : i32
    %489 = tpu.memref_slice %arg3[%c0_i32_294, %c0_i32_295] : memref<512x512xf32, #tpu.memory_space<any>> -> memref<1x256xf32, #tpu.memory_space<any>>
    %c1_i32_296 = arith.constant 1 : i32
    %c0_i32_297 = arith.constant 0 : i32
    %490 = tpu.memref_slice %arg8[%c1_i32_296, %c0_i32_297] : memref<48x256xf32, #tpu.memory_space<vmem>> -> memref<1x256xf32, #tpu.memory_space<vmem>>
    %491 = tpu.memref_slice %arg9[%c0_i32_293] : memref<1x!tpu.dma_semaphore, #tpu.memory_space<semaphore_mem>> -> memref<1x!tpu.dma_semaphore, #tpu.memory_space<semaphore_mem>>
    %492 = tpu.memref_squeeze %491 : memref<1x!tpu.dma_semaphore, #tpu.memory_space<semaphore_mem>> -> memref<!tpu.dma_semaphore, #tpu.memory_space<semaphore_mem>>
    tpu.wait_dma2 semaphore(%492 : memref<!tpu.dma_semaphore, #tpu.memory_space<semaphore_mem>>) src(%489 : memref<1x256xf32, #tpu.memory_space<any>>) dst(%490 : memref<1x256xf32, #tpu.memory_space<vmem>>)
    %c0_i32_298 = arith.constant 0 : i32
    %c0_i32_299 = arith.constant 0 : i32
    %c0_i32_300 = arith.constant 0 : i32
    %493 = tpu.memref_slice %arg3[%c0_i32_299, %c0_i32_300] : memref<512x512xf32, #tpu.memory_space<any>> -> memref<1x256xf32, #tpu.memory_space<any>>
    %c2_i32_301 = arith.constant 2 : i32
    %c0_i32_302 = arith.constant 0 : i32
    %494 = tpu.memref_slice %arg8[%c2_i32_301, %c0_i32_302] : memref<48x256xf32, #tpu.memory_space<vmem>> -> memref<1x256xf32, #tpu.memory_space<vmem>>
    %495 = tpu.memref_slice %arg9[%c0_i32_298] : memref<1x!tpu.dma_semaphore, #tpu.memory_space<semaphore_mem>> -> memref<1x!tpu.dma_semaphore, #tpu.memory_space<semaphore_mem>>
    %496 = tpu.memref_squeeze %495 : memref<1x!tpu.dma_semaphore, #tpu.memory_space<semaphore_mem>> -> memref<!tpu.dma_semaphore, #tpu.memory_space<semaphore_mem>>
    tpu.wait_dma2 semaphore(%496 : memref<!tpu.dma_semaphore, #tpu.memory_space<semaphore_mem>>) src(%493 : memref<1x256xf32, #tpu.memory_space<any>>) dst(%494 : memref<1x256xf32, #tpu.memory_space<vmem>>)
    %c0_i32_303 = arith.constant 0 : i32
    %c0_i32_304 = arith.constant 0 : i32
    %c0_i32_305 = arith.constant 0 : i32
    %497 = tpu.memref_slice %arg3[%c0_i32_304, %c0_i32_305] : memref<512x512xf32, #tpu.memory_space<any>> -> memref<1x256xf32, #tpu.memory_space<any>>
    %c3_i32_306 = arith.constant 3 : i32
    %c0_i32_307 = arith.constant 0 : i32
    %498 = tpu.memref_slice %arg8[%c3_i32_306, %c0_i32_307] : memref<48x256xf32, #tpu.memory_space<vmem>> -> memref<1x256xf32, #tpu.memory_space<vmem>>
    %499 = tpu.memref_slice %arg9[%c0_i32_303] : memref<1x!tpu.dma_semaphore, #tpu.memory_space<semaphore_mem>> -> memref<1x!tpu.dma_semaphore, #tpu.memory_space<semaphore_mem>>
    %500 = tpu.memref_squeeze %499 : memref<1x!tpu.dma_semaphore, #tpu.memory_space<semaphore_mem>> -> memref<!tpu.dma_semaphore, #tpu.memory_space<semaphore_mem>>
    tpu.wait_dma2 semaphore(%500 : memref<!tpu.dma_semaphore, #tpu.memory_space<semaphore_mem>>) src(%497 : memref<1x256xf32, #tpu.memory_space<any>>) dst(%498 : memref<1x256xf32, #tpu.memory_space<vmem>>)
    %c0_i32_308 = arith.constant 0 : i32
    %c0_i32_309 = arith.constant 0 : i32
    %c0_i32_310 = arith.constant 0 : i32
    %501 = tpu.memref_slice %arg3[%c0_i32_309, %c0_i32_310] : memref<512x512xf32, #tpu.memory_space<any>> -> memref<1x256xf32, #tpu.memory_space<any>>
    %c4_i32_311 = arith.constant 4 : i32
    %c0_i32_312 = arith.constant 0 : i32
    %502 = tpu.memref_slice %arg8[%c4_i32_311, %c0_i32_312] : memref<48x256xf32, #tpu.memory_space<vmem>> -> memref<1x256xf32, #tpu.memory_space<vmem>>
    %503 = tpu.memref_slice %arg9[%c0_i32_308] : memref<1x!tpu.dma_semaphore, #tpu.memory_space<semaphore_mem>> -> memref<1x!tpu.dma_semaphore, #tpu.memory_space<semaphore_mem>>
    %504 = tpu.memref_squeeze %503 : memref<1x!tpu.dma_semaphore, #tpu.memory_space<semaphore_mem>> -> memref<!tpu.dma_semaphore, #tpu.memory_space<semaphore_mem>>
    tpu.wait_dma2 semaphore(%504 : memref<!tpu.dma_semaphore, #tpu.memory_space<semaphore_mem>>) src(%501 : memref<1x256xf32, #tpu.memory_space<any>>) dst(%502 : memref<1x256xf32, #tpu.memory_space<vmem>>)
    %c0_i32_313 = arith.constant 0 : i32
    %c0_i32_314 = arith.constant 0 : i32
    %c0_i32_315 = arith.constant 0 : i32
    %505 = tpu.memref_slice %arg3[%c0_i32_314, %c0_i32_315] : memref<512x512xf32, #tpu.memory_space<any>> -> memref<1x256xf32, #tpu.memory_space<any>>
    %c5_i32_316 = arith.constant 5 : i32
    %c0_i32_317 = arith.constant 0 : i32
    %506 = tpu.memref_slice %arg8[%c5_i32_316, %c0_i32_317] : memref<48x256xf32, #tpu.memory_space<vmem>> -> memref<1x256xf32, #tpu.memory_space<vmem>>
    %507 = tpu.memref_slice %arg9[%c0_i32_313] : memref<1x!tpu.dma_semaphore, #tpu.memory_space<semaphore_mem>> -> memref<1x!tpu.dma_semaphore, #tpu.memory_space<semaphore_mem>>
    %508 = tpu.memref_squeeze %507 : memref<1x!tpu.dma_semaphore, #tpu.memory_space<semaphore_mem>> -> memref<!tpu.dma_semaphore, #tpu.memory_space<semaphore_mem>>
    tpu.wait_dma2 semaphore(%508 : memref<!tpu.dma_semaphore, #tpu.memory_space<semaphore_mem>>) src(%505 : memref<1x256xf32, #tpu.memory_space<any>>) dst(%506 : memref<1x256xf32, #tpu.memory_space<vmem>>)
    %c0_i32_318 = arith.constant 0 : i32
    %c0_i32_319 = arith.constant 0 : i32
    %c0_i32_320 = arith.constant 0 : i32
    %509 = tpu.memref_slice %arg3[%c0_i32_319, %c0_i32_320] : memref<512x512xf32, #tpu.memory_space<any>> -> memref<1x256xf32, #tpu.memory_space<any>>
    %c6_i32_321 = arith.constant 6 : i32
    %c0_i32_322 = arith.constant 0 : i32
    %510 = tpu.memref_slice %arg8[%c6_i32_321, %c0_i32_322] : memref<48x256xf32, #tpu.memory_space<vmem>> -> memref<1x256xf32, #tpu.memory_space<vmem>>
    %511 = tpu.memref_slice %arg9[%c0_i32_318] : memref<1x!tpu.dma_semaphore, #tpu.memory_space<semaphore_mem>> -> memref<1x!tpu.dma_semaphore, #tpu.memory_space<semaphore_mem>>
    %512 = tpu.memref_squeeze %511 : memref<1x!tpu.dma_semaphore, #tpu.memory_space<semaphore_mem>> -> memref<!tpu.dma_semaphore, #tpu.memory_space<semaphore_mem>>
    tpu.wait_dma2 semaphore(%512 : memref<!tpu.dma_semaphore, #tpu.memory_space<semaphore_mem>>) src(%509 : memref<1x256xf32, #tpu.memory_space<any>>) dst(%510 : memref<1x256xf32, #tpu.memory_space<vmem>>)
    %c0_i32_323 = arith.constant 0 : i32
    %c0_i32_324 = arith.constant 0 : i32
    %c0_i32_325 = arith.constant 0 : i32
    %513 = tpu.memref_slice %arg3[%c0_i32_324, %c0_i32_325] : memref<512x512xf32, #tpu.memory_space<any>> -> memref<1x256xf32, #tpu.memory_space<any>>
    %c7_i32_326 = arith.constant 7 : i32
    %c0_i32_327 = arith.constant 0 : i32
    %514 = tpu.memref_slice %arg8[%c7_i32_326, %c0_i32_327] : memref<48x256xf32, #tpu.memory_space<vmem>> -> memref<1x256xf32, #tpu.memory_space<vmem>>
    %515 = tpu.memref_slice %arg9[%c0_i32_323] : memref<1x!tpu.dma_semaphore, #tpu.memory_space<semaphore_mem>> -> memref<1x!tpu.dma_semaphore, #tpu.memory_space<semaphore_mem>>
    %516 = tpu.memref_squeeze %515 : memref<1x!tpu.dma_semaphore, #tpu.memory_space<semaphore_mem>> -> memref<!tpu.dma_semaphore, #tpu.memory_space<semaphore_mem>>
    tpu.wait_dma2 semaphore(%516 : memref<!tpu.dma_semaphore, #tpu.memory_space<semaphore_mem>>) src(%513 : memref<1x256xf32, #tpu.memory_space<any>>) dst(%514 : memref<1x256xf32, #tpu.memory_space<vmem>>)
    %c0_i32_328 = arith.constant 0 : i32
    %c0_i32_329 = arith.constant 0 : i32
    %c0_i32_330 = arith.constant 0 : i32
    %517 = tpu.memref_slice %arg3[%c0_i32_329, %c0_i32_330] : memref<512x512xf32, #tpu.memory_space<any>> -> memref<1x256xf32, #tpu.memory_space<any>>
    %c8_i32_331 = arith.constant 8 : i32
    %c0_i32_332 = arith.constant 0 : i32
    %518 = tpu.memref_slice %arg8[%c8_i32_331, %c0_i32_332] : memref<48x256xf32, #tpu.memory_space<vmem>> -> memref<1x256xf32, #tpu.memory_space<vmem>>
    %519 = tpu.memref_slice %arg9[%c0_i32_328] : memref<1x!tpu.dma_semaphore, #tpu.memory_space<semaphore_mem>> -> memref<1x!tpu.dma_semaphore, #tpu.memory_space<semaphore_mem>>
    %520 = tpu.memref_squeeze %519 : memref<1x!tpu.dma_semaphore, #tpu.memory_space<semaphore_mem>> -> memref<!tpu.dma_semaphore, #tpu.memory_space<semaphore_mem>>
    tpu.wait_dma2 semaphore(%520 : memref<!tpu.dma_semaphore, #tpu.memory_space<semaphore_mem>>) src(%517 : memref<1x256xf32, #tpu.memory_space<any>>) dst(%518 : memref<1x256xf32, #tpu.memory_space<vmem>>)
    %c0_i32_333 = arith.constant 0 : i32
    %c0_i32_334 = arith.constant 0 : i32
    %c0_i32_335 = arith.constant 0 : i32
    %521 = tpu.memref_slice %arg3[%c0_i32_334, %c0_i32_335] : memref<512x512xf32, #tpu.memory_space<any>> -> memref<1x256xf32, #tpu.memory_space<any>>
    %c9_i32_336 = arith.constant 9 : i32
    %c0_i32_337 = arith.constant 0 : i32
    %522 = tpu.memref_slice %arg8[%c9_i32_336, %c0_i32_337] : memref<48x256xf32, #tpu.memory_space<vmem>> -> memref<1x256xf32, #tpu.memory_space<vmem>>
    %523 = tpu.memref_slice %arg9[%c0_i32_333] : memref<1x!tpu.dma_semaphore, #tpu.memory_space<semaphore_mem>> -> memref<1x!tpu.dma_semaphore, #tpu.memory_space<semaphore_mem>>
    %524 = tpu.memref_squeeze %523 : memref<1x!tpu.dma_semaphore, #tpu.memory_space<semaphore_mem>> -> memref<!tpu.dma_semaphore, #tpu.memory_space<semaphore_mem>>
    tpu.wait_dma2 semaphore(%524 : memref<!tpu.dma_semaphore, #tpu.memory_space<semaphore_mem>>) src(%521 : memref<1x256xf32, #tpu.memory_space<any>>) dst(%522 : memref<1x256xf32, #tpu.memory_space<vmem>>)
    %c0_i32_338 = arith.constant 0 : i32
    %c0_i32_339 = arith.constant 0 : i32
    %c0_i32_340 = arith.constant 0 : i32
    %525 = tpu.memref_slice %arg3[%c0_i32_339, %c0_i32_340] : memref<512x512xf32, #tpu.memory_space<any>> -> memref<1x256xf32, #tpu.memory_space<any>>
    %c10_i32_341 = arith.constant 10 : i32
    %c0_i32_342 = arith.constant 0 : i32
    %526 = tpu.memref_slice %arg8[%c10_i32_341, %c0_i32_342] : memref<48x256xf32, #tpu.memory_space<vmem>> -> memref<1x256xf32, #tpu.memory_space<vmem>>
    %527 = tpu.memref_slice %arg9[%c0_i32_338] : memref<1x!tpu.dma_semaphore, #tpu.memory_space<semaphore_mem>> -> memref<1x!tpu.dma_semaphore, #tpu.memory_space<semaphore_mem>>
    %528 = tpu.memref_squeeze %527 : memref<1x!tpu.dma_semaphore, #tpu.memory_space<semaphore_mem>> -> memref<!tpu.dma_semaphore, #tpu.memory_space<semaphore_mem>>
    tpu.wait_dma2 semaphore(%528 : memref<!tpu.dma_semaphore, #tpu.memory_space<semaphore_mem>>) src(%525 : memref<1x256xf32, #tpu.memory_space<any>>) dst(%526 : memref<1x256xf32, #tpu.memory_space<vmem>>)
    %c0_i32_343 = arith.constant 0 : i32
    %c0_i32_344 = arith.constant 0 : i32
    %c0_i32_345 = arith.constant 0 : i32
    %529 = tpu.memref_slice %arg3[%c0_i32_344, %c0_i32_345] : memref<512x512xf32, #tpu.memory_space<any>> -> memref<1x256xf32, #tpu.memory_space<any>>
    %c11_i32_346 = arith.constant 11 : i32
    %c0_i32_347 = arith.constant 0 : i32
    %530 = tpu.memref_slice %arg8[%c11_i32_346, %c0_i32_347] : memref<48x256xf32, #tpu.memory_space<vmem>> -> memref<1x256xf32, #tpu.memory_space<vmem>>
    %531 = tpu.memref_slice %arg9[%c0_i32_343] : memref<1x!tpu.dma_semaphore, #tpu.memory_space<semaphore_mem>> -> memref<1x!tpu.dma_semaphore, #tpu.memory_space<semaphore_mem>>
    %532 = tpu.memref_squeeze %531 : memref<1x!tpu.dma_semaphore, #tpu.memory_space<semaphore_mem>> -> memref<!tpu.dma_semaphore, #tpu.memory_space<semaphore_mem>>
    tpu.wait_dma2 semaphore(%532 : memref<!tpu.dma_semaphore, #tpu.memory_space<semaphore_mem>>) src(%529 : memref<1x256xf32, #tpu.memory_space<any>>) dst(%530 : memref<1x256xf32, #tpu.memory_space<vmem>>)
    %c0_i32_348 = arith.constant 0 : i32
    %c0_i32_349 = arith.constant 0 : i32
    %c0_i32_350 = arith.constant 0 : i32
    %533 = tpu.memref_slice %arg3[%c0_i32_349, %c0_i32_350] : memref<512x512xf32, #tpu.memory_space<any>> -> memref<1x256xf32, #tpu.memory_space<any>>
    %c12_i32_351 = arith.constant 12 : i32
    %c0_i32_352 = arith.constant 0 : i32
    %534 = tpu.memref_slice %arg8[%c12_i32_351, %c0_i32_352] : memref<48x256xf32, #tpu.memory_space<vmem>> -> memref<1x256xf32, #tpu.memory_space<vmem>>
    %535 = tpu.memref_slice %arg9[%c0_i32_348] : memref<1x!tpu.dma_semaphore, #tpu.memory_space<semaphore_mem>> -> memref<1x!tpu.dma_semaphore, #tpu.memory_space<semaphore_mem>>
    %536 = tpu.memref_squeeze %535 : memref<1x!tpu.dma_semaphore, #tpu.memory_space<semaphore_mem>> -> memref<!tpu.dma_semaphore, #tpu.memory_space<semaphore_mem>>
    tpu.wait_dma2 semaphore(%536 : memref<!tpu.dma_semaphore, #tpu.memory_space<semaphore_mem>>) src(%533 : memref<1x256xf32, #tpu.memory_space<any>>) dst(%534 : memref<1x256xf32, #tpu.memory_space<vmem>>)
    %c0_i32_353 = arith.constant 0 : i32
    %c0_i32_354 = arith.constant 0 : i32
    %c0_i32_355 = arith.constant 0 : i32
    %537 = tpu.memref_slice %arg3[%c0_i32_354, %c0_i32_355] : memref<512x512xf32, #tpu.memory_space<any>> -> memref<1x256xf32, #tpu.memory_space<any>>
    %c13_i32_356 = arith.constant 13 : i32
    %c0_i32_357 = arith.constant 0 : i32
    %538 = tpu.memref_slice %arg8[%c13_i32_356, %c0_i32_357] : memref<48x256xf32, #tpu.memory_space<vmem>> -> memref<1x256xf32, #tpu.memory_space<vmem>>
    %539 = tpu.memref_slice %arg9[%c0_i32_353] : memref<1x!tpu.dma_semaphore, #tpu.memory_space<semaphore_mem>> -> memref<1x!tpu.dma_semaphore, #tpu.memory_space<semaphore_mem>>
    %540 = tpu.memref_squeeze %539 : memref<1x!tpu.dma_semaphore, #tpu.memory_space<semaphore_mem>> -> memref<!tpu.dma_semaphore, #tpu.memory_space<semaphore_mem>>
    tpu.wait_dma2 semaphore(%540 : memref<!tpu.dma_semaphore, #tpu.memory_space<semaphore_mem>>) src(%537 : memref<1x256xf32, #tpu.memory_space<any>>) dst(%538 : memref<1x256xf32, #tpu.memory_space<vmem>>)
    %c0_i32_358 = arith.constant 0 : i32
    %c0_i32_359 = arith.constant 0 : i32
    %c0_i32_360 = arith.constant 0 : i32
    %541 = tpu.memref_slice %arg3[%c0_i32_359, %c0_i32_360] : memref<512x512xf32, #tpu.memory_space<any>> -> memref<1x256xf32, #tpu.memory_space<any>>
    %c14_i32_361 = arith.constant 14 : i32
    %c0_i32_362 = arith.constant 0 : i32
    %542 = tpu.memref_slice %arg8[%c14_i32_361, %c0_i32_362] : memref<48x256xf32, #tpu.memory_space<vmem>> -> memref<1x256xf32, #tpu.memory_space<vmem>>
    %543 = tpu.memref_slice %arg9[%c0_i32_358] : memref<1x!tpu.dma_semaphore, #tpu.memory_space<semaphore_mem>> -> memref<1x!tpu.dma_semaphore, #tpu.memory_space<semaphore_mem>>
    %544 = tpu.memref_squeeze %543 : memref<1x!tpu.dma_semaphore, #tpu.memory_space<semaphore_mem>> -> memref<!tpu.dma_semaphore, #tpu.memory_space<semaphore_mem>>
    tpu.wait_dma2 semaphore(%544 : memref<!tpu.dma_semaphore, #tpu.memory_space<semaphore_mem>>) src(%541 : memref<1x256xf32, #tpu.memory_space<any>>) dst(%542 : memref<1x256xf32, #tpu.memory_space<vmem>>)
    %c0_i32_363 = arith.constant 0 : i32
    %c0_i32_364 = arith.constant 0 : i32
    %c0_i32_365 = arith.constant 0 : i32
    %545 = tpu.memref_slice %arg3[%c0_i32_364, %c0_i32_365] : memref<512x512xf32, #tpu.memory_space<any>> -> memref<1x256xf32, #tpu.memory_space<any>>
    %c15_i32_366 = arith.constant 15 : i32
    %c0_i32_367 = arith.constant 0 : i32
    %546 = tpu.memref_slice %arg8[%c15_i32_366, %c0_i32_367] : memref<48x256xf32, #tpu.memory_space<vmem>> -> memref<1x256xf32, #tpu.memory_space<vmem>>
    %547 = tpu.memref_slice %arg9[%c0_i32_363] : memref<1x!tpu.dma_semaphore, #tpu.memory_space<semaphore_mem>> -> memref<1x!tpu.dma_semaphore, #tpu.memory_space<semaphore_mem>>
    %548 = tpu.memref_squeeze %547 : memref<1x!tpu.dma_semaphore, #tpu.memory_space<semaphore_mem>> -> memref<!tpu.dma_semaphore, #tpu.memory_space<semaphore_mem>>
    tpu.wait_dma2 semaphore(%548 : memref<!tpu.dma_semaphore, #tpu.memory_space<semaphore_mem>>) src(%545 : memref<1x256xf32, #tpu.memory_space<any>>) dst(%546 : memref<1x256xf32, #tpu.memory_space<vmem>>)
    %c0_i32_368 = arith.constant 0 : i32
    %c0_i32_369 = arith.constant 0 : i32
    %c0_i32_370 = arith.constant 0 : i32
    %549 = tpu.memref_slice %arg3[%c0_i32_369, %c0_i32_370] : memref<512x512xf32, #tpu.memory_space<any>> -> memref<1x256xf32, #tpu.memory_space<any>>
    %c16_i32_371 = arith.constant 16 : i32
    %c0_i32_372 = arith.constant 0 : i32
    %550 = tpu.memref_slice %arg8[%c16_i32_371, %c0_i32_372] : memref<48x256xf32, #tpu.memory_space<vmem>> -> memref<1x256xf32, #tpu.memory_space<vmem>>
    %551 = tpu.memref_slice %arg9[%c0_i32_368] : memref<1x!tpu.dma_semaphore, #tpu.memory_space<semaphore_mem>> -> memref<1x!tpu.dma_semaphore, #tpu.memory_space<semaphore_mem>>
    %552 = tpu.memref_squeeze %551 : memref<1x!tpu.dma_semaphore, #tpu.memory_space<semaphore_mem>> -> memref<!tpu.dma_semaphore, #tpu.memory_space<semaphore_mem>>
    tpu.wait_dma2 semaphore(%552 : memref<!tpu.dma_semaphore, #tpu.memory_space<semaphore_mem>>) src(%549 : memref<1x256xf32, #tpu.memory_space<any>>) dst(%550 : memref<1x256xf32, #tpu.memory_space<vmem>>)
    %c0_i32_373 = arith.constant 0 : i32
    %c0_i32_374 = arith.constant 0 : i32
    %c0_i32_375 = arith.constant 0 : i32
    %553 = tpu.memref_slice %arg3[%c0_i32_374, %c0_i32_375] : memref<512x512xf32, #tpu.memory_space<any>> -> memref<1x256xf32, #tpu.memory_space<any>>
    %c17_i32_376 = arith.constant 17 : i32
    %c0_i32_377 = arith.constant 0 : i32
    %554 = tpu.memref_slice %arg8[%c17_i32_376, %c0_i32_377] : memref<48x256xf32, #tpu.memory_space<vmem>> -> memref<1x256xf32, #tpu.memory_space<vmem>>
    %555 = tpu.memref_slice %arg9[%c0_i32_373] : memref<1x!tpu.dma_semaphore, #tpu.memory_space<semaphore_mem>> -> memref<1x!tpu.dma_semaphore, #tpu.memory_space<semaphore_mem>>
    %556 = tpu.memref_squeeze %555 : memref<1x!tpu.dma_semaphore, #tpu.memory_space<semaphore_mem>> -> memref<!tpu.dma_semaphore, #tpu.memory_space<semaphore_mem>>
    tpu.wait_dma2 semaphore(%556 : memref<!tpu.dma_semaphore, #tpu.memory_space<semaphore_mem>>) src(%553 : memref<1x256xf32, #tpu.memory_space<any>>) dst(%554 : memref<1x256xf32, #tpu.memory_space<vmem>>)
    %c0_i32_378 = arith.constant 0 : i32
    %c0_i32_379 = arith.constant 0 : i32
    %c0_i32_380 = arith.constant 0 : i32
    %557 = tpu.memref_slice %arg3[%c0_i32_379, %c0_i32_380] : memref<512x512xf32, #tpu.memory_space<any>> -> memref<1x256xf32, #tpu.memory_space<any>>
    %c18_i32_381 = arith.constant 18 : i32
    %c0_i32_382 = arith.constant 0 : i32
    %558 = tpu.memref_slice %arg8[%c18_i32_381, %c0_i32_382] : memref<48x256xf32, #tpu.memory_space<vmem>> -> memref<1x256xf32, #tpu.memory_space<vmem>>
    %559 = tpu.memref_slice %arg9[%c0_i32_378] : memref<1x!tpu.dma_semaphore, #tpu.memory_space<semaphore_mem>> -> memref<1x!tpu.dma_semaphore, #tpu.memory_space<semaphore_mem>>
    %560 = tpu.memref_squeeze %559 : memref<1x!tpu.dma_semaphore, #tpu.memory_space<semaphore_mem>> -> memref<!tpu.dma_semaphore, #tpu.memory_space<semaphore_mem>>
    tpu.wait_dma2 semaphore(%560 : memref<!tpu.dma_semaphore, #tpu.memory_space<semaphore_mem>>) src(%557 : memref<1x256xf32, #tpu.memory_space<any>>) dst(%558 : memref<1x256xf32, #tpu.memory_space<vmem>>)
    %c0_i32_383 = arith.constant 0 : i32
    %c0_i32_384 = arith.constant 0 : i32
    %c0_i32_385 = arith.constant 0 : i32
    %561 = tpu.memref_slice %arg3[%c0_i32_384, %c0_i32_385] : memref<512x512xf32, #tpu.memory_space<any>> -> memref<1x256xf32, #tpu.memory_space<any>>
    %c19_i32_386 = arith.constant 19 : i32
    %c0_i32_387 = arith.constant 0 : i32
    %562 = tpu.memref_slice %arg8[%c19_i32_386, %c0_i32_387] : memref<48x256xf32, #tpu.memory_space<vmem>> -> memref<1x256xf32, #tpu.memory_space<vmem>>
    %563 = tpu.memref_slice %arg9[%c0_i32_383] : memref<1x!tpu.dma_semaphore, #tpu.memory_space<semaphore_mem>> -> memref<1x!tpu.dma_semaphore, #tpu.memory_space<semaphore_mem>>
    %564 = tpu.memref_squeeze %563 : memref<1x!tpu.dma_semaphore, #tpu.memory_space<semaphore_mem>> -> memref<!tpu.dma_semaphore, #tpu.memory_space<semaphore_mem>>
    tpu.wait_dma2 semaphore(%564 : memref<!tpu.dma_semaphore, #tpu.memory_space<semaphore_mem>>) src(%561 : memref<1x256xf32, #tpu.memory_space<any>>) dst(%562 : memref<1x256xf32, #tpu.memory_space<vmem>>)
    %c0_i32_388 = arith.constant 0 : i32
    %c0_i32_389 = arith.constant 0 : i32
    %c0_i32_390 = arith.constant 0 : i32
    %565 = tpu.memref_slice %arg3[%c0_i32_389, %c0_i32_390] : memref<512x512xf32, #tpu.memory_space<any>> -> memref<1x256xf32, #tpu.memory_space<any>>
    %c20_i32_391 = arith.constant 20 : i32
    %c0_i32_392 = arith.constant 0 : i32
    %566 = tpu.memref_slice %arg8[%c20_i32_391, %c0_i32_392] : memref<48x256xf32, #tpu.memory_space<vmem>> -> memref<1x256xf32, #tpu.memory_space<vmem>>
    %567 = tpu.memref_slice %arg9[%c0_i32_388] : memref<1x!tpu.dma_semaphore, #tpu.memory_space<semaphore_mem>> -> memref<1x!tpu.dma_semaphore, #tpu.memory_space<semaphore_mem>>
    %568 = tpu.memref_squeeze %567 : memref<1x!tpu.dma_semaphore, #tpu.memory_space<semaphore_mem>> -> memref<!tpu.dma_semaphore, #tpu.memory_space<semaphore_mem>>
    tpu.wait_dma2 semaphore(%568 : memref<!tpu.dma_semaphore, #tpu.memory_space<semaphore_mem>>) src(%565 : memref<1x256xf32, #tpu.memory_space<any>>) dst(%566 : memref<1x256xf32, #tpu.memory_space<vmem>>)
    %c0_i32_393 = arith.constant 0 : i32
    %c0_i32_394 = arith.constant 0 : i32
    %c0_i32_395 = arith.constant 0 : i32
    %569 = tpu.memref_slice %arg3[%c0_i32_394, %c0_i32_395] : memref<512x512xf32, #tpu.memory_space<any>> -> memref<1x256xf32, #tpu.memory_space<any>>
    %c21_i32_396 = arith.constant 21 : i32
    %c0_i32_397 = arith.constant 0 : i32
    %570 = tpu.memref_slice %arg8[%c21_i32_396, %c0_i32_397] : memref<48x256xf32, #tpu.memory_space<vmem>> -> memref<1x256xf32, #tpu.memory_space<vmem>>
    %571 = tpu.memref_slice %arg9[%c0_i32_393] : memref<1x!tpu.dma_semaphore, #tpu.memory_space<semaphore_mem>> -> memref<1x!tpu.dma_semaphore, #tpu.memory_space<semaphore_mem>>
    %572 = tpu.memref_squeeze %571 : memref<1x!tpu.dma_semaphore, #tpu.memory_space<semaphore_mem>> -> memref<!tpu.dma_semaphore, #tpu.memory_space<semaphore_mem>>
    tpu.wait_dma2 semaphore(%572 : memref<!tpu.dma_semaphore, #tpu.memory_space<semaphore_mem>>) src(%569 : memref<1x256xf32, #tpu.memory_space<any>>) dst(%570 : memref<1x256xf32, #tpu.memory_space<vmem>>)
    %c0_i32_398 = arith.constant 0 : i32
    %c0_i32_399 = arith.constant 0 : i32
    %c0_i32_400 = arith.constant 0 : i32
    %573 = tpu.memref_slice %arg3[%c0_i32_399, %c0_i32_400] : memref<512x512xf32, #tpu.memory_space<any>> -> memref<1x256xf32, #tpu.memory_space<any>>
    %c22_i32_401 = arith.constant 22 : i32
    %c0_i32_402 = arith.constant 0 : i32
    %574 = tpu.memref_slice %arg8[%c22_i32_401, %c0_i32_402] : memref<48x256xf32, #tpu.memory_space<vmem>> -> memref<1x256xf32, #tpu.memory_space<vmem>>
    %575 = tpu.memref_slice %arg9[%c0_i32_398] : memref<1x!tpu.dma_semaphore, #tpu.memory_space<semaphore_mem>> -> memref<1x!tpu.dma_semaphore, #tpu.memory_space<semaphore_mem>>
    %576 = tpu.memref_squeeze %575 : memref<1x!tpu.dma_semaphore, #tpu.memory_space<semaphore_mem>> -> memref<!tpu.dma_semaphore, #tpu.memory_space<semaphore_mem>>
    tpu.wait_dma2 semaphore(%576 : memref<!tpu.dma_semaphore, #tpu.memory_space<semaphore_mem>>) src(%573 : memref<1x256xf32, #tpu.memory_space<any>>) dst(%574 : memref<1x256xf32, #tpu.memory_space<vmem>>)
    %c0_i32_403 = arith.constant 0 : i32
    %c0_i32_404 = arith.constant 0 : i32
    %c0_i32_405 = arith.constant 0 : i32
    %577 = tpu.memref_slice %arg3[%c0_i32_404, %c0_i32_405] : memref<512x512xf32, #tpu.memory_space<any>> -> memref<1x256xf32, #tpu.memory_space<any>>
    %c23_i32_406 = arith.constant 23 : i32
    %c0_i32_407 = arith.constant 0 : i32
    %578 = tpu.memref_slice %arg8[%c23_i32_406, %c0_i32_407] : memref<48x256xf32, #tpu.memory_space<vmem>> -> memref<1x256xf32, #tpu.memory_space<vmem>>
    %579 = tpu.memref_slice %arg9[%c0_i32_403] : memref<1x!tpu.dma_semaphore, #tpu.memory_space<semaphore_mem>> -> memref<1x!tpu.dma_semaphore, #tpu.memory_space<semaphore_mem>>
    %580 = tpu.memref_squeeze %579 : memref<1x!tpu.dma_semaphore, #tpu.memory_space<semaphore_mem>> -> memref<!tpu.dma_semaphore, #tpu.memory_space<semaphore_mem>>
    tpu.wait_dma2 semaphore(%580 : memref<!tpu.dma_semaphore, #tpu.memory_space<semaphore_mem>>) src(%577 : memref<1x256xf32, #tpu.memory_space<any>>) dst(%578 : memref<1x256xf32, #tpu.memory_space<vmem>>)
    %c0_i32_408 = arith.constant 0 : i32
    %c0_i32_409 = arith.constant 0 : i32
    %c0_i32_410 = arith.constant 0 : i32
    %581 = tpu.memref_slice %arg3[%c0_i32_409, %c0_i32_410] : memref<512x512xf32, #tpu.memory_space<any>> -> memref<1x256xf32, #tpu.memory_space<any>>
    %c24_i32_411 = arith.constant 24 : i32
    %c0_i32_412 = arith.constant 0 : i32
    %582 = tpu.memref_slice %arg8[%c24_i32_411, %c0_i32_412] : memref<48x256xf32, #tpu.memory_space<vmem>> -> memref<1x256xf32, #tpu.memory_space<vmem>>
    %583 = tpu.memref_slice %arg9[%c0_i32_408] : memref<1x!tpu.dma_semaphore, #tpu.memory_space<semaphore_mem>> -> memref<1x!tpu.dma_semaphore, #tpu.memory_space<semaphore_mem>>
    %584 = tpu.memref_squeeze %583 : memref<1x!tpu.dma_semaphore, #tpu.memory_space<semaphore_mem>> -> memref<!tpu.dma_semaphore, #tpu.memory_space<semaphore_mem>>
    tpu.wait_dma2 semaphore(%584 : memref<!tpu.dma_semaphore, #tpu.memory_space<semaphore_mem>>) src(%581 : memref<1x256xf32, #tpu.memory_space<any>>) dst(%582 : memref<1x256xf32, #tpu.memory_space<vmem>>)
    %c0_i32_413 = arith.constant 0 : i32
    %c0_i32_414 = arith.constant 0 : i32
    %c0_i32_415 = arith.constant 0 : i32
    %585 = tpu.memref_slice %arg3[%c0_i32_414, %c0_i32_415] : memref<512x512xf32, #tpu.memory_space<any>> -> memref<1x256xf32, #tpu.memory_space<any>>
    %c25_i32_416 = arith.constant 25 : i32
    %c0_i32_417 = arith.constant 0 : i32
    %586 = tpu.memref_slice %arg8[%c25_i32_416, %c0_i32_417] : memref<48x256xf32, #tpu.memory_space<vmem>> -> memref<1x256xf32, #tpu.memory_space<vmem>>
    %587 = tpu.memref_slice %arg9[%c0_i32_413] : memref<1x!tpu.dma_semaphore, #tpu.memory_space<semaphore_mem>> -> memref<1x!tpu.dma_semaphore, #tpu.memory_space<semaphore_mem>>
    %588 = tpu.memref_squeeze %587 : memref<1x!tpu.dma_semaphore, #tpu.memory_space<semaphore_mem>> -> memref<!tpu.dma_semaphore, #tpu.memory_space<semaphore_mem>>
    tpu.wait_dma2 semaphore(%588 : memref<!tpu.dma_semaphore, #tpu.memory_space<semaphore_mem>>) src(%585 : memref<1x256xf32, #tpu.memory_space<any>>) dst(%586 : memref<1x256xf32, #tpu.memory_space<vmem>>)
    %c0_i32_418 = arith.constant 0 : i32
    %c0_i32_419 = arith.constant 0 : i32
    %c0_i32_420 = arith.constant 0 : i32
    %589 = tpu.memref_slice %arg3[%c0_i32_419, %c0_i32_420] : memref<512x512xf32, #tpu.memory_space<any>> -> memref<1x256xf32, #tpu.memory_space<any>>
    %c26_i32_421 = arith.constant 26 : i32
    %c0_i32_422 = arith.constant 0 : i32
    %590 = tpu.memref_slice %arg8[%c26_i32_421, %c0_i32_422] : memref<48x256xf32, #tpu.memory_space<vmem>> -> memref<1x256xf32, #tpu.memory_space<vmem>>
    %591 = tpu.memref_slice %arg9[%c0_i32_418] : memref<1x!tpu.dma_semaphore, #tpu.memory_space<semaphore_mem>> -> memref<1x!tpu.dma_semaphore, #tpu.memory_space<semaphore_mem>>
    %592 = tpu.memref_squeeze %591 : memref<1x!tpu.dma_semaphore, #tpu.memory_space<semaphore_mem>> -> memref<!tpu.dma_semaphore, #tpu.memory_space<semaphore_mem>>
    tpu.wait_dma2 semaphore(%592 : memref<!tpu.dma_semaphore, #tpu.memory_space<semaphore_mem>>) src(%589 : memref<1x256xf32, #tpu.memory_space<any>>) dst(%590 : memref<1x256xf32, #tpu.memory_space<vmem>>)
    %c0_i32_423 = arith.constant 0 : i32
    %c0_i32_424 = arith.constant 0 : i32
    %c0_i32_425 = arith.constant 0 : i32
    %593 = tpu.memref_slice %arg3[%c0_i32_424, %c0_i32_425] : memref<512x512xf32, #tpu.memory_space<any>> -> memref<1x256xf32, #tpu.memory_space<any>>
    %c27_i32_426 = arith.constant 27 : i32
    %c0_i32_427 = arith.constant 0 : i32
    %594 = tpu.memref_slice %arg8[%c27_i32_426, %c0_i32_427] : memref<48x256xf32, #tpu.memory_space<vmem>> -> memref<1x256xf32, #tpu.memory_space<vmem>>
    %595 = tpu.memref_slice %arg9[%c0_i32_423] : memref<1x!tpu.dma_semaphore, #tpu.memory_space<semaphore_mem>> -> memref<1x!tpu.dma_semaphore, #tpu.memory_space<semaphore_mem>>
    %596 = tpu.memref_squeeze %595 : memref<1x!tpu.dma_semaphore, #tpu.memory_space<semaphore_mem>> -> memref<!tpu.dma_semaphore, #tpu.memory_space<semaphore_mem>>
    tpu.wait_dma2 semaphore(%596 : memref<!tpu.dma_semaphore, #tpu.memory_space<semaphore_mem>>) src(%593 : memref<1x256xf32, #tpu.memory_space<any>>) dst(%594 : memref<1x256xf32, #tpu.memory_space<vmem>>)
    %c0_i32_428 = arith.constant 0 : i32
    %c0_i32_429 = arith.constant 0 : i32
    %c0_i32_430 = arith.constant 0 : i32
    %597 = tpu.memref_slice %arg3[%c0_i32_429, %c0_i32_430] : memref<512x512xf32, #tpu.memory_space<any>> -> memref<1x256xf32, #tpu.memory_space<any>>
    %c28_i32_431 = arith.constant 28 : i32
    %c0_i32_432 = arith.constant 0 : i32
    %598 = tpu.memref_slice %arg8[%c28_i32_431, %c0_i32_432] : memref<48x256xf32, #tpu.memory_space<vmem>> -> memref<1x256xf32, #tpu.memory_space<vmem>>
    %599 = tpu.memref_slice %arg9[%c0_i32_428] : memref<1x!tpu.dma_semaphore, #tpu.memory_space<semaphore_mem>> -> memref<1x!tpu.dma_semaphore, #tpu.memory_space<semaphore_mem>>
    %600 = tpu.memref_squeeze %599 : memref<1x!tpu.dma_semaphore, #tpu.memory_space<semaphore_mem>> -> memref<!tpu.dma_semaphore, #tpu.memory_space<semaphore_mem>>
    tpu.wait_dma2 semaphore(%600 : memref<!tpu.dma_semaphore, #tpu.memory_space<semaphore_mem>>) src(%597 : memref<1x256xf32, #tpu.memory_space<any>>) dst(%598 : memref<1x256xf32, #tpu.memory_space<vmem>>)
    %c0_i32_433 = arith.constant 0 : i32
    %c0_i32_434 = arith.constant 0 : i32
    %c0_i32_435 = arith.constant 0 : i32
    %601 = tpu.memref_slice %arg3[%c0_i32_434, %c0_i32_435] : memref<512x512xf32, #tpu.memory_space<any>> -> memref<1x256xf32, #tpu.memory_space<any>>
    %c29_i32_436 = arith.constant 29 : i32
    %c0_i32_437 = arith.constant 0 : i32
    %602 = tpu.memref_slice %arg8[%c29_i32_436, %c0_i32_437] : memref<48x256xf32, #tpu.memory_space<vmem>> -> memref<1x256xf32, #tpu.memory_space<vmem>>
    %603 = tpu.memref_slice %arg9[%c0_i32_433] : memref<1x!tpu.dma_semaphore, #tpu.memory_space<semaphore_mem>> -> memref<1x!tpu.dma_semaphore, #tpu.memory_space<semaphore_mem>>
    %604 = tpu.memref_squeeze %603 : memref<1x!tpu.dma_semaphore, #tpu.memory_space<semaphore_mem>> -> memref<!tpu.dma_semaphore, #tpu.memory_space<semaphore_mem>>
    tpu.wait_dma2 semaphore(%604 : memref<!tpu.dma_semaphore, #tpu.memory_space<semaphore_mem>>) src(%601 : memref<1x256xf32, #tpu.memory_space<any>>) dst(%602 : memref<1x256xf32, #tpu.memory_space<vmem>>)
    %c0_i32_438 = arith.constant 0 : i32
    %c0_i32_439 = arith.constant 0 : i32
    %c0_i32_440 = arith.constant 0 : i32
    %605 = tpu.memref_slice %arg3[%c0_i32_439, %c0_i32_440] : memref<512x512xf32, #tpu.memory_space<any>> -> memref<1x256xf32, #tpu.memory_space<any>>
    %c30_i32_441 = arith.constant 30 : i32
    %c0_i32_442 = arith.constant 0 : i32
    %606 = tpu.memref_slice %arg8[%c30_i32_441, %c0_i32_442] : memref<48x256xf32, #tpu.memory_space<vmem>> -> memref<1x256xf32, #tpu.memory_space<vmem>>
    %607 = tpu.memref_slice %arg9[%c0_i32_438] : memref<1x!tpu.dma_semaphore, #tpu.memory_space<semaphore_mem>> -> memref<1x!tpu.dma_semaphore, #tpu.memory_space<semaphore_mem>>
    %608 = tpu.memref_squeeze %607 : memref<1x!tpu.dma_semaphore, #tpu.memory_space<semaphore_mem>> -> memref<!tpu.dma_semaphore, #tpu.memory_space<semaphore_mem>>
    tpu.wait_dma2 semaphore(%608 : memref<!tpu.dma_semaphore, #tpu.memory_space<semaphore_mem>>) src(%605 : memref<1x256xf32, #tpu.memory_space<any>>) dst(%606 : memref<1x256xf32, #tpu.memory_space<vmem>>)
    %c0_i32_443 = arith.constant 0 : i32
    %c0_i32_444 = arith.constant 0 : i32
    %c0_i32_445 = arith.constant 0 : i32
    %609 = tpu.memref_slice %arg3[%c0_i32_444, %c0_i32_445] : memref<512x512xf32, #tpu.memory_space<any>> -> memref<1x256xf32, #tpu.memory_space<any>>
    %c31_i32_446 = arith.constant 31 : i32
    %c0_i32_447 = arith.constant 0 : i32
    %610 = tpu.memref_slice %arg8[%c31_i32_446, %c0_i32_447] : memref<48x256xf32, #tpu.memory_space<vmem>> -> memref<1x256xf32, #tpu.memory_space<vmem>>
    %611 = tpu.memref_slice %arg9[%c0_i32_443] : memref<1x!tpu.dma_semaphore, #tpu.memory_space<semaphore_mem>> -> memref<1x!tpu.dma_semaphore, #tpu.memory_space<semaphore_mem>>
    %612 = tpu.memref_squeeze %611 : memref<1x!tpu.dma_semaphore, #tpu.memory_space<semaphore_mem>> -> memref<!tpu.dma_semaphore, #tpu.memory_space<semaphore_mem>>
    tpu.wait_dma2 semaphore(%612 : memref<!tpu.dma_semaphore, #tpu.memory_space<semaphore_mem>>) src(%609 : memref<1x256xf32, #tpu.memory_space<any>>) dst(%610 : memref<1x256xf32, #tpu.memory_space<vmem>>)
    %c0_i32_448 = arith.constant 0 : i32
    %c0_i32_449 = arith.constant 0 : i32
    %c0_i32_450 = arith.constant 0 : i32
    %613 = tpu.memref_slice %arg3[%c0_i32_449, %c0_i32_450] : memref<512x512xf32, #tpu.memory_space<any>> -> memref<1x256xf32, #tpu.memory_space<any>>
    %c32_i32_451 = arith.constant 32 : i32
    %c0_i32_452 = arith.constant 0 : i32
    %614 = tpu.memref_slice %arg8[%c32_i32_451, %c0_i32_452] : memref<48x256xf32, #tpu.memory_space<vmem>> -> memref<1x256xf32, #tpu.memory_space<vmem>>
    %615 = tpu.memref_slice %arg9[%c0_i32_448] : memref<1x!tpu.dma_semaphore, #tpu.memory_space<semaphore_mem>> -> memref<1x!tpu.dma_semaphore, #tpu.memory_space<semaphore_mem>>
    %616 = tpu.memref_squeeze %615 : memref<1x!tpu.dma_semaphore, #tpu.memory_space<semaphore_mem>> -> memref<!tpu.dma_semaphore, #tpu.memory_space<semaphore_mem>>
    tpu.wait_dma2 semaphore(%616 : memref<!tpu.dma_semaphore, #tpu.memory_space<semaphore_mem>>) src(%613 : memref<1x256xf32, #tpu.memory_space<any>>) dst(%614 : memref<1x256xf32, #tpu.memory_space<vmem>>)
    %c0_i32_453 = arith.constant 0 : i32
    %c0_i32_454 = arith.constant 0 : i32
    %c0_i32_455 = arith.constant 0 : i32
    %617 = tpu.memref_slice %arg3[%c0_i32_454, %c0_i32_455] : memref<512x512xf32, #tpu.memory_space<any>> -> memref<1x256xf32, #tpu.memory_space<any>>
    %c33_i32_456 = arith.constant 33 : i32
    %c0_i32_457 = arith.constant 0 : i32
    %618 = tpu.memref_slice %arg8[%c33_i32_456, %c0_i32_457] : memref<48x256xf32, #tpu.memory_space<vmem>> -> memref<1x256xf32, #tpu.memory_space<vmem>>
    %619 = tpu.memref_slice %arg9[%c0_i32_453] : memref<1x!tpu.dma_semaphore, #tpu.memory_space<semaphore_mem>> -> memref<1x!tpu.dma_semaphore, #tpu.memory_space<semaphore_mem>>
    %620 = tpu.memref_squeeze %619 : memref<1x!tpu.dma_semaphore, #tpu.memory_space<semaphore_mem>> -> memref<!tpu.dma_semaphore, #tpu.memory_space<semaphore_mem>>
    tpu.wait_dma2 semaphore(%620 : memref<!tpu.dma_semaphore, #tpu.memory_space<semaphore_mem>>) src(%617 : memref<1x256xf32, #tpu.memory_space<any>>) dst(%618 : memref<1x256xf32, #tpu.memory_space<vmem>>)
    %c0_i32_458 = arith.constant 0 : i32
    %c0_i32_459 = arith.constant 0 : i32
    %c0_i32_460 = arith.constant 0 : i32
    %621 = tpu.memref_slice %arg3[%c0_i32_459, %c0_i32_460] : memref<512x512xf32, #tpu.memory_space<any>> -> memref<1x256xf32, #tpu.memory_space<any>>
    %c34_i32_461 = arith.constant 34 : i32
    %c0_i32_462 = arith.constant 0 : i32
    %622 = tpu.memref_slice %arg8[%c34_i32_461, %c0_i32_462] : memref<48x256xf32, #tpu.memory_space<vmem>> -> memref<1x256xf32, #tpu.memory_space<vmem>>
    %623 = tpu.memref_slice %arg9[%c0_i32_458] : memref<1x!tpu.dma_semaphore, #tpu.memory_space<semaphore_mem>> -> memref<1x!tpu.dma_semaphore, #tpu.memory_space<semaphore_mem>>
    %624 = tpu.memref_squeeze %623 : memref<1x!tpu.dma_semaphore, #tpu.memory_space<semaphore_mem>> -> memref<!tpu.dma_semaphore, #tpu.memory_space<semaphore_mem>>
    tpu.wait_dma2 semaphore(%624 : memref<!tpu.dma_semaphore, #tpu.memory_space<semaphore_mem>>) src(%621 : memref<1x256xf32, #tpu.memory_space<any>>) dst(%622 : memref<1x256xf32, #tpu.memory_space<vmem>>)
    %c0_i32_463 = arith.constant 0 : i32
    %c0_i32_464 = arith.constant 0 : i32
    %c0_i32_465 = arith.constant 0 : i32
    %625 = tpu.memref_slice %arg3[%c0_i32_464, %c0_i32_465] : memref<512x512xf32, #tpu.memory_space<any>> -> memref<1x256xf32, #tpu.memory_space<any>>
    %c35_i32_466 = arith.constant 35 : i32
    %c0_i32_467 = arith.constant 0 : i32
    %626 = tpu.memref_slice %arg8[%c35_i32_466, %c0_i32_467] : memref<48x256xf32, #tpu.memory_space<vmem>> -> memref<1x256xf32, #tpu.memory_space<vmem>>
    %627 = tpu.memref_slice %arg9[%c0_i32_463] : memref<1x!tpu.dma_semaphore, #tpu.memory_space<semaphore_mem>> -> memref<1x!tpu.dma_semaphore, #tpu.memory_space<semaphore_mem>>
    %628 = tpu.memref_squeeze %627 : memref<1x!tpu.dma_semaphore, #tpu.memory_space<semaphore_mem>> -> memref<!tpu.dma_semaphore, #tpu.memory_space<semaphore_mem>>
    tpu.wait_dma2 semaphore(%628 : memref<!tpu.dma_semaphore, #tpu.memory_space<semaphore_mem>>) src(%625 : memref<1x256xf32, #tpu.memory_space<any>>) dst(%626 : memref<1x256xf32, #tpu.memory_space<vmem>>)
    %c0_i32_468 = arith.constant 0 : i32
    %c0_i32_469 = arith.constant 0 : i32
    %c0_i32_470 = arith.constant 0 : i32
    %629 = tpu.memref_slice %arg3[%c0_i32_469, %c0_i32_470] : memref<512x512xf32, #tpu.memory_space<any>> -> memref<1x256xf32, #tpu.memory_space<any>>
    %c36_i32_471 = arith.constant 36 : i32
    %c0_i32_472 = arith.constant 0 : i32
    %630 = tpu.memref_slice %arg8[%c36_i32_471, %c0_i32_472] : memref<48x256xf32, #tpu.memory_space<vmem>> -> memref<1x256xf32, #tpu.memory_space<vmem>>
    %631 = tpu.memref_slice %arg9[%c0_i32_468] : memref<1x!tpu.dma_semaphore, #tpu.memory_space<semaphore_mem>> -> memref<1x!tpu.dma_semaphore, #tpu.memory_space<semaphore_mem>>
    %632 = tpu.memref_squeeze %631 : memref<1x!tpu.dma_semaphore, #tpu.memory_space<semaphore_mem>> -> memref<!tpu.dma_semaphore, #tpu.memory_space<semaphore_mem>>
    tpu.wait_dma2 semaphore(%632 : memref<!tpu.dma_semaphore, #tpu.memory_space<semaphore_mem>>) src(%629 : memref<1x256xf32, #tpu.memory_space<any>>) dst(%630 : memref<1x256xf32, #tpu.memory_space<vmem>>)
    %c0_i32_473 = arith.constant 0 : i32
    %c0_i32_474 = arith.constant 0 : i32
    %c0_i32_475 = arith.constant 0 : i32
    %633 = tpu.memref_slice %arg3[%c0_i32_474, %c0_i32_475] : memref<512x512xf32, #tpu.memory_space<any>> -> memref<1x256xf32, #tpu.memory_space<any>>
    %c37_i32_476 = arith.constant 37 : i32
    %c0_i32_477 = arith.constant 0 : i32
    %634 = tpu.memref_slice %arg8[%c37_i32_476, %c0_i32_477] : memref<48x256xf32, #tpu.memory_space<vmem>> -> memref<1x256xf32, #tpu.memory_space<vmem>>
    %635 = tpu.memref_slice %arg9[%c0_i32_473] : memref<1x!tpu.dma_semaphore, #tpu.memory_space<semaphore_mem>> -> memref<1x!tpu.dma_semaphore, #tpu.memory_space<semaphore_mem>>
    %636 = tpu.memref_squeeze %635 : memref<1x!tpu.dma_semaphore, #tpu.memory_space<semaphore_mem>> -> memref<!tpu.dma_semaphore, #tpu.memory_space<semaphore_mem>>
    tpu.wait_dma2 semaphore(%636 : memref<!tpu.dma_semaphore, #tpu.memory_space<semaphore_mem>>) src(%633 : memref<1x256xf32, #tpu.memory_space<any>>) dst(%634 : memref<1x256xf32, #tpu.memory_space<vmem>>)
    %c0_i32_478 = arith.constant 0 : i32
    %c0_i32_479 = arith.constant 0 : i32
    %c0_i32_480 = arith.constant 0 : i32
    %637 = tpu.memref_slice %arg3[%c0_i32_479, %c0_i32_480] : memref<512x512xf32, #tpu.memory_space<any>> -> memref<1x256xf32, #tpu.memory_space<any>>
    %c38_i32_481 = arith.constant 38 : i32
    %c0_i32_482 = arith.constant 0 : i32
    %638 = tpu.memref_slice %arg8[%c38_i32_481, %c0_i32_482] : memref<48x256xf32, #tpu.memory_space<vmem>> -> memref<1x256xf32, #tpu.memory_space<vmem>>
    %639 = tpu.memref_slice %arg9[%c0_i32_478] : memref<1x!tpu.dma_semaphore, #tpu.memory_space<semaphore_mem>> -> memref<1x!tpu.dma_semaphore, #tpu.memory_space<semaphore_mem>>
    %640 = tpu.memref_squeeze %639 : memref<1x!tpu.dma_semaphore, #tpu.memory_space<semaphore_mem>> -> memref<!tpu.dma_semaphore, #tpu.memory_space<semaphore_mem>>
    tpu.wait_dma2 semaphore(%640 : memref<!tpu.dma_semaphore, #tpu.memory_space<semaphore_mem>>) src(%637 : memref<1x256xf32, #tpu.memory_space<any>>) dst(%638 : memref<1x256xf32, #tpu.memory_space<vmem>>)
    %c0_i32_483 = arith.constant 0 : i32
    %c0_i32_484 = arith.constant 0 : i32
    %c0_i32_485 = arith.constant 0 : i32
    %641 = tpu.memref_slice %arg3[%c0_i32_484, %c0_i32_485] : memref<512x512xf32, #tpu.memory_space<any>> -> memref<1x256xf32, #tpu.memory_space<any>>
    %c39_i32_486 = arith.constant 39 : i32
    %c0_i32_487 = arith.constant 0 : i32
    %642 = tpu.memref_slice %arg8[%c39_i32_486, %c0_i32_487] : memref<48x256xf32, #tpu.memory_space<vmem>> -> memref<1x256xf32, #tpu.memory_space<vmem>>
    %643 = tpu.memref_slice %arg9[%c0_i32_483] : memref<1x!tpu.dma_semaphore, #tpu.memory_space<semaphore_mem>> -> memref<1x!tpu.dma_semaphore, #tpu.memory_space<semaphore_mem>>
    %644 = tpu.memref_squeeze %643 : memref<1x!tpu.dma_semaphore, #tpu.memory_space<semaphore_mem>> -> memref<!tpu.dma_semaphore, #tpu.memory_space<semaphore_mem>>
    tpu.wait_dma2 semaphore(%644 : memref<!tpu.dma_semaphore, #tpu.memory_space<semaphore_mem>>) src(%641 : memref<1x256xf32, #tpu.memory_space<any>>) dst(%642 : memref<1x256xf32, #tpu.memory_space<vmem>>)
    %c0_i32_488 = arith.constant 0 : i32
    %c0_i32_489 = arith.constant 0 : i32
    %c0_i32_490 = arith.constant 0 : i32
    %645 = tpu.memref_slice %arg3[%c0_i32_489, %c0_i32_490] : memref<512x512xf32, #tpu.memory_space<any>> -> memref<1x256xf32, #tpu.memory_space<any>>
    %c40_i32_491 = arith.constant 40 : i32
    %c0_i32_492 = arith.constant 0 : i32
    %646 = tpu.memref_slice %arg8[%c40_i32_491, %c0_i32_492] : memref<48x256xf32, #tpu.memory_space<vmem>> -> memref<1x256xf32, #tpu.memory_space<vmem>>
    %647 = tpu.memref_slice %arg9[%c0_i32_488] : memref<1x!tpu.dma_semaphore, #tpu.memory_space<semaphore_mem>> -> memref<1x!tpu.dma_semaphore, #tpu.memory_space<semaphore_mem>>
    %648 = tpu.memref_squeeze %647 : memref<1x!tpu.dma_semaphore, #tpu.memory_space<semaphore_mem>> -> memref<!tpu.dma_semaphore, #tpu.memory_space<semaphore_mem>>
    tpu.wait_dma2 semaphore(%648 : memref<!tpu.dma_semaphore, #tpu.memory_space<semaphore_mem>>) src(%645 : memref<1x256xf32, #tpu.memory_space<any>>) dst(%646 : memref<1x256xf32, #tpu.memory_space<vmem>>)
    %c0_i32_493 = arith.constant 0 : i32
    %c0_i32_494 = arith.constant 0 : i32
    %c0_i32_495 = arith.constant 0 : i32
    %649 = tpu.memref_slice %arg3[%c0_i32_494, %c0_i32_495] : memref<512x512xf32, #tpu.memory_space<any>> -> memref<1x256xf32, #tpu.memory_space<any>>
    %c41_i32_496 = arith.constant 41 : i32
    %c0_i32_497 = arith.constant 0 : i32
    %650 = tpu.memref_slice %arg8[%c41_i32_496, %c0_i32_497] : memref<48x256xf32, #tpu.memory_space<vmem>> -> memref<1x256xf32, #tpu.memory_space<vmem>>
    %651 = tpu.memref_slice %arg9[%c0_i32_493] : memref<1x!tpu.dma_semaphore, #tpu.memory_space<semaphore_mem>> -> memref<1x!tpu.dma_semaphore, #tpu.memory_space<semaphore_mem>>
    %652 = tpu.memref_squeeze %651 : memref<1x!tpu.dma_semaphore, #tpu.memory_space<semaphore_mem>> -> memref<!tpu.dma_semaphore, #tpu.memory_space<semaphore_mem>>
    tpu.wait_dma2 semaphore(%652 : memref<!tpu.dma_semaphore, #tpu.memory_space<semaphore_mem>>) src(%649 : memref<1x256xf32, #tpu.memory_space<any>>) dst(%650 : memref<1x256xf32, #tpu.memory_space<vmem>>)
    %c0_i32_498 = arith.constant 0 : i32
    %c0_i32_499 = arith.constant 0 : i32
    %c0_i32_500 = arith.constant 0 : i32
    %653 = tpu.memref_slice %arg3[%c0_i32_499, %c0_i32_500] : memref<512x512xf32, #tpu.memory_space<any>> -> memref<1x256xf32, #tpu.memory_space<any>>
    %c42_i32_501 = arith.constant 42 : i32
    %c0_i32_502 = arith.constant 0 : i32
    %654 = tpu.memref_slice %arg8[%c42_i32_501, %c0_i32_502] : memref<48x256xf32, #tpu.memory_space<vmem>> -> memref<1x256xf32, #tpu.memory_space<vmem>>
    %655 = tpu.memref_slice %arg9[%c0_i32_498] : memref<1x!tpu.dma_semaphore, #tpu.memory_space<semaphore_mem>> -> memref<1x!tpu.dma_semaphore, #tpu.memory_space<semaphore_mem>>
    %656 = tpu.memref_squeeze %655 : memref<1x!tpu.dma_semaphore, #tpu.memory_space<semaphore_mem>> -> memref<!tpu.dma_semaphore, #tpu.memory_space<semaphore_mem>>
    tpu.wait_dma2 semaphore(%656 : memref<!tpu.dma_semaphore, #tpu.memory_space<semaphore_mem>>) src(%653 : memref<1x256xf32, #tpu.memory_space<any>>) dst(%654 : memref<1x256xf32, #tpu.memory_space<vmem>>)
    %c0_i32_503 = arith.constant 0 : i32
    %c0_i32_504 = arith.constant 0 : i32
    %c0_i32_505 = arith.constant 0 : i32
    %657 = tpu.memref_slice %arg3[%c0_i32_504, %c0_i32_505] : memref<512x512xf32, #tpu.memory_space<any>> -> memref<1x256xf32, #tpu.memory_space<any>>
    %c43_i32_506 = arith.constant 43 : i32
    %c0_i32_507 = arith.constant 0 : i32
    %658 = tpu.memref_slice %arg8[%c43_i32_506, %c0_i32_507] : memref<48x256xf32, #tpu.memory_space<vmem>> -> memref<1x256xf32, #tpu.memory_space<vmem>>
    %659 = tpu.memref_slice %arg9[%c0_i32_503] : memref<1x!tpu.dma_semaphore, #tpu.memory_space<semaphore_mem>> -> memref<1x!tpu.dma_semaphore, #tpu.memory_space<semaphore_mem>>
    %660 = tpu.memref_squeeze %659 : memref<1x!tpu.dma_semaphore, #tpu.memory_space<semaphore_mem>> -> memref<!tpu.dma_semaphore, #tpu.memory_space<semaphore_mem>>
    tpu.wait_dma2 semaphore(%660 : memref<!tpu.dma_semaphore, #tpu.memory_space<semaphore_mem>>) src(%657 : memref<1x256xf32, #tpu.memory_space<any>>) dst(%658 : memref<1x256xf32, #tpu.memory_space<vmem>>)
    %c0_i32_508 = arith.constant 0 : i32
    %c0_i32_509 = arith.constant 0 : i32
    %c0_i32_510 = arith.constant 0 : i32
    %661 = tpu.memref_slice %arg3[%c0_i32_509, %c0_i32_510] : memref<512x512xf32, #tpu.memory_space<any>> -> memref<1x256xf32, #tpu.memory_space<any>>
    %c44_i32_511 = arith.constant 44 : i32
    %c0_i32_512 = arith.constant 0 : i32
    %662 = tpu.memref_slice %arg8[%c44_i32_511, %c0_i32_512] : memref<48x256xf32, #tpu.memory_space<vmem>> -> memref<1x256xf32, #tpu.memory_space<vmem>>
    %663 = tpu.memref_slice %arg9[%c0_i32_508] : memref<1x!tpu.dma_semaphore, #tpu.memory_space<semaphore_mem>> -> memref<1x!tpu.dma_semaphore, #tpu.memory_space<semaphore_mem>>
    %664 = tpu.memref_squeeze %663 : memref<1x!tpu.dma_semaphore, #tpu.memory_space<semaphore_mem>> -> memref<!tpu.dma_semaphore, #tpu.memory_space<semaphore_mem>>
    tpu.wait_dma2 semaphore(%664 : memref<!tpu.dma_semaphore, #tpu.memory_space<semaphore_mem>>) src(%661 : memref<1x256xf32, #tpu.memory_space<any>>) dst(%662 : memref<1x256xf32, #tpu.memory_space<vmem>>)
    %c0_i32_513 = arith.constant 0 : i32
    %c0_i32_514 = arith.constant 0 : i32
    %c0_i32_515 = arith.constant 0 : i32
    %665 = tpu.memref_slice %arg3[%c0_i32_514, %c0_i32_515] : memref<512x512xf32, #tpu.memory_space<any>> -> memref<1x256xf32, #tpu.memory_space<any>>
    %c45_i32_516 = arith.constant 45 : i32
    %c0_i32_517 = arith.constant 0 : i32
    %666 = tpu.memref_slice %arg8[%c45_i32_516, %c0_i32_517] : memref<48x256xf32, #tpu.memory_space<vmem>> -> memref<1x256xf32, #tpu.memory_space<vmem>>
    %667 = tpu.memref_slice %arg9[%c0_i32_513] : memref<1x!tpu.dma_semaphore, #tpu.memory_space<semaphore_mem>> -> memref<1x!tpu.dma_semaphore, #tpu.memory_space<semaphore_mem>>
    %668 = tpu.memref_squeeze %667 : memref<1x!tpu.dma_semaphore, #tpu.memory_space<semaphore_mem>> -> memref<!tpu.dma_semaphore, #tpu.memory_space<semaphore_mem>>
    tpu.wait_dma2 semaphore(%668 : memref<!tpu.dma_semaphore, #tpu.memory_space<semaphore_mem>>) src(%665 : memref<1x256xf32, #tpu.memory_space<any>>) dst(%666 : memref<1x256xf32, #tpu.memory_space<vmem>>)
    %c0_i32_518 = arith.constant 0 : i32
    %c0_i32_519 = arith.constant 0 : i32
    %c0_i32_520 = arith.constant 0 : i32
    %669 = tpu.memref_slice %arg3[%c0_i32_519, %c0_i32_520] : memref<512x512xf32, #tpu.memory_space<any>> -> memref<1x256xf32, #tpu.memory_space<any>>
    %c46_i32_521 = arith.constant 46 : i32
    %c0_i32_522 = arith.constant 0 : i32
    %670 = tpu.memref_slice %arg8[%c46_i32_521, %c0_i32_522] : memref<48x256xf32, #tpu.memory_space<vmem>> -> memref<1x256xf32, #tpu.memory_space<vmem>>
    %671 = tpu.memref_slice %arg9[%c0_i32_518] : memref<1x!tpu.dma_semaphore, #tpu.memory_space<semaphore_mem>> -> memref<1x!tpu.dma_semaphore, #tpu.memory_space<semaphore_mem>>
    %672 = tpu.memref_squeeze %671 : memref<1x!tpu.dma_semaphore, #tpu.memory_space<semaphore_mem>> -> memref<!tpu.dma_semaphore, #tpu.memory_space<semaphore_mem>>
    tpu.wait_dma2 semaphore(%672 : memref<!tpu.dma_semaphore, #tpu.memory_space<semaphore_mem>>) src(%669 : memref<1x256xf32, #tpu.memory_space<any>>) dst(%670 : memref<1x256xf32, #tpu.memory_space<vmem>>)
    %c0_i32_523 = arith.constant 0 : i32
    %c0_i32_524 = arith.constant 0 : i32
    %c0_i32_525 = arith.constant 0 : i32
    %673 = tpu.memref_slice %arg3[%c0_i32_524, %c0_i32_525] : memref<512x512xf32, #tpu.memory_space<any>> -> memref<1x256xf32, #tpu.memory_space<any>>
    %c47_i32_526 = arith.constant 47 : i32
    %c0_i32_527 = arith.constant 0 : i32
    %674 = tpu.memref_slice %arg8[%c47_i32_526, %c0_i32_527] : memref<48x256xf32, #tpu.memory_space<vmem>> -> memref<1x256xf32, #tpu.memory_space<vmem>>
    %675 = tpu.memref_slice %arg9[%c0_i32_523] : memref<1x!tpu.dma_semaphore, #tpu.memory_space<semaphore_mem>> -> memref<1x!tpu.dma_semaphore, #tpu.memory_space<semaphore_mem>>
    %676 = tpu.memref_squeeze %675 : memref<1x!tpu.dma_semaphore, #tpu.memory_space<semaphore_mem>> -> memref<!tpu.dma_semaphore, #tpu.memory_space<semaphore_mem>>
    tpu.wait_dma2 semaphore(%676 : memref<!tpu.dma_semaphore, #tpu.memory_space<semaphore_mem>>) src(%673 : memref<1x256xf32, #tpu.memory_space<any>>) dst(%674 : memref<1x256xf32, #tpu.memory_space<vmem>>)
    %c0 = arith.constant 0 : index
    %c0_528 = arith.constant 0 : index
    %677 = vector.load %arg10[%c0, %c0_528] : memref<48x128xf32, #tpu.memory_space<vmem>>, vector<48x128xf32>
    %c0_529 = arith.constant 0 : index
    %c0_530 = arith.constant 0 : index
    %678 = vector.load %arg8[%c0_529, %c0_530] : memref<48x256xf32, #tpu.memory_space<vmem>>, vector<48x256xf32>
    %679 = arith.truncf %678 : vector<48x256xf32> to vector<48x256xbf16>
    %c0_531 = arith.constant 0 : index
    %c0_532 = arith.constant 0 : index
    %680 = vector.load %arg4[%c0_531, %c0_532] : memref<256x128xf32, #tpu.memory_space<vmem>>, vector<256x128xf32>
    %681 = arith.truncf %680 : vector<256x128xf32> to vector<256x128xbf16>
    %cst = arith.constant dense<0.000000e+00> : vector<48x128xf32>
    %682 = tpu.matmul %679, %681, %cst {dimension_numbers = #tpu.dot_dimension_numbers<[1], [0], [0], [1], [0, 0, 1, 1], [], []>} : vector<48x256xbf16>, vector<256x128xbf16>, vector<48x128xf32> -> vector<48x128xf32>
    %683 = arith.addf %677, %682 : vector<48x128xf32>
    %c0_533 = arith.constant 0 : index
    %c0_534 = arith.constant 0 : index
    %684 = vector.load %arg10[%c0_533, %c0_534] : memref<48x128xf32, #tpu.memory_space<vmem>>, vector<48x128xf32>
    tpu.vector_store %arg10[%c0_533, %c0_534], %683 {strides = array<i32>} : memref<48x128xf32, #tpu.memory_space<vmem>>, vector<48x128xf32>,
    %c1_i32_535 = arith.constant 1 : i32
    %685 = arith.cmpi eq, %arg1, %c1_i32_535 : i32
    %686 = arith.extui %685 : i1 to i32
    %c0_i32_536 = arith.constant 0 : i32
    %687 = arith.cmpi ne, %686, %c0_i32_536 : i32
    scf.if %687 {
      %c0_537 = arith.constant 0 : index
      %c0_538 = arith.constant 0 : index
      %688 = vector.load %arg10[%c0_537, %c0_538] : memref<48x128xf32, #tpu.memory_space<vmem>>, vector<48x128xf32>
      %c0_539 = arith.constant 0 : index
      %c0_540 = arith.constant 0 : index
      %689 = vector.load %arg5[%c0_539, %c0_540] : memref<128x128xf32, #tpu.memory_space<vmem>>, vector<128x128xf32>
      %cst_541 = arith.constant dense<0.000000e+00> : vector<48x128xf32>
      %690 = tpu.matmul %688, %689, %cst_541 {dimension_numbers = #tpu.dot_dimension_numbers<[1], [0], [0], [1], [0, 0, 1, 1], [], []>} : vector<48x128xf32>, vector<128x128xf32>, vector<48x128xf32> -> vector<48x128xf32>
      %c0_542 = arith.constant 0 : index
      %c0_543 = arith.constant 0 : index
      %691 = vector.load %arg6[%c0_542, %c0_543] : memref<1x128xf32, #tpu.memory_space<vmem>>, vector<1x128xf32>
      %692 = vector.broadcast %691 : vector<1x128xf32> to vector<48x128xf32>
      %693 = arith.addf %690, %692 : vector<48x128xf32>
      %cst_544 = arith.constant 0.000000e+00 : f32
      %694 = vector.broadcast %cst_544 : f32 to vector<48x128xf32>
      %695 = arith.maximumf %693, %694 : vector<48x128xf32>
      %c0_545 = arith.constant 0 : index
      %c0_546 = arith.constant 0 : index
      %696 = vector.load %arg7[%c0_545, %c0_546] : memref<48x128xf32, #tpu.memory_space<vmem>>, vector<48x128xf32>
      tpu.vector_store %arg7[%c0_545, %c0_546], %695 {strides = array<i32>} : memref<48x128xf32, #tpu.memory_space<vmem>>, vector<48x128xf32>,
    } else {
    }
    return
  }
  func.func @transform_1(%arg0: i32, %arg1: i32, %arg2: memref<48xi32, #tpu.memory_space<smem>>) -> (i32, i32) {
    %c0_i32 = arith.constant 0 : i32
    %c0_i32_0 = arith.constant 0 : i32
    return %arg1, %c0_i32 : i32, i32
  }
  func.func @transform_2(%arg0: i32, %arg1: i32, %arg2: memref<48xi32, #tpu.memory_space<smem>>) -> (i32, i32) {
    %c0_i32 = arith.constant 0 : i32
    %c0_i32_0 = arith.constant 0 : i32
    %c0_i32_1 = arith.constant 0 : i32
    return %c0_i32, %c0_i32_0 : i32, i32
  }
  func.func @transform_3(%arg0: i32, %arg1: i32, %arg2: memref<48xi32, #tpu.memory_space<smem>>) -> (i32, i32) {
    %c0_i32 = arith.constant 0 : i32
    %c0_i32_0 = arith.constant 0 : i32
    %c0_i32_1 = arith.constant 0 : i32
    return %c0_i32, %c0_i32_0 : i32, i32
  }
  func.func @transform_4(%arg0: i32, %arg1: i32, %arg2: memref<48xi32, #tpu.memory_space<smem>>) -> (i32, i32) {
    %c0_i32 = arith.constant 0 : i32
    %c0_i32_0 = arith.constant 0 : i32
    return %arg0, %c0_i32 : i32, i32
  }
}

module attributes {stable_mosaic.version = 11 : i64} {
  func.func @kernel(%arg0: i32, %arg1: i32, %arg2: memref<48xi32, #tpu.memory_space<smem>>, %arg3: memref<512x512xf32, #tpu.memory_space<any>>, %arg4: memref<256x128xf32, #tpu.memory_space<vmem>>, %arg5: memref<128x128xf32, #tpu.memory_space<vmem>>, %arg6: memref<1x128xf32, #tpu.memory_space<vmem>>, %arg7: memref<48x128xf32, #tpu.memory_space<vmem>>, %arg8: memref<48x256xf32, #tpu.memory_space<vmem>>, %arg9: memref<1x!tpu.dma_semaphore, #tpu.memory_space<semaphore_mem>>, %arg10: memref<48x128xf32, #tpu.memory_space<vmem>>) attributes {dimension_semantics = [#tpu.dimension_semantics<parallel>, #tpu.dimension_semantics<arbitrary>], iteration_bounds = array<i64: 1, 2>, scalar_prefetch = 1 : i64, scratch_operands = 3 : i64, tpu.core_type = #tpu.core_type<tc>, window_params = [{}, {transform_indices = @transform_1, window_bounds = array<i64: 256, 128>}, {pipeline_mode = #tpu.pipeline_mode<synchronous>, transform_indices = @transform_2, window_bounds = array<i64: 128, 128>}, {pipeline_mode = #tpu.pipeline_mode<synchronous>, transform_indices = @transform_3, window_bounds = array<i64: 1, 128>}, {transform_indices = @transform_4, window_bounds = array<i64: 48, 128>}]} {
    %c256_i32 = arith.constant 256 : i32
    %0 = arith.muli %arg1, %c256_i32 : i32
    %1 = tpu.assume_multiple %0, 128 : i32
    %c48_i32 = arith.constant 48 : i32
    %2 = arith.muli %arg0, %c48_i32 : i32
    %c0_i32 = arith.constant 0 : i32
    %3 = arith.addi %2, %c0_i32 : i32
    %4 = arith.index_cast %3 : i32 to index
    %5 = memref.load %arg2[%4] : memref<48xi32, #tpu.memory_space<smem>>
    %c0_i32_0 = arith.constant 0 : i32
    %6 = arith.maxsi %5, %c0_i32_0 : i32
    %c511_i32 = arith.constant 511 : i32
    %7 = arith.minsi %6, %c511_i32 : i32
    %c0_i32_1 = arith.constant 0 : i32
    %8 = tpu.memref_slice %arg3[%7, %1] : memref<512x512xf32, #tpu.memory_space<any>> -> memref<1x256xf32, #tpu.memory_space<any>>
    %c0_i32_2 = arith.constant 0 : i32
    %c0_i32_3 = arith.constant 0 : i32
    %9 = tpu.memref_slice %arg8[%c0_i32_2, %c0_i32_3] : memref<48x256xf32, #tpu.memory_space<vmem>> -> memref<1x256xf32, #tpu.memory_space<vmem>>
    %10 = tpu.memref_slice %arg9[%c0_i32_1] : memref<1x!tpu.dma_semaphore, #tpu.memory_space<semaphore_mem>> -> memref<1x!tpu.dma_semaphore, #tpu.memory_space<semaphore_mem>>
    %11 = tpu.memref_squeeze %10 : memref<1x!tpu.dma_semaphore, #tpu.memory_space<semaphore_mem>> -> memref<!tpu.dma_semaphore, #tpu.memory_space<semaphore_mem>>
    tpu.enqueue_dma source(%8 : memref<1x256xf32, #tpu.memory_space<any>>) target(%9 : memref<1x256xf32, #tpu.memory_space<vmem>>) target_semaphore(%11 : memref<!tpu.dma_semaphore, #tpu.memory_space<semaphore_mem>>)
    %c48_i32_4 = arith.constant 48 : i32
    %12 = arith.muli %arg0, %c48_i32_4 : i32
    %c1_i32 = arith.constant 1 : i32
    %13 = arith.addi %12, %c1_i32 : i32
    %14 = arith.index_cast %13 : i32 to index
    %15 = memref.load %arg2[%14] : memref<48xi32, #tpu.memory_space<smem>>
    %c0_i32_5 = arith.constant 0 : i32
    %16 = arith.maxsi %15, %c0_i32_5 : i32
    %c511_i32_6 = arith.constant 511 : i32
    %17 = arith.minsi %16, %c511_i32_6 : i32
    %c0_i32_7 = arith.constant 0 : i32
    %18 = tpu.memref_slice %arg3[%17, %1] : memref<512x512xf32, #tpu.memory_space<any>> -> memref<1x256xf32, #tpu.memory_space<any>>
    %c1_i32_8 = arith.constant 1 : i32
    %c0_i32_9 = arith.constant 0 : i32
    %19 = tpu.memref_slice %arg8[%c1_i32_8, %c0_i32_9] : memref<48x256xf32, #tpu.memory_space<vmem>> -> memref<1x256xf32, #tpu.memory_space<vmem>>
    %20 = tpu.memref_slice %arg9[%c0_i32_7] : memref<1x!tpu.dma_semaphore, #tpu.memory_space<semaphore_mem>> -> memref<1x!tpu.dma_semaphore, #tpu.memory_space<semaphore_mem>>
    %21 = tpu.memref_squeeze %20 : memref<1x!tpu.dma_semaphore, #tpu.memory_space<semaphore_mem>> -> memref<!tpu.dma_semaphore, #tpu.memory_space<semaphore_mem>>
    tpu.enqueue_dma source(%18 : memref<1x256xf32, #tpu.memory_space<any>>) target(%19 : memref<1x256xf32, #tpu.memory_space<vmem>>) target_semaphore(%21 : memref<!tpu.dma_semaphore, #tpu.memory_space<semaphore_mem>>)
    %c48_i32_10 = arith.constant 48 : i32
    %22 = arith.muli %arg0, %c48_i32_10 : i32
    %c2_i32 = arith.constant 2 : i32
    %23 = arith.addi %22, %c2_i32 : i32
    %24 = arith.index_cast %23 : i32 to index
    %25 = memref.load %arg2[%24] : memref<48xi32, #tpu.memory_space<smem>>
    %c0_i32_11 = arith.constant 0 : i32
    %26 = arith.maxsi %25, %c0_i32_11 : i32
    %c511_i32_12 = arith.constant 511 : i32
    %27 = arith.minsi %26, %c511_i32_12 : i32
    %c0_i32_13 = arith.constant 0 : i32
    %28 = tpu.memref_slice %arg3[%27, %1] : memref<512x512xf32, #tpu.memory_space<any>> -> memref<1x256xf32, #tpu.memory_space<any>>
    %c2_i32_14 = arith.constant 2 : i32
    %c0_i32_15 = arith.constant 0 : i32
    %29 = tpu.memref_slice %arg8[%c2_i32_14, %c0_i32_15] : memref<48x256xf32, #tpu.memory_space<vmem>> -> memref<1x256xf32, #tpu.memory_space<vmem>>
    %30 = tpu.memref_slice %arg9[%c0_i32_13] : memref<1x!tpu.dma_semaphore, #tpu.memory_space<semaphore_mem>> -> memref<1x!tpu.dma_semaphore, #tpu.memory_space<semaphore_mem>>
    %31 = tpu.memref_squeeze %30 : memref<1x!tpu.dma_semaphore, #tpu.memory_space<semaphore_mem>> -> memref<!tpu.dma_semaphore, #tpu.memory_space<semaphore_mem>>
    tpu.enqueue_dma source(%28 : memref<1x256xf32, #tpu.memory_space<any>>) target(%29 : memref<1x256xf32, #tpu.memory_space<vmem>>) target_semaphore(%31 : memref<!tpu.dma_semaphore, #tpu.memory_space<semaphore_mem>>)
    %c48_i32_16 = arith.constant 48 : i32
    %32 = arith.muli %arg0, %c48_i32_16 : i32
    %c3_i32 = arith.constant 3 : i32
    %33 = arith.addi %32, %c3_i32 : i32
    %34 = arith.index_cast %33 : i32 to index
    %35 = memref.load %arg2[%34] : memref<48xi32, #tpu.memory_space<smem>>
    %c0_i32_17 = arith.constant 0 : i32
    %36 = arith.maxsi %35, %c0_i32_17 : i32
    %c511_i32_18 = arith.constant 511 : i32
    %37 = arith.minsi %36, %c511_i32_18 : i32
    %c0_i32_19 = arith.constant 0 : i32
    %38 = tpu.memref_slice %arg3[%37, %1] : memref<512x512xf32, #tpu.memory_space<any>> -> memref<1x256xf32, #tpu.memory_space<any>>
    %c3_i32_20 = arith.constant 3 : i32
    %c0_i32_21 = arith.constant 0 : i32
    %39 = tpu.memref_slice %arg8[%c3_i32_20, %c0_i32_21] : memref<48x256xf32, #tpu.memory_space<vmem>> -> memref<1x256xf32, #tpu.memory_space<vmem>>
    %40 = tpu.memref_slice %arg9[%c0_i32_19] : memref<1x!tpu.dma_semaphore, #tpu.memory_space<semaphore_mem>> -> memref<1x!tpu.dma_semaphore, #tpu.memory_space<semaphore_mem>>
    %41 = tpu.memref_squeeze %40 : memref<1x!tpu.dma_semaphore, #tpu.memory_space<semaphore_mem>> -> memref<!tpu.dma_semaphore, #tpu.memory_space<semaphore_mem>>
    tpu.enqueue_dma source(%38 : memref<1x256xf32, #tpu.memory_space<any>>) target(%39 : memref<1x256xf32, #tpu.memory_space<vmem>>) target_semaphore(%41 : memref<!tpu.dma_semaphore, #tpu.memory_space<semaphore_mem>>)
    %c48_i32_22 = arith.constant 48 : i32
    %42 = arith.muli %arg0, %c48_i32_22 : i32
    %c4_i32 = arith.constant 4 : i32
    %43 = arith.addi %42, %c4_i32 : i32
    %44 = arith.index_cast %43 : i32 to index
    %45 = memref.load %arg2[%44] : memref<48xi32, #tpu.memory_space<smem>>
    %c0_i32_23 = arith.constant 0 : i32
    %46 = arith.maxsi %45, %c0_i32_23 : i32
    %c511_i32_24 = arith.constant 511 : i32
    %47 = arith.minsi %46, %c511_i32_24 : i32
    %c0_i32_25 = arith.constant 0 : i32
    %48 = tpu.memref_slice %arg3[%47, %1] : memref<512x512xf32, #tpu.memory_space<any>> -> memref<1x256xf32, #tpu.memory_space<any>>
    %c4_i32_26 = arith.constant 4 : i32
    %c0_i32_27 = arith.constant 0 : i32
    %49 = tpu.memref_slice %arg8[%c4_i32_26, %c0_i32_27] : memref<48x256xf32, #tpu.memory_space<vmem>> -> memref<1x256xf32, #tpu.memory_space<vmem>>
    %50 = tpu.memref_slice %arg9[%c0_i32_25] : memref<1x!tpu.dma_semaphore, #tpu.memory_space<semaphore_mem>> -> memref<1x!tpu.dma_semaphore, #tpu.memory_space<semaphore_mem>>
    %51 = tpu.memref_squeeze %50 : memref<1x!tpu.dma_semaphore, #tpu.memory_space<semaphore_mem>> -> memref<!tpu.dma_semaphore, #tpu.memory_space<semaphore_mem>>
    tpu.enqueue_dma source(%48 : memref<1x256xf32, #tpu.memory_space<any>>) target(%49 : memref<1x256xf32, #tpu.memory_space<vmem>>) target_semaphore(%51 : memref<!tpu.dma_semaphore, #tpu.memory_space<semaphore_mem>>)
    %c48_i32_28 = arith.constant 48 : i32
    %52 = arith.muli %arg0, %c48_i32_28 : i32
    %c5_i32 = arith.constant 5 : i32
    %53 = arith.addi %52, %c5_i32 : i32
    %54 = arith.index_cast %53 : i32 to index
    %55 = memref.load %arg2[%54] : memref<48xi32, #tpu.memory_space<smem>>
    %c0_i32_29 = arith.constant 0 : i32
    %56 = arith.maxsi %55, %c0_i32_29 : i32
    %c511_i32_30 = arith.constant 511 : i32
    %57 = arith.minsi %56, %c511_i32_30 : i32
    %c0_i32_31 = arith.constant 0 : i32
    %58 = tpu.memref_slice %arg3[%57, %1] : memref<512x512xf32, #tpu.memory_space<any>> -> memref<1x256xf32, #tpu.memory_space<any>>
    %c5_i32_32 = arith.constant 5 : i32
    %c0_i32_33 = arith.constant 0 : i32
    %59 = tpu.memref_slice %arg8[%c5_i32_32, %c0_i32_33] : memref<48x256xf32, #tpu.memory_space<vmem>> -> memref<1x256xf32, #tpu.memory_space<vmem>>
    %60 = tpu.memref_slice %arg9[%c0_i32_31] : memref<1x!tpu.dma_semaphore, #tpu.memory_space<semaphore_mem>> -> memref<1x!tpu.dma_semaphore, #tpu.memory_space<semaphore_mem>>
    %61 = tpu.memref_squeeze %60 : memref<1x!tpu.dma_semaphore, #tpu.memory_space<semaphore_mem>> -> memref<!tpu.dma_semaphore, #tpu.memory_space<semaphore_mem>>
    tpu.enqueue_dma source(%58 : memref<1x256xf32, #tpu.memory_space<any>>) target(%59 : memref<1x256xf32, #tpu.memory_space<vmem>>) target_semaphore(%61 : memref<!tpu.dma_semaphore, #tpu.memory_space<semaphore_mem>>)
    %c48_i32_34 = arith.constant 48 : i32
    %62 = arith.muli %arg0, %c48_i32_34 : i32
    %c6_i32 = arith.constant 6 : i32
    %63 = arith.addi %62, %c6_i32 : i32
    %64 = arith.index_cast %63 : i32 to index
    %65 = memref.load %arg2[%64] : memref<48xi32, #tpu.memory_space<smem>>
    %c0_i32_35 = arith.constant 0 : i32
    %66 = arith.maxsi %65, %c0_i32_35 : i32
    %c511_i32_36 = arith.constant 511 : i32
    %67 = arith.minsi %66, %c511_i32_36 : i32
    %c0_i32_37 = arith.constant 0 : i32
    %68 = tpu.memref_slice %arg3[%67, %1] : memref<512x512xf32, #tpu.memory_space<any>> -> memref<1x256xf32, #tpu.memory_space<any>>
    %c6_i32_38 = arith.constant 6 : i32
    %c0_i32_39 = arith.constant 0 : i32
    %69 = tpu.memref_slice %arg8[%c6_i32_38, %c0_i32_39] : memref<48x256xf32, #tpu.memory_space<vmem>> -> memref<1x256xf32, #tpu.memory_space<vmem>>
    %70 = tpu.memref_slice %arg9[%c0_i32_37] : memref<1x!tpu.dma_semaphore, #tpu.memory_space<semaphore_mem>> -> memref<1x!tpu.dma_semaphore, #tpu.memory_space<semaphore_mem>>
    %71 = tpu.memref_squeeze %70 : memref<1x!tpu.dma_semaphore, #tpu.memory_space<semaphore_mem>> -> memref<!tpu.dma_semaphore, #tpu.memory_space<semaphore_mem>>
    tpu.enqueue_dma source(%68 : memref<1x256xf32, #tpu.memory_space<any>>) target(%69 : memref<1x256xf32, #tpu.memory_space<vmem>>) target_semaphore(%71 : memref<!tpu.dma_semaphore, #tpu.memory_space<semaphore_mem>>)
    %c48_i32_40 = arith.constant 48 : i32
    %72 = arith.muli %arg0, %c48_i32_40 : i32
    %c7_i32 = arith.constant 7 : i32
    %73 = arith.addi %72, %c7_i32 : i32
    %74 = arith.index_cast %73 : i32 to index
    %75 = memref.load %arg2[%74] : memref<48xi32, #tpu.memory_space<smem>>
    %c0_i32_41 = arith.constant 0 : i32
    %76 = arith.maxsi %75, %c0_i32_41 : i32
    %c511_i32_42 = arith.constant 511 : i32
    %77 = arith.minsi %76, %c511_i32_42 : i32
    %c0_i32_43 = arith.constant 0 : i32
    %78 = tpu.memref_slice %arg3[%77, %1] : memref<512x512xf32, #tpu.memory_space<any>> -> memref<1x256xf32, #tpu.memory_space<any>>
    %c7_i32_44 = arith.constant 7 : i32
    %c0_i32_45 = arith.constant 0 : i32
    %79 = tpu.memref_slice %arg8[%c7_i32_44, %c0_i32_45] : memref<48x256xf32, #tpu.memory_space<vmem>> -> memref<1x256xf32, #tpu.memory_space<vmem>>
    %80 = tpu.memref_slice %arg9[%c0_i32_43] : memref<1x!tpu.dma_semaphore, #tpu.memory_space<semaphore_mem>> -> memref<1x!tpu.dma_semaphore, #tpu.memory_space<semaphore_mem>>
    %81 = tpu.memref_squeeze %80 : memref<1x!tpu.dma_semaphore, #tpu.memory_space<semaphore_mem>> -> memref<!tpu.dma_semaphore, #tpu.memory_space<semaphore_mem>>
    tpu.enqueue_dma source(%78 : memref<1x256xf32, #tpu.memory_space<any>>) target(%79 : memref<1x256xf32, #tpu.memory_space<vmem>>) target_semaphore(%81 : memref<!tpu.dma_semaphore, #tpu.memory_space<semaphore_mem>>)
    %c48_i32_46 = arith.constant 48 : i32
    %82 = arith.muli %arg0, %c48_i32_46 : i32
    %c8_i32 = arith.constant 8 : i32
    %83 = arith.addi %82, %c8_i32 : i32
    %84 = arith.index_cast %83 : i32 to index
    %85 = memref.load %arg2[%84] : memref<48xi32, #tpu.memory_space<smem>>
    %c0_i32_47 = arith.constant 0 : i32
    %86 = arith.maxsi %85, %c0_i32_47 : i32
    %c511_i32_48 = arith.constant 511 : i32
    %87 = arith.minsi %86, %c511_i32_48 : i32
    %c0_i32_49 = arith.constant 0 : i32
    %88 = tpu.memref_slice %arg3[%87, %1] : memref<512x512xf32, #tpu.memory_space<any>> -> memref<1x256xf32, #tpu.memory_space<any>>
    %c8_i32_50 = arith.constant 8 : i32
    %c0_i32_51 = arith.constant 0 : i32
    %89 = tpu.memref_slice %arg8[%c8_i32_50, %c0_i32_51] : memref<48x256xf32, #tpu.memory_space<vmem>> -> memref<1x256xf32, #tpu.memory_space<vmem>>
    %90 = tpu.memref_slice %arg9[%c0_i32_49] : memref<1x!tpu.dma_semaphore, #tpu.memory_space<semaphore_mem>> -> memref<1x!tpu.dma_semaphore, #tpu.memory_space<semaphore_mem>>
    %91 = tpu.memref_squeeze %90 : memref<1x!tpu.dma_semaphore, #tpu.memory_space<semaphore_mem>> -> memref<!tpu.dma_semaphore, #tpu.memory_space<semaphore_mem>>
    tpu.enqueue_dma source(%88 : memref<1x256xf32, #tpu.memory_space<any>>) target(%89 : memref<1x256xf32, #tpu.memory_space<vmem>>) target_semaphore(%91 : memref<!tpu.dma_semaphore, #tpu.memory_space<semaphore_mem>>)
    %c48_i32_52 = arith.constant 48 : i32
    %92 = arith.muli %arg0, %c48_i32_52 : i32
    %c9_i32 = arith.constant 9 : i32
    %93 = arith.addi %92, %c9_i32 : i32
    %94 = arith.index_cast %93 : i32 to index
    %95 = memref.load %arg2[%94] : memref<48xi32, #tpu.memory_space<smem>>
    %c0_i32_53 = arith.constant 0 : i32
    %96 = arith.maxsi %95, %c0_i32_53 : i32
    %c511_i32_54 = arith.constant 511 : i32
    %97 = arith.minsi %96, %c511_i32_54 : i32
    %c0_i32_55 = arith.constant 0 : i32
    %98 = tpu.memref_slice %arg3[%97, %1] : memref<512x512xf32, #tpu.memory_space<any>> -> memref<1x256xf32, #tpu.memory_space<any>>
    %c9_i32_56 = arith.constant 9 : i32
    %c0_i32_57 = arith.constant 0 : i32
    %99 = tpu.memref_slice %arg8[%c9_i32_56, %c0_i32_57] : memref<48x256xf32, #tpu.memory_space<vmem>> -> memref<1x256xf32, #tpu.memory_space<vmem>>
    %100 = tpu.memref_slice %arg9[%c0_i32_55] : memref<1x!tpu.dma_semaphore, #tpu.memory_space<semaphore_mem>> -> memref<1x!tpu.dma_semaphore, #tpu.memory_space<semaphore_mem>>
    %101 = tpu.memref_squeeze %100 : memref<1x!tpu.dma_semaphore, #tpu.memory_space<semaphore_mem>> -> memref<!tpu.dma_semaphore, #tpu.memory_space<semaphore_mem>>
    tpu.enqueue_dma source(%98 : memref<1x256xf32, #tpu.memory_space<any>>) target(%99 : memref<1x256xf32, #tpu.memory_space<vmem>>) target_semaphore(%101 : memref<!tpu.dma_semaphore, #tpu.memory_space<semaphore_mem>>)
    %c48_i32_58 = arith.constant 48 : i32
    %102 = arith.muli %arg0, %c48_i32_58 : i32
    %c10_i32 = arith.constant 10 : i32
    %103 = arith.addi %102, %c10_i32 : i32
    %104 = arith.index_cast %103 : i32 to index
    %105 = memref.load %arg2[%104] : memref<48xi32, #tpu.memory_space<smem>>
    %c0_i32_59 = arith.constant 0 : i32
    %106 = arith.maxsi %105, %c0_i32_59 : i32
    %c511_i32_60 = arith.constant 511 : i32
    %107 = arith.minsi %106, %c511_i32_60 : i32
    %c0_i32_61 = arith.constant 0 : i32
    %108 = tpu.memref_slice %arg3[%107, %1] : memref<512x512xf32, #tpu.memory_space<any>> -> memref<1x256xf32, #tpu.memory_space<any>>
    %c10_i32_62 = arith.constant 10 : i32
    %c0_i32_63 = arith.constant 0 : i32
    %109 = tpu.memref_slice %arg8[%c10_i32_62, %c0_i32_63] : memref<48x256xf32, #tpu.memory_space<vmem>> -> memref<1x256xf32, #tpu.memory_space<vmem>>
    %110 = tpu.memref_slice %arg9[%c0_i32_61] : memref<1x!tpu.dma_semaphore, #tpu.memory_space<semaphore_mem>> -> memref<1x!tpu.dma_semaphore, #tpu.memory_space<semaphore_mem>>
    %111 = tpu.memref_squeeze %110 : memref<1x!tpu.dma_semaphore, #tpu.memory_space<semaphore_mem>> -> memref<!tpu.dma_semaphore, #tpu.memory_space<semaphore_mem>>
    tpu.enqueue_dma source(%108 : memref<1x256xf32, #tpu.memory_space<any>>) target(%109 : memref<1x256xf32, #tpu.memory_space<vmem>>) target_semaphore(%111 : memref<!tpu.dma_semaphore, #tpu.memory_space<semaphore_mem>>)
    %c48_i32_64 = arith.constant 48 : i32
    %112 = arith.muli %arg0, %c48_i32_64 : i32
    %c11_i32 = arith.constant 11 : i32
    %113 = arith.addi %112, %c11_i32 : i32
    %114 = arith.index_cast %113 : i32 to index
    %115 = memref.load %arg2[%114] : memref<48xi32, #tpu.memory_space<smem>>
    %c0_i32_65 = arith.constant 0 : i32
    %116 = arith.maxsi %115, %c0_i32_65 : i32
    %c511_i32_66 = arith.constant 511 : i32
    %117 = arith.minsi %116, %c511_i32_66 : i32
    %c0_i32_67 = arith.constant 0 : i32
    %118 = tpu.memref_slice %arg3[%117, %1] : memref<512x512xf32, #tpu.memory_space<any>> -> memref<1x256xf32, #tpu.memory_space<any>>
    %c11_i32_68 = arith.constant 11 : i32
    %c0_i32_69 = arith.constant 0 : i32
    %119 = tpu.memref_slice %arg8[%c11_i32_68, %c0_i32_69] : memref<48x256xf32, #tpu.memory_space<vmem>> -> memref<1x256xf32, #tpu.memory_space<vmem>>
    %120 = tpu.memref_slice %arg9[%c0_i32_67] : memref<1x!tpu.dma_semaphore, #tpu.memory_space<semaphore_mem>> -> memref<1x!tpu.dma_semaphore, #tpu.memory_space<semaphore_mem>>
    %121 = tpu.memref_squeeze %120 : memref<1x!tpu.dma_semaphore, #tpu.memory_space<semaphore_mem>> -> memref<!tpu.dma_semaphore, #tpu.memory_space<semaphore_mem>>
    tpu.enqueue_dma source(%118 : memref<1x256xf32, #tpu.memory_space<any>>) target(%119 : memref<1x256xf32, #tpu.memory_space<vmem>>) target_semaphore(%121 : memref<!tpu.dma_semaphore, #tpu.memory_space<semaphore_mem>>)
    %c48_i32_70 = arith.constant 48 : i32
    %122 = arith.muli %arg0, %c48_i32_70 : i32
    %c12_i32 = arith.constant 12 : i32
    %123 = arith.addi %122, %c12_i32 : i32
    %124 = arith.index_cast %123 : i32 to index
    %125 = memref.load %arg2[%124] : memref<48xi32, #tpu.memory_space<smem>>
    %c0_i32_71 = arith.constant 0 : i32
    %126 = arith.maxsi %125, %c0_i32_71 : i32
    %c511_i32_72 = arith.constant 511 : i32
    %127 = arith.minsi %126, %c511_i32_72 : i32
    %c0_i32_73 = arith.constant 0 : i32
    %128 = tpu.memref_slice %arg3[%127, %1] : memref<512x512xf32, #tpu.memory_space<any>> -> memref<1x256xf32, #tpu.memory_space<any>>
    %c12_i32_74 = arith.constant 12 : i32
    %c0_i32_75 = arith.constant 0 : i32
    %129 = tpu.memref_slice %arg8[%c12_i32_74, %c0_i32_75] : memref<48x256xf32, #tpu.memory_space<vmem>> -> memref<1x256xf32, #tpu.memory_space<vmem>>
    %130 = tpu.memref_slice %arg9[%c0_i32_73] : memref<1x!tpu.dma_semaphore, #tpu.memory_space<semaphore_mem>> -> memref<1x!tpu.dma_semaphore, #tpu.memory_space<semaphore_mem>>
    %131 = tpu.memref_squeeze %130 : memref<1x!tpu.dma_semaphore, #tpu.memory_space<semaphore_mem>> -> memref<!tpu.dma_semaphore, #tpu.memory_space<semaphore_mem>>
    tpu.enqueue_dma source(%128 : memref<1x256xf32, #tpu.memory_space<any>>) target(%129 : memref<1x256xf32, #tpu.memory_space<vmem>>) target_semaphore(%131 : memref<!tpu.dma_semaphore, #tpu.memory_space<semaphore_mem>>)
    %c48_i32_76 = arith.constant 48 : i32
    %132 = arith.muli %arg0, %c48_i32_76 : i32
    %c13_i32 = arith.constant 13 : i32
    %133 = arith.addi %132, %c13_i32 : i32
    %134 = arith.index_cast %133 : i32 to index
    %135 = memref.load %arg2[%134] : memref<48xi32, #tpu.memory_space<smem>>
    %c0_i32_77 = arith.constant 0 : i32
    %136 = arith.maxsi %135, %c0_i32_77 : i32
    %c511_i32_78 = arith.constant 511 : i32
    %137 = arith.minsi %136, %c511_i32_78 : i32
    %c0_i32_79 = arith.constant 0 : i32
    %138 = tpu.memref_slice %arg3[%137, %1] : memref<512x512xf32, #tpu.memory_space<any>> -> memref<1x256xf32, #tpu.memory_space<any>>
    %c13_i32_80 = arith.constant 13 : i32
    %c0_i32_81 = arith.constant 0 : i32
    %139 = tpu.memref_slice %arg8[%c13_i32_80, %c0_i32_81] : memref<48x256xf32, #tpu.memory_space<vmem>> -> memref<1x256xf32, #tpu.memory_space<vmem>>
    %140 = tpu.memref_slice %arg9[%c0_i32_79] : memref<1x!tpu.dma_semaphore, #tpu.memory_space<semaphore_mem>> -> memref<1x!tpu.dma_semaphore, #tpu.memory_space<semaphore_mem>>
    %141 = tpu.memref_squeeze %140 : memref<1x!tpu.dma_semaphore, #tpu.memory_space<semaphore_mem>> -> memref<!tpu.dma_semaphore, #tpu.memory_space<semaphore_mem>>
    tpu.enqueue_dma source(%138 : memref<1x256xf32, #tpu.memory_space<any>>) target(%139 : memref<1x256xf32, #tpu.memory_space<vmem>>) target_semaphore(%141 : memref<!tpu.dma_semaphore, #tpu.memory_space<semaphore_mem>>)
    %c48_i32_82 = arith.constant 48 : i32
    %142 = arith.muli %arg0, %c48_i32_82 : i32
    %c14_i32 = arith.constant 14 : i32
    %143 = arith.addi %142, %c14_i32 : i32
    %144 = arith.index_cast %143 : i32 to index
    %145 = memref.load %arg2[%144] : memref<48xi32, #tpu.memory_space<smem>>
    %c0_i32_83 = arith.constant 0 : i32
    %146 = arith.maxsi %145, %c0_i32_83 : i32
    %c511_i32_84 = arith.constant 511 : i32
    %147 = arith.minsi %146, %c511_i32_84 : i32
    %c0_i32_85 = arith.constant 0 : i32
    %148 = tpu.memref_slice %arg3[%147, %1] : memref<512x512xf32, #tpu.memory_space<any>> -> memref<1x256xf32, #tpu.memory_space<any>>
    %c14_i32_86 = arith.constant 14 : i32
    %c0_i32_87 = arith.constant 0 : i32
    %149 = tpu.memref_slice %arg8[%c14_i32_86, %c0_i32_87] : memref<48x256xf32, #tpu.memory_space<vmem>> -> memref<1x256xf32, #tpu.memory_space<vmem>>
    %150 = tpu.memref_slice %arg9[%c0_i32_85] : memref<1x!tpu.dma_semaphore, #tpu.memory_space<semaphore_mem>> -> memref<1x!tpu.dma_semaphore, #tpu.memory_space<semaphore_mem>>
    %151 = tpu.memref_squeeze %150 : memref<1x!tpu.dma_semaphore, #tpu.memory_space<semaphore_mem>> -> memref<!tpu.dma_semaphore, #tpu.memory_space<semaphore_mem>>
    tpu.enqueue_dma source(%148 : memref<1x256xf32, #tpu.memory_space<any>>) target(%149 : memref<1x256xf32, #tpu.memory_space<vmem>>) target_semaphore(%151 : memref<!tpu.dma_semaphore, #tpu.memory_space<semaphore_mem>>)
    %c48_i32_88 = arith.constant 48 : i32
    %152 = arith.muli %arg0, %c48_i32_88 : i32
    %c15_i32 = arith.constant 15 : i32
    %153 = arith.addi %152, %c15_i32 : i32
    %154 = arith.index_cast %153 : i32 to index
    %155 = memref.load %arg2[%154] : memref<48xi32, #tpu.memory_space<smem>>
    %c0_i32_89 = arith.constant 0 : i32
    %156 = arith.maxsi %155, %c0_i32_89 : i32
    %c511_i32_90 = arith.constant 511 : i32
    %157 = arith.minsi %156, %c511_i32_90 : i32
    %c0_i32_91 = arith.constant 0 : i32
    %158 = tpu.memref_slice %arg3[%157, %1] : memref<512x512xf32, #tpu.memory_space<any>> -> memref<1x256xf32, #tpu.memory_space<any>>
    %c15_i32_92 = arith.constant 15 : i32
    %c0_i32_93 = arith.constant 0 : i32
    %159 = tpu.memref_slice %arg8[%c15_i32_92, %c0_i32_93] : memref<48x256xf32, #tpu.memory_space<vmem>> -> memref<1x256xf32, #tpu.memory_space<vmem>>
    %160 = tpu.memref_slice %arg9[%c0_i32_91] : memref<1x!tpu.dma_semaphore, #tpu.memory_space<semaphore_mem>> -> memref<1x!tpu.dma_semaphore, #tpu.memory_space<semaphore_mem>>
    %161 = tpu.memref_squeeze %160 : memref<1x!tpu.dma_semaphore, #tpu.memory_space<semaphore_mem>> -> memref<!tpu.dma_semaphore, #tpu.memory_space<semaphore_mem>>
    tpu.enqueue_dma source(%158 : memref<1x256xf32, #tpu.memory_space<any>>) target(%159 : memref<1x256xf32, #tpu.memory_space<vmem>>) target_semaphore(%161 : memref<!tpu.dma_semaphore, #tpu.memory_space<semaphore_mem>>)
    %c48_i32_94 = arith.constant 48 : i32
    %162 = arith.muli %arg0, %c48_i32_94 : i32
    %c16_i32 = arith.constant 16 : i32
    %163 = arith.addi %162, %c16_i32 : i32
    %164 = arith.index_cast %163 : i32 to index
    %165 = memref.load %arg2[%164] : memref<48xi32, #tpu.memory_space<smem>>
    %c0_i32_95 = arith.constant 0 : i32
    %166 = arith.maxsi %165, %c0_i32_95 : i32
    %c511_i32_96 = arith.constant 511 : i32
    %167 = arith.minsi %166, %c511_i32_96 : i32
    %c0_i32_97 = arith.constant 0 : i32
    %168 = tpu.memref_slice %arg3[%167, %1] : memref<512x512xf32, #tpu.memory_space<any>> -> memref<1x256xf32, #tpu.memory_space<any>>
    %c16_i32_98 = arith.constant 16 : i32
    %c0_i32_99 = arith.constant 0 : i32
    %169 = tpu.memref_slice %arg8[%c16_i32_98, %c0_i32_99] : memref<48x256xf32, #tpu.memory_space<vmem>> -> memref<1x256xf32, #tpu.memory_space<vmem>>
    %170 = tpu.memref_slice %arg9[%c0_i32_97] : memref<1x!tpu.dma_semaphore, #tpu.memory_space<semaphore_mem>> -> memref<1x!tpu.dma_semaphore, #tpu.memory_space<semaphore_mem>>
    %171 = tpu.memref_squeeze %170 : memref<1x!tpu.dma_semaphore, #tpu.memory_space<semaphore_mem>> -> memref<!tpu.dma_semaphore, #tpu.memory_space<semaphore_mem>>
    tpu.enqueue_dma source(%168 : memref<1x256xf32, #tpu.memory_space<any>>) target(%169 : memref<1x256xf32, #tpu.memory_space<vmem>>) target_semaphore(%171 : memref<!tpu.dma_semaphore, #tpu.memory_space<semaphore_mem>>)
    %c48_i32_100 = arith.constant 48 : i32
    %172 = arith.muli %arg0, %c48_i32_100 : i32
    %c17_i32 = arith.constant 17 : i32
    %173 = arith.addi %172, %c17_i32 : i32
    %174 = arith.index_cast %173 : i32 to index
    %175 = memref.load %arg2[%174] : memref<48xi32, #tpu.memory_space<smem>>
    %c0_i32_101 = arith.constant 0 : i32
    %176 = arith.maxsi %175, %c0_i32_101 : i32
    %c511_i32_102 = arith.constant 511 : i32
    %177 = arith.minsi %176, %c511_i32_102 : i32
    %c0_i32_103 = arith.constant 0 : i32
    %178 = tpu.memref_slice %arg3[%177, %1] : memref<512x512xf32, #tpu.memory_space<any>> -> memref<1x256xf32, #tpu.memory_space<any>>
    %c17_i32_104 = arith.constant 17 : i32
    %c0_i32_105 = arith.constant 0 : i32
    %179 = tpu.memref_slice %arg8[%c17_i32_104, %c0_i32_105] : memref<48x256xf32, #tpu.memory_space<vmem>> -> memref<1x256xf32, #tpu.memory_space<vmem>>
    %180 = tpu.memref_slice %arg9[%c0_i32_103] : memref<1x!tpu.dma_semaphore, #tpu.memory_space<semaphore_mem>> -> memref<1x!tpu.dma_semaphore, #tpu.memory_space<semaphore_mem>>
    %181 = tpu.memref_squeeze %180 : memref<1x!tpu.dma_semaphore, #tpu.memory_space<semaphore_mem>> -> memref<!tpu.dma_semaphore, #tpu.memory_space<semaphore_mem>>
    tpu.enqueue_dma source(%178 : memref<1x256xf32, #tpu.memory_space<any>>) target(%179 : memref<1x256xf32, #tpu.memory_space<vmem>>) target_semaphore(%181 : memref<!tpu.dma_semaphore, #tpu.memory_space<semaphore_mem>>)
    %c48_i32_106 = arith.constant 48 : i32
    %182 = arith.muli %arg0, %c48_i32_106 : i32
    %c18_i32 = arith.constant 18 : i32
    %183 = arith.addi %182, %c18_i32 : i32
    %184 = arith.index_cast %183 : i32 to index
    %185 = memref.load %arg2[%184] : memref<48xi32, #tpu.memory_space<smem>>
    %c0_i32_107 = arith.constant 0 : i32
    %186 = arith.maxsi %185, %c0_i32_107 : i32
    %c511_i32_108 = arith.constant 511 : i32
    %187 = arith.minsi %186, %c511_i32_108 : i32
    %c0_i32_109 = arith.constant 0 : i32
    %188 = tpu.memref_slice %arg3[%187, %1] : memref<512x512xf32, #tpu.memory_space<any>> -> memref<1x256xf32, #tpu.memory_space<any>>
    %c18_i32_110 = arith.constant 18 : i32
    %c0_i32_111 = arith.constant 0 : i32
    %189 = tpu.memref_slice %arg8[%c18_i32_110, %c0_i32_111] : memref<48x256xf32, #tpu.memory_space<vmem>> -> memref<1x256xf32, #tpu.memory_space<vmem>>
    %190 = tpu.memref_slice %arg9[%c0_i32_109] : memref<1x!tpu.dma_semaphore, #tpu.memory_space<semaphore_mem>> -> memref<1x!tpu.dma_semaphore, #tpu.memory_space<semaphore_mem>>
    %191 = tpu.memref_squeeze %190 : memref<1x!tpu.dma_semaphore, #tpu.memory_space<semaphore_mem>> -> memref<!tpu.dma_semaphore, #tpu.memory_space<semaphore_mem>>
    tpu.enqueue_dma source(%188 : memref<1x256xf32, #tpu.memory_space<any>>) target(%189 : memref<1x256xf32, #tpu.memory_space<vmem>>) target_semaphore(%191 : memref<!tpu.dma_semaphore, #tpu.memory_space<semaphore_mem>>)
    %c48_i32_112 = arith.constant 48 : i32
    %192 = arith.muli %arg0, %c48_i32_112 : i32
    %c19_i32 = arith.constant 19 : i32
    %193 = arith.addi %192, %c19_i32 : i32
    %194 = arith.index_cast %193 : i32 to index
    %195 = memref.load %arg2[%194] : memref<48xi32, #tpu.memory_space<smem>>
    %c0_i32_113 = arith.constant 0 : i32
    %196 = arith.maxsi %195, %c0_i32_113 : i32
    %c511_i32_114 = arith.constant 511 : i32
    %197 = arith.minsi %196, %c511_i32_114 : i32
    %c0_i32_115 = arith.constant 0 : i32
    %198 = tpu.memref_slice %arg3[%197, %1] : memref<512x512xf32, #tpu.memory_space<any>> -> memref<1x256xf32, #tpu.memory_space<any>>
    %c19_i32_116 = arith.constant 19 : i32
    %c0_i32_117 = arith.constant 0 : i32
    %199 = tpu.memref_slice %arg8[%c19_i32_116, %c0_i32_117] : memref<48x256xf32, #tpu.memory_space<vmem>> -> memref<1x256xf32, #tpu.memory_space<vmem>>
    %200 = tpu.memref_slice %arg9[%c0_i32_115] : memref<1x!tpu.dma_semaphore, #tpu.memory_space<semaphore_mem>> -> memref<1x!tpu.dma_semaphore, #tpu.memory_space<semaphore_mem>>
    %201 = tpu.memref_squeeze %200 : memref<1x!tpu.dma_semaphore, #tpu.memory_space<semaphore_mem>> -> memref<!tpu.dma_semaphore, #tpu.memory_space<semaphore_mem>>
    tpu.enqueue_dma source(%198 : memref<1x256xf32, #tpu.memory_space<any>>) target(%199 : memref<1x256xf32, #tpu.memory_space<vmem>>) target_semaphore(%201 : memref<!tpu.dma_semaphore, #tpu.memory_space<semaphore_mem>>)
    %c48_i32_118 = arith.constant 48 : i32
    %202 = arith.muli %arg0, %c48_i32_118 : i32
    %c20_i32 = arith.constant 20 : i32
    %203 = arith.addi %202, %c20_i32 : i32
    %204 = arith.index_cast %203 : i32 to index
    %205 = memref.load %arg2[%204] : memref<48xi32, #tpu.memory_space<smem>>
    %c0_i32_119 = arith.constant 0 : i32
    %206 = arith.maxsi %205, %c0_i32_119 : i32
    %c511_i32_120 = arith.constant 511 : i32
    %207 = arith.minsi %206, %c511_i32_120 : i32
    %c0_i32_121 = arith.constant 0 : i32
    %208 = tpu.memref_slice %arg3[%207, %1] : memref<512x512xf32, #tpu.memory_space<any>> -> memref<1x256xf32, #tpu.memory_space<any>>
    %c20_i32_122 = arith.constant 20 : i32
    %c0_i32_123 = arith.constant 0 : i32
    %209 = tpu.memref_slice %arg8[%c20_i32_122, %c0_i32_123] : memref<48x256xf32, #tpu.memory_space<vmem>> -> memref<1x256xf32, #tpu.memory_space<vmem>>
    %210 = tpu.memref_slice %arg9[%c0_i32_121] : memref<1x!tpu.dma_semaphore, #tpu.memory_space<semaphore_mem>> -> memref<1x!tpu.dma_semaphore, #tpu.memory_space<semaphore_mem>>
    %211 = tpu.memref_squeeze %210 : memref<1x!tpu.dma_semaphore, #tpu.memory_space<semaphore_mem>> -> memref<!tpu.dma_semaphore, #tpu.memory_space<semaphore_mem>>
    tpu.enqueue_dma source(%208 : memref<1x256xf32, #tpu.memory_space<any>>) target(%209 : memref<1x256xf32, #tpu.memory_space<vmem>>) target_semaphore(%211 : memref<!tpu.dma_semaphore, #tpu.memory_space<semaphore_mem>>)
    %c48_i32_124 = arith.constant 48 : i32
    %212 = arith.muli %arg0, %c48_i32_124 : i32
    %c21_i32 = arith.constant 21 : i32
    %213 = arith.addi %212, %c21_i32 : i32
    %214 = arith.index_cast %213 : i32 to index
    %215 = memref.load %arg2[%214] : memref<48xi32, #tpu.memory_space<smem>>
    %c0_i32_125 = arith.constant 0 : i32
    %216 = arith.maxsi %215, %c0_i32_125 : i32
    %c511_i32_126 = arith.constant 511 : i32
    %217 = arith.minsi %216, %c511_i32_126 : i32
    %c0_i32_127 = arith.constant 0 : i32
    %218 = tpu.memref_slice %arg3[%217, %1] : memref<512x512xf32, #tpu.memory_space<any>> -> memref<1x256xf32, #tpu.memory_space<any>>
    %c21_i32_128 = arith.constant 21 : i32
    %c0_i32_129 = arith.constant 0 : i32
    %219 = tpu.memref_slice %arg8[%c21_i32_128, %c0_i32_129] : memref<48x256xf32, #tpu.memory_space<vmem>> -> memref<1x256xf32, #tpu.memory_space<vmem>>
    %220 = tpu.memref_slice %arg9[%c0_i32_127] : memref<1x!tpu.dma_semaphore, #tpu.memory_space<semaphore_mem>> -> memref<1x!tpu.dma_semaphore, #tpu.memory_space<semaphore_mem>>
    %221 = tpu.memref_squeeze %220 : memref<1x!tpu.dma_semaphore, #tpu.memory_space<semaphore_mem>> -> memref<!tpu.dma_semaphore, #tpu.memory_space<semaphore_mem>>
    tpu.enqueue_dma source(%218 : memref<1x256xf32, #tpu.memory_space<any>>) target(%219 : memref<1x256xf32, #tpu.memory_space<vmem>>) target_semaphore(%221 : memref<!tpu.dma_semaphore, #tpu.memory_space<semaphore_mem>>)
    %c48_i32_130 = arith.constant 48 : i32
    %222 = arith.muli %arg0, %c48_i32_130 : i32
    %c22_i32 = arith.constant 22 : i32
    %223 = arith.addi %222, %c22_i32 : i32
    %224 = arith.index_cast %223 : i32 to index
    %225 = memref.load %arg2[%224] : memref<48xi32, #tpu.memory_space<smem>>
    %c0_i32_131 = arith.constant 0 : i32
    %226 = arith.maxsi %225, %c0_i32_131 : i32
    %c511_i32_132 = arith.constant 511 : i32
    %227 = arith.minsi %226, %c511_i32_132 : i32
    %c0_i32_133 = arith.constant 0 : i32
    %228 = tpu.memref_slice %arg3[%227, %1] : memref<512x512xf32, #tpu.memory_space<any>> -> memref<1x256xf32, #tpu.memory_space<any>>
    %c22_i32_134 = arith.constant 22 : i32
    %c0_i32_135 = arith.constant 0 : i32
    %229 = tpu.memref_slice %arg8[%c22_i32_134, %c0_i32_135] : memref<48x256xf32, #tpu.memory_space<vmem>> -> memref<1x256xf32, #tpu.memory_space<vmem>>
    %230 = tpu.memref_slice %arg9[%c0_i32_133] : memref<1x!tpu.dma_semaphore, #tpu.memory_space<semaphore_mem>> -> memref<1x!tpu.dma_semaphore, #tpu.memory_space<semaphore_mem>>
    %231 = tpu.memref_squeeze %230 : memref<1x!tpu.dma_semaphore, #tpu.memory_space<semaphore_mem>> -> memref<!tpu.dma_semaphore, #tpu.memory_space<semaphore_mem>>
    tpu.enqueue_dma source(%228 : memref<1x256xf32, #tpu.memory_space<any>>) target(%229 : memref<1x256xf32, #tpu.memory_space<vmem>>) target_semaphore(%231 : memref<!tpu.dma_semaphore, #tpu.memory_space<semaphore_mem>>)
    %c48_i32_136 = arith.constant 48 : i32
    %232 = arith.muli %arg0, %c48_i32_136 : i32
    %c23_i32 = arith.constant 23 : i32
    %233 = arith.addi %232, %c23_i32 : i32
    %234 = arith.index_cast %233 : i32 to index
    %235 = memref.load %arg2[%234] : memref<48xi32, #tpu.memory_space<smem>>
    %c0_i32_137 = arith.constant 0 : i32
    %236 = arith.maxsi %235, %c0_i32_137 : i32
    %c511_i32_138 = arith.constant 511 : i32
    %237 = arith.minsi %236, %c511_i32_138 : i32
    %c0_i32_139 = arith.constant 0 : i32
    %238 = tpu.memref_slice %arg3[%237, %1] : memref<512x512xf32, #tpu.memory_space<any>> -> memref<1x256xf32, #tpu.memory_space<any>>
    %c23_i32_140 = arith.constant 23 : i32
    %c0_i32_141 = arith.constant 0 : i32
    %239 = tpu.memref_slice %arg8[%c23_i32_140, %c0_i32_141] : memref<48x256xf32, #tpu.memory_space<vmem>> -> memref<1x256xf32, #tpu.memory_space<vmem>>
    %240 = tpu.memref_slice %arg9[%c0_i32_139] : memref<1x!tpu.dma_semaphore, #tpu.memory_space<semaphore_mem>> -> memref<1x!tpu.dma_semaphore, #tpu.memory_space<semaphore_mem>>
    %241 = tpu.memref_squeeze %240 : memref<1x!tpu.dma_semaphore, #tpu.memory_space<semaphore_mem>> -> memref<!tpu.dma_semaphore, #tpu.memory_space<semaphore_mem>>
    tpu.enqueue_dma source(%238 : memref<1x256xf32, #tpu.memory_space<any>>) target(%239 : memref<1x256xf32, #tpu.memory_space<vmem>>) target_semaphore(%241 : memref<!tpu.dma_semaphore, #tpu.memory_space<semaphore_mem>>)
    %c48_i32_142 = arith.constant 48 : i32
    %242 = arith.muli %arg0, %c48_i32_142 : i32
    %c24_i32 = arith.constant 24 : i32
    %243 = arith.addi %242, %c24_i32 : i32
    %244 = arith.index_cast %243 : i32 to index
    %245 = memref.load %arg2[%244] : memref<48xi32, #tpu.memory_space<smem>>
    %c0_i32_143 = arith.constant 0 : i32
    %246 = arith.maxsi %245, %c0_i32_143 : i32
    %c511_i32_144 = arith.constant 511 : i32
    %247 = arith.minsi %246, %c511_i32_144 : i32
    %c0_i32_145 = arith.constant 0 : i32
    %248 = tpu.memref_slice %arg3[%247, %1] : memref<512x512xf32, #tpu.memory_space<any>> -> memref<1x256xf32, #tpu.memory_space<any>>
    %c24_i32_146 = arith.constant 24 : i32
    %c0_i32_147 = arith.constant 0 : i32
    %249 = tpu.memref_slice %arg8[%c24_i32_146, %c0_i32_147] : memref<48x256xf32, #tpu.memory_space<vmem>> -> memref<1x256xf32, #tpu.memory_space<vmem>>
    %250 = tpu.memref_slice %arg9[%c0_i32_145] : memref<1x!tpu.dma_semaphore, #tpu.memory_space<semaphore_mem>> -> memref<1x!tpu.dma_semaphore, #tpu.memory_space<semaphore_mem>>
    %251 = tpu.memref_squeeze %250 : memref<1x!tpu.dma_semaphore, #tpu.memory_space<semaphore_mem>> -> memref<!tpu.dma_semaphore, #tpu.memory_space<semaphore_mem>>
    tpu.enqueue_dma source(%248 : memref<1x256xf32, #tpu.memory_space<any>>) target(%249 : memref<1x256xf32, #tpu.memory_space<vmem>>) target_semaphore(%251 : memref<!tpu.dma_semaphore, #tpu.memory_space<semaphore_mem>>)
    %c48_i32_148 = arith.constant 48 : i32
    %252 = arith.muli %arg0, %c48_i32_148 : i32
    %c25_i32 = arith.constant 25 : i32
    %253 = arith.addi %252, %c25_i32 : i32
    %254 = arith.index_cast %253 : i32 to index
    %255 = memref.load %arg2[%254] : memref<48xi32, #tpu.memory_space<smem>>
    %c0_i32_149 = arith.constant 0 : i32
    %256 = arith.maxsi %255, %c0_i32_149 : i32
    %c511_i32_150 = arith.constant 511 : i32
    %257 = arith.minsi %256, %c511_i32_150 : i32
    %c0_i32_151 = arith.constant 0 : i32
    %258 = tpu.memref_slice %arg3[%257, %1] : memref<512x512xf32, #tpu.memory_space<any>> -> memref<1x256xf32, #tpu.memory_space<any>>
    %c25_i32_152 = arith.constant 25 : i32
    %c0_i32_153 = arith.constant 0 : i32
    %259 = tpu.memref_slice %arg8[%c25_i32_152, %c0_i32_153] : memref<48x256xf32, #tpu.memory_space<vmem>> -> memref<1x256xf32, #tpu.memory_space<vmem>>
    %260 = tpu.memref_slice %arg9[%c0_i32_151] : memref<1x!tpu.dma_semaphore, #tpu.memory_space<semaphore_mem>> -> memref<1x!tpu.dma_semaphore, #tpu.memory_space<semaphore_mem>>
    %261 = tpu.memref_squeeze %260 : memref<1x!tpu.dma_semaphore, #tpu.memory_space<semaphore_mem>> -> memref<!tpu.dma_semaphore, #tpu.memory_space<semaphore_mem>>
    tpu.enqueue_dma source(%258 : memref<1x256xf32, #tpu.memory_space<any>>) target(%259 : memref<1x256xf32, #tpu.memory_space<vmem>>) target_semaphore(%261 : memref<!tpu.dma_semaphore, #tpu.memory_space<semaphore_mem>>)
    %c48_i32_154 = arith.constant 48 : i32
    %262 = arith.muli %arg0, %c48_i32_154 : i32
    %c26_i32 = arith.constant 26 : i32
    %263 = arith.addi %262, %c26_i32 : i32
    %264 = arith.index_cast %263 : i32 to index
    %265 = memref.load %arg2[%264] : memref<48xi32, #tpu.memory_space<smem>>
    %c0_i32_155 = arith.constant 0 : i32
    %266 = arith.maxsi %265, %c0_i32_155 : i32
    %c511_i32_156 = arith.constant 511 : i32
    %267 = arith.minsi %266, %c511_i32_156 : i32
    %c0_i32_157 = arith.constant 0 : i32
    %268 = tpu.memref_slice %arg3[%267, %1] : memref<512x512xf32, #tpu.memory_space<any>> -> memref<1x256xf32, #tpu.memory_space<any>>
    %c26_i32_158 = arith.constant 26 : i32
    %c0_i32_159 = arith.constant 0 : i32
    %269 = tpu.memref_slice %arg8[%c26_i32_158, %c0_i32_159] : memref<48x256xf32, #tpu.memory_space<vmem>> -> memref<1x256xf32, #tpu.memory_space<vmem>>
    %270 = tpu.memref_slice %arg9[%c0_i32_157] : memref<1x!tpu.dma_semaphore, #tpu.memory_space<semaphore_mem>> -> memref<1x!tpu.dma_semaphore, #tpu.memory_space<semaphore_mem>>
    %271 = tpu.memref_squeeze %270 : memref<1x!tpu.dma_semaphore, #tpu.memory_space<semaphore_mem>> -> memref<!tpu.dma_semaphore, #tpu.memory_space<semaphore_mem>>
    tpu.enqueue_dma source(%268 : memref<1x256xf32, #tpu.memory_space<any>>) target(%269 : memref<1x256xf32, #tpu.memory_space<vmem>>) target_semaphore(%271 : memref<!tpu.dma_semaphore, #tpu.memory_space<semaphore_mem>>)
    %c48_i32_160 = arith.constant 48 : i32
    %272 = arith.muli %arg0, %c48_i32_160 : i32
    %c27_i32 = arith.constant 27 : i32
    %273 = arith.addi %272, %c27_i32 : i32
    %274 = arith.index_cast %273 : i32 to index
    %275 = memref.load %arg2[%274] : memref<48xi32, #tpu.memory_space<smem>>
    %c0_i32_161 = arith.constant 0 : i32
    %276 = arith.maxsi %275, %c0_i32_161 : i32
    %c511_i32_162 = arith.constant 511 : i32
    %277 = arith.minsi %276, %c511_i32_162 : i32
    %c0_i32_163 = arith.constant 0 : i32
    %278 = tpu.memref_slice %arg3[%277, %1] : memref<512x512xf32, #tpu.memory_space<any>> -> memref<1x256xf32, #tpu.memory_space<any>>
    %c27_i32_164 = arith.constant 27 : i32
    %c0_i32_165 = arith.constant 0 : i32
    %279 = tpu.memref_slice %arg8[%c27_i32_164, %c0_i32_165] : memref<48x256xf32, #tpu.memory_space<vmem>> -> memref<1x256xf32, #tpu.memory_space<vmem>>
    %280 = tpu.memref_slice %arg9[%c0_i32_163] : memref<1x!tpu.dma_semaphore, #tpu.memory_space<semaphore_mem>> -> memref<1x!tpu.dma_semaphore, #tpu.memory_space<semaphore_mem>>
    %281 = tpu.memref_squeeze %280 : memref<1x!tpu.dma_semaphore, #tpu.memory_space<semaphore_mem>> -> memref<!tpu.dma_semaphore, #tpu.memory_space<semaphore_mem>>
    tpu.enqueue_dma source(%278 : memref<1x256xf32, #tpu.memory_space<any>>) target(%279 : memref<1x256xf32, #tpu.memory_space<vmem>>) target_semaphore(%281 : memref<!tpu.dma_semaphore, #tpu.memory_space<semaphore_mem>>)
    %c48_i32_166 = arith.constant 48 : i32
    %282 = arith.muli %arg0, %c48_i32_166 : i32
    %c28_i32 = arith.constant 28 : i32
    %283 = arith.addi %282, %c28_i32 : i32
    %284 = arith.index_cast %283 : i32 to index
    %285 = memref.load %arg2[%284] : memref<48xi32, #tpu.memory_space<smem>>
    %c0_i32_167 = arith.constant 0 : i32
    %286 = arith.maxsi %285, %c0_i32_167 : i32
    %c511_i32_168 = arith.constant 511 : i32
    %287 = arith.minsi %286, %c511_i32_168 : i32
    %c0_i32_169 = arith.constant 0 : i32
    %288 = tpu.memref_slice %arg3[%287, %1] : memref<512x512xf32, #tpu.memory_space<any>> -> memref<1x256xf32, #tpu.memory_space<any>>
    %c28_i32_170 = arith.constant 28 : i32
    %c0_i32_171 = arith.constant 0 : i32
    %289 = tpu.memref_slice %arg8[%c28_i32_170, %c0_i32_171] : memref<48x256xf32, #tpu.memory_space<vmem>> -> memref<1x256xf32, #tpu.memory_space<vmem>>
    %290 = tpu.memref_slice %arg9[%c0_i32_169] : memref<1x!tpu.dma_semaphore, #tpu.memory_space<semaphore_mem>> -> memref<1x!tpu.dma_semaphore, #tpu.memory_space<semaphore_mem>>
    %291 = tpu.memref_squeeze %290 : memref<1x!tpu.dma_semaphore, #tpu.memory_space<semaphore_mem>> -> memref<!tpu.dma_semaphore, #tpu.memory_space<semaphore_mem>>
    tpu.enqueue_dma source(%288 : memref<1x256xf32, #tpu.memory_space<any>>) target(%289 : memref<1x256xf32, #tpu.memory_space<vmem>>) target_semaphore(%291 : memref<!tpu.dma_semaphore, #tpu.memory_space<semaphore_mem>>)
    %c48_i32_172 = arith.constant 48 : i32
    %292 = arith.muli %arg0, %c48_i32_172 : i32
    %c29_i32 = arith.constant 29 : i32
    %293 = arith.addi %292, %c29_i32 : i32
    %294 = arith.index_cast %293 : i32 to index
    %295 = memref.load %arg2[%294] : memref<48xi32, #tpu.memory_space<smem>>
    %c0_i32_173 = arith.constant 0 : i32
    %296 = arith.maxsi %295, %c0_i32_173 : i32
    %c511_i32_174 = arith.constant 511 : i32
    %297 = arith.minsi %296, %c511_i32_174 : i32
    %c0_i32_175 = arith.constant 0 : i32
    %298 = tpu.memref_slice %arg3[%297, %1] : memref<512x512xf32, #tpu.memory_space<any>> -> memref<1x256xf32, #tpu.memory_space<any>>
    %c29_i32_176 = arith.constant 29 : i32
    %c0_i32_177 = arith.constant 0 : i32
    %299 = tpu.memref_slice %arg8[%c29_i32_176, %c0_i32_177] : memref<48x256xf32, #tpu.memory_space<vmem>> -> memref<1x256xf32, #tpu.memory_space<vmem>>
    %300 = tpu.memref_slice %arg9[%c0_i32_175] : memref<1x!tpu.dma_semaphore, #tpu.memory_space<semaphore_mem>> -> memref<1x!tpu.dma_semaphore, #tpu.memory_space<semaphore_mem>>
    %301 = tpu.memref_squeeze %300 : memref<1x!tpu.dma_semaphore, #tpu.memory_space<semaphore_mem>> -> memref<!tpu.dma_semaphore, #tpu.memory_space<semaphore_mem>>
    tpu.enqueue_dma source(%298 : memref<1x256xf32, #tpu.memory_space<any>>) target(%299 : memref<1x256xf32, #tpu.memory_space<vmem>>) target_semaphore(%301 : memref<!tpu.dma_semaphore, #tpu.memory_space<semaphore_mem>>)
    %c48_i32_178 = arith.constant 48 : i32
    %302 = arith.muli %arg0, %c48_i32_178 : i32
    %c30_i32 = arith.constant 30 : i32
    %303 = arith.addi %302, %c30_i32 : i32
    %304 = arith.index_cast %303 : i32 to index
    %305 = memref.load %arg2[%304] : memref<48xi32, #tpu.memory_space<smem>>
    %c0_i32_179 = arith.constant 0 : i32
    %306 = arith.maxsi %305, %c0_i32_179 : i32
    %c511_i32_180 = arith.constant 511 : i32
    %307 = arith.minsi %306, %c511_i32_180 : i32
    %c0_i32_181 = arith.constant 0 : i32
    %308 = tpu.memref_slice %arg3[%307, %1] : memref<512x512xf32, #tpu.memory_space<any>> -> memref<1x256xf32, #tpu.memory_space<any>>
    %c30_i32_182 = arith.constant 30 : i32
    %c0_i32_183 = arith.constant 0 : i32
    %309 = tpu.memref_slice %arg8[%c30_i32_182, %c0_i32_183] : memref<48x256xf32, #tpu.memory_space<vmem>> -> memref<1x256xf32, #tpu.memory_space<vmem>>
    %310 = tpu.memref_slice %arg9[%c0_i32_181] : memref<1x!tpu.dma_semaphore, #tpu.memory_space<semaphore_mem>> -> memref<1x!tpu.dma_semaphore, #tpu.memory_space<semaphore_mem>>
    %311 = tpu.memref_squeeze %310 : memref<1x!tpu.dma_semaphore, #tpu.memory_space<semaphore_mem>> -> memref<!tpu.dma_semaphore, #tpu.memory_space<semaphore_mem>>
    tpu.enqueue_dma source(%308 : memref<1x256xf32, #tpu.memory_space<any>>) target(%309 : memref<1x256xf32, #tpu.memory_space<vmem>>) target_semaphore(%311 : memref<!tpu.dma_semaphore, #tpu.memory_space<semaphore_mem>>)
    %c48_i32_184 = arith.constant 48 : i32
    %312 = arith.muli %arg0, %c48_i32_184 : i32
    %c31_i32 = arith.constant 31 : i32
    %313 = arith.addi %312, %c31_i32 : i32
    %314 = arith.index_cast %313 : i32 to index
    %315 = memref.load %arg2[%314] : memref<48xi32, #tpu.memory_space<smem>>
    %c0_i32_185 = arith.constant 0 : i32
    %316 = arith.maxsi %315, %c0_i32_185 : i32
    %c511_i32_186 = arith.constant 511 : i32
    %317 = arith.minsi %316, %c511_i32_186 : i32
    %c0_i32_187 = arith.constant 0 : i32
    %318 = tpu.memref_slice %arg3[%317, %1] : memref<512x512xf32, #tpu.memory_space<any>> -> memref<1x256xf32, #tpu.memory_space<any>>
    %c31_i32_188 = arith.constant 31 : i32
    %c0_i32_189 = arith.constant 0 : i32
    %319 = tpu.memref_slice %arg8[%c31_i32_188, %c0_i32_189] : memref<48x256xf32, #tpu.memory_space<vmem>> -> memref<1x256xf32, #tpu.memory_space<vmem>>
    %320 = tpu.memref_slice %arg9[%c0_i32_187] : memref<1x!tpu.dma_semaphore, #tpu.memory_space<semaphore_mem>> -> memref<1x!tpu.dma_semaphore, #tpu.memory_space<semaphore_mem>>
    %321 = tpu.memref_squeeze %320 : memref<1x!tpu.dma_semaphore, #tpu.memory_space<semaphore_mem>> -> memref<!tpu.dma_semaphore, #tpu.memory_space<semaphore_mem>>
    tpu.enqueue_dma source(%318 : memref<1x256xf32, #tpu.memory_space<any>>) target(%319 : memref<1x256xf32, #tpu.memory_space<vmem>>) target_semaphore(%321 : memref<!tpu.dma_semaphore, #tpu.memory_space<semaphore_mem>>)
    %c48_i32_190 = arith.constant 48 : i32
    %322 = arith.muli %arg0, %c48_i32_190 : i32
    %c32_i32 = arith.constant 32 : i32
    %323 = arith.addi %322, %c32_i32 : i32
    %324 = arith.index_cast %323 : i32 to index
    %325 = memref.load %arg2[%324] : memref<48xi32, #tpu.memory_space<smem>>
    %c0_i32_191 = arith.constant 0 : i32
    %326 = arith.maxsi %325, %c0_i32_191 : i32
    %c511_i32_192 = arith.constant 511 : i32
    %327 = arith.minsi %326, %c511_i32_192 : i32
    %c0_i32_193 = arith.constant 0 : i32
    %328 = tpu.memref_slice %arg3[%327, %1] : memref<512x512xf32, #tpu.memory_space<any>> -> memref<1x256xf32, #tpu.memory_space<any>>
    %c32_i32_194 = arith.constant 32 : i32
    %c0_i32_195 = arith.constant 0 : i32
    %329 = tpu.memref_slice %arg8[%c32_i32_194, %c0_i32_195] : memref<48x256xf32, #tpu.memory_space<vmem>> -> memref<1x256xf32, #tpu.memory_space<vmem>>
    %330 = tpu.memref_slice %arg9[%c0_i32_193] : memref<1x!tpu.dma_semaphore, #tpu.memory_space<semaphore_mem>> -> memref<1x!tpu.dma_semaphore, #tpu.memory_space<semaphore_mem>>
    %331 = tpu.memref_squeeze %330 : memref<1x!tpu.dma_semaphore, #tpu.memory_space<semaphore_mem>> -> memref<!tpu.dma_semaphore, #tpu.memory_space<semaphore_mem>>
    tpu.enqueue_dma source(%328 : memref<1x256xf32, #tpu.memory_space<any>>) target(%329 : memref<1x256xf32, #tpu.memory_space<vmem>>) target_semaphore(%331 : memref<!tpu.dma_semaphore, #tpu.memory_space<semaphore_mem>>)
    %c48_i32_196 = arith.constant 48 : i32
    %332 = arith.muli %arg0, %c48_i32_196 : i32
    %c33_i32 = arith.constant 33 : i32
    %333 = arith.addi %332, %c33_i32 : i32
    %334 = arith.index_cast %333 : i32 to index
    %335 = memref.load %arg2[%334] : memref<48xi32, #tpu.memory_space<smem>>
    %c0_i32_197 = arith.constant 0 : i32
    %336 = arith.maxsi %335, %c0_i32_197 : i32
    %c511_i32_198 = arith.constant 511 : i32
    %337 = arith.minsi %336, %c511_i32_198 : i32
    %c0_i32_199 = arith.constant 0 : i32
    %338 = tpu.memref_slice %arg3[%337, %1] : memref<512x512xf32, #tpu.memory_space<any>> -> memref<1x256xf32, #tpu.memory_space<any>>
    %c33_i32_200 = arith.constant 33 : i32
    %c0_i32_201 = arith.constant 0 : i32
    %339 = tpu.memref_slice %arg8[%c33_i32_200, %c0_i32_201] : memref<48x256xf32, #tpu.memory_space<vmem>> -> memref<1x256xf32, #tpu.memory_space<vmem>>
    %340 = tpu.memref_slice %arg9[%c0_i32_199] : memref<1x!tpu.dma_semaphore, #tpu.memory_space<semaphore_mem>> -> memref<1x!tpu.dma_semaphore, #tpu.memory_space<semaphore_mem>>
    %341 = tpu.memref_squeeze %340 : memref<1x!tpu.dma_semaphore, #tpu.memory_space<semaphore_mem>> -> memref<!tpu.dma_semaphore, #tpu.memory_space<semaphore_mem>>
    tpu.enqueue_dma source(%338 : memref<1x256xf32, #tpu.memory_space<any>>) target(%339 : memref<1x256xf32, #tpu.memory_space<vmem>>) target_semaphore(%341 : memref<!tpu.dma_semaphore, #tpu.memory_space<semaphore_mem>>)
    %c48_i32_202 = arith.constant 48 : i32
    %342 = arith.muli %arg0, %c48_i32_202 : i32
    %c34_i32 = arith.constant 34 : i32
    %343 = arith.addi %342, %c34_i32 : i32
    %344 = arith.index_cast %343 : i32 to index
    %345 = memref.load %arg2[%344] : memref<48xi32, #tpu.memory_space<smem>>
    %c0_i32_203 = arith.constant 0 : i32
    %346 = arith.maxsi %345, %c0_i32_203 : i32
    %c511_i32_204 = arith.constant 511 : i32
    %347 = arith.minsi %346, %c511_i32_204 : i32
    %c0_i32_205 = arith.constant 0 : i32
    %348 = tpu.memref_slice %arg3[%347, %1] : memref<512x512xf32, #tpu.memory_space<any>> -> memref<1x256xf32, #tpu.memory_space<any>>
    %c34_i32_206 = arith.constant 34 : i32
    %c0_i32_207 = arith.constant 0 : i32
    %349 = tpu.memref_slice %arg8[%c34_i32_206, %c0_i32_207] : memref<48x256xf32, #tpu.memory_space<vmem>> -> memref<1x256xf32, #tpu.memory_space<vmem>>
    %350 = tpu.memref_slice %arg9[%c0_i32_205] : memref<1x!tpu.dma_semaphore, #tpu.memory_space<semaphore_mem>> -> memref<1x!tpu.dma_semaphore, #tpu.memory_space<semaphore_mem>>
    %351 = tpu.memref_squeeze %350 : memref<1x!tpu.dma_semaphore, #tpu.memory_space<semaphore_mem>> -> memref<!tpu.dma_semaphore, #tpu.memory_space<semaphore_mem>>
    tpu.enqueue_dma source(%348 : memref<1x256xf32, #tpu.memory_space<any>>) target(%349 : memref<1x256xf32, #tpu.memory_space<vmem>>) target_semaphore(%351 : memref<!tpu.dma_semaphore, #tpu.memory_space<semaphore_mem>>)
    %c48_i32_208 = arith.constant 48 : i32
    %352 = arith.muli %arg0, %c48_i32_208 : i32
    %c35_i32 = arith.constant 35 : i32
    %353 = arith.addi %352, %c35_i32 : i32
    %354 = arith.index_cast %353 : i32 to index
    %355 = memref.load %arg2[%354] : memref<48xi32, #tpu.memory_space<smem>>
    %c0_i32_209 = arith.constant 0 : i32
    %356 = arith.maxsi %355, %c0_i32_209 : i32
    %c511_i32_210 = arith.constant 511 : i32
    %357 = arith.minsi %356, %c511_i32_210 : i32
    %c0_i32_211 = arith.constant 0 : i32
    %358 = tpu.memref_slice %arg3[%357, %1] : memref<512x512xf32, #tpu.memory_space<any>> -> memref<1x256xf32, #tpu.memory_space<any>>
    %c35_i32_212 = arith.constant 35 : i32
    %c0_i32_213 = arith.constant 0 : i32
    %359 = tpu.memref_slice %arg8[%c35_i32_212, %c0_i32_213] : memref<48x256xf32, #tpu.memory_space<vmem>> -> memref<1x256xf32, #tpu.memory_space<vmem>>
    %360 = tpu.memref_slice %arg9[%c0_i32_211] : memref<1x!tpu.dma_semaphore, #tpu.memory_space<semaphore_mem>> -> memref<1x!tpu.dma_semaphore, #tpu.memory_space<semaphore_mem>>
    %361 = tpu.memref_squeeze %360 : memref<1x!tpu.dma_semaphore, #tpu.memory_space<semaphore_mem>> -> memref<!tpu.dma_semaphore, #tpu.memory_space<semaphore_mem>>
    tpu.enqueue_dma source(%358 : memref<1x256xf32, #tpu.memory_space<any>>) target(%359 : memref<1x256xf32, #tpu.memory_space<vmem>>) target_semaphore(%361 : memref<!tpu.dma_semaphore, #tpu.memory_space<semaphore_mem>>)
    %c48_i32_214 = arith.constant 48 : i32
    %362 = arith.muli %arg0, %c48_i32_214 : i32
    %c36_i32 = arith.constant 36 : i32
    %363 = arith.addi %362, %c36_i32 : i32
    %364 = arith.index_cast %363 : i32 to index
    %365 = memref.load %arg2[%364] : memref<48xi32, #tpu.memory_space<smem>>
    %c0_i32_215 = arith.constant 0 : i32
    %366 = arith.maxsi %365, %c0_i32_215 : i32
    %c511_i32_216 = arith.constant 511 : i32
    %367 = arith.minsi %366, %c511_i32_216 : i32
    %c0_i32_217 = arith.constant 0 : i32
    %368 = tpu.memref_slice %arg3[%367, %1] : memref<512x512xf32, #tpu.memory_space<any>> -> memref<1x256xf32, #tpu.memory_space<any>>
    %c36_i32_218 = arith.constant 36 : i32
    %c0_i32_219 = arith.constant 0 : i32
    %369 = tpu.memref_slice %arg8[%c36_i32_218, %c0_i32_219] : memref<48x256xf32, #tpu.memory_space<vmem>> -> memref<1x256xf32, #tpu.memory_space<vmem>>
    %370 = tpu.memref_slice %arg9[%c0_i32_217] : memref<1x!tpu.dma_semaphore, #tpu.memory_space<semaphore_mem>> -> memref<1x!tpu.dma_semaphore, #tpu.memory_space<semaphore_mem>>
    %371 = tpu.memref_squeeze %370 : memref<1x!tpu.dma_semaphore, #tpu.memory_space<semaphore_mem>> -> memref<!tpu.dma_semaphore, #tpu.memory_space<semaphore_mem>>
    tpu.enqueue_dma source(%368 : memref<1x256xf32, #tpu.memory_space<any>>) target(%369 : memref<1x256xf32, #tpu.memory_space<vmem>>) target_semaphore(%371 : memref<!tpu.dma_semaphore, #tpu.memory_space<semaphore_mem>>)
    %c48_i32_220 = arith.constant 48 : i32
    %372 = arith.muli %arg0, %c48_i32_220 : i32
    %c37_i32 = arith.constant 37 : i32
    %373 = arith.addi %372, %c37_i32 : i32
    %374 = arith.index_cast %373 : i32 to index
    %375 = memref.load %arg2[%374] : memref<48xi32, #tpu.memory_space<smem>>
    %c0_i32_221 = arith.constant 0 : i32
    %376 = arith.maxsi %375, %c0_i32_221 : i32
    %c511_i32_222 = arith.constant 511 : i32
    %377 = arith.minsi %376, %c511_i32_222 : i32
    %c0_i32_223 = arith.constant 0 : i32
    %378 = tpu.memref_slice %arg3[%377, %1] : memref<512x512xf32, #tpu.memory_space<any>> -> memref<1x256xf32, #tpu.memory_space<any>>
    %c37_i32_224 = arith.constant 37 : i32
    %c0_i32_225 = arith.constant 0 : i32
    %379 = tpu.memref_slice %arg8[%c37_i32_224, %c0_i32_225] : memref<48x256xf32, #tpu.memory_space<vmem>> -> memref<1x256xf32, #tpu.memory_space<vmem>>
    %380 = tpu.memref_slice %arg9[%c0_i32_223] : memref<1x!tpu.dma_semaphore, #tpu.memory_space<semaphore_mem>> -> memref<1x!tpu.dma_semaphore, #tpu.memory_space<semaphore_mem>>
    %381 = tpu.memref_squeeze %380 : memref<1x!tpu.dma_semaphore, #tpu.memory_space<semaphore_mem>> -> memref<!tpu.dma_semaphore, #tpu.memory_space<semaphore_mem>>
    tpu.enqueue_dma source(%378 : memref<1x256xf32, #tpu.memory_space<any>>) target(%379 : memref<1x256xf32, #tpu.memory_space<vmem>>) target_semaphore(%381 : memref<!tpu.dma_semaphore, #tpu.memory_space<semaphore_mem>>)
    %c48_i32_226 = arith.constant 48 : i32
    %382 = arith.muli %arg0, %c48_i32_226 : i32
    %c38_i32 = arith.constant 38 : i32
    %383 = arith.addi %382, %c38_i32 : i32
    %384 = arith.index_cast %383 : i32 to index
    %385 = memref.load %arg2[%384] : memref<48xi32, #tpu.memory_space<smem>>
    %c0_i32_227 = arith.constant 0 : i32
    %386 = arith.maxsi %385, %c0_i32_227 : i32
    %c511_i32_228 = arith.constant 511 : i32
    %387 = arith.minsi %386, %c511_i32_228 : i32
    %c0_i32_229 = arith.constant 0 : i32
    %388 = tpu.memref_slice %arg3[%387, %1] : memref<512x512xf32, #tpu.memory_space<any>> -> memref<1x256xf32, #tpu.memory_space<any>>
    %c38_i32_230 = arith.constant 38 : i32
    %c0_i32_231 = arith.constant 0 : i32
    %389 = tpu.memref_slice %arg8[%c38_i32_230, %c0_i32_231] : memref<48x256xf32, #tpu.memory_space<vmem>> -> memref<1x256xf32, #tpu.memory_space<vmem>>
    %390 = tpu.memref_slice %arg9[%c0_i32_229] : memref<1x!tpu.dma_semaphore, #tpu.memory_space<semaphore_mem>> -> memref<1x!tpu.dma_semaphore, #tpu.memory_space<semaphore_mem>>
    %391 = tpu.memref_squeeze %390 : memref<1x!tpu.dma_semaphore, #tpu.memory_space<semaphore_mem>> -> memref<!tpu.dma_semaphore, #tpu.memory_space<semaphore_mem>>
    tpu.enqueue_dma source(%388 : memref<1x256xf32, #tpu.memory_space<any>>) target(%389 : memref<1x256xf32, #tpu.memory_space<vmem>>) target_semaphore(%391 : memref<!tpu.dma_semaphore, #tpu.memory_space<semaphore_mem>>)
    %c48_i32_232 = arith.constant 48 : i32
    %392 = arith.muli %arg0, %c48_i32_232 : i32
    %c39_i32 = arith.constant 39 : i32
    %393 = arith.addi %392, %c39_i32 : i32
    %394 = arith.index_cast %393 : i32 to index
    %395 = memref.load %arg2[%394] : memref<48xi32, #tpu.memory_space<smem>>
    %c0_i32_233 = arith.constant 0 : i32
    %396 = arith.maxsi %395, %c0_i32_233 : i32
    %c511_i32_234 = arith.constant 511 : i32
    %397 = arith.minsi %396, %c511_i32_234 : i32
    %c0_i32_235 = arith.constant 0 : i32
    %398 = tpu.memref_slice %arg3[%397, %1] : memref<512x512xf32, #tpu.memory_space<any>> -> memref<1x256xf32, #tpu.memory_space<any>>
    %c39_i32_236 = arith.constant 39 : i32
    %c0_i32_237 = arith.constant 0 : i32
    %399 = tpu.memref_slice %arg8[%c39_i32_236, %c0_i32_237] : memref<48x256xf32, #tpu.memory_space<vmem>> -> memref<1x256xf32, #tpu.memory_space<vmem>>
    %400 = tpu.memref_slice %arg9[%c0_i32_235] : memref<1x!tpu.dma_semaphore, #tpu.memory_space<semaphore_mem>> -> memref<1x!tpu.dma_semaphore, #tpu.memory_space<semaphore_mem>>
    %401 = tpu.memref_squeeze %400 : memref<1x!tpu.dma_semaphore, #tpu.memory_space<semaphore_mem>> -> memref<!tpu.dma_semaphore, #tpu.memory_space<semaphore_mem>>
    tpu.enqueue_dma source(%398 : memref<1x256xf32, #tpu.memory_space<any>>) target(%399 : memref<1x256xf32, #tpu.memory_space<vmem>>) target_semaphore(%401 : memref<!tpu.dma_semaphore, #tpu.memory_space<semaphore_mem>>)
    %c48_i32_238 = arith.constant 48 : i32
    %402 = arith.muli %arg0, %c48_i32_238 : i32
    %c40_i32 = arith.constant 40 : i32
    %403 = arith.addi %402, %c40_i32 : i32
    %404 = arith.index_cast %403 : i32 to index
    %405 = memref.load %arg2[%404] : memref<48xi32, #tpu.memory_space<smem>>
    %c0_i32_239 = arith.constant 0 : i32
    %406 = arith.maxsi %405, %c0_i32_239 : i32
    %c511_i32_240 = arith.constant 511 : i32
    %407 = arith.minsi %406, %c511_i32_240 : i32
    %c0_i32_241 = arith.constant 0 : i32
    %408 = tpu.memref_slice %arg3[%407, %1] : memref<512x512xf32, #tpu.memory_space<any>> -> memref<1x256xf32, #tpu.memory_space<any>>
    %c40_i32_242 = arith.constant 40 : i32
    %c0_i32_243 = arith.constant 0 : i32
    %409 = tpu.memref_slice %arg8[%c40_i32_242, %c0_i32_243] : memref<48x256xf32, #tpu.memory_space<vmem>> -> memref<1x256xf32, #tpu.memory_space<vmem>>
    %410 = tpu.memref_slice %arg9[%c0_i32_241] : memref<1x!tpu.dma_semaphore, #tpu.memory_space<semaphore_mem>> -> memref<1x!tpu.dma_semaphore, #tpu.memory_space<semaphore_mem>>
    %411 = tpu.memref_squeeze %410 : memref<1x!tpu.dma_semaphore, #tpu.memory_space<semaphore_mem>> -> memref<!tpu.dma_semaphore, #tpu.memory_space<semaphore_mem>>
    tpu.enqueue_dma source(%408 : memref<1x256xf32, #tpu.memory_space<any>>) target(%409 : memref<1x256xf32, #tpu.memory_space<vmem>>) target_semaphore(%411 : memref<!tpu.dma_semaphore, #tpu.memory_space<semaphore_mem>>)
    %c48_i32_244 = arith.constant 48 : i32
    %412 = arith.muli %arg0, %c48_i32_244 : i32
    %c41_i32 = arith.constant 41 : i32
    %413 = arith.addi %412, %c41_i32 : i32
    %414 = arith.index_cast %413 : i32 to index
    %415 = memref.load %arg2[%414] : memref<48xi32, #tpu.memory_space<smem>>
    %c0_i32_245 = arith.constant 0 : i32
    %416 = arith.maxsi %415, %c0_i32_245 : i32
    %c511_i32_246 = arith.constant 511 : i32
    %417 = arith.minsi %416, %c511_i32_246 : i32
    %c0_i32_247 = arith.constant 0 : i32
    %418 = tpu.memref_slice %arg3[%417, %1] : memref<512x512xf32, #tpu.memory_space<any>> -> memref<1x256xf32, #tpu.memory_space<any>>
    %c41_i32_248 = arith.constant 41 : i32
    %c0_i32_249 = arith.constant 0 : i32
    %419 = tpu.memref_slice %arg8[%c41_i32_248, %c0_i32_249] : memref<48x256xf32, #tpu.memory_space<vmem>> -> memref<1x256xf32, #tpu.memory_space<vmem>>
    %420 = tpu.memref_slice %arg9[%c0_i32_247] : memref<1x!tpu.dma_semaphore, #tpu.memory_space<semaphore_mem>> -> memref<1x!tpu.dma_semaphore, #tpu.memory_space<semaphore_mem>>
    %421 = tpu.memref_squeeze %420 : memref<1x!tpu.dma_semaphore, #tpu.memory_space<semaphore_mem>> -> memref<!tpu.dma_semaphore, #tpu.memory_space<semaphore_mem>>
    tpu.enqueue_dma source(%418 : memref<1x256xf32, #tpu.memory_space<any>>) target(%419 : memref<1x256xf32, #tpu.memory_space<vmem>>) target_semaphore(%421 : memref<!tpu.dma_semaphore, #tpu.memory_space<semaphore_mem>>)
    %c48_i32_250 = arith.constant 48 : i32
    %422 = arith.muli %arg0, %c48_i32_250 : i32
    %c42_i32 = arith.constant 42 : i32
    %423 = arith.addi %422, %c42_i32 : i32
    %424 = arith.index_cast %423 : i32 to index
    %425 = memref.load %arg2[%424] : memref<48xi32, #tpu.memory_space<smem>>
    %c0_i32_251 = arith.constant 0 : i32
    %426 = arith.maxsi %425, %c0_i32_251 : i32
    %c511_i32_252 = arith.constant 511 : i32
    %427 = arith.minsi %426, %c511_i32_252 : i32
    %c0_i32_253 = arith.constant 0 : i32
    %428 = tpu.memref_slice %arg3[%427, %1] : memref<512x512xf32, #tpu.memory_space<any>> -> memref<1x256xf32, #tpu.memory_space<any>>
    %c42_i32_254 = arith.constant 42 : i32
    %c0_i32_255 = arith.constant 0 : i32
    %429 = tpu.memref_slice %arg8[%c42_i32_254, %c0_i32_255] : memref<48x256xf32, #tpu.memory_space<vmem>> -> memref<1x256xf32, #tpu.memory_space<vmem>>
    %430 = tpu.memref_slice %arg9[%c0_i32_253] : memref<1x!tpu.dma_semaphore, #tpu.memory_space<semaphore_mem>> -> memref<1x!tpu.dma_semaphore, #tpu.memory_space<semaphore_mem>>
    %431 = tpu.memref_squeeze %430 : memref<1x!tpu.dma_semaphore, #tpu.memory_space<semaphore_mem>> -> memref<!tpu.dma_semaphore, #tpu.memory_space<semaphore_mem>>
    tpu.enqueue_dma source(%428 : memref<1x256xf32, #tpu.memory_space<any>>) target(%429 : memref<1x256xf32, #tpu.memory_space<vmem>>) target_semaphore(%431 : memref<!tpu.dma_semaphore, #tpu.memory_space<semaphore_mem>>)
    %c48_i32_256 = arith.constant 48 : i32
    %432 = arith.muli %arg0, %c48_i32_256 : i32
    %c43_i32 = arith.constant 43 : i32
    %433 = arith.addi %432, %c43_i32 : i32
    %434 = arith.index_cast %433 : i32 to index
    %435 = memref.load %arg2[%434] : memref<48xi32, #tpu.memory_space<smem>>
    %c0_i32_257 = arith.constant 0 : i32
    %436 = arith.maxsi %435, %c0_i32_257 : i32
    %c511_i32_258 = arith.constant 511 : i32
    %437 = arith.minsi %436, %c511_i32_258 : i32
    %c0_i32_259 = arith.constant 0 : i32
    %438 = tpu.memref_slice %arg3[%437, %1] : memref<512x512xf32, #tpu.memory_space<any>> -> memref<1x256xf32, #tpu.memory_space<any>>
    %c43_i32_260 = arith.constant 43 : i32
    %c0_i32_261 = arith.constant 0 : i32
    %439 = tpu.memref_slice %arg8[%c43_i32_260, %c0_i32_261] : memref<48x256xf32, #tpu.memory_space<vmem>> -> memref<1x256xf32, #tpu.memory_space<vmem>>
    %440 = tpu.memref_slice %arg9[%c0_i32_259] : memref<1x!tpu.dma_semaphore, #tpu.memory_space<semaphore_mem>> -> memref<1x!tpu.dma_semaphore, #tpu.memory_space<semaphore_mem>>
    %441 = tpu.memref_squeeze %440 : memref<1x!tpu.dma_semaphore, #tpu.memory_space<semaphore_mem>> -> memref<!tpu.dma_semaphore, #tpu.memory_space<semaphore_mem>>
    tpu.enqueue_dma source(%438 : memref<1x256xf32, #tpu.memory_space<any>>) target(%439 : memref<1x256xf32, #tpu.memory_space<vmem>>) target_semaphore(%441 : memref<!tpu.dma_semaphore, #tpu.memory_space<semaphore_mem>>)
    %c48_i32_262 = arith.constant 48 : i32
    %442 = arith.muli %arg0, %c48_i32_262 : i32
    %c44_i32 = arith.constant 44 : i32
    %443 = arith.addi %442, %c44_i32 : i32
    %444 = arith.index_cast %443 : i32 to index
    %445 = memref.load %arg2[%444] : memref<48xi32, #tpu.memory_space<smem>>
    %c0_i32_263 = arith.constant 0 : i32
    %446 = arith.maxsi %445, %c0_i32_263 : i32
    %c511_i32_264 = arith.constant 511 : i32
    %447 = arith.minsi %446, %c511_i32_264 : i32
    %c0_i32_265 = arith.constant 0 : i32
    %448 = tpu.memref_slice %arg3[%447, %1] : memref<512x512xf32, #tpu.memory_space<any>> -> memref<1x256xf32, #tpu.memory_space<any>>
    %c44_i32_266 = arith.constant 44 : i32
    %c0_i32_267 = arith.constant 0 : i32
    %449 = tpu.memref_slice %arg8[%c44_i32_266, %c0_i32_267] : memref<48x256xf32, #tpu.memory_space<vmem>> -> memref<1x256xf32, #tpu.memory_space<vmem>>
    %450 = tpu.memref_slice %arg9[%c0_i32_265] : memref<1x!tpu.dma_semaphore, #tpu.memory_space<semaphore_mem>> -> memref<1x!tpu.dma_semaphore, #tpu.memory_space<semaphore_mem>>
    %451 = tpu.memref_squeeze %450 : memref<1x!tpu.dma_semaphore, #tpu.memory_space<semaphore_mem>> -> memref<!tpu.dma_semaphore, #tpu.memory_space<semaphore_mem>>
    tpu.enqueue_dma source(%448 : memref<1x256xf32, #tpu.memory_space<any>>) target(%449 : memref<1x256xf32, #tpu.memory_space<vmem>>) target_semaphore(%451 : memref<!tpu.dma_semaphore, #tpu.memory_space<semaphore_mem>>)
    %c48_i32_268 = arith.constant 48 : i32
    %452 = arith.muli %arg0, %c48_i32_268 : i32
    %c45_i32 = arith.constant 45 : i32
    %453 = arith.addi %452, %c45_i32 : i32
    %454 = arith.index_cast %453 : i32 to index
    %455 = memref.load %arg2[%454] : memref<48xi32, #tpu.memory_space<smem>>
    %c0_i32_269 = arith.constant 0 : i32
    %456 = arith.maxsi %455, %c0_i32_269 : i32
    %c511_i32_270 = arith.constant 511 : i32
    %457 = arith.minsi %456, %c511_i32_270 : i32
    %c0_i32_271 = arith.constant 0 : i32
    %458 = tpu.memref_slice %arg3[%457, %1] : memref<512x512xf32, #tpu.memory_space<any>> -> memref<1x256xf32, #tpu.memory_space<any>>
    %c45_i32_272 = arith.constant 45 : i32
    %c0_i32_273 = arith.constant 0 : i32
    %459 = tpu.memref_slice %arg8[%c45_i32_272, %c0_i32_273] : memref<48x256xf32, #tpu.memory_space<vmem>> -> memref<1x256xf32, #tpu.memory_space<vmem>>
    %460 = tpu.memref_slice %arg9[%c0_i32_271] : memref<1x!tpu.dma_semaphore, #tpu.memory_space<semaphore_mem>> -> memref<1x!tpu.dma_semaphore, #tpu.memory_space<semaphore_mem>>
    %461 = tpu.memref_squeeze %460 : memref<1x!tpu.dma_semaphore, #tpu.memory_space<semaphore_mem>> -> memref<!tpu.dma_semaphore, #tpu.memory_space<semaphore_mem>>
    tpu.enqueue_dma source(%458 : memref<1x256xf32, #tpu.memory_space<any>>) target(%459 : memref<1x256xf32, #tpu.memory_space<vmem>>) target_semaphore(%461 : memref<!tpu.dma_semaphore, #tpu.memory_space<semaphore_mem>>)
    %c48_i32_274 = arith.constant 48 : i32
    %462 = arith.muli %arg0, %c48_i32_274 : i32
    %c46_i32 = arith.constant 46 : i32
    %463 = arith.addi %462, %c46_i32 : i32
    %464 = arith.index_cast %463 : i32 to index
    %465 = memref.load %arg2[%464] : memref<48xi32, #tpu.memory_space<smem>>
    %c0_i32_275 = arith.constant 0 : i32
    %466 = arith.maxsi %465, %c0_i32_275 : i32
    %c511_i32_276 = arith.constant 511 : i32
    %467 = arith.minsi %466, %c511_i32_276 : i32
    %c0_i32_277 = arith.constant 0 : i32
    %468 = tpu.memref_slice %arg3[%467, %1] : memref<512x512xf32, #tpu.memory_space<any>> -> memref<1x256xf32, #tpu.memory_space<any>>
    %c46_i32_278 = arith.constant 46 : i32
    %c0_i32_279 = arith.constant 0 : i32
    %469 = tpu.memref_slice %arg8[%c46_i32_278, %c0_i32_279] : memref<48x256xf32, #tpu.memory_space<vmem>> -> memref<1x256xf32, #tpu.memory_space<vmem>>
    %470 = tpu.memref_slice %arg9[%c0_i32_277] : memref<1x!tpu.dma_semaphore, #tpu.memory_space<semaphore_mem>> -> memref<1x!tpu.dma_semaphore, #tpu.memory_space<semaphore_mem>>
    %471 = tpu.memref_squeeze %470 : memref<1x!tpu.dma_semaphore, #tpu.memory_space<semaphore_mem>> -> memref<!tpu.dma_semaphore, #tpu.memory_space<semaphore_mem>>
    tpu.enqueue_dma source(%468 : memref<1x256xf32, #tpu.memory_space<any>>) target(%469 : memref<1x256xf32, #tpu.memory_space<vmem>>) target_semaphore(%471 : memref<!tpu.dma_semaphore, #tpu.memory_space<semaphore_mem>>)
    %c48_i32_280 = arith.constant 48 : i32
    %472 = arith.muli %arg0, %c48_i32_280 : i32
    %c47_i32 = arith.constant 47 : i32
    %473 = arith.addi %472, %c47_i32 : i32
    %474 = arith.index_cast %473 : i32 to index
    %475 = memref.load %arg2[%474] : memref<48xi32, #tpu.memory_space<smem>>
    %c0_i32_281 = arith.constant 0 : i32
    %476 = arith.maxsi %475, %c0_i32_281 : i32
    %c511_i32_282 = arith.constant 511 : i32
    %477 = arith.minsi %476, %c511_i32_282 : i32
    %c0_i32_283 = arith.constant 0 : i32
    %478 = tpu.memref_slice %arg3[%477, %1] : memref<512x512xf32, #tpu.memory_space<any>> -> memref<1x256xf32, #tpu.memory_space<any>>
    %c47_i32_284 = arith.constant 47 : i32
    %c0_i32_285 = arith.constant 0 : i32
    %479 = tpu.memref_slice %arg8[%c47_i32_284, %c0_i32_285] : memref<48x256xf32, #tpu.memory_space<vmem>> -> memref<1x256xf32, #tpu.memory_space<vmem>>
    %480 = tpu.memref_slice %arg9[%c0_i32_283] : memref<1x!tpu.dma_semaphore, #tpu.memory_space<semaphore_mem>> -> memref<1x!tpu.dma_semaphore, #tpu.memory_space<semaphore_mem>>
    %481 = tpu.memref_squeeze %480 : memref<1x!tpu.dma_semaphore, #tpu.memory_space<semaphore_mem>> -> memref<!tpu.dma_semaphore, #tpu.memory_space<semaphore_mem>>
    tpu.enqueue_dma source(%478 : memref<1x256xf32, #tpu.memory_space<any>>) target(%479 : memref<1x256xf32, #tpu.memory_space<vmem>>) target_semaphore(%481 : memref<!tpu.dma_semaphore, #tpu.memory_space<semaphore_mem>>)
    %c0_i32_286 = arith.constant 0 : i32
    %482 = arith.cmpi eq, %arg1, %c0_i32_286 : i32
    %483 = arith.extui %482 : i1 to i32
    %c0_i32_287 = arith.constant 0 : i32
    %484 = arith.cmpi ne, %483, %c0_i32_287 : i32
    scf.if %484 {
      %cst_537 = arith.constant 0.000000e+00 : f32
      %688 = vector.broadcast %cst_537 : f32 to vector<48x128xf32>
      %c0_538 = arith.constant 0 : index
      %c0_539 = arith.constant 0 : index
      %689 = vector.load %arg10[%c0_538, %c0_539] : memref<48x128xf32, #tpu.memory_space<vmem>>, vector<48x128xf32>
      tpu.vector_store %arg10[%c0_538, %c0_539], %688 {strides = array<i32>} : memref<48x128xf32, #tpu.memory_space<vmem>>, vector<48x128xf32>,
    } else {
    }
    %c0_i32_288 = arith.constant 0 : i32
    %c0_i32_289 = arith.constant 0 : i32
    %c0_i32_290 = arith.constant 0 : i32
    %485 = tpu.memref_slice %arg3[%c0_i32_289, %c0_i32_290] : memref<512x512xf32, #tpu.memory_space<any>> -> memref<1x256xf32, #tpu.memory_space<any>>
    %c0_i32_291 = arith.constant 0 : i32
    %c0_i32_292 = arith.constant 0 : i32
    %486 = tpu.memref_slice %arg8[%c0_i32_291, %c0_i32_292] : memref<48x256xf32, #tpu.memory_space<vmem>> -> memref<1x256xf32, #tpu.memory_space<vmem>>
    %487 = tpu.memref_slice %arg9[%c0_i32_288] : memref<1x!tpu.dma_semaphore, #tpu.memory_space<semaphore_mem>> -> memref<1x!tpu.dma_semaphore, #tpu.memory_space<semaphore_mem>>
    %488 = tpu.memref_squeeze %487 : memref<1x!tpu.dma_semaphore, #tpu.memory_space<semaphore_mem>> -> memref<!tpu.dma_semaphore, #tpu.memory_space<semaphore_mem>>
    tpu.wait_dma2 semaphore(%488 : memref<!tpu.dma_semaphore, #tpu.memory_space<semaphore_mem>>) src(%485 : memref<1x256xf32, #tpu.memory_space<any>>) dst(%486 : memref<1x256xf32, #tpu.memory_space<vmem>>)
    %c0_i32_293 = arith.constant 0 : i32
    %c0_i32_294 = arith.constant 0 : i32
    %c0_i32_295 = arith.constant 0 : i32
    %489 = tpu.memref_slice %arg3[%c0_i32_294, %c0_i32_295] : memref<512x512xf32, #tpu.memory_space<any>> -> memref<1x256xf32, #tpu.memory_space<any>>
    %c1_i32_296 = arith.constant 1 : i32
    %c0_i32_297 = arith.constant 0 : i32
    %490 = tpu.memref_slice %arg8[%c1_i32_296, %c0_i32_297] : memref<48x256xf32, #tpu.memory_space<vmem>> -> memref<1x256xf32, #tpu.memory_space<vmem>>
    %491 = tpu.memref_slice %arg9[%c0_i32_293] : memref<1x!tpu.dma_semaphore, #tpu.memory_space<semaphore_mem>> -> memref<1x!tpu.dma_semaphore, #tpu.memory_space<semaphore_mem>>
    %492 = tpu.memref_squeeze %491 : memref<1x!tpu.dma_semaphore, #tpu.memory_space<semaphore_mem>> -> memref<!tpu.dma_semaphore, #tpu.memory_space<semaphore_mem>>
    tpu.wait_dma2 semaphore(%492 : memref<!tpu.dma_semaphore, #tpu.memory_space<semaphore_mem>>) src(%489 : memref<1x256xf32, #tpu.memory_space<any>>) dst(%490 : memref<1x256xf32, #tpu.memory_space<vmem>>)
    %c0_i32_298 = arith.constant 0 : i32
    %c0_i32_299 = arith.constant 0 : i32
    %c0_i32_300 = arith.constant 0 : i32
    %493 = tpu.memref_slice %arg3[%c0_i32_299, %c0_i32_300] : memref<512x512xf32, #tpu.memory_space<any>> -> memref<1x256xf32, #tpu.memory_space<any>>
    %c2_i32_301 = arith.constant 2 : i32
    %c0_i32_302 = arith.constant 0 : i32
    %494 = tpu.memref_slice %arg8[%c2_i32_301, %c0_i32_302] : memref<48x256xf32, #tpu.memory_space<vmem>> -> memref<1x256xf32, #tpu.memory_space<vmem>>
    %495 = tpu.memref_slice %arg9[%c0_i32_298] : memref<1x!tpu.dma_semaphore, #tpu.memory_space<semaphore_mem>> -> memref<1x!tpu.dma_semaphore, #tpu.memory_space<semaphore_mem>>
    %496 = tpu.memref_squeeze %495 : memref<1x!tpu.dma_semaphore, #tpu.memory_space<semaphore_mem>> -> memref<!tpu.dma_semaphore, #tpu.memory_space<semaphore_mem>>
    tpu.wait_dma2 semaphore(%496 : memref<!tpu.dma_semaphore, #tpu.memory_space<semaphore_mem>>) src(%493 : memref<1x256xf32, #tpu.memory_space<any>>) dst(%494 : memref<1x256xf32, #tpu.memory_space<vmem>>)
    %c0_i32_303 = arith.constant 0 : i32
    %c0_i32_304 = arith.constant 0 : i32
    %c0_i32_305 = arith.constant 0 : i32
    %497 = tpu.memref_slice %arg3[%c0_i32_304, %c0_i32_305] : memref<512x512xf32, #tpu.memory_space<any>> -> memref<1x256xf32, #tpu.memory_space<any>>
    %c3_i32_306 = arith.constant 3 : i32
    %c0_i32_307 = arith.constant 0 : i32
    %498 = tpu.memref_slice %arg8[%c3_i32_306, %c0_i32_307] : memref<48x256xf32, #tpu.memory_space<vmem>> -> memref<1x256xf32, #tpu.memory_space<vmem>>
    %499 = tpu.memref_slice %arg9[%c0_i32_303] : memref<1x!tpu.dma_semaphore, #tpu.memory_space<semaphore_mem>> -> memref<1x!tpu.dma_semaphore, #tpu.memory_space<semaphore_mem>>
    %500 = tpu.memref_squeeze %499 : memref<1x!tpu.dma_semaphore, #tpu.memory_space<semaphore_mem>> -> memref<!tpu.dma_semaphore, #tpu.memory_space<semaphore_mem>>
    tpu.wait_dma2 semaphore(%500 : memref<!tpu.dma_semaphore, #tpu.memory_space<semaphore_mem>>) src(%497 : memref<1x256xf32, #tpu.memory_space<any>>) dst(%498 : memref<1x256xf32, #tpu.memory_space<vmem>>)
    %c0_i32_308 = arith.constant 0 : i32
    %c0_i32_309 = arith.constant 0 : i32
    %c0_i32_310 = arith.constant 0 : i32
    %501 = tpu.memref_slice %arg3[%c0_i32_309, %c0_i32_310] : memref<512x512xf32, #tpu.memory_space<any>> -> memref<1x256xf32, #tpu.memory_space<any>>
    %c4_i32_311 = arith.constant 4 : i32
    %c0_i32_312 = arith.constant 0 : i32
    %502 = tpu.memref_slice %arg8[%c4_i32_311, %c0_i32_312] : memref<48x256xf32, #tpu.memory_space<vmem>> -> memref<1x256xf32, #tpu.memory_space<vmem>>
    %503 = tpu.memref_slice %arg9[%c0_i32_308] : memref<1x!tpu.dma_semaphore, #tpu.memory_space<semaphore_mem>> -> memref<1x!tpu.dma_semaphore, #tpu.memory_space<semaphore_mem>>
    %504 = tpu.memref_squeeze %503 : memref<1x!tpu.dma_semaphore, #tpu.memory_space<semaphore_mem>> -> memref<!tpu.dma_semaphore, #tpu.memory_space<semaphore_mem>>
    tpu.wait_dma2 semaphore(%504 : memref<!tpu.dma_semaphore, #tpu.memory_space<semaphore_mem>>) src(%501 : memref<1x256xf32, #tpu.memory_space<any>>) dst(%502 : memref<1x256xf32, #tpu.memory_space<vmem>>)
    %c0_i32_313 = arith.constant 0 : i32
    %c0_i32_314 = arith.constant 0 : i32
    %c0_i32_315 = arith.constant 0 : i32
    %505 = tpu.memref_slice %arg3[%c0_i32_314, %c0_i32_315] : memref<512x512xf32, #tpu.memory_space<any>> -> memref<1x256xf32, #tpu.memory_space<any>>
    %c5_i32_316 = arith.constant 5 : i32
    %c0_i32_317 = arith.constant 0 : i32
    %506 = tpu.memref_slice %arg8[%c5_i32_316, %c0_i32_317] : memref<48x256xf32, #tpu.memory_space<vmem>> -> memref<1x256xf32, #tpu.memory_space<vmem>>
    %507 = tpu.memref_slice %arg9[%c0_i32_313] : memref<1x!tpu.dma_semaphore, #tpu.memory_space<semaphore_mem>> -> memref<1x!tpu.dma_semaphore, #tpu.memory_space<semaphore_mem>>
    %508 = tpu.memref_squeeze %507 : memref<1x!tpu.dma_semaphore, #tpu.memory_space<semaphore_mem>> -> memref<!tpu.dma_semaphore, #tpu.memory_space<semaphore_mem>>
    tpu.wait_dma2 semaphore(%508 : memref<!tpu.dma_semaphore, #tpu.memory_space<semaphore_mem>>) src(%505 : memref<1x256xf32, #tpu.memory_space<any>>) dst(%506 : memref<1x256xf32, #tpu.memory_space<vmem>>)
    %c0_i32_318 = arith.constant 0 : i32
    %c0_i32_319 = arith.constant 0 : i32
    %c0_i32_320 = arith.constant 0 : i32
    %509 = tpu.memref_slice %arg3[%c0_i32_319, %c0_i32_320] : memref<512x512xf32, #tpu.memory_space<any>> -> memref<1x256xf32, #tpu.memory_space<any>>
    %c6_i32_321 = arith.constant 6 : i32
    %c0_i32_322 = arith.constant 0 : i32
    %510 = tpu.memref_slice %arg8[%c6_i32_321, %c0_i32_322] : memref<48x256xf32, #tpu.memory_space<vmem>> -> memref<1x256xf32, #tpu.memory_space<vmem>>
    %511 = tpu.memref_slice %arg9[%c0_i32_318] : memref<1x!tpu.dma_semaphore, #tpu.memory_space<semaphore_mem>> -> memref<1x!tpu.dma_semaphore, #tpu.memory_space<semaphore_mem>>
    %512 = tpu.memref_squeeze %511 : memref<1x!tpu.dma_semaphore, #tpu.memory_space<semaphore_mem>> -> memref<!tpu.dma_semaphore, #tpu.memory_space<semaphore_mem>>
    tpu.wait_dma2 semaphore(%512 : memref<!tpu.dma_semaphore, #tpu.memory_space<semaphore_mem>>) src(%509 : memref<1x256xf32, #tpu.memory_space<any>>) dst(%510 : memref<1x256xf32, #tpu.memory_space<vmem>>)
    %c0_i32_323 = arith.constant 0 : i32
    %c0_i32_324 = arith.constant 0 : i32
    %c0_i32_325 = arith.constant 0 : i32
    %513 = tpu.memref_slice %arg3[%c0_i32_324, %c0_i32_325] : memref<512x512xf32, #tpu.memory_space<any>> -> memref<1x256xf32, #tpu.memory_space<any>>
    %c7_i32_326 = arith.constant 7 : i32
    %c0_i32_327 = arith.constant 0 : i32
    %514 = tpu.memref_slice %arg8[%c7_i32_326, %c0_i32_327] : memref<48x256xf32, #tpu.memory_space<vmem>> -> memref<1x256xf32, #tpu.memory_space<vmem>>
    %515 = tpu.memref_slice %arg9[%c0_i32_323] : memref<1x!tpu.dma_semaphore, #tpu.memory_space<semaphore_mem>> -> memref<1x!tpu.dma_semaphore, #tpu.memory_space<semaphore_mem>>
    %516 = tpu.memref_squeeze %515 : memref<1x!tpu.dma_semaphore, #tpu.memory_space<semaphore_mem>> -> memref<!tpu.dma_semaphore, #tpu.memory_space<semaphore_mem>>
    tpu.wait_dma2 semaphore(%516 : memref<!tpu.dma_semaphore, #tpu.memory_space<semaphore_mem>>) src(%513 : memref<1x256xf32, #tpu.memory_space<any>>) dst(%514 : memref<1x256xf32, #tpu.memory_space<vmem>>)
    %c0_i32_328 = arith.constant 0 : i32
    %c0_i32_329 = arith.constant 0 : i32
    %c0_i32_330 = arith.constant 0 : i32
    %517 = tpu.memref_slice %arg3[%c0_i32_329, %c0_i32_330] : memref<512x512xf32, #tpu.memory_space<any>> -> memref<1x256xf32, #tpu.memory_space<any>>
    %c8_i32_331 = arith.constant 8 : i32
    %c0_i32_332 = arith.constant 0 : i32
    %518 = tpu.memref_slice %arg8[%c8_i32_331, %c0_i32_332] : memref<48x256xf32, #tpu.memory_space<vmem>> -> memref<1x256xf32, #tpu.memory_space<vmem>>
    %519 = tpu.memref_slice %arg9[%c0_i32_328] : memref<1x!tpu.dma_semaphore, #tpu.memory_space<semaphore_mem>> -> memref<1x!tpu.dma_semaphore, #tpu.memory_space<semaphore_mem>>
    %520 = tpu.memref_squeeze %519 : memref<1x!tpu.dma_semaphore, #tpu.memory_space<semaphore_mem>> -> memref<!tpu.dma_semaphore, #tpu.memory_space<semaphore_mem>>
    tpu.wait_dma2 semaphore(%520 : memref<!tpu.dma_semaphore, #tpu.memory_space<semaphore_mem>>) src(%517 : memref<1x256xf32, #tpu.memory_space<any>>) dst(%518 : memref<1x256xf32, #tpu.memory_space<vmem>>)
    %c0_i32_333 = arith.constant 0 : i32
    %c0_i32_334 = arith.constant 0 : i32
    %c0_i32_335 = arith.constant 0 : i32
    %521 = tpu.memref_slice %arg3[%c0_i32_334, %c0_i32_335] : memref<512x512xf32, #tpu.memory_space<any>> -> memref<1x256xf32, #tpu.memory_space<any>>
    %c9_i32_336 = arith.constant 9 : i32
    %c0_i32_337 = arith.constant 0 : i32
    %522 = tpu.memref_slice %arg8[%c9_i32_336, %c0_i32_337] : memref<48x256xf32, #tpu.memory_space<vmem>> -> memref<1x256xf32, #tpu.memory_space<vmem>>
    %523 = tpu.memref_slice %arg9[%c0_i32_333] : memref<1x!tpu.dma_semaphore, #tpu.memory_space<semaphore_mem>> -> memref<1x!tpu.dma_semaphore, #tpu.memory_space<semaphore_mem>>
    %524 = tpu.memref_squeeze %523 : memref<1x!tpu.dma_semaphore, #tpu.memory_space<semaphore_mem>> -> memref<!tpu.dma_semaphore, #tpu.memory_space<semaphore_mem>>
    tpu.wait_dma2 semaphore(%524 : memref<!tpu.dma_semaphore, #tpu.memory_space<semaphore_mem>>) src(%521 : memref<1x256xf32, #tpu.memory_space<any>>) dst(%522 : memref<1x256xf32, #tpu.memory_space<vmem>>)
    %c0_i32_338 = arith.constant 0 : i32
    %c0_i32_339 = arith.constant 0 : i32
    %c0_i32_340 = arith.constant 0 : i32
    %525 = tpu.memref_slice %arg3[%c0_i32_339, %c0_i32_340] : memref<512x512xf32, #tpu.memory_space<any>> -> memref<1x256xf32, #tpu.memory_space<any>>
    %c10_i32_341 = arith.constant 10 : i32
    %c0_i32_342 = arith.constant 0 : i32
    %526 = tpu.memref_slice %arg8[%c10_i32_341, %c0_i32_342] : memref<48x256xf32, #tpu.memory_space<vmem>> -> memref<1x256xf32, #tpu.memory_space<vmem>>
    %527 = tpu.memref_slice %arg9[%c0_i32_338] : memref<1x!tpu.dma_semaphore, #tpu.memory_space<semaphore_mem>> -> memref<1x!tpu.dma_semaphore, #tpu.memory_space<semaphore_mem>>
    %528 = tpu.memref_squeeze %527 : memref<1x!tpu.dma_semaphore, #tpu.memory_space<semaphore_mem>> -> memref<!tpu.dma_semaphore, #tpu.memory_space<semaphore_mem>>
    tpu.wait_dma2 semaphore(%528 : memref<!tpu.dma_semaphore, #tpu.memory_space<semaphore_mem>>) src(%525 : memref<1x256xf32, #tpu.memory_space<any>>) dst(%526 : memref<1x256xf32, #tpu.memory_space<vmem>>)
    %c0_i32_343 = arith.constant 0 : i32
    %c0_i32_344 = arith.constant 0 : i32
    %c0_i32_345 = arith.constant 0 : i32
    %529 = tpu.memref_slice %arg3[%c0_i32_344, %c0_i32_345] : memref<512x512xf32, #tpu.memory_space<any>> -> memref<1x256xf32, #tpu.memory_space<any>>
    %c11_i32_346 = arith.constant 11 : i32
    %c0_i32_347 = arith.constant 0 : i32
    %530 = tpu.memref_slice %arg8[%c11_i32_346, %c0_i32_347] : memref<48x256xf32, #tpu.memory_space<vmem>> -> memref<1x256xf32, #tpu.memory_space<vmem>>
    %531 = tpu.memref_slice %arg9[%c0_i32_343] : memref<1x!tpu.dma_semaphore, #tpu.memory_space<semaphore_mem>> -> memref<1x!tpu.dma_semaphore, #tpu.memory_space<semaphore_mem>>
    %532 = tpu.memref_squeeze %531 : memref<1x!tpu.dma_semaphore, #tpu.memory_space<semaphore_mem>> -> memref<!tpu.dma_semaphore, #tpu.memory_space<semaphore_mem>>
    tpu.wait_dma2 semaphore(%532 : memref<!tpu.dma_semaphore, #tpu.memory_space<semaphore_mem>>) src(%529 : memref<1x256xf32, #tpu.memory_space<any>>) dst(%530 : memref<1x256xf32, #tpu.memory_space<vmem>>)
    %c0_i32_348 = arith.constant 0 : i32
    %c0_i32_349 = arith.constant 0 : i32
    %c0_i32_350 = arith.constant 0 : i32
    %533 = tpu.memref_slice %arg3[%c0_i32_349, %c0_i32_350] : memref<512x512xf32, #tpu.memory_space<any>> -> memref<1x256xf32, #tpu.memory_space<any>>
    %c12_i32_351 = arith.constant 12 : i32
    %c0_i32_352 = arith.constant 0 : i32
    %534 = tpu.memref_slice %arg8[%c12_i32_351, %c0_i32_352] : memref<48x256xf32, #tpu.memory_space<vmem>> -> memref<1x256xf32, #tpu.memory_space<vmem>>
    %535 = tpu.memref_slice %arg9[%c0_i32_348] : memref<1x!tpu.dma_semaphore, #tpu.memory_space<semaphore_mem>> -> memref<1x!tpu.dma_semaphore, #tpu.memory_space<semaphore_mem>>
    %536 = tpu.memref_squeeze %535 : memref<1x!tpu.dma_semaphore, #tpu.memory_space<semaphore_mem>> -> memref<!tpu.dma_semaphore, #tpu.memory_space<semaphore_mem>>
    tpu.wait_dma2 semaphore(%536 : memref<!tpu.dma_semaphore, #tpu.memory_space<semaphore_mem>>) src(%533 : memref<1x256xf32, #tpu.memory_space<any>>) dst(%534 : memref<1x256xf32, #tpu.memory_space<vmem>>)
    %c0_i32_353 = arith.constant 0 : i32
    %c0_i32_354 = arith.constant 0 : i32
    %c0_i32_355 = arith.constant 0 : i32
    %537 = tpu.memref_slice %arg3[%c0_i32_354, %c0_i32_355] : memref<512x512xf32, #tpu.memory_space<any>> -> memref<1x256xf32, #tpu.memory_space<any>>
    %c13_i32_356 = arith.constant 13 : i32
    %c0_i32_357 = arith.constant 0 : i32
    %538 = tpu.memref_slice %arg8[%c13_i32_356, %c0_i32_357] : memref<48x256xf32, #tpu.memory_space<vmem>> -> memref<1x256xf32, #tpu.memory_space<vmem>>
    %539 = tpu.memref_slice %arg9[%c0_i32_353] : memref<1x!tpu.dma_semaphore, #tpu.memory_space<semaphore_mem>> -> memref<1x!tpu.dma_semaphore, #tpu.memory_space<semaphore_mem>>
    %540 = tpu.memref_squeeze %539 : memref<1x!tpu.dma_semaphore, #tpu.memory_space<semaphore_mem>> -> memref<!tpu.dma_semaphore, #tpu.memory_space<semaphore_mem>>
    tpu.wait_dma2 semaphore(%540 : memref<!tpu.dma_semaphore, #tpu.memory_space<semaphore_mem>>) src(%537 : memref<1x256xf32, #tpu.memory_space<any>>) dst(%538 : memref<1x256xf32, #tpu.memory_space<vmem>>)
    %c0_i32_358 = arith.constant 0 : i32
    %c0_i32_359 = arith.constant 0 : i32
    %c0_i32_360 = arith.constant 0 : i32
    %541 = tpu.memref_slice %arg3[%c0_i32_359, %c0_i32_360] : memref<512x512xf32, #tpu.memory_space<any>> -> memref<1x256xf32, #tpu.memory_space<any>>
    %c14_i32_361 = arith.constant 14 : i32
    %c0_i32_362 = arith.constant 0 : i32
    %542 = tpu.memref_slice %arg8[%c14_i32_361, %c0_i32_362] : memref<48x256xf32, #tpu.memory_space<vmem>> -> memref<1x256xf32, #tpu.memory_space<vmem>>
    %543 = tpu.memref_slice %arg9[%c0_i32_358] : memref<1x!tpu.dma_semaphore, #tpu.memory_space<semaphore_mem>> -> memref<1x!tpu.dma_semaphore, #tpu.memory_space<semaphore_mem>>
    %544 = tpu.memref_squeeze %543 : memref<1x!tpu.dma_semaphore, #tpu.memory_space<semaphore_mem>> -> memref<!tpu.dma_semaphore, #tpu.memory_space<semaphore_mem>>
    tpu.wait_dma2 semaphore(%544 : memref<!tpu.dma_semaphore, #tpu.memory_space<semaphore_mem>>) src(%541 : memref<1x256xf32, #tpu.memory_space<any>>) dst(%542 : memref<1x256xf32, #tpu.memory_space<vmem>>)
    %c0_i32_363 = arith.constant 0 : i32
    %c0_i32_364 = arith.constant 0 : i32
    %c0_i32_365 = arith.constant 0 : i32
    %545 = tpu.memref_slice %arg3[%c0_i32_364, %c0_i32_365] : memref<512x512xf32, #tpu.memory_space<any>> -> memref<1x256xf32, #tpu.memory_space<any>>
    %c15_i32_366 = arith.constant 15 : i32
    %c0_i32_367 = arith.constant 0 : i32
    %546 = tpu.memref_slice %arg8[%c15_i32_366, %c0_i32_367] : memref<48x256xf32, #tpu.memory_space<vmem>> -> memref<1x256xf32, #tpu.memory_space<vmem>>
    %547 = tpu.memref_slice %arg9[%c0_i32_363] : memref<1x!tpu.dma_semaphore, #tpu.memory_space<semaphore_mem>> -> memref<1x!tpu.dma_semaphore, #tpu.memory_space<semaphore_mem>>
    %548 = tpu.memref_squeeze %547 : memref<1x!tpu.dma_semaphore, #tpu.memory_space<semaphore_mem>> -> memref<!tpu.dma_semaphore, #tpu.memory_space<semaphore_mem>>
    tpu.wait_dma2 semaphore(%548 : memref<!tpu.dma_semaphore, #tpu.memory_space<semaphore_mem>>) src(%545 : memref<1x256xf32, #tpu.memory_space<any>>) dst(%546 : memref<1x256xf32, #tpu.memory_space<vmem>>)
    %c0_i32_368 = arith.constant 0 : i32
    %c0_i32_369 = arith.constant 0 : i32
    %c0_i32_370 = arith.constant 0 : i32
    %549 = tpu.memref_slice %arg3[%c0_i32_369, %c0_i32_370] : memref<512x512xf32, #tpu.memory_space<any>> -> memref<1x256xf32, #tpu.memory_space<any>>
    %c16_i32_371 = arith.constant 16 : i32
    %c0_i32_372 = arith.constant 0 : i32
    %550 = tpu.memref_slice %arg8[%c16_i32_371, %c0_i32_372] : memref<48x256xf32, #tpu.memory_space<vmem>> -> memref<1x256xf32, #tpu.memory_space<vmem>>
    %551 = tpu.memref_slice %arg9[%c0_i32_368] : memref<1x!tpu.dma_semaphore, #tpu.memory_space<semaphore_mem>> -> memref<1x!tpu.dma_semaphore, #tpu.memory_space<semaphore_mem>>
    %552 = tpu.memref_squeeze %551 : memref<1x!tpu.dma_semaphore, #tpu.memory_space<semaphore_mem>> -> memref<!tpu.dma_semaphore, #tpu.memory_space<semaphore_mem>>
    tpu.wait_dma2 semaphore(%552 : memref<!tpu.dma_semaphore, #tpu.memory_space<semaphore_mem>>) src(%549 : memref<1x256xf32, #tpu.memory_space<any>>) dst(%550 : memref<1x256xf32, #tpu.memory_space<vmem>>)
    %c0_i32_373 = arith.constant 0 : i32
    %c0_i32_374 = arith.constant 0 : i32
    %c0_i32_375 = arith.constant 0 : i32
    %553 = tpu.memref_slice %arg3[%c0_i32_374, %c0_i32_375] : memref<512x512xf32, #tpu.memory_space<any>> -> memref<1x256xf32, #tpu.memory_space<any>>
    %c17_i32_376 = arith.constant 17 : i32
    %c0_i32_377 = arith.constant 0 : i32
    %554 = tpu.memref_slice %arg8[%c17_i32_376, %c0_i32_377] : memref<48x256xf32, #tpu.memory_space<vmem>> -> memref<1x256xf32, #tpu.memory_space<vmem>>
    %555 = tpu.memref_slice %arg9[%c0_i32_373] : memref<1x!tpu.dma_semaphore, #tpu.memory_space<semaphore_mem>> -> memref<1x!tpu.dma_semaphore, #tpu.memory_space<semaphore_mem>>
    %556 = tpu.memref_squeeze %555 : memref<1x!tpu.dma_semaphore, #tpu.memory_space<semaphore_mem>> -> memref<!tpu.dma_semaphore, #tpu.memory_space<semaphore_mem>>
    tpu.wait_dma2 semaphore(%556 : memref<!tpu.dma_semaphore, #tpu.memory_space<semaphore_mem>>) src(%553 : memref<1x256xf32, #tpu.memory_space<any>>) dst(%554 : memref<1x256xf32, #tpu.memory_space<vmem>>)
    %c0_i32_378 = arith.constant 0 : i32
    %c0_i32_379 = arith.constant 0 : i32
    %c0_i32_380 = arith.constant 0 : i32
    %557 = tpu.memref_slice %arg3[%c0_i32_379, %c0_i32_380] : memref<512x512xf32, #tpu.memory_space<any>> -> memref<1x256xf32, #tpu.memory_space<any>>
    %c18_i32_381 = arith.constant 18 : i32
    %c0_i32_382 = arith.constant 0 : i32
    %558 = tpu.memref_slice %arg8[%c18_i32_381, %c0_i32_382] : memref<48x256xf32, #tpu.memory_space<vmem>> -> memref<1x256xf32, #tpu.memory_space<vmem>>
    %559 = tpu.memref_slice %arg9[%c0_i32_378] : memref<1x!tpu.dma_semaphore, #tpu.memory_space<semaphore_mem>> -> memref<1x!tpu.dma_semaphore, #tpu.memory_space<semaphore_mem>>
    %560 = tpu.memref_squeeze %559 : memref<1x!tpu.dma_semaphore, #tpu.memory_space<semaphore_mem>> -> memref<!tpu.dma_semaphore, #tpu.memory_space<semaphore_mem>>
    tpu.wait_dma2 semaphore(%560 : memref<!tpu.dma_semaphore, #tpu.memory_space<semaphore_mem>>) src(%557 : memref<1x256xf32, #tpu.memory_space<any>>) dst(%558 : memref<1x256xf32, #tpu.memory_space<vmem>>)
    %c0_i32_383 = arith.constant 0 : i32
    %c0_i32_384 = arith.constant 0 : i32
    %c0_i32_385 = arith.constant 0 : i32
    %561 = tpu.memref_slice %arg3[%c0_i32_384, %c0_i32_385] : memref<512x512xf32, #tpu.memory_space<any>> -> memref<1x256xf32, #tpu.memory_space<any>>
    %c19_i32_386 = arith.constant 19 : i32
    %c0_i32_387 = arith.constant 0 : i32
    %562 = tpu.memref_slice %arg8[%c19_i32_386, %c0_i32_387] : memref<48x256xf32, #tpu.memory_space<vmem>> -> memref<1x256xf32, #tpu.memory_space<vmem>>
    %563 = tpu.memref_slice %arg9[%c0_i32_383] : memref<1x!tpu.dma_semaphore, #tpu.memory_space<semaphore_mem>> -> memref<1x!tpu.dma_semaphore, #tpu.memory_space<semaphore_mem>>
    %564 = tpu.memref_squeeze %563 : memref<1x!tpu.dma_semaphore, #tpu.memory_space<semaphore_mem>> -> memref<!tpu.dma_semaphore, #tpu.memory_space<semaphore_mem>>
    tpu.wait_dma2 semaphore(%564 : memref<!tpu.dma_semaphore, #tpu.memory_space<semaphore_mem>>) src(%561 : memref<1x256xf32, #tpu.memory_space<any>>) dst(%562 : memref<1x256xf32, #tpu.memory_space<vmem>>)
    %c0_i32_388 = arith.constant 0 : i32
    %c0_i32_389 = arith.constant 0 : i32
    %c0_i32_390 = arith.constant 0 : i32
    %565 = tpu.memref_slice %arg3[%c0_i32_389, %c0_i32_390] : memref<512x512xf32, #tpu.memory_space<any>> -> memref<1x256xf32, #tpu.memory_space<any>>
    %c20_i32_391 = arith.constant 20 : i32
    %c0_i32_392 = arith.constant 0 : i32
    %566 = tpu.memref_slice %arg8[%c20_i32_391, %c0_i32_392] : memref<48x256xf32, #tpu.memory_space<vmem>> -> memref<1x256xf32, #tpu.memory_space<vmem>>
    %567 = tpu.memref_slice %arg9[%c0_i32_388] : memref<1x!tpu.dma_semaphore, #tpu.memory_space<semaphore_mem>> -> memref<1x!tpu.dma_semaphore, #tpu.memory_space<semaphore_mem>>
    %568 = tpu.memref_squeeze %567 : memref<1x!tpu.dma_semaphore, #tpu.memory_space<semaphore_mem>> -> memref<!tpu.dma_semaphore, #tpu.memory_space<semaphore_mem>>
    tpu.wait_dma2 semaphore(%568 : memref<!tpu.dma_semaphore, #tpu.memory_space<semaphore_mem>>) src(%565 : memref<1x256xf32, #tpu.memory_space<any>>) dst(%566 : memref<1x256xf32, #tpu.memory_space<vmem>>)
    %c0_i32_393 = arith.constant 0 : i32
    %c0_i32_394 = arith.constant 0 : i32
    %c0_i32_395 = arith.constant 0 : i32
    %569 = tpu.memref_slice %arg3[%c0_i32_394, %c0_i32_395] : memref<512x512xf32, #tpu.memory_space<any>> -> memref<1x256xf32, #tpu.memory_space<any>>
    %c21_i32_396 = arith.constant 21 : i32
    %c0_i32_397 = arith.constant 0 : i32
    %570 = tpu.memref_slice %arg8[%c21_i32_396, %c0_i32_397] : memref<48x256xf32, #tpu.memory_space<vmem>> -> memref<1x256xf32, #tpu.memory_space<vmem>>
    %571 = tpu.memref_slice %arg9[%c0_i32_393] : memref<1x!tpu.dma_semaphore, #tpu.memory_space<semaphore_mem>> -> memref<1x!tpu.dma_semaphore, #tpu.memory_space<semaphore_mem>>
    %572 = tpu.memref_squeeze %571 : memref<1x!tpu.dma_semaphore, #tpu.memory_space<semaphore_mem>> -> memref<!tpu.dma_semaphore, #tpu.memory_space<semaphore_mem>>
    tpu.wait_dma2 semaphore(%572 : memref<!tpu.dma_semaphore, #tpu.memory_space<semaphore_mem>>) src(%569 : memref<1x256xf32, #tpu.memory_space<any>>) dst(%570 : memref<1x256xf32, #tpu.memory_space<vmem>>)
    %c0_i32_398 = arith.constant 0 : i32
    %c0_i32_399 = arith.constant 0 : i32
    %c0_i32_400 = arith.constant 0 : i32
    %573 = tpu.memref_slice %arg3[%c0_i32_399, %c0_i32_400] : memref<512x512xf32, #tpu.memory_space<any>> -> memref<1x256xf32, #tpu.memory_space<any>>
    %c22_i32_401 = arith.constant 22 : i32
    %c0_i32_402 = arith.constant 0 : i32
    %574 = tpu.memref_slice %arg8[%c22_i32_401, %c0_i32_402] : memref<48x256xf32, #tpu.memory_space<vmem>> -> memref<1x256xf32, #tpu.memory_space<vmem>>
    %575 = tpu.memref_slice %arg9[%c0_i32_398] : memref<1x!tpu.dma_semaphore, #tpu.memory_space<semaphore_mem>> -> memref<1x!tpu.dma_semaphore, #tpu.memory_space<semaphore_mem>>
    %576 = tpu.memref_squeeze %575 : memref<1x!tpu.dma_semaphore, #tpu.memory_space<semaphore_mem>> -> memref<!tpu.dma_semaphore, #tpu.memory_space<semaphore_mem>>
    tpu.wait_dma2 semaphore(%576 : memref<!tpu.dma_semaphore, #tpu.memory_space<semaphore_mem>>) src(%573 : memref<1x256xf32, #tpu.memory_space<any>>) dst(%574 : memref<1x256xf32, #tpu.memory_space<vmem>>)
    %c0_i32_403 = arith.constant 0 : i32
    %c0_i32_404 = arith.constant 0 : i32
    %c0_i32_405 = arith.constant 0 : i32
    %577 = tpu.memref_slice %arg3[%c0_i32_404, %c0_i32_405] : memref<512x512xf32, #tpu.memory_space<any>> -> memref<1x256xf32, #tpu.memory_space<any>>
    %c23_i32_406 = arith.constant 23 : i32
    %c0_i32_407 = arith.constant 0 : i32
    %578 = tpu.memref_slice %arg8[%c23_i32_406, %c0_i32_407] : memref<48x256xf32, #tpu.memory_space<vmem>> -> memref<1x256xf32, #tpu.memory_space<vmem>>
    %579 = tpu.memref_slice %arg9[%c0_i32_403] : memref<1x!tpu.dma_semaphore, #tpu.memory_space<semaphore_mem>> -> memref<1x!tpu.dma_semaphore, #tpu.memory_space<semaphore_mem>>
    %580 = tpu.memref_squeeze %579 : memref<1x!tpu.dma_semaphore, #tpu.memory_space<semaphore_mem>> -> memref<!tpu.dma_semaphore, #tpu.memory_space<semaphore_mem>>
    tpu.wait_dma2 semaphore(%580 : memref<!tpu.dma_semaphore, #tpu.memory_space<semaphore_mem>>) src(%577 : memref<1x256xf32, #tpu.memory_space<any>>) dst(%578 : memref<1x256xf32, #tpu.memory_space<vmem>>)
    %c0_i32_408 = arith.constant 0 : i32
    %c0_i32_409 = arith.constant 0 : i32
    %c0_i32_410 = arith.constant 0 : i32
    %581 = tpu.memref_slice %arg3[%c0_i32_409, %c0_i32_410] : memref<512x512xf32, #tpu.memory_space<any>> -> memref<1x256xf32, #tpu.memory_space<any>>
    %c24_i32_411 = arith.constant 24 : i32
    %c0_i32_412 = arith.constant 0 : i32
    %582 = tpu.memref_slice %arg8[%c24_i32_411, %c0_i32_412] : memref<48x256xf32, #tpu.memory_space<vmem>> -> memref<1x256xf32, #tpu.memory_space<vmem>>
    %583 = tpu.memref_slice %arg9[%c0_i32_408] : memref<1x!tpu.dma_semaphore, #tpu.memory_space<semaphore_mem>> -> memref<1x!tpu.dma_semaphore, #tpu.memory_space<semaphore_mem>>
    %584 = tpu.memref_squeeze %583 : memref<1x!tpu.dma_semaphore, #tpu.memory_space<semaphore_mem>> -> memref<!tpu.dma_semaphore, #tpu.memory_space<semaphore_mem>>
    tpu.wait_dma2 semaphore(%584 : memref<!tpu.dma_semaphore, #tpu.memory_space<semaphore_mem>>) src(%581 : memref<1x256xf32, #tpu.memory_space<any>>) dst(%582 : memref<1x256xf32, #tpu.memory_space<vmem>>)
    %c0_i32_413 = arith.constant 0 : i32
    %c0_i32_414 = arith.constant 0 : i32
    %c0_i32_415 = arith.constant 0 : i32
    %585 = tpu.memref_slice %arg3[%c0_i32_414, %c0_i32_415] : memref<512x512xf32, #tpu.memory_space<any>> -> memref<1x256xf32, #tpu.memory_space<any>>
    %c25_i32_416 = arith.constant 25 : i32
    %c0_i32_417 = arith.constant 0 : i32
    %586 = tpu.memref_slice %arg8[%c25_i32_416, %c0_i32_417] : memref<48x256xf32, #tpu.memory_space<vmem>> -> memref<1x256xf32, #tpu.memory_space<vmem>>
    %587 = tpu.memref_slice %arg9[%c0_i32_413] : memref<1x!tpu.dma_semaphore, #tpu.memory_space<semaphore_mem>> -> memref<1x!tpu.dma_semaphore, #tpu.memory_space<semaphore_mem>>
    %588 = tpu.memref_squeeze %587 : memref<1x!tpu.dma_semaphore, #tpu.memory_space<semaphore_mem>> -> memref<!tpu.dma_semaphore, #tpu.memory_space<semaphore_mem>>
    tpu.wait_dma2 semaphore(%588 : memref<!tpu.dma_semaphore, #tpu.memory_space<semaphore_mem>>) src(%585 : memref<1x256xf32, #tpu.memory_space<any>>) dst(%586 : memref<1x256xf32, #tpu.memory_space<vmem>>)
    %c0_i32_418 = arith.constant 0 : i32
    %c0_i32_419 = arith.constant 0 : i32
    %c0_i32_420 = arith.constant 0 : i32
    %589 = tpu.memref_slice %arg3[%c0_i32_419, %c0_i32_420] : memref<512x512xf32, #tpu.memory_space<any>> -> memref<1x256xf32, #tpu.memory_space<any>>
    %c26_i32_421 = arith.constant 26 : i32
    %c0_i32_422 = arith.constant 0 : i32
    %590 = tpu.memref_slice %arg8[%c26_i32_421, %c0_i32_422] : memref<48x256xf32, #tpu.memory_space<vmem>> -> memref<1x256xf32, #tpu.memory_space<vmem>>
    %591 = tpu.memref_slice %arg9[%c0_i32_418] : memref<1x!tpu.dma_semaphore, #tpu.memory_space<semaphore_mem>> -> memref<1x!tpu.dma_semaphore, #tpu.memory_space<semaphore_mem>>
    %592 = tpu.memref_squeeze %591 : memref<1x!tpu.dma_semaphore, #tpu.memory_space<semaphore_mem>> -> memref<!tpu.dma_semaphore, #tpu.memory_space<semaphore_mem>>
    tpu.wait_dma2 semaphore(%592 : memref<!tpu.dma_semaphore, #tpu.memory_space<semaphore_mem>>) src(%589 : memref<1x256xf32, #tpu.memory_space<any>>) dst(%590 : memref<1x256xf32, #tpu.memory_space<vmem>>)
    %c0_i32_423 = arith.constant 0 : i32
    %c0_i32_424 = arith.constant 0 : i32
    %c0_i32_425 = arith.constant 0 : i32
    %593 = tpu.memref_slice %arg3[%c0_i32_424, %c0_i32_425] : memref<512x512xf32, #tpu.memory_space<any>> -> memref<1x256xf32, #tpu.memory_space<any>>
    %c27_i32_426 = arith.constant 27 : i32
    %c0_i32_427 = arith.constant 0 : i32
    %594 = tpu.memref_slice %arg8[%c27_i32_426, %c0_i32_427] : memref<48x256xf32, #tpu.memory_space<vmem>> -> memref<1x256xf32, #tpu.memory_space<vmem>>
    %595 = tpu.memref_slice %arg9[%c0_i32_423] : memref<1x!tpu.dma_semaphore, #tpu.memory_space<semaphore_mem>> -> memref<1x!tpu.dma_semaphore, #tpu.memory_space<semaphore_mem>>
    %596 = tpu.memref_squeeze %595 : memref<1x!tpu.dma_semaphore, #tpu.memory_space<semaphore_mem>> -> memref<!tpu.dma_semaphore, #tpu.memory_space<semaphore_mem>>
    tpu.wait_dma2 semaphore(%596 : memref<!tpu.dma_semaphore, #tpu.memory_space<semaphore_mem>>) src(%593 : memref<1x256xf32, #tpu.memory_space<any>>) dst(%594 : memref<1x256xf32, #tpu.memory_space<vmem>>)
    %c0_i32_428 = arith.constant 0 : i32
    %c0_i32_429 = arith.constant 0 : i32
    %c0_i32_430 = arith.constant 0 : i32
    %597 = tpu.memref_slice %arg3[%c0_i32_429, %c0_i32_430] : memref<512x512xf32, #tpu.memory_space<any>> -> memref<1x256xf32, #tpu.memory_space<any>>
    %c28_i32_431 = arith.constant 28 : i32
    %c0_i32_432 = arith.constant 0 : i32
    %598 = tpu.memref_slice %arg8[%c28_i32_431, %c0_i32_432] : memref<48x256xf32, #tpu.memory_space<vmem>> -> memref<1x256xf32, #tpu.memory_space<vmem>>
    %599 = tpu.memref_slice %arg9[%c0_i32_428] : memref<1x!tpu.dma_semaphore, #tpu.memory_space<semaphore_mem>> -> memref<1x!tpu.dma_semaphore, #tpu.memory_space<semaphore_mem>>
    %600 = tpu.memref_squeeze %599 : memref<1x!tpu.dma_semaphore, #tpu.memory_space<semaphore_mem>> -> memref<!tpu.dma_semaphore, #tpu.memory_space<semaphore_mem>>
    tpu.wait_dma2 semaphore(%600 : memref<!tpu.dma_semaphore, #tpu.memory_space<semaphore_mem>>) src(%597 : memref<1x256xf32, #tpu.memory_space<any>>) dst(%598 : memref<1x256xf32, #tpu.memory_space<vmem>>)
    %c0_i32_433 = arith.constant 0 : i32
    %c0_i32_434 = arith.constant 0 : i32
    %c0_i32_435 = arith.constant 0 : i32
    %601 = tpu.memref_slice %arg3[%c0_i32_434, %c0_i32_435] : memref<512x512xf32, #tpu.memory_space<any>> -> memref<1x256xf32, #tpu.memory_space<any>>
    %c29_i32_436 = arith.constant 29 : i32
    %c0_i32_437 = arith.constant 0 : i32
    %602 = tpu.memref_slice %arg8[%c29_i32_436, %c0_i32_437] : memref<48x256xf32, #tpu.memory_space<vmem>> -> memref<1x256xf32, #tpu.memory_space<vmem>>
    %603 = tpu.memref_slice %arg9[%c0_i32_433] : memref<1x!tpu.dma_semaphore, #tpu.memory_space<semaphore_mem>> -> memref<1x!tpu.dma_semaphore, #tpu.memory_space<semaphore_mem>>
    %604 = tpu.memref_squeeze %603 : memref<1x!tpu.dma_semaphore, #tpu.memory_space<semaphore_mem>> -> memref<!tpu.dma_semaphore, #tpu.memory_space<semaphore_mem>>
    tpu.wait_dma2 semaphore(%604 : memref<!tpu.dma_semaphore, #tpu.memory_space<semaphore_mem>>) src(%601 : memref<1x256xf32, #tpu.memory_space<any>>) dst(%602 : memref<1x256xf32, #tpu.memory_space<vmem>>)
    %c0_i32_438 = arith.constant 0 : i32
    %c0_i32_439 = arith.constant 0 : i32
    %c0_i32_440 = arith.constant 0 : i32
    %605 = tpu.memref_slice %arg3[%c0_i32_439, %c0_i32_440] : memref<512x512xf32, #tpu.memory_space<any>> -> memref<1x256xf32, #tpu.memory_space<any>>
    %c30_i32_441 = arith.constant 30 : i32
    %c0_i32_442 = arith.constant 0 : i32
    %606 = tpu.memref_slice %arg8[%c30_i32_441, %c0_i32_442] : memref<48x256xf32, #tpu.memory_space<vmem>> -> memref<1x256xf32, #tpu.memory_space<vmem>>
    %607 = tpu.memref_slice %arg9[%c0_i32_438] : memref<1x!tpu.dma_semaphore, #tpu.memory_space<semaphore_mem>> -> memref<1x!tpu.dma_semaphore, #tpu.memory_space<semaphore_mem>>
    %608 = tpu.memref_squeeze %607 : memref<1x!tpu.dma_semaphore, #tpu.memory_space<semaphore_mem>> -> memref<!tpu.dma_semaphore, #tpu.memory_space<semaphore_mem>>
    tpu.wait_dma2 semaphore(%608 : memref<!tpu.dma_semaphore, #tpu.memory_space<semaphore_mem>>) src(%605 : memref<1x256xf32, #tpu.memory_space<any>>) dst(%606 : memref<1x256xf32, #tpu.memory_space<vmem>>)
    %c0_i32_443 = arith.constant 0 : i32
    %c0_i32_444 = arith.constant 0 : i32
    %c0_i32_445 = arith.constant 0 : i32
    %609 = tpu.memref_slice %arg3[%c0_i32_444, %c0_i32_445] : memref<512x512xf32, #tpu.memory_space<any>> -> memref<1x256xf32, #tpu.memory_space<any>>
    %c31_i32_446 = arith.constant 31 : i32
    %c0_i32_447 = arith.constant 0 : i32
    %610 = tpu.memref_slice %arg8[%c31_i32_446, %c0_i32_447] : memref<48x256xf32, #tpu.memory_space<vmem>> -> memref<1x256xf32, #tpu.memory_space<vmem>>
    %611 = tpu.memref_slice %arg9[%c0_i32_443] : memref<1x!tpu.dma_semaphore, #tpu.memory_space<semaphore_mem>> -> memref<1x!tpu.dma_semaphore, #tpu.memory_space<semaphore_mem>>
    %612 = tpu.memref_squeeze %611 : memref<1x!tpu.dma_semaphore, #tpu.memory_space<semaphore_mem>> -> memref<!tpu.dma_semaphore, #tpu.memory_space<semaphore_mem>>
    tpu.wait_dma2 semaphore(%612 : memref<!tpu.dma_semaphore, #tpu.memory_space<semaphore_mem>>) src(%609 : memref<1x256xf32, #tpu.memory_space<any>>) dst(%610 : memref<1x256xf32, #tpu.memory_space<vmem>>)
    %c0_i32_448 = arith.constant 0 : i32
    %c0_i32_449 = arith.constant 0 : i32
    %c0_i32_450 = arith.constant 0 : i32
    %613 = tpu.memref_slice %arg3[%c0_i32_449, %c0_i32_450] : memref<512x512xf32, #tpu.memory_space<any>> -> memref<1x256xf32, #tpu.memory_space<any>>
    %c32_i32_451 = arith.constant 32 : i32
    %c0_i32_452 = arith.constant 0 : i32
    %614 = tpu.memref_slice %arg8[%c32_i32_451, %c0_i32_452] : memref<48x256xf32, #tpu.memory_space<vmem>> -> memref<1x256xf32, #tpu.memory_space<vmem>>
    %615 = tpu.memref_slice %arg9[%c0_i32_448] : memref<1x!tpu.dma_semaphore, #tpu.memory_space<semaphore_mem>> -> memref<1x!tpu.dma_semaphore, #tpu.memory_space<semaphore_mem>>
    %616 = tpu.memref_squeeze %615 : memref<1x!tpu.dma_semaphore, #tpu.memory_space<semaphore_mem>> -> memref<!tpu.dma_semaphore, #tpu.memory_space<semaphore_mem>>
    tpu.wait_dma2 semaphore(%616 : memref<!tpu.dma_semaphore, #tpu.memory_space<semaphore_mem>>) src(%613 : memref<1x256xf32, #tpu.memory_space<any>>) dst(%614 : memref<1x256xf32, #tpu.memory_space<vmem>>)
    %c0_i32_453 = arith.constant 0 : i32
    %c0_i32_454 = arith.constant 0 : i32
    %c0_i32_455 = arith.constant 0 : i32
    %617 = tpu.memref_slice %arg3[%c0_i32_454, %c0_i32_455] : memref<512x512xf32, #tpu.memory_space<any>> -> memref<1x256xf32, #tpu.memory_space<any>>
    %c33_i32_456 = arith.constant 33 : i32
    %c0_i32_457 = arith.constant 0 : i32
    %618 = tpu.memref_slice %arg8[%c33_i32_456, %c0_i32_457] : memref<48x256xf32, #tpu.memory_space<vmem>> -> memref<1x256xf32, #tpu.memory_space<vmem>>
    %619 = tpu.memref_slice %arg9[%c0_i32_453] : memref<1x!tpu.dma_semaphore, #tpu.memory_space<semaphore_mem>> -> memref<1x!tpu.dma_semaphore, #tpu.memory_space<semaphore_mem>>
    %620 = tpu.memref_squeeze %619 : memref<1x!tpu.dma_semaphore, #tpu.memory_space<semaphore_mem>> -> memref<!tpu.dma_semaphore, #tpu.memory_space<semaphore_mem>>
    tpu.wait_dma2 semaphore(%620 : memref<!tpu.dma_semaphore, #tpu.memory_space<semaphore_mem>>) src(%617 : memref<1x256xf32, #tpu.memory_space<any>>) dst(%618 : memref<1x256xf32, #tpu.memory_space<vmem>>)
    %c0_i32_458 = arith.constant 0 : i32
    %c0_i32_459 = arith.constant 0 : i32
    %c0_i32_460 = arith.constant 0 : i32
    %621 = tpu.memref_slice %arg3[%c0_i32_459, %c0_i32_460] : memref<512x512xf32, #tpu.memory_space<any>> -> memref<1x256xf32, #tpu.memory_space<any>>
    %c34_i32_461 = arith.constant 34 : i32
    %c0_i32_462 = arith.constant 0 : i32
    %622 = tpu.memref_slice %arg8[%c34_i32_461, %c0_i32_462] : memref<48x256xf32, #tpu.memory_space<vmem>> -> memref<1x256xf32, #tpu.memory_space<vmem>>
    %623 = tpu.memref_slice %arg9[%c0_i32_458] : memref<1x!tpu.dma_semaphore, #tpu.memory_space<semaphore_mem>> -> memref<1x!tpu.dma_semaphore, #tpu.memory_space<semaphore_mem>>
    %624 = tpu.memref_squeeze %623 : memref<1x!tpu.dma_semaphore, #tpu.memory_space<semaphore_mem>> -> memref<!tpu.dma_semaphore, #tpu.memory_space<semaphore_mem>>
    tpu.wait_dma2 semaphore(%624 : memref<!tpu.dma_semaphore, #tpu.memory_space<semaphore_mem>>) src(%621 : memref<1x256xf32, #tpu.memory_space<any>>) dst(%622 : memref<1x256xf32, #tpu.memory_space<vmem>>)
    %c0_i32_463 = arith.constant 0 : i32
    %c0_i32_464 = arith.constant 0 : i32
    %c0_i32_465 = arith.constant 0 : i32
    %625 = tpu.memref_slice %arg3[%c0_i32_464, %c0_i32_465] : memref<512x512xf32, #tpu.memory_space<any>> -> memref<1x256xf32, #tpu.memory_space<any>>
    %c35_i32_466 = arith.constant 35 : i32
    %c0_i32_467 = arith.constant 0 : i32
    %626 = tpu.memref_slice %arg8[%c35_i32_466, %c0_i32_467] : memref<48x256xf32, #tpu.memory_space<vmem>> -> memref<1x256xf32, #tpu.memory_space<vmem>>
    %627 = tpu.memref_slice %arg9[%c0_i32_463] : memref<1x!tpu.dma_semaphore, #tpu.memory_space<semaphore_mem>> -> memref<1x!tpu.dma_semaphore, #tpu.memory_space<semaphore_mem>>
    %628 = tpu.memref_squeeze %627 : memref<1x!tpu.dma_semaphore, #tpu.memory_space<semaphore_mem>> -> memref<!tpu.dma_semaphore, #tpu.memory_space<semaphore_mem>>
    tpu.wait_dma2 semaphore(%628 : memref<!tpu.dma_semaphore, #tpu.memory_space<semaphore_mem>>) src(%625 : memref<1x256xf32, #tpu.memory_space<any>>) dst(%626 : memref<1x256xf32, #tpu.memory_space<vmem>>)
    %c0_i32_468 = arith.constant 0 : i32
    %c0_i32_469 = arith.constant 0 : i32
    %c0_i32_470 = arith.constant 0 : i32
    %629 = tpu.memref_slice %arg3[%c0_i32_469, %c0_i32_470] : memref<512x512xf32, #tpu.memory_space<any>> -> memref<1x256xf32, #tpu.memory_space<any>>
    %c36_i32_471 = arith.constant 36 : i32
    %c0_i32_472 = arith.constant 0 : i32
    %630 = tpu.memref_slice %arg8[%c36_i32_471, %c0_i32_472] : memref<48x256xf32, #tpu.memory_space<vmem>> -> memref<1x256xf32, #tpu.memory_space<vmem>>
    %631 = tpu.memref_slice %arg9[%c0_i32_468] : memref<1x!tpu.dma_semaphore, #tpu.memory_space<semaphore_mem>> -> memref<1x!tpu.dma_semaphore, #tpu.memory_space<semaphore_mem>>
    %632 = tpu.memref_squeeze %631 : memref<1x!tpu.dma_semaphore, #tpu.memory_space<semaphore_mem>> -> memref<!tpu.dma_semaphore, #tpu.memory_space<semaphore_mem>>
    tpu.wait_dma2 semaphore(%632 : memref<!tpu.dma_semaphore, #tpu.memory_space<semaphore_mem>>) src(%629 : memref<1x256xf32, #tpu.memory_space<any>>) dst(%630 : memref<1x256xf32, #tpu.memory_space<vmem>>)
    %c0_i32_473 = arith.constant 0 : i32
    %c0_i32_474 = arith.constant 0 : i32
    %c0_i32_475 = arith.constant 0 : i32
    %633 = tpu.memref_slice %arg3[%c0_i32_474, %c0_i32_475] : memref<512x512xf32, #tpu.memory_space<any>> -> memref<1x256xf32, #tpu.memory_space<any>>
    %c37_i32_476 = arith.constant 37 : i32
    %c0_i32_477 = arith.constant 0 : i32
    %634 = tpu.memref_slice %arg8[%c37_i32_476, %c0_i32_477] : memref<48x256xf32, #tpu.memory_space<vmem>> -> memref<1x256xf32, #tpu.memory_space<vmem>>
    %635 = tpu.memref_slice %arg9[%c0_i32_473] : memref<1x!tpu.dma_semaphore, #tpu.memory_space<semaphore_mem>> -> memref<1x!tpu.dma_semaphore, #tpu.memory_space<semaphore_mem>>
    %636 = tpu.memref_squeeze %635 : memref<1x!tpu.dma_semaphore, #tpu.memory_space<semaphore_mem>> -> memref<!tpu.dma_semaphore, #tpu.memory_space<semaphore_mem>>
    tpu.wait_dma2 semaphore(%636 : memref<!tpu.dma_semaphore, #tpu.memory_space<semaphore_mem>>) src(%633 : memref<1x256xf32, #tpu.memory_space<any>>) dst(%634 : memref<1x256xf32, #tpu.memory_space<vmem>>)
    %c0_i32_478 = arith.constant 0 : i32
    %c0_i32_479 = arith.constant 0 : i32
    %c0_i32_480 = arith.constant 0 : i32
    %637 = tpu.memref_slice %arg3[%c0_i32_479, %c0_i32_480] : memref<512x512xf32, #tpu.memory_space<any>> -> memref<1x256xf32, #tpu.memory_space<any>>
    %c38_i32_481 = arith.constant 38 : i32
    %c0_i32_482 = arith.constant 0 : i32
    %638 = tpu.memref_slice %arg8[%c38_i32_481, %c0_i32_482] : memref<48x256xf32, #tpu.memory_space<vmem>> -> memref<1x256xf32, #tpu.memory_space<vmem>>
    %639 = tpu.memref_slice %arg9[%c0_i32_478] : memref<1x!tpu.dma_semaphore, #tpu.memory_space<semaphore_mem>> -> memref<1x!tpu.dma_semaphore, #tpu.memory_space<semaphore_mem>>
    %640 = tpu.memref_squeeze %639 : memref<1x!tpu.dma_semaphore, #tpu.memory_space<semaphore_mem>> -> memref<!tpu.dma_semaphore, #tpu.memory_space<semaphore_mem>>
    tpu.wait_dma2 semaphore(%640 : memref<!tpu.dma_semaphore, #tpu.memory_space<semaphore_mem>>) src(%637 : memref<1x256xf32, #tpu.memory_space<any>>) dst(%638 : memref<1x256xf32, #tpu.memory_space<vmem>>)
    %c0_i32_483 = arith.constant 0 : i32
    %c0_i32_484 = arith.constant 0 : i32
    %c0_i32_485 = arith.constant 0 : i32
    %641 = tpu.memref_slice %arg3[%c0_i32_484, %c0_i32_485] : memref<512x512xf32, #tpu.memory_space<any>> -> memref<1x256xf32, #tpu.memory_space<any>>
    %c39_i32_486 = arith.constant 39 : i32
    %c0_i32_487 = arith.constant 0 : i32
    %642 = tpu.memref_slice %arg8[%c39_i32_486, %c0_i32_487] : memref<48x256xf32, #tpu.memory_space<vmem>> -> memref<1x256xf32, #tpu.memory_space<vmem>>
    %643 = tpu.memref_slice %arg9[%c0_i32_483] : memref<1x!tpu.dma_semaphore, #tpu.memory_space<semaphore_mem>> -> memref<1x!tpu.dma_semaphore, #tpu.memory_space<semaphore_mem>>
    %644 = tpu.memref_squeeze %643 : memref<1x!tpu.dma_semaphore, #tpu.memory_space<semaphore_mem>> -> memref<!tpu.dma_semaphore, #tpu.memory_space<semaphore_mem>>
    tpu.wait_dma2 semaphore(%644 : memref<!tpu.dma_semaphore, #tpu.memory_space<semaphore_mem>>) src(%641 : memref<1x256xf32, #tpu.memory_space<any>>) dst(%642 : memref<1x256xf32, #tpu.memory_space<vmem>>)
    %c0_i32_488 = arith.constant 0 : i32
    %c0_i32_489 = arith.constant 0 : i32
    %c0_i32_490 = arith.constant 0 : i32
    %645 = tpu.memref_slice %arg3[%c0_i32_489, %c0_i32_490] : memref<512x512xf32, #tpu.memory_space<any>> -> memref<1x256xf32, #tpu.memory_space<any>>
    %c40_i32_491 = arith.constant 40 : i32
    %c0_i32_492 = arith.constant 0 : i32
    %646 = tpu.memref_slice %arg8[%c40_i32_491, %c0_i32_492] : memref<48x256xf32, #tpu.memory_space<vmem>> -> memref<1x256xf32, #tpu.memory_space<vmem>>
    %647 = tpu.memref_slice %arg9[%c0_i32_488] : memref<1x!tpu.dma_semaphore, #tpu.memory_space<semaphore_mem>> -> memref<1x!tpu.dma_semaphore, #tpu.memory_space<semaphore_mem>>
    %648 = tpu.memref_squeeze %647 : memref<1x!tpu.dma_semaphore, #tpu.memory_space<semaphore_mem>> -> memref<!tpu.dma_semaphore, #tpu.memory_space<semaphore_mem>>
    tpu.wait_dma2 semaphore(%648 : memref<!tpu.dma_semaphore, #tpu.memory_space<semaphore_mem>>) src(%645 : memref<1x256xf32, #tpu.memory_space<any>>) dst(%646 : memref<1x256xf32, #tpu.memory_space<vmem>>)
    %c0_i32_493 = arith.constant 0 : i32
    %c0_i32_494 = arith.constant 0 : i32
    %c0_i32_495 = arith.constant 0 : i32
    %649 = tpu.memref_slice %arg3[%c0_i32_494, %c0_i32_495] : memref<512x512xf32, #tpu.memory_space<any>> -> memref<1x256xf32, #tpu.memory_space<any>>
    %c41_i32_496 = arith.constant 41 : i32
    %c0_i32_497 = arith.constant 0 : i32
    %650 = tpu.memref_slice %arg8[%c41_i32_496, %c0_i32_497] : memref<48x256xf32, #tpu.memory_space<vmem>> -> memref<1x256xf32, #tpu.memory_space<vmem>>
    %651 = tpu.memref_slice %arg9[%c0_i32_493] : memref<1x!tpu.dma_semaphore, #tpu.memory_space<semaphore_mem>> -> memref<1x!tpu.dma_semaphore, #tpu.memory_space<semaphore_mem>>
    %652 = tpu.memref_squeeze %651 : memref<1x!tpu.dma_semaphore, #tpu.memory_space<semaphore_mem>> -> memref<!tpu.dma_semaphore, #tpu.memory_space<semaphore_mem>>
    tpu.wait_dma2 semaphore(%652 : memref<!tpu.dma_semaphore, #tpu.memory_space<semaphore_mem>>) src(%649 : memref<1x256xf32, #tpu.memory_space<any>>) dst(%650 : memref<1x256xf32, #tpu.memory_space<vmem>>)
    %c0_i32_498 = arith.constant 0 : i32
    %c0_i32_499 = arith.constant 0 : i32
    %c0_i32_500 = arith.constant 0 : i32
    %653 = tpu.memref_slice %arg3[%c0_i32_499, %c0_i32_500] : memref<512x512xf32, #tpu.memory_space<any>> -> memref<1x256xf32, #tpu.memory_space<any>>
    %c42_i32_501 = arith.constant 42 : i32
    %c0_i32_502 = arith.constant 0 : i32
    %654 = tpu.memref_slice %arg8[%c42_i32_501, %c0_i32_502] : memref<48x256xf32, #tpu.memory_space<vmem>> -> memref<1x256xf32, #tpu.memory_space<vmem>>
    %655 = tpu.memref_slice %arg9[%c0_i32_498] : memref<1x!tpu.dma_semaphore, #tpu.memory_space<semaphore_mem>> -> memref<1x!tpu.dma_semaphore, #tpu.memory_space<semaphore_mem>>
    %656 = tpu.memref_squeeze %655 : memref<1x!tpu.dma_semaphore, #tpu.memory_space<semaphore_mem>> -> memref<!tpu.dma_semaphore, #tpu.memory_space<semaphore_mem>>
    tpu.wait_dma2 semaphore(%656 : memref<!tpu.dma_semaphore, #tpu.memory_space<semaphore_mem>>) src(%653 : memref<1x256xf32, #tpu.memory_space<any>>) dst(%654 : memref<1x256xf32, #tpu.memory_space<vmem>>)
    %c0_i32_503 = arith.constant 0 : i32
    %c0_i32_504 = arith.constant 0 : i32
    %c0_i32_505 = arith.constant 0 : i32
    %657 = tpu.memref_slice %arg3[%c0_i32_504, %c0_i32_505] : memref<512x512xf32, #tpu.memory_space<any>> -> memref<1x256xf32, #tpu.memory_space<any>>
    %c43_i32_506 = arith.constant 43 : i32
    %c0_i32_507 = arith.constant 0 : i32
    %658 = tpu.memref_slice %arg8[%c43_i32_506, %c0_i32_507] : memref<48x256xf32, #tpu.memory_space<vmem>> -> memref<1x256xf32, #tpu.memory_space<vmem>>
    %659 = tpu.memref_slice %arg9[%c0_i32_503] : memref<1x!tpu.dma_semaphore, #tpu.memory_space<semaphore_mem>> -> memref<1x!tpu.dma_semaphore, #tpu.memory_space<semaphore_mem>>
    %660 = tpu.memref_squeeze %659 : memref<1x!tpu.dma_semaphore, #tpu.memory_space<semaphore_mem>> -> memref<!tpu.dma_semaphore, #tpu.memory_space<semaphore_mem>>
    tpu.wait_dma2 semaphore(%660 : memref<!tpu.dma_semaphore, #tpu.memory_space<semaphore_mem>>) src(%657 : memref<1x256xf32, #tpu.memory_space<any>>) dst(%658 : memref<1x256xf32, #tpu.memory_space<vmem>>)
    %c0_i32_508 = arith.constant 0 : i32
    %c0_i32_509 = arith.constant 0 : i32
    %c0_i32_510 = arith.constant 0 : i32
    %661 = tpu.memref_slice %arg3[%c0_i32_509, %c0_i32_510] : memref<512x512xf32, #tpu.memory_space<any>> -> memref<1x256xf32, #tpu.memory_space<any>>
    %c44_i32_511 = arith.constant 44 : i32
    %c0_i32_512 = arith.constant 0 : i32
    %662 = tpu.memref_slice %arg8[%c44_i32_511, %c0_i32_512] : memref<48x256xf32, #tpu.memory_space<vmem>> -> memref<1x256xf32, #tpu.memory_space<vmem>>
    %663 = tpu.memref_slice %arg9[%c0_i32_508] : memref<1x!tpu.dma_semaphore, #tpu.memory_space<semaphore_mem>> -> memref<1x!tpu.dma_semaphore, #tpu.memory_space<semaphore_mem>>
    %664 = tpu.memref_squeeze %663 : memref<1x!tpu.dma_semaphore, #tpu.memory_space<semaphore_mem>> -> memref<!tpu.dma_semaphore, #tpu.memory_space<semaphore_mem>>
    tpu.wait_dma2 semaphore(%664 : memref<!tpu.dma_semaphore, #tpu.memory_space<semaphore_mem>>) src(%661 : memref<1x256xf32, #tpu.memory_space<any>>) dst(%662 : memref<1x256xf32, #tpu.memory_space<vmem>>)
    %c0_i32_513 = arith.constant 0 : i32
    %c0_i32_514 = arith.constant 0 : i32
    %c0_i32_515 = arith.constant 0 : i32
    %665 = tpu.memref_slice %arg3[%c0_i32_514, %c0_i32_515] : memref<512x512xf32, #tpu.memory_space<any>> -> memref<1x256xf32, #tpu.memory_space<any>>
    %c45_i32_516 = arith.constant 45 : i32
    %c0_i32_517 = arith.constant 0 : i32
    %666 = tpu.memref_slice %arg8[%c45_i32_516, %c0_i32_517] : memref<48x256xf32, #tpu.memory_space<vmem>> -> memref<1x256xf32, #tpu.memory_space<vmem>>
    %667 = tpu.memref_slice %arg9[%c0_i32_513] : memref<1x!tpu.dma_semaphore, #tpu.memory_space<semaphore_mem>> -> memref<1x!tpu.dma_semaphore, #tpu.memory_space<semaphore_mem>>
    %668 = tpu.memref_squeeze %667 : memref<1x!tpu.dma_semaphore, #tpu.memory_space<semaphore_mem>> -> memref<!tpu.dma_semaphore, #tpu.memory_space<semaphore_mem>>
    tpu.wait_dma2 semaphore(%668 : memref<!tpu.dma_semaphore, #tpu.memory_space<semaphore_mem>>) src(%665 : memref<1x256xf32, #tpu.memory_space<any>>) dst(%666 : memref<1x256xf32, #tpu.memory_space<vmem>>)
    %c0_i32_518 = arith.constant 0 : i32
    %c0_i32_519 = arith.constant 0 : i32
    %c0_i32_520 = arith.constant 0 : i32
    %669 = tpu.memref_slice %arg3[%c0_i32_519, %c0_i32_520] : memref<512x512xf32, #tpu.memory_space<any>> -> memref<1x256xf32, #tpu.memory_space<any>>
    %c46_i32_521 = arith.constant 46 : i32
    %c0_i32_522 = arith.constant 0 : i32
    %670 = tpu.memref_slice %arg8[%c46_i32_521, %c0_i32_522] : memref<48x256xf32, #tpu.memory_space<vmem>> -> memref<1x256xf32, #tpu.memory_space<vmem>>
    %671 = tpu.memref_slice %arg9[%c0_i32_518] : memref<1x!tpu.dma_semaphore, #tpu.memory_space<semaphore_mem>> -> memref<1x!tpu.dma_semaphore, #tpu.memory_space<semaphore_mem>>
    %672 = tpu.memref_squeeze %671 : memref<1x!tpu.dma_semaphore, #tpu.memory_space<semaphore_mem>> -> memref<!tpu.dma_semaphore, #tpu.memory_space<semaphore_mem>>
    tpu.wait_dma2 semaphore(%672 : memref<!tpu.dma_semaphore, #tpu.memory_space<semaphore_mem>>) src(%669 : memref<1x256xf32, #tpu.memory_space<any>>) dst(%670 : memref<1x256xf32, #tpu.memory_space<vmem>>)
    %c0_i32_523 = arith.constant 0 : i32
    %c0_i32_524 = arith.constant 0 : i32
    %c0_i32_525 = arith.constant 0 : i32
    %673 = tpu.memref_slice %arg3[%c0_i32_524, %c0_i32_525] : memref<512x512xf32, #tpu.memory_space<any>> -> memref<1x256xf32, #tpu.memory_space<any>>
    %c47_i32_526 = arith.constant 47 : i32
    %c0_i32_527 = arith.constant 0 : i32
    %674 = tpu.memref_slice %arg8[%c47_i32_526, %c0_i32_527] : memref<48x256xf32, #tpu.memory_space<vmem>> -> memref<1x256xf32, #tpu.memory_space<vmem>>
    %675 = tpu.memref_slice %arg9[%c0_i32_523] : memref<1x!tpu.dma_semaphore, #tpu.memory_space<semaphore_mem>> -> memref<1x!tpu.dma_semaphore, #tpu.memory_space<semaphore_mem>>
    %676 = tpu.memref_squeeze %675 : memref<1x!tpu.dma_semaphore, #tpu.memory_space<semaphore_mem>> -> memref<!tpu.dma_semaphore, #tpu.memory_space<semaphore_mem>>
    tpu.wait_dma2 semaphore(%676 : memref<!tpu.dma_semaphore, #tpu.memory_space<semaphore_mem>>) src(%673 : memref<1x256xf32, #tpu.memory_space<any>>) dst(%674 : memref<1x256xf32, #tpu.memory_space<vmem>>)
    %c0 = arith.constant 0 : index
    %c0_528 = arith.constant 0 : index
    %677 = vector.load %arg10[%c0, %c0_528] : memref<48x128xf32, #tpu.memory_space<vmem>>, vector<48x128xf32>
    %c0_529 = arith.constant 0 : index
    %c0_530 = arith.constant 0 : index
    %678 = vector.load %arg8[%c0_529, %c0_530] : memref<48x256xf32, #tpu.memory_space<vmem>>, vector<48x256xf32>
    %679 = arith.truncf %678 : vector<48x256xf32> to vector<48x256xbf16>
    %c0_531 = arith.constant 0 : index
    %c0_532 = arith.constant 0 : index
    %680 = vector.load %arg4[%c0_531, %c0_532] : memref<256x128xf32, #tpu.memory_space<vmem>>, vector<256x128xf32>
    %681 = arith.truncf %680 : vector<256x128xf32> to vector<256x128xbf16>
    %cst = arith.constant dense<0.000000e+00> : vector<48x128xf32>
    %682 = tpu.matmul %679, %681, %cst {dimension_numbers = #tpu.dot_dimension_numbers<[1], [0], [0], [1], [0, 0, 1, 1], [], []>} : vector<48x256xbf16>, vector<256x128xbf16>, vector<48x128xf32> -> vector<48x128xf32>
    %683 = arith.addf %677, %682 : vector<48x128xf32>
    %c0_533 = arith.constant 0 : index
    %c0_534 = arith.constant 0 : index
    %684 = vector.load %arg10[%c0_533, %c0_534] : memref<48x128xf32, #tpu.memory_space<vmem>>, vector<48x128xf32>
    tpu.vector_store %arg10[%c0_533, %c0_534], %683 {strides = array<i32>} : memref<48x128xf32, #tpu.memory_space<vmem>>, vector<48x128xf32>,
    %c1_i32_535 = arith.constant 1 : i32
    %685 = arith.cmpi eq, %arg1, %c1_i32_535 : i32
    %686 = arith.extui %685 : i1 to i32
    %c0_i32_536 = arith.constant 0 : i32
    %687 = arith.cmpi ne, %686, %c0_i32_536 : i32
    scf.if %687 {
      %c0_537 = arith.constant 0 : index
      %c0_538 = arith.constant 0 : index
      %688 = vector.load %arg10[%c0_537, %c0_538] : memref<48x128xf32, #tpu.memory_space<vmem>>, vector<48x128xf32>
      %c0_539 = arith.constant 0 : index
      %c0_540 = arith.constant 0 : index
      %689 = vector.load %arg5[%c0_539, %c0_540] : memref<128x128xf32, #tpu.memory_space<vmem>>, vector<128x128xf32>
      %cst_541 = arith.constant dense<0.000000e+00> : vector<48x128xf32>
      %690 = tpu.matmul %688, %689, %cst_541 {dimension_numbers = #tpu.dot_dimension_numbers<[1], [0], [0], [1], [0, 0, 1, 1], [], []>} : vector<48x128xf32>, vector<128x128xf32>, vector<48x128xf32> -> vector<48x128xf32>
      %c0_542 = arith.constant 0 : index
      %c0_543 = arith.constant 0 : index
      %691 = vector.load %arg6[%c0_542, %c0_543] : memref<1x128xf32, #tpu.memory_space<vmem>>, vector<1x128xf32>
      %692 = vector.broadcast %691 : vector<1x128xf32> to vector<48x128xf32>
      %693 = arith.addf %690, %692 : vector<48x128xf32>
      %cst_544 = arith.constant 0.000000e+00 : f32
      %694 = vector.broadcast %cst_544 : f32 to vector<48x128xf32>
      %695 = arith.maximumf %693, %694 : vector<48x128xf32>
      %c0_545 = arith.constant 0 : index
      %c0_546 = arith.constant 0 : index
      %696 = vector.load %arg7[%c0_545, %c0_546] : memref<48x128xf32, #tpu.memory_space<vmem>>, vector<48x128xf32>
      tpu.vector_store %arg7[%c0_545, %c0_546], %695 {strides = array<i32>} : memref<48x128xf32, #tpu.memory_space<vmem>>, vector<48x128xf32>,
    } else {
    }
    return
  }
  func.func @transform_1(%arg0: i32, %arg1: i32, %arg2: memref<48xi32, #tpu.memory_space<smem>>) -> (i32, i32) {
    %c0_i32 = arith.constant 0 : i32
    %c0_i32_0 = arith.constant 0 : i32
    return %arg1, %c0_i32 : i32, i32
  }
  func.func @transform_2(%arg0: i32, %arg1: i32, %arg2: memref<48xi32, #tpu.memory_space<smem>>) -> (i32, i32) {
    %c0_i32 = arith.constant 0 : i32
    %c0_i32_0 = arith.constant 0 : i32
    %c0_i32_1 = arith.constant 0 : i32
    return %c0_i32, %c0_i32_0 : i32, i32
  }
  func.func @transform_3(%arg0: i32, %arg1: i32, %arg2: memref<48xi32, #tpu.memory_space<smem>>) -> (i32, i32) {
    %c0_i32 = arith.constant 0 : i32
    %c0_i32_0 = arith.constant 0 : i32
    %c0_i32_1 = arith.constant 0 : i32
    return %c0_i32, %c0_i32_0 : i32, i32
  }
  func.func @transform_4(%arg0: i32, %arg1: i32, %arg2: memref<48xi32, #tpu.memory_space<smem>>) -> (i32, i32) {
    %c0_i32 = arith.constant 0 : i32
    %c0_i32_0 = arith.constant 0 : i32
    return %arg0, %c0_i32 : i32, i32
  }
}

</mosaic_0001>

<llo_original>
// kernel: tpu_custom_call.1
$region0: #{tpu_custom_call.1}
  #allocation0 [shape = 'u32[]', space=smem, size = 0x4, offset = 0x4, fixed_abs, tag = 'smem constant byte address 0x4 - core index']
  #allocation1 [shape = 'u32[144,128]{1,0:T(1,128)}', space=vmem, size = 0x12000, scoped, tag = 'internal scratch']
  #allocation2 [shape = 'f32[48,256]{1,0:T(8,128)}', space=vmem, size = 0xc000, scoped, tag = 'scratch operand']
  #allocation3 [shape = 's32[1]{0}', space=sflag, size = 0x4, scoped, tag = 'scratch operand']
  #allocation4 [shape = 'f32[48,128]{1,0:T(8,128)}', space=vmem, size = 0x6000, scoped, tag = 'scratch operand']
  #allocation5 [shape = 's32[1]{0}', space=sflag, size = 0x4, scoped, tag = 'scoped memory for tpu_custom_call.1']
  #allocation6 [shape = 'u8[512]{0}', space=smem, size = 0x200, scoped, tag = 'prefetched SMEM operand 0']
  #allocation13 [shape = 's32[]', space=sflag, size = 0x4, offset = 0, fixed_abs, tag = 'sflag constant byte address 0x0 - dummy sync flag']
  #allocation14 [shape = 's32[]', space=sflag, size = 0x4, offset = 0, fixed_abs, tag = 'sflag constant byte address 0x0 - dummy sync flag']
  #allocation15 [shape = 's32[]', space=sflag, size = 0x4, offset = 0, fixed_abs, tag = 'sflag constant byte address 0x0 - dummy sync flag']
  #allocation16 [shape = 's32[]', space=sflag, size = 0x4, offset = 0, fixed_abs, tag = 'sflag constant byte address 0x0 - dummy sync flag']
  #allocation17 [shape = 's32[]', space=sflag, size = 0x4, offset = 0, fixed_abs, tag = 'sflag constant byte address 0x0 - dummy sync flag']
  #allocation18 [shape = 's32[]', space=sflag, size = 0x4, offset = 0, fixed_abs, tag = 'sflag constant byte address 0x0 - dummy sync flag']
  #allocation19 [shape = 's32[]', space=sflag, size = 0x4, offset = 0, fixed_abs, tag = 'sflag constant byte address 0x0 - dummy sync flag']
  #allocation20 [shape = 's32[]', space=sflag, size = 0x4, offset = 0, fixed_abs, tag = 'sflag constant byte address 0x0 - dummy sync flag']
  #allocation21 [shape = 's32[]', space=sflag, size = 0x4, offset = 0, fixed_abs, tag = 'sflag constant byte address 0x0 - dummy sync flag']
  #allocation22 [shape = 's32[]', space=sflag, size = 0x4, offset = 0, fixed_abs, tag = 'sflag constant byte address 0x0 - dummy sync flag']
  #allocation23 [shape = 's32[]', space=sflag, size = 0x4, offset = 0, fixed_abs, tag = 'sflag constant byte address 0x0 - dummy sync flag']
  #allocation24 [shape = 's32[]', space=sflag, size = 0x4, offset = 0, fixed_abs, tag = 'sflag constant byte address 0x0 - dummy sync flag']
  #allocation25 [shape = 's32[]', space=sflag, size = 0x4, offset = 0, fixed_abs, tag = 'sflag constant byte address 0x0 - dummy sync flag']
  #allocation26 [shape = 's32[]', space=sflag, size = 0x4, offset = 0, fixed_abs, tag = 'sflag constant byte address 0x0 - dummy sync flag']
  #allocation27 [shape = 's32[]', space=sflag, size = 0x4, offset = 0, fixed_abs, tag = 'sflag constant byte address 0x0 - dummy sync flag']
  #allocation28 [shape = 's32[]', space=sflag, size = 0x4, offset = 0, fixed_abs, tag = 'sflag constant byte address 0x0 - dummy sync flag']
  #allocation29 [shape = 's32[]', space=sflag, size = 0x4, offset = 0, fixed_abs, tag = 'sflag constant byte address 0x0 - dummy sync flag']
  #allocation30 [shape = 's32[]', space=sflag, size = 0x4, offset = 0, fixed_abs, tag = 'sflag constant byte address 0x0 - dummy sync flag']
  #allocation31 [shape = 's32[]', space=sflag, size = 0x4, offset = 0, fixed_abs, tag = 'sflag constant byte address 0x0 - dummy sync flag']
  #allocation32 [shape = 's32[]', space=sflag, size = 0x4, offset = 0, fixed_abs, tag = 'sflag constant byte address 0x0 - dummy sync flag']
  #allocation33 [shape = 's32[]', space=sflag, size = 0x4, offset = 0, fixed_abs, tag = 'sflag constant byte address 0x0 - dummy sync flag']
  #allocation34 [shape = 's32[]', space=sflag, size = 0x4, offset = 0, fixed_abs, tag = 'sflag constant byte address 0x0 - dummy sync flag']
  #allocation35 [shape = 's32[]', space=sflag, size = 0x4, offset = 0, fixed_abs, tag = 'sflag constant byte address 0x0 - dummy sync flag']
  #allocation36 [shape = 's32[]', space=sflag, size = 0x4, offset = 0, fixed_abs, tag = 'sflag constant byte address 0x0 - dummy sync flag']
  #allocation37 [shape = 's32[]', space=sflag, size = 0x4, offset = 0, fixed_abs, tag = 'sflag constant byte address 0x0 - dummy sync flag']
  #allocation38 [shape = 's32[]', space=sflag, size = 0x4, offset = 0, fixed_abs, tag = 'sflag constant byte address 0x0 - dummy sync flag']
  #allocation39 [shape = 's32[]', space=sflag, size = 0x4, offset = 0, fixed_abs, tag = 'sflag constant byte address 0x0 - dummy sync flag']
  #allocation40 [shape = 's32[]', space=sflag, size = 0x4, offset = 0, fixed_abs, tag = 'sflag constant byte address 0x0 - dummy sync flag']
  #allocation41 [shape = 's32[]', space=sflag, size = 0x4, offset = 0, fixed_abs, tag = 'sflag constant byte address 0x0 - dummy sync flag']
  #allocation42 [shape = 's32[]', space=sflag, size = 0x4, offset = 0, fixed_abs, tag = 'sflag constant byte address 0x0 - dummy sync flag']
  #allocation43 [shape = 's32[]', space=sflag, size = 0x4, offset = 0, fixed_abs, tag = 'sflag constant byte address 0x0 - dummy sync flag']
  #allocation44 [shape = 's32[]', space=sflag, size = 0x4, offset = 0, fixed_abs, tag = 'sflag constant byte address 0x0 - dummy sync flag']
  #allocation45 [shape = 's32[]', space=sflag, size = 0x4, offset = 0, fixed_abs, tag = 'sflag constant byte address 0x0 - dummy sync flag']
  #allocation46 [shape = 's32[]', space=sflag, size = 0x4, offset = 0, fixed_abs, tag = 'sflag constant byte address 0x0 - dummy sync flag']
  #allocation47 [shape = 's32[]', space=sflag, size = 0x4, offset = 0, fixed_abs, tag = 'sflag constant byte address 0x0 - dummy sync flag']
  #allocation48 [shape = 's32[]', space=sflag, size = 0x4, offset = 0, fixed_abs, tag = 'sflag constant byte address 0x0 - dummy sync flag']
  #allocation49 [shape = 's32[]', space=sflag, size = 0x4, offset = 0, fixed_abs, tag = 'sflag constant byte address 0x0 - dummy sync flag']
  #allocation50 [shape = 's32[]', space=sflag, size = 0x4, offset = 0, fixed_abs, tag = 'sflag constant byte address 0x0 - dummy sync flag']
  #allocation51 [shape = 's32[]', space=sflag, size = 0x4, offset = 0, fixed_abs, tag = 'sflag constant byte address 0x0 - dummy sync flag']
  #allocation52 [shape = 's32[]', space=sflag, size = 0x4, offset = 0, fixed_abs, tag = 'sflag constant byte address 0x0 - dummy sync flag']
  #allocation53 [shape = 's32[]', space=sflag, size = 0x4, offset = 0, fixed_abs, tag = 'sflag constant byte address 0x0 - dummy sync flag']
  #allocation54 [shape = 's32[]', space=sflag, size = 0x4, offset = 0, fixed_abs, tag = 'sflag constant byte address 0x0 - dummy sync flag']
  #allocation55 [shape = 's32[]', space=sflag, size = 0x4, offset = 0, fixed_abs, tag = 'sflag constant byte address 0x0 - dummy sync flag']
  #allocation56 [shape = 's32[]', space=sflag, size = 0x4, offset = 0, fixed_abs, tag = 'sflag constant byte address 0x0 - dummy sync flag']
  #allocation57 [shape = 's32[]', space=sflag, size = 0x4, offset = 0, fixed_abs, tag = 'sflag constant byte address 0x0 - dummy sync flag']
  #allocation58 [shape = 's32[]', space=sflag, size = 0x4, offset = 0, fixed_abs, tag = 'sflag constant byte address 0x0 - dummy sync flag']
  #allocation59 [shape = 's32[]', space=sflag, size = 0x4, offset = 0, fixed_abs, tag = 'sflag constant byte address 0x0 - dummy sync flag']
  #allocation60 [shape = 's32[]', space=sflag, size = 0x4, offset = 0, fixed_abs, tag = 'sflag constant byte address 0x0 - dummy sync flag']
  %s0 = inlined_call_operand.hbm [shape: s32[48], index: 0, kind: input, shape index: {}]
  %s1 = inlined_call_operand.hbm [shape: f32[512,512], index: 1, kind: input, shape index: {}]
  %s2 = inlined_call_operand.hbm [shape: f32[512,128], index: 2, kind: input, shape index: {}]
  %s3 = inlined_call_operand.hbm [shape: f32[128,128], index: 3, kind: input, shape index: {}]
  %s4 = inlined_call_operand.vmem [shape: f32[1,128], index: 4, kind: input, shape index: {}]
  %s5 = inlined_call_operand.hbm [shape: f32[48,128], index: 5, kind: output, shape index: {}]
  %s6 = sld [smem:[#allocation0]]
  $region61: #{tpu_custom_call.1} parent=0
    _
  %s8 = ssub.s32 1, %s6
  %s9 = scalar_select 0, %s8, %s6
  %11 = dma.hbm_to_smem %s0, 16, [#allocation6], [#allocation5]
  %12 = dma.done [#allocation5], 16
  %13 = sfence
  $region1: #{tpu_custom_call.1} parent=0
    #allocation7 [shape = 'u8[262144]{0}', space=vmem, size = 0x40000, scoped, tag = 'input window, operand 2']
    #allocation8 [shape = 's32[2]{0}', space=sflag, size = 0x8, scoped, tag = 'scoped memory for tpu_custom_call.1']
    #allocation9 [shape = 's32[2]{0}', space=sflag, size = 0x8, scoped, tag = 'scoped memory for tpu_custom_call.1']
    #allocation10 [shape = 'u8[65536]{0}', space=vmem, size = 0x10000, scoped, tag = 'input window, operand 3, single buffered']
    #allocation11 [shape = 's32[1]{0}', space=sflag, size = 0x4, scoped, tag = 'scoped memory for tpu_custom_call.1']
    #allocation12 [shape = 'u8[24576]{0}', space=vmem, size = 0x6000, scoped, tag = 'output window, operand 0, single buffered']
    %14 = vsyncpa [#allocation8], 0
    %s15 = scalar_lea.sflag [#allocation8], 1
    %16 = vsyncpa %s15, 0
    %17 = vsyncpa [#allocation11], 0
    %18 = vsyncpa [#allocation9], 0
    loop: start=0, step=1, limit=4
    $region2: #{tpu_custom_call.1} parent=1 // loop_pre_header
      _
    $region3: #{tpu_custom_call.1} parent=1 // loop_header
      %s20 = sphi 0, %s24
      %p21 = scmp.ge.s32.totalorder %s20, 4
      %s27 = sphi 0, %s39
      %s28 = sphi 0, %s35
      %s29 = sphi 0, %s27
      %s30 = sphi 0, %s28
      %s31 = sphi 0, %s29
      %s32 = sphi 0, %s30
      %s42 = sphi 0, %s44
      %s45 = sphi 0, %s42
      %s46 = sphi 0, %s45
      %s62 = sphi 0, %s46
      %s66 = sphi 0, %s66
      %s68 = sphi 0, %s66
      %s69 = sphi 0, %s68
      %s83 = sphi 0, %s69
      %s87 = sphi 0, %s87
      %s89 = sphi 0, %s87
      %s90 = sphi 0, %s89
      %s104 = sphi 0, %s90
      %s110 = sphi 0, %s112
      %s113 = sphi 0, %s110
      %s114 = sphi 0, %s113
      %s130 = sphi 0, %s114
    $region4: #{tpu_custom_call.1} parent=1 // loop_header_branch
      %23 = sbr.rel (%p21) target = $region8
    $region5: #{tpu_custom_call.1} parent=1 // loop_body
      %s25 = ssub.s32 %s20, 1
      %s26 = ssub.s32 %s20, 2
      %s33 = sadd.s32 1, %s28
      %p34 = scmp.ge.s32.totalorder %s33, 2
      %s35 = scalar_select %p34, 0, %s33
      %s36 = sadd.s32 1, %s27
      %s37 = scalar_select %p34, %s36, %s27
      %p38 = scmp.ge.s32.totalorder %s37, 1
      %s39 = scalar_select %p38, 0, %s37
      %s40 = ssub.s32 %s28, %s35
      %p41 = scmp.eq.s32.totalorder %s40, 0
      %s43 = sadd.s32 %s42, 1
      %s44 = scalar_select %p41, %s42, %s43
      %p47 = pneg %p41
      %p48 = scmp.eq.s32.totalorder %s20, 1
      %p49 = por %p47, %p48
      %p50 = scmp.ne.s32.totalorder %s42, %s45
      %p51 = scmp.eq.s32.totalorder %s20, 0
      %p52 = por %p50, %p51
      %p53 = scmp.ne.s32.totalorder %s42, %s45
      %p54 = scmp.eq.s32.totalorder %s25, 1
      %p55 = por %p53, %p54
      %p56 = scmp.ne.s32.totalorder %s45, %s46
      %p57 = scmp.eq.s32.totalorder %s25, 0
      %p58 = por %p56, %p57
      %p59 = scmp.ne.s32.totalorder %s45, %s46
      %p60 = scmp.eq.s32.totalorder %s26, 1
      %p61 = por %p59, %p60
      %p63 = scmp.ne.s32.totalorder %s46, %s62
      %p64 = scmp.eq.s32.totalorder %s26, 0
      %p65 = por %p63, %p64
      %s67 = sadd.s32 %s66, 1
      %p70 = scmp.eq.s32.totalorder %s20, 1
      %p71 = scmp.ne.s32.totalorder %s66, %s68
      %p72 = scmp.eq.s32.totalorder %s20, 0
      %p73 = por %p71, %p72
      %p74 = scmp.ne.s32.totalorder %s66, %s68
      %p75 = scmp.eq.s32.totalorder %s25, 1
      %p76 = por %p74, %p75
      %p77 = scmp.ne.s32.totalorder %s68, %s69
      %p78 = scmp.eq.s32.totalorder %s25, 0
      %p79 = por %p77, %p78
      %p80 = scmp.ne.s32.totalorder %s68, %s69
      %p81 = scmp.eq.s32.totalorder %s26, 1
      %p82 = por %p80, %p81
      %p84 = scmp.ne.s32.totalorder %s69, %s83
      %p85 = scmp.eq.s32.totalorder %s26, 0
      %p86 = por %p84, %p85
      %s88 = sadd.s32 %s87, 1
      %p91 = scmp.eq.s32.totalorder %s20, 1
      %p92 = scmp.ne.s32.totalorder %s87, %s89
      %p93 = scmp.eq.s32.totalorder %s20, 0
      %p94 = por %p92, %p93
      %p95 = scmp.ne.s32.totalorder %s87, %s89
      %p96 = scmp.eq.s32.totalorder %s25, 1
      %p97 = por %p95, %p96
      %p98 = scmp.ne.s32.totalorder %s89, %s90
      %p99 = scmp.eq.s32.totalorder %s25, 0
      %p100 = por %p98, %p99
      %p101 = scmp.ne.s32.totalorder %s89, %s90
      %p102 = scmp.eq.s32.totalorder %s26, 1
      %p103 = por %p101, %p102
      %p105 = scmp.ne.s32.totalorder %s90, %s104
      %p106 = scmp.eq.s32.totalorder %s26, 0
      %p107 = por %p105, %p106
      %s108 = ssub.s32 %s27, %s39
      %p109 = scmp.eq.s32.totalorder %s108, 0
      %s111 = sadd.s32 %s110, 1
      %s112 = scalar_select %p109, %s110, %s111
      %p115 = pneg %p109
      %p116 = scmp.eq.s32.totalorder %s20, 1
      %p117 = por %p115, %p116
      %p118 = scmp.ne.s32.totalorder %s110, %s113
      %p119 = scmp.eq.s32.totalorder %s20, 0
      %p120 = por %p118, %p119
      %p121 = scmp.ne.s32.totalorder %s110, %s113
      %p122 = scmp.eq.s32.totalorder %s25, 1
      %p123 = por %p121, %p122
      %p124 = scmp.ne.s32.totalorder %s113, %s114
      %p125 = scmp.eq.s32.totalorder %s25, 0
      %p126 = por %p124, %p125
      %p127 = scmp.ne.s32.totalorder %s113, %s114
      %p128 = scmp.eq.s32.totalorder %s26, 1
      %p129 = por %p127, %p128
      %p131 = scmp.ne.s32.totalorder %s114, %s130
      %p132 = scmp.eq.s32.totalorder %s26, 0
      %p133 = por %p131, %p132
      %p134 = scmp.le.s32.totalorder 1, %s20
      %p135 = scmp.lt.s32.totalorder %s20, 3
      %p136 = pnand %p134, %p135
      %p137 = pneg %p136
      // Predicated region
      $region9: #{tpu_custom_call.1} parent=5 // pred_check
        _
      $region10: #{tpu_custom_call.1} parent=5 // pred_check_branch
        %139 = sbr.rel (%p136) target = $region12
      $region11: #{tpu_custom_call.1} parent=5 // pred_region
        %s140 = ssub.s32 %s20, 1
        // Predicated region
        $region13: #{tpu_custom_call.1} parent=11 // pred_check
          %p141 = pneg %p79
        $region14: #{tpu_custom_call.1} parent=11 // pred_check_branch
          %143 = sbr.rel (%p141) target = $region16
        $region15: #{tpu_custom_call.1} parent=11 // pred_region
          %s145 = ssub.s32 2048, 2048
          %146 = vsyncadd [#allocation11], %s145
          %s147 = sshll.u32 [#allocation10], 4
          %s148 = int_to_ptr.vmem [resolvable:$true] %s147
          %153 = dma.hbm_to_vmem [thread:$0]  %s3, 2048, %s148, [#allocation11], 128, 128, 8
        $region16: #{tpu_custom_call.1} parent=11 // pred_fallthru
          _
        // Predicated region
        $region17: #{tpu_custom_call.1} parent=11 // pred_check
          %p154 = pneg %p100
        $region18: #{tpu_custom_call.1} parent=11 // pred_check_branch
          %156 = sbr.rel (%p154) target = $region20
        $region19: #{tpu_custom_call.1} parent=11 // pred_region
          _
        $region20: #{tpu_custom_call.1} parent=11 // pred_fallthru
          _
      $region12: #{tpu_custom_call.1} parent=5 // pred_fallthru
        _
      %p157 = scmp.lt.s32.totalorder %s20, 2
      // Predicated region
      $region21: #{tpu_custom_call.1} parent=5 // pred_check
        %p158 = pneg %p157
      $region22: #{tpu_custom_call.1} parent=5 // pred_check_branch
        %160 = sbr.rel (%p158) target = $region24
      $region23: #{tpu_custom_call.1} parent=5 // pred_region
        // Predicated region
        $region25: #{tpu_custom_call.1} parent=23 // pred_check
          %p161 = pneg %p52
        $region26: #{tpu_custom_call.1} parent=23 // pred_check_branch
          %163 = sbr.rel (%p161) target = $region28
        $region27: #{tpu_custom_call.1} parent=23 // pred_region
          %s164 = sand.u32 %s42, 1
          %s165 = scalar_lea.sflag [#allocation8], %s164
          %s166 = sand.u32 %s42, 1
          %s167 = smul.addr %s166, 256
          %s168 = scalar_lea.vmem [#allocation7], %s167
          %s169 = smul.u32 32, %s28
          %s171 = ssub.s32 4096, 4096
          %172 = vsyncadd %s165, %s171
          %s173 = smul.addr %s169, 128
          %s174 = scalar_lea.hbm %s2, %s173
          %s175 = sshll.u32 %s168, 4
          %s176 = int_to_ptr.vmem [resolvable:$true] %s175
          %181 = dma.hbm_to_vmem [thread:$0]  %s174, 4096, %s176, %s165, 128, 128, 8
        $region28: #{tpu_custom_call.1} parent=23 // pred_fallthru
          _
      $region24: #{tpu_custom_call.1} parent=5 // pred_fallthru
        _
      %p182 = scmp.le.s32.totalorder 1, %s20
      %p183 = scmp.lt.s32.totalorder %s20, 3
      %p184 = pnand %p182, %p183
      %p185 = pneg %p184
      // Predicated region
      $region29: #{tpu_custom_call.1} parent=5 // pred_check
        _
      $region30: #{tpu_custom_call.1} parent=5 // pred_check_branch
        %187 = sbr.rel (%p184) target = $region32
      $region31: #{tpu_custom_call.1} parent=5 // pred_region
        %s188 = ssub.s32 %s20, 1
        %s189 = sand.u32 %s45, 1
        %s190 = scalar_lea.sflag [#allocation8], %s189
        %s191 = sand.u32 %s45, 1
        %s192 = smul.addr %s191, 256
        %s193 = scalar_lea.vmem [#allocation7], %s192
        // Predicated region
        $region33: #{tpu_custom_call.1} parent=31 // pred_check
          %p194 = pneg %p58
        $region34: #{tpu_custom_call.1} parent=31 // pred_check_branch
          %196 = sbr.rel (%p194) target = $region36
        $region35: #{tpu_custom_call.1} parent=31 // pred_region
          %197 = dma.done %s190, 4096
        $region36: #{tpu_custom_call.1} parent=31 // pred_fallthru
          _
        // Predicated region
        $region37: #{tpu_custom_call.1} parent=31 // pred_check
          %p198 = pneg %p79
        $region38: #{tpu_custom_call.1} parent=31 // pred_check_branch
          %200 = sbr.rel (%p198) target = $region40
        $region39: #{tpu_custom_call.1} parent=31 // pred_region
          %201 = dma.done [#allocation11], 2048
        $region40: #{tpu_custom_call.1} parent=31 // pred_fallthru
          _
        %s202 = sand.u32 %s45, 1
        %s203 = scalar_lea.sflag [#allocation8], %s202
        %s204 = sand.u32 %s45, 1
        %s205 = smul.addr %s204, 256
        %s206 = scalar_lea.vmem [#allocation7], %s205
        %p207 = pneg %p58
        %p208 = pneg %p55
        %p209 = pneg %p79
        %p210 = pneg %p76
        %p211 = pneg %p100
        %p212 = pneg %p97
        %p213 = pneg %p126
        %p214 = pneg %p123
        %s215 = smul.u32 32, %s30
        %s216 = smul.u32 6, %s29
        %s218 = smul.u32 %s30, 256
        %s219 = smul.u32 %s29, 48
        %s220 = sld [smem:[#allocation6 + %s219]]
        %p221 = scmp.gt.s32.totalorder %s220, 0
        %s222 = scalar_select %p221, %s220, 0
        %p223 = scmp.lt.s32.totalorder %s222, 511
        %s224 = scalar_select %p223, %s222, 511
        %s225 = sshrl.u32 %s224, 3
        %s226 = sand.u32 %s224, 7
        %s227 = smul.u32 %s225, 32
        %s228 = sadd.s32 %s226, %s227
        %s229 = sshra.s32 %s218, 7
        %s230 = sand.u32 %s218, 127
        %s231 = smul.u32 %s229, 8
        %s232 = sadd.s32 %s231, %s228
        %s233 = smul.addr %s232, 16
        %s234 = scalar_lea.hbm %s1, %s233
        %s236 = sshll.u32 [#allocation2], 4
        %s237 = int_to_ptr.vmem [resolvable:$true] %s236
        %239 = dma.hbm_to_vmem [thread:$0]  %s234, 32, %s237, [#allocation3], 128, 128, 1
        %s240 = sadd.s32 %s219, 1
        %s241 = sld [smem:[#allocation6 + %s240]]
        %p242 = scmp.gt.s32.totalorder %s241, 0
        %s243 = scalar_select %p242, %s241, 0
        %p244 = scmp.lt.s32.totalorder %s243, 511
        %s245 = scalar_select %p244, %s243, 511
        %s246 = sshrl.u32 %s245, 3
        %s247 = sand.u32 %s245, 7
        %s248 = smul.u32 %s246, 32
        %s249 = sadd.s32 %s247, %s248
        %s250 = sadd.s32 %s231, %s249
        %s251 = smul.addr %s250, 16
        %s252 = scalar_lea.hbm %s1, %s251
        %s253 = scalar_lea.vmem [#allocation2], 1
        %s255 = sshll.u32 %s253, 4
        %s256 = int_to_ptr.vmem [resolvable:$true] %s255
        %258 = dma.hbm_to_vmem [thread:$0]  %s252, 32, %s256, [#allocation3], 128, 128, 1
        %s259 = sadd.s32 %s219, 2
        %s260 = sld [smem:[#allocation6 + %s259]]
        %p261 = scmp.gt.s32.totalorder %s260, 0
        %s262 = scalar_select %p261, %s260, 0
        %p263 = scmp.lt.s32.totalorder %s262, 511
        %s264 = scalar_select %p263, %s262, 511
        %s265 = sshrl.u32 %s264, 3
        %s266 = sand.u32 %s264, 7
        %s267 = smul.u32 %s265, 32
        %s268 = sadd.s32 %s266, %s267
        %s269 = sadd.s32 %s231, %s268
        %s270 = smul.addr %s269, 16
        %s271 = scalar_lea.hbm %s1, %s270
        %s272 = scalar_lea.vmem [#allocation2], 2
        %s274 = sshll.u32 %s272, 4
        %s275 = int_to_ptr.vmem [resolvable:$true] %s274
        %277 = dma.hbm_to_vmem [thread:$0]  %s271, 32, %s275, [#allocation3], 128, 128, 1
        %s278 = sadd.s32 %s219, 3
        %s279 = sld [smem:[#allocation6 + %s278]]
        %p280 = scmp.gt.s32.totalorder %s279, 0
        %s281 = scalar_select %p280, %s279, 0
        %p282 = scmp.lt.s32.totalorder %s281, 511
        %s283 = scalar_select %p282, %s281, 511
        %s284 = sshrl.u32 %s283, 3
        %s285 = sand.u32 %s283, 7
        %s286 = smul.u32 %s284, 32
        %s287 = sadd.s32 %s285, %s286
        %s288 = sadd.s32 %s231, %s287
        %s289 = smul.addr %s288, 16
        %s290 = scalar_lea.hbm %s1, %s289
        %s291 = scalar_lea.vmem [#allocation2], 3
        %s293 = sshll.u32 %s291, 4
        %s294 = int_to_ptr.vmem [resolvable:$true] %s293
        %296 = dma.hbm_to_vmem [thread:$0]  %s290, 32, %s294, [#allocation3], 128, 128, 1
        %s297 = sadd.s32 %s219, 4
        %s298 = sld [smem:[#allocation6 + %s297]]
        %p299 = scmp.gt.s32.totalorder %s298, 0
        %s300 = scalar_select %p299, %s298, 0
        %p301 = scmp.lt.s32.totalorder %s300, 511
        %s302 = scalar_select %p301, %s300, 511
        %s303 = sshrl.u32 %s302, 3
        %s304 = sand.u32 %s302, 7
        %s305 = smul.u32 %s303, 32
        %s306 = sadd.s32 %s304, %s305
        %s307 = sadd.s32 %s231, %s306
        %s308 = smul.addr %s307, 16
        %s309 = scalar_lea.hbm %s1, %s308
        %s310 = scalar_lea.vmem [#allocation2], 4
        %s312 = sshll.u32 %s310, 4
        %s313 = int_to_ptr.vmem [resolvable:$true] %s312
        %315 = dma.hbm_to_vmem [thread:$0]  %s309, 32, %s313, [#allocation3], 128, 128, 1
        %s316 = sadd.s32 %s219, 5
        %s317 = sld [smem:[#allocation6 + %s316]]
        %p318 = scmp.gt.s32.totalorder %s317, 0
        %s319 = scalar_select %p318, %s317, 0
        %p320 = scmp.lt.s32.totalorder %s319, 511
        %s321 = scalar_select %p320, %s319, 511
        %s322 = sshrl.u32 %s321, 3
        %s323 = sand.u32 %s321, 7
        %s324 = smul.u32 %s322, 32
        %s325 = sadd.s32 %s323, %s324
        %s326 = sadd.s32 %s231, %s325
        %s327 = smul.addr %s326, 16
        %s328 = scalar_lea.hbm %s1, %s327
        %s329 = scalar_lea.vmem [#allocation2], 5
        %s331 = sshll.u32 %s329, 4
        %s332 = int_to_ptr.vmem [resolvable:$true] %s331
        %334 = dma.hbm_to_vmem [thread:$0]  %s328, 32, %s332, [#allocation3], 128, 128, 1
        %s335 = sadd.s32 %s219, 6
        %s336 = sld [smem:[#allocation6 + %s335]]
        %p337 = scmp.gt.s32.totalorder %s336, 0
        %s338 = scalar_select %p337, %s336, 0
        %p339 = scmp.lt.s32.totalorder %s338, 511
        %s340 = scalar_select %p339, %s338, 511
        %s341 = sshrl.u32 %s340, 3
        %s342 = sand.u32 %s340, 7
        %s343 = smul.u32 %s341, 32
        %s344 = sadd.s32 %s342, %s343
        %s345 = sadd.s32 %s231, %s344
        %s346 = smul.addr %s345, 16
        %s347 = scalar_lea.hbm %s1, %s346
        %s348 = scalar_lea.vmem [#allocation2], 6
        %s350 = sshll.u32 %s348, 4
        %s351 = int_to_ptr.vmem [resolvable:$true] %s350
        %353 = dma.hbm_to_vmem [thread:$0]  %s347, 32, %s351, [#allocation3], 128, 128, 1
        %s354 = sadd.s32 %s219, 7
        %s355 = sld [smem:[#allocation6 + %s354]]
        %p356 = scmp.gt.s32.totalorder %s355, 0
        %s357 = scalar_select %p356, %s355, 0
        %p358 = scmp.lt.s32.totalorder %s357, 511
        %s359 = scalar_select %p358, %s357, 511
        %s360 = sshrl.u32 %s359, 3
        %s361 = sand.u32 %s359, 7
        %s362 = smul.u32 %s360, 32
        %s363 = sadd.s32 %s361, %s362
        %s364 = sadd.s32 %s231, %s363
        %s365 = smul.addr %s364, 16
        %s366 = scalar_lea.hbm %s1, %s365
        %s367 = scalar_lea.vmem [#allocation2], 7
        %s369 = sshll.u32 %s367, 4
        %s370 = int_to_ptr.vmem [resolvable:$true] %s369
        %372 = dma.hbm_to_vmem [thread:$0]  %s366, 32, %s370, [#allocation3], 128, 128, 1
        %s373 = sadd.s32 %s219, 8
        %s374 = sld [smem:[#allocation6 + %s373]]
        %p375 = scmp.gt.s32.totalorder %s374, 0
        %s376 = scalar_select %p375, %s374, 0
        %p377 = scmp.lt.s32.totalorder %s376, 511
        %s378 = scalar_select %p377, %s376, 511
        %s379 = sshrl.u32 %s378, 3
        %s380 = sand.u32 %s378, 7
        %s381 = smul.u32 %s379, 32
        %s382 = sadd.s32 %s380, %s381
        %s383 = sadd.s32 %s231, %s382
        %s384 = smul.addr %s383, 16
        %s385 = scalar_lea.hbm %s1, %s384
        %s386 = scalar_lea.vmem [#allocation2], 16
        %s388 = sshll.u32 %s386, 4
        %s389 = int_to_ptr.vmem [resolvable:$true] %s388
        %391 = dma.hbm_to_vmem [thread:$0]  %s385, 32, %s389, [#allocation3], 128, 128, 1
        %s392 = sadd.s32 %s219, 9
        %s393 = sld [smem:[#allocation6 + %s392]]
        %p394 = scmp.gt.s32.totalorder %s393, 0
        %s395 = scalar_select %p394, %s393, 0
        %p396 = scmp.lt.s32.totalorder %s395, 511
        %s397 = scalar_select %p396, %s395, 511
        %s398 = sshrl.u32 %s397, 3
        %s399 = sand.u32 %s397, 7
        %s400 = smul.u32 %s398, 32
        %s401 = sadd.s32 %s399, %s400
        %s402 = sadd.s32 %s231, %s401
        %s403 = smul.addr %s402, 16
        %s404 = scalar_lea.hbm %s1, %s403
        %s405 = scalar_lea.vmem [#allocation2], 17
        %s407 = sshll.u32 %s405, 4
        %s408 = int_to_ptr.vmem [resolvable:$true] %s407
        %410 = dma.hbm_to_vmem [thread:$0]  %s404, 32, %s408, [#allocation3], 128, 128, 1
        %s411 = sadd.s32 %s219, 10
        %s412 = sld [smem:[#allocation6 + %s411]]
        %p413 = scmp.gt.s32.totalorder %s412, 0
        %s414 = scalar_select %p413, %s412, 0
        %p415 = scmp.lt.s32.totalorder %s414, 511
        %s416 = scalar_select %p415, %s414, 511
        %s417 = sshrl.u32 %s416, 3
        %s418 = sand.u32 %s416, 7
        %s419 = smul.u32 %s417, 32
        %s420 = sadd.s32 %s418, %s419
        %s421 = sadd.s32 %s231, %s420
        %s422 = smul.addr %s421, 16
        %s423 = scalar_lea.hbm %s1, %s422
        %s424 = scalar_lea.vmem [#allocation2], 18
        %s426 = sshll.u32 %s424, 4
        %s427 = int_to_ptr.vmem [resolvable:$true] %s426
        %429 = dma.hbm_to_vmem [thread:$0]  %s423, 32, %s427, [#allocation3], 128, 128, 1
        %s430 = sadd.s32 %s219, 11
        %s431 = sld [smem:[#allocation6 + %s430]]
        %p432 = scmp.gt.s32.totalorder %s431, 0
        %s433 = scalar_select %p432, %s431, 0
        %p434 = scmp.lt.s32.totalorder %s433, 511
        %s435 = scalar_select %p434, %s433, 511
        %s436 = sshrl.u32 %s435, 3
        %s437 = sand.u32 %s435, 7
        %s438 = smul.u32 %s436, 32
        %s439 = sadd.s32 %s437, %s438
        %s440 = sadd.s32 %s231, %s439
        %s441 = smul.addr %s440, 16
        %s442 = scalar_lea.hbm %s1, %s441
        %s443 = scalar_lea.vmem [#allocation2], 19
        %s445 = sshll.u32 %s443, 4
        %s446 = int_to_ptr.vmem [resolvable:$true] %s445
        %448 = dma.hbm_to_vmem [thread:$0]  %s442, 32, %s446, [#allocation3], 128, 128, 1
        %s449 = sadd.s32 %s219, 12
        %s450 = sld [smem:[#allocation6 + %s449]]
        %p451 = scmp.gt.s32.totalorder %s450, 0
        %s452 = scalar_select %p451, %s450, 0
        %p453 = scmp.lt.s32.totalorder %s452, 511
        %s454 = scalar_select %p453, %s452, 511
        %s455 = sshrl.u32 %s454, 3
        %s456 = sand.u32 %s454, 7
        %s457 = smul.u32 %s455, 32
        %s458 = sadd.s32 %s456, %s457
        %s459 = sadd.s32 %s231, %s458
        %s460 = smul.addr %s459, 16
        %s461 = scalar_lea.hbm %s1, %s460
        %s462 = scalar_lea.vmem [#allocation2], 20
        %s464 = sshll.u32 %s462, 4
        %s465 = int_to_ptr.vmem [resolvable:$true] %s464
        %467 = dma.hbm_to_vmem [thread:$0]  %s461, 32, %s465, [#allocation3], 128, 128, 1
        %s468 = sadd.s32 %s219, 13
        %s469 = sld [smem:[#allocation6 + %s468]]
        %p470 = scmp.gt.s32.totalorder %s469, 0
        %s471 = scalar_select %p470, %s469, 0
        %p472 = scmp.lt.s32.totalorder %s471, 511
        %s473 = scalar_select %p472, %s471, 511
        %s474 = sshrl.u32 %s473, 3
        %s475 = sand.u32 %s473, 7
        %s476 = smul.u32 %s474, 32
        %s477 = sadd.s32 %s475, %s476
        %s478 = sadd.s32 %s231, %s477
        %s479 = smul.addr %s478, 16
        %s480 = scalar_lea.hbm %s1, %s479
        %s481 = scalar_lea.vmem [#allocation2], 21
        %s483 = sshll.u32 %s481, 4
        %s484 = int_to_ptr.vmem [resolvable:$true] %s483
        %486 = dma.hbm_to_vmem [thread:$0]  %s480, 32, %s484, [#allocation3], 128, 128, 1
        %s487 = sadd.s32 %s219, 14
        %s488 = sld [smem:[#allocation6 + %s487]]
        %p489 = scmp.gt.s32.totalorder %s488, 0
        %s490 = scalar_select %p489, %s488, 0
        %p491 = scmp.lt.s32.totalorder %s490, 511
        %s492 = scalar_select %p491, %s490, 511
        %s493 = sshrl.u32 %s492, 3
        %s494 = sand.u32 %s492, 7
        %s495 = smul.u32 %s493, 32
        %s496 = sadd.s32 %s494, %s495
        %s497 = sadd.s32 %s231, %s496
        %s498 = smul.addr %s497, 16
        %s499 = scalar_lea.hbm %s1, %s498
        %s500 = scalar_lea.vmem [#allocation2], 22
        %s502 = sshll.u32 %s500, 4
        %s503 = int_to_ptr.vmem [resolvable:$true] %s502
        %505 = dma.hbm_to_vmem [thread:$0]  %s499, 32, %s503, [#allocation3], 128, 128, 1
        %s506 = sadd.s32 %s219, 15
        %s507 = sld [smem:[#allocation6 + %s506]]
        %p508 = scmp.gt.s32.totalorder %s507, 0
        %s509 = scalar_select %p508, %s507, 0
        %p510 = scmp.lt.s32.totalorder %s509, 511
        %s511 = scalar_select %p510, %s509, 511
        %s512 = sshrl.u32 %s511, 3
        %s513 = sand.u32 %s511, 7
        %s514 = smul.u32 %s512, 32
        %s515 = sadd.s32 %s513, %s514
        %s516 = sadd.s32 %s231, %s515
        %s517 = smul.addr %s516, 16
        %s518 = scalar_lea.hbm %s1, %s517
        %s519 = scalar_lea.vmem [#allocation2], 23
        %s521 = sshll.u32 %s519, 4
        %s522 = int_to_ptr.vmem [resolvable:$true] %s521
        %524 = dma.hbm_to_vmem [thread:$0]  %s518, 32, %s522, [#allocation3], 128, 128, 1
        %s525 = sadd.s32 %s219, 16
        %s526 = sld [smem:[#allocation6 + %s525]]
        %p527 = scmp.gt.s32.totalorder %s526, 0
        %s528 = scalar_select %p527, %s526, 0
        %p529 = scmp.lt.s32.totalorder %s528, 511
        %s530 = scalar_select %p529, %s528, 511
        %s531 = sshrl.u32 %s530, 3
        %s532 = sand.u32 %s530, 7
        %s533 = smul.u32 %s531, 32
        %s534 = sadd.s32 %s532, %s533
        %s535 = sadd.s32 %s231, %s534
        %s536 = smul.addr %s535, 16
        %s537 = scalar_lea.hbm %s1, %s536
        %s538 = scalar_lea.vmem [#allocation2], 32
        %s540 = sshll.u32 %s538, 4
        %s541 = int_to_ptr.vmem [resolvable:$true] %s540
        %543 = dma.hbm_to_vmem [thread:$0]  %s537, 32, %s541, [#allocation3], 128, 128, 1
        %s544 = sadd.s32 %s219, 17
        %s545 = sld [smem:[#allocation6 + %s544]]
        %p546 = scmp.gt.s32.totalorder %s545, 0
        %s547 = scalar_select %p546, %s545, 0
        %p548 = scmp.lt.s32.totalorder %s547, 511
        %s549 = scalar_select %p548, %s547, 511
        %s550 = sshrl.u32 %s549, 3
        %s551 = sand.u32 %s549, 7
        %s552 = smul.u32 %s550, 32
        %s553 = sadd.s32 %s551, %s552
        %s554 = sadd.s32 %s231, %s553
        %s555 = smul.addr %s554, 16
        %s556 = scalar_lea.hbm %s1, %s555
        %s557 = scalar_lea.vmem [#allocation2], 33
        %s559 = sshll.u32 %s557, 4
        %s560 = int_to_ptr.vmem [resolvable:$true] %s559
        %562 = dma.hbm_to_vmem [thread:$0]  %s556, 32, %s560, [#allocation3], 128, 128, 1
        %s563 = sadd.s32 %s219, 18
        %s564 = sld [smem:[#allocation6 + %s563]]
        %p565 = scmp.gt.s32.totalorder %s564, 0
        %s566 = scalar_select %p565, %s564, 0
        %p567 = scmp.lt.s32.totalorder %s566, 511
        %s568 = scalar_select %p567, %s566, 511
        %s569 = sshrl.u32 %s568, 3
        %s570 = sand.u32 %s568, 7
        %s571 = smul.u32 %s569, 32
        %s572 = sadd.s32 %s570, %s571
        %s573 = sadd.s32 %s231, %s572
        %s574 = smul.addr %s573, 16
        %s575 = scalar_lea.hbm %s1, %s574
        %s576 = scalar_lea.vmem [#allocation2], 34
        %s578 = sshll.u32 %s576, 4
        %s579 = int_to_ptr.vmem [resolvable:$true] %s578
        %581 = dma.hbm_to_vmem [thread:$0]  %s575, 32, %s579, [#allocation3], 128, 128, 1
        %s582 = sadd.s32 %s219, 19
        %s583 = sld [smem:[#allocation6 + %s582]]
        %p584 = scmp.gt.s32.totalorder %s583, 0
        %s585 = scalar_select %p584, %s583, 0
        %p586 = scmp.lt.s32.totalorder %s585, 511
        %s587 = scalar_select %p586, %s585, 511
        %s588 = sshrl.u32 %s587, 3
        %s589 = sand.u32 %s587, 7
        %s590 = smul.u32 %s588, 32
        %s591 = sadd.s32 %s589, %s590
        %s592 = sadd.s32 %s231, %s591
        %s593 = smul.addr %s592, 16
        %s594 = scalar_lea.hbm %s1, %s593
        %s595 = scalar_lea.vmem [#allocation2], 35
        %s597 = sshll.u32 %s595, 4
        %s598 = int_to_ptr.vmem [resolvable:$true] %s597
        %600 = dma.hbm_to_vmem [thread:$0]  %s594, 32, %s598, [#allocation3], 128, 128, 1
        %s601 = sadd.s32 %s219, 20
        %s602 = sld [smem:[#allocation6 + %s601]]
        %p603 = scmp.gt.s32.totalorder %s602, 0
        %s604 = scalar_select %p603, %s602, 0
        %p605 = scmp.lt.s32.totalorder %s604, 511
        %s606 = scalar_select %p605, %s604, 511
        %s607 = sshrl.u32 %s606, 3
        %s608 = sand.u32 %s606, 7
        %s609 = smul.u32 %s607, 32
        %s610 = sadd.s32 %s608, %s609
        %s611 = sadd.s32 %s231, %s610
        %s612 = smul.addr %s611, 16
        %s613 = scalar_lea.hbm %s1, %s612
        %s614 = scalar_lea.vmem [#allocation2], 36
        %s616 = sshll.u32 %s614, 4
        %s617 = int_to_ptr.vmem [resolvable:$true] %s616
        %619 = dma.hbm_to_vmem [thread:$0]  %s613, 32, %s617, [#allocation3], 128, 128, 1
        %s620 = sadd.s32 %s219, 21
        %s621 = sld [smem:[#allocation6 + %s620]]
        %p622 = scmp.gt.s32.totalorder %s621, 0
        %s623 = scalar_select %p622, %s621, 0
        %p624 = scmp.lt.s32.totalorder %s623, 511
        %s625 = scalar_select %p624, %s623, 511
        %s626 = sshrl.u32 %s625, 3
        %s627 = sand.u32 %s625, 7
        %s628 = smul.u32 %s626, 32
        %s629 = sadd.s32 %s627, %s628
        %s630 = sadd.s32 %s231, %s629
        %s631 = smul.addr %s630, 16
        %s632 = scalar_lea.hbm %s1, %s631
        %s633 = scalar_lea.vmem [#allocation2], 37
        %s635 = sshll.u32 %s633, 4
        %s636 = int_to_ptr.vmem [resolvable:$true] %s635
        %638 = dma.hbm_to_vmem [thread:$0]  %s632, 32, %s636, [#allocation3], 128, 128, 1
        %s639 = sadd.s32 %s219, 22
        %s640 = sld [smem:[#allocation6 + %s639]]
        %p641 = scmp.gt.s32.totalorder %s640, 0
        %s642 = scalar_select %p641, %s640, 0
        %p643 = scmp.lt.s32.totalorder %s642, 511
        %s644 = scalar_select %p643, %s642, 511
        %s645 = sshrl.u32 %s644, 3
        %s646 = sand.u32 %s644, 7
        %s647 = smul.u32 %s645, 32
        %s648 = sadd.s32 %s646, %s647
        %s649 = sadd.s32 %s231, %s648
        %s650 = smul.addr %s649, 16
        %s651 = scalar_lea.hbm %s1, %s650
        %s652 = scalar_lea.vmem [#allocation2], 38
        %s654 = sshll.u32 %s652, 4
        %s655 = int_to_ptr.vmem [resolvable:$true] %s654
        %657 = dma.hbm_to_vmem [thread:$0]  %s651, 32, %s655, [#allocation3], 128, 128, 1
        %s658 = sadd.s32 %s219, 23
        %s659 = sld [smem:[#allocation6 + %s658]]
        %p660 = scmp.gt.s32.totalorder %s659, 0
        %s661 = scalar_select %p660, %s659, 0
        %p662 = scmp.lt.s32.totalorder %s661, 511
        %s663 = scalar_select %p662, %s661, 511
        %s664 = sshrl.u32 %s663, 3
        %s665 = sand.u32 %s663, 7
        %s666 = smul.u32 %s664, 32
        %s667 = sadd.s32 %s665, %s666
        %s668 = sadd.s32 %s231, %s667
        %s669 = smul.addr %s668, 16
        %s670 = scalar_lea.hbm %s1, %s669
        %s671 = scalar_lea.vmem [#allocation2], 39
        %s673 = sshll.u32 %s671, 4
        %s674 = int_to_ptr.vmem [resolvable:$true] %s673
        %676 = dma.hbm_to_vmem [thread:$0]  %s670, 32, %s674, [#allocation3], 128, 128, 1
        %s677 = sadd.s32 %s219, 24
        %s678 = sld [smem:[#allocation6 + %s677]]
        %p679 = scmp.gt.s32.totalorder %s678, 0
        %s680 = scalar_select %p679, %s678, 0
        %p681 = scmp.lt.s32.totalorder %s680, 511
        %s682 = scalar_select %p681, %s680, 511
        %s683 = sshrl.u32 %s682, 3
        %s684 = sand.u32 %s682, 7
        %s685 = smul.u32 %s683, 32
        %s686 = sadd.s32 %s684, %s685
        %s687 = sadd.s32 %s231, %s686
        %s688 = smul.addr %s687, 16
        %s689 = scalar_lea.hbm %s1, %s688
        %s690 = scalar_lea.vmem [#allocation2], 48
        %s692 = sshll.u32 %s690, 4
        %s693 = int_to_ptr.vmem [resolvable:$true] %s692
        %695 = dma.hbm_to_vmem [thread:$0]  %s689, 32, %s693, [#allocation3], 128, 128, 1
        %s696 = sadd.s32 %s219, 25
        %s697 = sld [smem:[#allocation6 + %s696]]
        %p698 = scmp.gt.s32.totalorder %s697, 0
        %s699 = scalar_select %p698, %s697, 0
        %p700 = scmp.lt.s32.totalorder %s699, 511
        %s701 = scalar_select %p700, %s699, 511
        %s702 = sshrl.u32 %s701, 3
        %s703 = sand.u32 %s701, 7
        %s704 = smul.u32 %s702, 32
        %s705 = sadd.s32 %s703, %s704
        %s706 = sadd.s32 %s231, %s705
        %s707 = smul.addr %s706, 16
        %s708 = scalar_lea.hbm %s1, %s707
        %s709 = scalar_lea.vmem [#allocation2], 49
        %s711 = sshll.u32 %s709, 4
        %s712 = int_to_ptr.vmem [resolvable:$true] %s711
        %714 = dma.hbm_to_vmem [thread:$0]  %s708, 32, %s712, [#allocation3], 128, 128, 1
        %s715 = sadd.s32 %s219, 26
        %s716 = sld [smem:[#allocation6 + %s715]]
        %p717 = scmp.gt.s32.totalorder %s716, 0
        %s718 = scalar_select %p717, %s716, 0
        %p719 = scmp.lt.s32.totalorder %s718, 511
        %s720 = scalar_select %p719, %s718, 511
        %s721 = sshrl.u32 %s720, 3
        %s722 = sand.u32 %s720, 7
        %s723 = smul.u32 %s721, 32
        %s724 = sadd.s32 %s722, %s723
        %s725 = sadd.s32 %s231, %s724
        %s726 = smul.addr %s725, 16
        %s727 = scalar_lea.hbm %s1, %s726
        %s728 = scalar_lea.vmem [#allocation2], 50
        %s730 = sshll.u32 %s728, 4
        %s731 = int_to_ptr.vmem [resolvable:$true] %s730
        %733 = dma.hbm_to_vmem [thread:$0]  %s727, 32, %s731, [#allocation3], 128, 128, 1
        %s734 = sadd.s32 %s219, 27
        %s735 = sld [smem:[#allocation6 + %s734]]
        %p736 = scmp.gt.s32.totalorder %s735, 0
        %s737 = scalar_select %p736, %s735, 0
        %p738 = scmp.lt.s32.totalorder %s737, 511
        %s739 = scalar_select %p738, %s737, 511
        %s740 = sshrl.u32 %s739, 3
        %s741 = sand.u32 %s739, 7
        %s742 = smul.u32 %s740, 32
        %s743 = sadd.s32 %s741, %s742
        %s744 = sadd.s32 %s231, %s743
        %s745 = smul.addr %s744, 16
        %s746 = scalar_lea.hbm %s1, %s745
        %s747 = scalar_lea.vmem [#allocation2], 51
        %s749 = sshll.u32 %s747, 4
        %s750 = int_to_ptr.vmem [resolvable:$true] %s749
        %752 = dma.hbm_to_vmem [thread:$0]  %s746, 32, %s750, [#allocation3], 128, 128, 1
        %s753 = sadd.s32 %s219, 28
        %s754 = sld [smem:[#allocation6 + %s753]]
        %p755 = scmp.gt.s32.totalorder %s754, 0
        %s756 = scalar_select %p755, %s754, 0
        %p757 = scmp.lt.s32.totalorder %s756, 511
        %s758 = scalar_select %p757, %s756, 511
        %s759 = sshrl.u32 %s758, 3
        %s760 = sand.u32 %s758, 7
        %s761 = smul.u32 %s759, 32
        %s762 = sadd.s32 %s760, %s761
        %s763 = sadd.s32 %s231, %s762
        %s764 = smul.addr %s763, 16
        %s765 = scalar_lea.hbm %s1, %s764
        %s766 = scalar_lea.vmem [#allocation2], 52
        %s768 = sshll.u32 %s766, 4
        %s769 = int_to_ptr.vmem [resolvable:$true] %s768
        %771 = dma.hbm_to_vmem [thread:$0]  %s765, 32, %s769, [#allocation3], 128, 128, 1
        %s772 = sadd.s32 %s219, 29
        %s773 = sld [smem:[#allocation6 + %s772]]
        %p774 = scmp.gt.s32.totalorder %s773, 0
        %s775 = scalar_select %p774, %s773, 0
        %p776 = scmp.lt.s32.totalorder %s775, 511
        %s777 = scalar_select %p776, %s775, 511
        %s778 = sshrl.u32 %s777, 3
        %s779 = sand.u32 %s777, 7
        %s780 = smul.u32 %s778, 32
        %s781 = sadd.s32 %s779, %s780
        %s782 = sadd.s32 %s231, %s781
        %s783 = smul.addr %s782, 16
        %s784 = scalar_lea.hbm %s1, %s783
        %s785 = scalar_lea.vmem [#allocation2], 53
        %s787 = sshll.u32 %s785, 4
        %s788 = int_to_ptr.vmem [resolvable:$true] %s787
        %790 = dma.hbm_to_vmem [thread:$0]  %s784, 32, %s788, [#allocation3], 128, 128, 1
        %s791 = sadd.s32 %s219, 30
        %s792 = sld [smem:[#allocation6 + %s791]]
        %p793 = scmp.gt.s32.totalorder %s792, 0
        %s794 = scalar_select %p793, %s792, 0
        %p795 = scmp.lt.s32.totalorder %s794, 511
        %s796 = scalar_select %p795, %s794, 511
        %s797 = sshrl.u32 %s796, 3
        %s798 = sand.u32 %s796, 7
        %s799 = smul.u32 %s797, 32
        %s800 = sadd.s32 %s798, %s799
        %s801 = sadd.s32 %s231, %s800
        %s802 = smul.addr %s801, 16
        %s803 = scalar_lea.hbm %s1, %s802
        %s804 = scalar_lea.vmem [#allocation2], 54
        %s806 = sshll.u32 %s804, 4
        %s807 = int_to_ptr.vmem [resolvable:$true] %s806
        %809 = dma.hbm_to_vmem [thread:$0]  %s803, 32, %s807, [#allocation3], 128, 128, 1
        %s810 = sadd.s32 %s219, 31
        %s811 = sld [smem:[#allocation6 + %s810]]
        %p812 = scmp.gt.s32.totalorder %s811, 0
        %s813 = scalar_select %p812, %s811, 0
        %p814 = scmp.lt.s32.totalorder %s813, 511
        %s815 = scalar_select %p814, %s813, 511
        %s816 = sshrl.u32 %s815, 3
        %s817 = sand.u32 %s815, 7
        %s818 = smul.u32 %s816, 32
        %s819 = sadd.s32 %s817, %s818
        %s820 = sadd.s32 %s231, %s819
        %s821 = smul.addr %s820, 16
        %s822 = scalar_lea.hbm %s1, %s821
        %s823 = scalar_lea.vmem [#allocation2], 55
        %s825 = sshll.u32 %s823, 4
        %s826 = int_to_ptr.vmem [resolvable:$true] %s825
        %828 = dma.hbm_to_vmem [thread:$0]  %s822, 32, %s826, [#allocation3], 128, 128, 1
        %s829 = sadd.s32 %s219, 32
        %s830 = sld [smem:[#allocation6 + %s829]]
        %p831 = scmp.gt.s32.totalorder %s830, 0
        %s832 = scalar_select %p831, %s830, 0
        %p833 = scmp.lt.s32.totalorder %s832, 511
        %s834 = scalar_select %p833, %s832, 511
        %s835 = sshrl.u32 %s834, 3
        %s836 = sand.u32 %s834, 7
        %s837 = smul.u32 %s835, 32
        %s838 = sadd.s32 %s836, %s837
        %s839 = sadd.s32 %s231, %s838
        %s840 = smul.addr %s839, 16
        %s841 = scalar_lea.hbm %s1, %s840
        %s842 = scalar_lea.vmem [#allocation2], 64
        %s844 = sshll.u32 %s842, 4
        %s845 = int_to_ptr.vmem [resolvable:$true] %s844
        %847 = dma.hbm_to_vmem [thread:$0]  %s841, 32, %s845, [#allocation3], 128, 128, 1
        %s848 = sadd.s32 %s219, 33
        %s849 = sld [smem:[#allocation6 + %s848]]
        %p850 = scmp.gt.s32.totalorder %s849, 0
        %s851 = scalar_select %p850, %s849, 0
        %p852 = scmp.lt.s32.totalorder %s851, 511
        %s853 = scalar_select %p852, %s851, 511
        %s854 = sshrl.u32 %s853, 3
        %s855 = sand.u32 %s853, 7
        %s856 = smul.u32 %s854, 32
        %s857 = sadd.s32 %s855, %s856
        %s858 = sadd.s32 %s231, %s857
        %s859 = smul.addr %s858, 16
        %s860 = scalar_lea.hbm %s1, %s859
        %s861 = scalar_lea.vmem [#allocation2], 65
        %s863 = sshll.u32 %s861, 4
        %s864 = int_to_ptr.vmem [resolvable:$true] %s863
        %866 = dma.hbm_to_vmem [thread:$0]  %s860, 32, %s864, [#allocation3], 128, 128, 1
        %s867 = sadd.s32 %s219, 34
        %s868 = sld [smem:[#allocation6 + %s867]]
        %p869 = scmp.gt.s32.totalorder %s868, 0
        %s870 = scalar_select %p869, %s868, 0
        %p871 = scmp.lt.s32.totalorder %s870, 511
        %s872 = scalar_select %p871, %s870, 511
        %s873 = sshrl.u32 %s872, 3
        %s874 = sand.u32 %s872, 7
        %s875 = smul.u32 %s873, 32
        %s876 = sadd.s32 %s874, %s875
        %s877 = sadd.s32 %s231, %s876
        %s878 = smul.addr %s877, 16
        %s879 = scalar_lea.hbm %s1, %s878
        %s880 = scalar_lea.vmem [#allocation2], 66
        %s882 = sshll.u32 %s880, 4
        %s883 = int_to_ptr.vmem [resolvable:$true] %s882
        %885 = dma.hbm_to_vmem [thread:$0]  %s879, 32, %s883, [#allocation3], 128, 128, 1
        %s886 = sadd.s32 %s219, 35
        %s887 = sld [smem:[#allocation6 + %s886]]
        %p888 = scmp.gt.s32.totalorder %s887, 0
        %s889 = scalar_select %p888, %s887, 0
        %p890 = scmp.lt.s32.totalorder %s889, 511
        %s891 = scalar_select %p890, %s889, 511
        %s892 = sshrl.u32 %s891, 3
        %s893 = sand.u32 %s891, 7
        %s894 = smul.u32 %s892, 32
        %s895 = sadd.s32 %s893, %s894
        %s896 = sadd.s32 %s231, %s895
        %s897 = smul.addr %s896, 16
        %s898 = scalar_lea.hbm %s1, %s897
        %s899 = scalar_lea.vmem [#allocation2], 67
        %s901 = sshll.u32 %s899, 4
        %s902 = int_to_ptr.vmem [resolvable:$true] %s901
        %904 = dma.hbm_to_vmem [thread:$0]  %s898, 32, %s902, [#allocation3], 128, 128, 1
        %s905 = sadd.s32 %s219, 36
        %s906 = sld [smem:[#allocation6 + %s905]]
        %p907 = scmp.gt.s32.totalorder %s906, 0
        %s908 = scalar_select %p907, %s906, 0
        %p909 = scmp.lt.s32.totalorder %s908, 511
        %s910 = scalar_select %p909, %s908, 511
        %s911 = sshrl.u32 %s910, 3
        %s912 = sand.u32 %s910, 7
        %s913 = smul.u32 %s911, 32
        %s914 = sadd.s32 %s912, %s913
        %s915 = sadd.s32 %s231, %s914
        %s916 = smul.addr %s915, 16
        %s917 = scalar_lea.hbm %s1, %s916
        %s918 = scalar_lea.vmem [#allocation2], 68
        %s920 = sshll.u32 %s918, 4
        %s921 = int_to_ptr.vmem [resolvable:$true] %s920
        %923 = dma.hbm_to_vmem [thread:$0]  %s917, 32, %s921, [#allocation3], 128, 128, 1
        %s924 = sadd.s32 %s219, 37
        %s925 = sld [smem:[#allocation6 + %s924]]
        %p926 = scmp.gt.s32.totalorder %s925, 0
        %s927 = scalar_select %p926, %s925, 0
        %p928 = scmp.lt.s32.totalorder %s927, 511
        %s929 = scalar_select %p928, %s927, 511
        %s930 = sshrl.u32 %s929, 3
        %s931 = sand.u32 %s929, 7
        %s932 = smul.u32 %s930, 32
        %s933 = sadd.s32 %s931, %s932
        %s934 = sadd.s32 %s231, %s933
        %s935 = smul.addr %s934, 16
        %s936 = scalar_lea.hbm %s1, %s935
        %s937 = scalar_lea.vmem [#allocation2], 69
        %s939 = sshll.u32 %s937, 4
        %s940 = int_to_ptr.vmem [resolvable:$true] %s939
        %942 = dma.hbm_to_vmem [thread:$0]  %s936, 32, %s940, [#allocation3], 128, 128, 1
        %s943 = sadd.s32 %s219, 38
        %s944 = sld [smem:[#allocation6 + %s943]]
        %p945 = scmp.gt.s32.totalorder %s944, 0
        %s946 = scalar_select %p945, %s944, 0
        %p947 = scmp.lt.s32.totalorder %s946, 511
        %s948 = scalar_select %p947, %s946, 511
        %s949 = sshrl.u32 %s948, 3
        %s950 = sand.u32 %s948, 7
        %s951 = smul.u32 %s949, 32
        %s952 = sadd.s32 %s950, %s951
        %s953 = sadd.s32 %s231, %s952
        %s954 = smul.addr %s953, 16
        %s955 = scalar_lea.hbm %s1, %s954
        %s956 = scalar_lea.vmem [#allocation2], 70
        %s958 = sshll.u32 %s956, 4
        %s959 = int_to_ptr.vmem [resolvable:$true] %s958
        %961 = dma.hbm_to_vmem [thread:$0]  %s955, 32, %s959, [#allocation3], 128, 128, 1
        %s962 = sadd.s32 %s219, 39
        %s963 = sld [smem:[#allocation6 + %s962]]
        %p964 = scmp.gt.s32.totalorder %s963, 0
        %s965 = scalar_select %p964, %s963, 0
        %p966 = scmp.lt.s32.totalorder %s965, 511
        %s967 = scalar_select %p966, %s965, 511
        %s968 = sshrl.u32 %s967, 3
        %s969 = sand.u32 %s967, 7
        %s970 = smul.u32 %s968, 32
        %s971 = sadd.s32 %s969, %s970
        %s972 = sadd.s32 %s231, %s971
        %s973 = smul.addr %s972, 16
        %s974 = scalar_lea.hbm %s1, %s973
        %s975 = scalar_lea.vmem [#allocation2], 71
        %s977 = sshll.u32 %s975, 4
        %s978 = int_to_ptr.vmem [resolvable:$true] %s977
        %980 = dma.hbm_to_vmem [thread:$0]  %s974, 32, %s978, [#allocation3], 128, 128, 1
        %s981 = sadd.s32 %s219, 40
        %s982 = sld [smem:[#allocation6 + %s981]]
        %p983 = scmp.gt.s32.totalorder %s982, 0
        %s984 = scalar_select %p983, %s982, 0
        %p985 = scmp.lt.s32.totalorder %s984, 511
        %s986 = scalar_select %p985, %s984, 511
        %s987 = sshrl.u32 %s986, 3
        %s988 = sand.u32 %s986, 7
        %s989 = smul.u32 %s987, 32
        %s990 = sadd.s32 %s988, %s989
        %s991 = sadd.s32 %s231, %s990
        %s992 = smul.addr %s991, 16
        %s993 = scalar_lea.hbm %s1, %s992
        %s994 = scalar_lea.vmem [#allocation2], 80
        %s996 = sshll.u32 %s994, 4
        %s997 = int_to_ptr.vmem [resolvable:$true] %s996
        %999 = dma.hbm_to_vmem [thread:$0]  %s993, 32, %s997, [#allocation3], 128, 128, 1
        %s1000 = sadd.s32 %s219, 41
        %s1001 = sld [smem:[#allocation6 + %s1000]]
        %p1002 = scmp.gt.s32.totalorder %s1001, 0
        %s1003 = scalar_select %p1002, %s1001, 0
        %p1004 = scmp.lt.s32.totalorder %s1003, 511
        %s1005 = scalar_select %p1004, %s1003, 511
        %s1006 = sshrl.u32 %s1005, 3
        %s1007 = sand.u32 %s1005, 7
        %s1008 = smul.u32 %s1006, 32
        %s1009 = sadd.s32 %s1007, %s1008
        %s1010 = sadd.s32 %s231, %s1009
        %s1011 = smul.addr %s1010, 16
        %s1012 = scalar_lea.hbm %s1, %s1011
        %s1013 = scalar_lea.vmem [#allocation2], 81
        %s1015 = sshll.u32 %s1013, 4
        %s1016 = int_to_ptr.vmem [resolvable:$true] %s1015
        %1018 = dma.hbm_to_vmem [thread:$0]  %s1012, 32, %s1016, [#allocation3], 128, 128, 1
        %s1019 = sadd.s32 %s219, 42
        %s1020 = sld [smem:[#allocation6 + %s1019]]
        %p1021 = scmp.gt.s32.totalorder %s1020, 0
        %s1022 = scalar_select %p1021, %s1020, 0
        %p1023 = scmp.lt.s32.totalorder %s1022, 511
        %s1024 = scalar_select %p1023, %s1022, 511
        %s1025 = sshrl.u32 %s1024, 3
        %s1026 = sand.u32 %s1024, 7
        %s1027 = smul.u32 %s1025, 32
        %s1028 = sadd.s32 %s1026, %s1027
        %s1029 = sadd.s32 %s231, %s1028
        %s1030 = smul.addr %s1029, 16
        %s1031 = scalar_lea.hbm %s1, %s1030
        %s1032 = scalar_lea.vmem [#allocation2], 82
        %s1034 = sshll.u32 %s1032, 4
        %s1035 = int_to_ptr.vmem [resolvable:$true] %s1034
        %1037 = dma.hbm_to_vmem [thread:$0]  %s1031, 32, %s1035, [#allocation3], 128, 128, 1
        %s1038 = sadd.s32 %s219, 43
        %s1039 = sld [smem:[#allocation6 + %s1038]]
        %p1040 = scmp.gt.s32.totalorder %s1039, 0
        %s1041 = scalar_select %p1040, %s1039, 0
        %p1042 = scmp.lt.s32.totalorder %s1041, 511
        %s1043 = scalar_select %p1042, %s1041, 511
        %s1044 = sshrl.u32 %s1043, 3
        %s1045 = sand.u32 %s1043, 7
        %s1046 = smul.u32 %s1044, 32
        %s1047 = sadd.s32 %s1045, %s1046
        %s1048 = sadd.s32 %s231, %s1047
        %s1049 = smul.addr %s1048, 16
        %s1050 = scalar_lea.hbm %s1, %s1049
        %s1051 = scalar_lea.vmem [#allocation2], 83
        %s1053 = sshll.u32 %s1051, 4
        %s1054 = int_to_ptr.vmem [resolvable:$true] %s1053
        %1056 = dma.hbm_to_vmem [thread:$0]  %s1050, 32, %s1054, [#allocation3], 128, 128, 1
        %s1057 = sadd.s32 %s219, 44
        %s1058 = sld [smem:[#allocation6 + %s1057]]
        %p1059 = scmp.gt.s32.totalorder %s1058, 0
        %s1060 = scalar_select %p1059, %s1058, 0
        %p1061 = scmp.lt.s32.totalorder %s1060, 511
        %s1062 = scalar_select %p1061, %s1060, 511
        %s1063 = sshrl.u32 %s1062, 3
        %s1064 = sand.u32 %s1062, 7
        %s1065 = smul.u32 %s1063, 32
        %s1066 = sadd.s32 %s1064, %s1065
        %s1067 = sadd.s32 %s231, %s1066
        %s1068 = smul.addr %s1067, 16
        %s1069 = scalar_lea.hbm %s1, %s1068
        %s1070 = scalar_lea.vmem [#allocation2], 84
        %s1072 = sshll.u32 %s1070, 4
        %s1073 = int_to_ptr.vmem [resolvable:$true] %s1072
        %1075 = dma.hbm_to_vmem [thread:$0]  %s1069, 32, %s1073, [#allocation3], 128, 128, 1
        %s1076 = sadd.s32 %s219, 45
        %s1077 = sld [smem:[#allocation6 + %s1076]]
        %p1078 = scmp.gt.s32.totalorder %s1077, 0
        %s1079 = scalar_select %p1078, %s1077, 0
        %p1080 = scmp.lt.s32.totalorder %s1079, 511
        %s1081 = scalar_select %p1080, %s1079, 511
        %s1082 = sshrl.u32 %s1081, 3
        %s1083 = sand.u32 %s1081, 7
        %s1084 = smul.u32 %s1082, 32
        %s1085 = sadd.s32 %s1083, %s1084
        %s1086 = sadd.s32 %s231, %s1085
        %s1087 = smul.addr %s1086, 16
        %s1088 = scalar_lea.hbm %s1, %s1087
        %s1089 = scalar_lea.vmem [#allocation2], 85
        %s1091 = sshll.u32 %s1089, 4
        %s1092 = int_to_ptr.vmem [resolvable:$true] %s1091
        %1094 = dma.hbm_to_vmem [thread:$0]  %s1088, 32, %s1092, [#allocation3], 128, 128, 1
        %s1095 = sadd.s32 %s219, 46
        %s1096 = sld [smem:[#allocation6 + %s1095]]
        %p1097 = scmp.gt.s32.totalorder %s1096, 0
        %s1098 = scalar_select %p1097, %s1096, 0
        %p1099 = scmp.lt.s32.totalorder %s1098, 511
        %s1100 = scalar_select %p1099, %s1098, 511
        %s1101 = sshrl.u32 %s1100, 3
        %s1102 = sand.u32 %s1100, 7
        %s1103 = smul.u32 %s1101, 32
        %s1104 = sadd.s32 %s1102, %s1103
        %s1105 = sadd.s32 %s231, %s1104
        %s1106 = smul.addr %s1105, 16
        %s1107 = scalar_lea.hbm %s1, %s1106
        %s1108 = scalar_lea.vmem [#allocation2], 86
        %s1110 = sshll.u32 %s1108, 4
        %s1111 = int_to_ptr.vmem [resolvable:$true] %s1110
        %1113 = dma.hbm_to_vmem [thread:$0]  %s1107, 32, %s1111, [#allocation3], 128, 128, 1
        %s1114 = sadd.s32 %s219, 47
        %s1115 = sld [smem:[#allocation6 + %s1114]]
        %p1116 = scmp.gt.s32.totalorder %s1115, 0
        %s1117 = scalar_select %p1116, %s1115, 0
        %p1118 = scmp.lt.s32.totalorder %s1117, 511
        %s1119 = scalar_select %p1118, %s1117, 511
        %s1120 = sshrl.u32 %s1119, 3
        %s1121 = sand.u32 %s1119, 7
        %s1122 = smul.u32 %s1120, 32
        %s1123 = sadd.s32 %s1121, %s1122
        %s1124 = sadd.s32 %s231, %s1123
        %s1125 = smul.addr %s1124, 16
        %s1126 = scalar_lea.hbm %s1, %s1125
        %s1127 = scalar_lea.vmem [#allocation2], 87
        %s1129 = sshll.u32 %s1127, 4
        %s1130 = int_to_ptr.vmem [resolvable:$true] %s1129
        %1132 = dma.hbm_to_vmem [thread:$0]  %s1126, 32, %s1130, [#allocation3], 128, 128, 1
        %p1133 = scmp.eq.s32.totalorder %s30, 0
        // Predicated region
        $region41: #{tpu_custom_call.1} parent=31 // pred_check
          %p1134 = pneg %p1133
        $region42: #{tpu_custom_call.1} parent=31 // pred_check_branch
          %1136 = sbr.rel (%p1134) target = $region44
        $region43: #{tpu_custom_call.1} parent=31 // pred_region
          %1137 = vst [vmem:[#allocation4] sm:$0xff] 0.0
          %1138 = vst [vmem:[#allocation4 + $0x8] sm:$0xff] 0.0
          %1139 = vst [vmem:[#allocation4 + $0x10] sm:$0xff] 0.0
          %1140 = vst [vmem:[#allocation4 + $0x18] sm:$0xff] 0.0
          %1141 = vst [vmem:[#allocation4 + $0x20] sm:$0xff] 0.0
          %1142 = vst [vmem:[#allocation4 + $0x28] sm:$0xff] 0.0
        $region44: #{tpu_custom_call.1} parent=31 // pred_fallthru
          _
        %s1143 = smul.u32 1, 2
        %s1144 = sshll.u32 %s1143, 4
        %1145 = dma.done [#allocation3], %s1144
        %s1146 = sshll.u32 %s1143, 4
        %1147 = dma.done [#allocation3], %s1146
        %s1148 = sshll.u32 %s1143, 4
        %1149 = dma.done [#allocation3], %s1148
        %s1150 = sshll.u32 %s1143, 4
        %1151 = dma.done [#allocation3], %s1150
        %s1152 = sshll.u32 %s1143, 4
        %1153 = dma.done [#allocation3], %s1152
        %s1154 = sshll.u32 %s1143, 4
        %1155 = dma.done [#allocation3], %s1154
        %s1156 = sshll.u32 %s1143, 4
        %1157 = dma.done [#allocation3], %s1156
        %s1158 = sshll.u32 %s1143, 4
        %1159 = dma.done [#allocation3], %s1158
        %s1160 = sshll.u32 %s1143, 4
        %1161 = dma.done [#allocation3], %s1160
        %s1162 = sshll.u32 %s1143, 4
        %1163 = dma.done [#allocation3], %s1162
        %s1164 = sshll.u32 %s1143, 4
        %1165 = dma.done [#allocation3], %s1164
        %s1166 = sshll.u32 %s1143, 4
        %1167 = dma.done [#allocation3], %s1166
        %s1168 = sshll.u32 %s1143, 4
        %1169 = dma.done [#allocation3], %s1168
        %s1170 = sshll.u32 %s1143, 4
        %1171 = dma.done [#allocation3], %s1170
        %s1172 = sshll.u32 %s1143, 4
        %1173 = dma.done [#allocation3], %s1172
        %s1174 = sshll.u32 %s1143, 4
        %1175 = dma.done [#allocation3], %s1174
        %s1176 = sshll.u32 %s1143, 4
        %1177 = dma.done [#allocation3], %s1176
        %s1178 = sshll.u32 %s1143, 4
        %1179 = dma.done [#allocation3], %s1178
        %s1180 = sshll.u32 %s1143, 4
        %1181 = dma.done [#allocation3], %s1180
        %s1182 = sshll.u32 %s1143, 4
        %1183 = dma.done [#allocation3], %s1182
        %s1184 = sshll.u32 %s1143, 4
        %1185 = dma.done [#allocation3], %s1184
        %s1186 = sshll.u32 %s1143, 4
        %1187 = dma.done [#allocation3], %s1186
        %s1188 = sshll.u32 %s1143, 4
        %1189 = dma.done [#allocation3], %s1188
        %s1190 = sshll.u32 %s1143, 4
        %1191 = dma.done [#allocation3], %s1190
        %s1192 = sshll.u32 %s1143, 4
        %1193 = dma.done [#allocation3], %s1192
        %s1194 = sshll.u32 %s1143, 4
        %1195 = dma.done [#allocation3], %s1194
        %s1196 = sshll.u32 %s1143, 4
        %1197 = dma.done [#allocation3], %s1196
        %s1198 = sshll.u32 %s1143, 4
        %1199 = dma.done [#allocation3], %s1198
        %s1200 = sshll.u32 %s1143, 4
        %1201 = dma.done [#allocation3], %s1200
        %s1202 = sshll.u32 %s1143, 4
        %1203 = dma.done [#allocation3], %s1202
        %s1204 = sshll.u32 %s1143, 4
        %1205 = dma.done [#allocation3], %s1204
        %s1206 = sshll.u32 %s1143, 4
        %1207 = dma.done [#allocation3], %s1206
        %s1208 = sshll.u32 %s1143, 4
        %1209 = dma.done [#allocation3], %s1208
        %s1210 = sshll.u32 %s1143, 4
        %1211 = dma.done [#allocation3], %s1210
        %s1212 = sshll.u32 %s1143, 4
        %1213 = dma.done [#allocation3], %s1212
        %s1214 = sshll.u32 %s1143, 4
        %1215 = dma.done [#allocation3], %s1214
        %s1216 = sshll.u32 %s1143, 4
        %1217 = dma.done [#allocation3], %s1216
        %s1218 = sshll.u32 %s1143, 4
        %1219 = dma.done [#allocation3], %s1218
        %s1220 = sshll.u32 %s1143, 4
        %1221 = dma.done [#allocation3], %s1220
        %s1222 = sshll.u32 %s1143, 4
        %1223 = dma.done [#allocation3], %s1222
        %s1224 = sshll.u32 %s1143, 4
        %1225 = dma.done [#allocation3], %s1224
        %s1226 = sshll.u32 %s1143, 4
        %1227 = dma.done [#allocation3], %s1226
        %s1228 = sshll.u32 %s1143, 4
        %1229 = dma.done [#allocation3], %s1228
        %s1230 = sshll.u32 %s1143, 4
        %1231 = dma.done [#allocation3], %s1230
        %s1232 = sshll.u32 %s1143, 4
        %1233 = dma.done [#allocation3], %s1232
        %s1234 = sshll.u32 %s1143, 4
        %1235 = dma.done [#allocation3], %s1234
        %s1236 = sshll.u32 %s1143, 4
        %1237 = dma.done [#allocation3], %s1236
        %s1238 = sshll.u32 %s1143, 4
        %1239 = dma.done [#allocation3], %s1238
        %v1240 = vld [vmem:[#allocation4] sm:$0xff]
        %v1241 = vld [vmem:[#allocation4 + $0x8] sm:$0xff]
        %v1242 = vld [vmem:[#allocation4 + $0x10] sm:$0xff]
        %v1243 = vld [vmem:[#allocation4 + $0x18] sm:$0xff]
        %v1244 = vld [vmem:[#allocation4 + $0x20] sm:$0xff]
        %v1245 = vld [vmem:[#allocation4 + $0x28] sm:$0xff]
        %v1246 = vld [vmem:[#allocation2] sm:$0xff]
        %v1247 = vld [vmem:[#allocation2 + $0x8] sm:$0xff]
        %v1248 = vld [vmem:[#allocation2 + $0x10] sm:$0xff]
        %v1249 = vld [vmem:[#allocation2 + $0x18] sm:$0xff]
        %v1250 = vld [vmem:[#allocation2 + $0x20] sm:$0xff]
        %v1251 = vld [vmem:[#allocation2 + $0x28] sm:$0xff]
        %v1252 = vld [vmem:[#allocation2 + $0x30] sm:$0xff]
        %v1253 = vld [vmem:[#allocation2 + $0x38] sm:$0xff]
        %v1254 = vld [vmem:[#allocation2 + $0x40] sm:$0xff]
        %v1255 = vld [vmem:[#allocation2 + $0x48] sm:$0xff]
        %v1256 = vld [vmem:[#allocation2 + $0x50] sm:$0xff]
        %v1257 = vld [vmem:[#allocation2 + $0x58] sm:$0xff]
        %v1258 = vpack.c.bf16 %v1248, %v1246
        %v1259 = vpack.c.bf16 %v1249, %v1247
        %v1260 = vpack.c.bf16 %v1252, %v1250
        %v1261 = vpack.c.bf16 %v1253, %v1251
        %v1262 = vpack.c.bf16 %v1256, %v1254
        %v1263 = vpack.c.bf16 %v1257, %v1255
        %v1264 = vld [vmem:[%s193] sm:$0xff]
        %v1265 = vld [vmem:[%s193 + $0x8] sm:$0xff]
        %v1266 = vld [vmem:[%s193 + $0x10] sm:$0xff]
        %v1267 = vld [vmem:[%s193 + $0x18] sm:$0xff]
        %v1268 = vld [vmem:[%s193 + $0x20] sm:$0xff]
        %v1269 = vld [vmem:[%s193 + $0x28] sm:$0xff]
        %v1270 = vld [vmem:[%s193 + $0x30] sm:$0xff]
        %v1271 = vld [vmem:[%s193 + $0x38] sm:$0xff]
        %v1272 = vld [vmem:[%s193 + $0x40] sm:$0xff]
        %v1273 = vld [vmem:[%s193 + $0x48] sm:$0xff]
        %v1274 = vld [vmem:[%s193 + $0x50] sm:$0xff]
        %v1275 = vld [vmem:[%s193 + $0x58] sm:$0xff]
        %v1276 = vld [vmem:[%s193 + $0x60] sm:$0xff]
        %v1277 = vld [vmem:[%s193 + $0x68] sm:$0xff]
        %v1278 = vld [vmem:[%s193 + $0x70] sm:$0xff]
        %v1279 = vld [vmem:[%s193 + $0x78] sm:$0xff]
        %v1280 = vld [vmem:[%s193 + $0x80] sm:$0xff]
        %v1281 = vld [vmem:[%s193 + $0x88] sm:$0xff]
        %v1282 = vld [vmem:[%s193 + $0x90] sm:$0xff]
        %v1283 = vld [vmem:[%s193 + $0x98] sm:$0xff]
        %v1284 = vld [vmem:[%s193 + $0xa0] sm:$0xff]
        %v1285 = vld [vmem:[%s193 + $0xa8] sm:$0xff]
        %v1286 = vld [vmem:[%s193 + $0xb0] sm:$0xff]
        %v1287 = vld [vmem:[%s193 + $0xb8] sm:$0xff]
        %v1288 = vld [vmem:[%s193 + $0xc0] sm:$0xff]
        %v1289 = vld [vmem:[%s193 + $0xc8] sm:$0xff]
        %v1290 = vld [vmem:[%s193 + $0xd0] sm:$0xff]
        %v1291 = vld [vmem:[%s193 + $0xd8] sm:$0xff]
        %v1292 = vld [vmem:[%s193 + $0xe0] sm:$0xff]
        %v1293 = vld [vmem:[%s193 + $0xe8] sm:$0xff]
        %v1294 = vld [vmem:[%s193 + $0xf0] sm:$0xff]
        %v1295 = vld [vmem:[%s193 + $0xf8] sm:$0xff]
        %v1296 = vpack.c.bf16 %v1265, %v1264
        %v1297 = vpack.c.bf16 %v1267, %v1266
        %v1298 = vpack.c.bf16 %v1269, %v1268
        %v1299 = vpack.c.bf16 %v1271, %v1270
        %v1300 = vpack.c.bf16 %v1273, %v1272
        %v1301 = vpack.c.bf16 %v1275, %v1274
        %v1302 = vpack.c.bf16 %v1277, %v1276
        %v1303 = vpack.c.bf16 %v1279, %v1278
        %v1304 = vpack.c.bf16 %v1281, %v1280
        %v1305 = vpack.c.bf16 %v1283, %v1282
        %v1306 = vpack.c.bf16 %v1285, %v1284
        %v1307 = vpack.c.bf16 %v1287, %v1286
        %v1308 = vpack.c.bf16 %v1289, %v1288
        %v1309 = vpack.c.bf16 %v1291, %v1290
        %v1310 = vpack.c.bf16 %v1293, %v1292
        %v1311 = vpack.c.bf16 %v1295, %v1294
        %1312 = vmatprep.subr.bf16.mxu0 0
        %1313 = vmatpush1.bf16.msra.mxu0 %v1303
        %1314 = vmatprep.subr.bf16.mxu0 0
        %1315 = vmatpush1.bf16.msra.mxu0 %v1302
        %1316 = vmatprep.subr.bf16.mxu0 0
        %1317 = vmatpush1.bf16.msra.mxu0 %v1301
        %1318 = vmatprep.subr.bf16.mxu0 0
        %1319 = vmatpush1.bf16.msra.mxu0 %v1300
        %1320 = vmatprep.subr.bf16.mxu0 0
        %1321 = vmatpush1.bf16.msra.mxu0 %v1299
        %1322 = vmatprep.subr.bf16.mxu0 0
        %1323 = vmatpush1.bf16.msra.mxu0 %v1298
        %1324 = vmatprep.subr.bf16.mxu0 0
        %1325 = vmatpush1.bf16.msra.mxu0 %v1297
        %1326 = vmatprep.subr.bf16.mxu0 0
        %1327 = vmatpush1.bf16.msra.mxu0 %v1296
        %1328 = vmatprep.subr.bf16.mxu0 0
        %1329 = vmatpush2.bf16.msra.mxu0 %v1311
        %1330 = vmatprep.subr.bf16.mxu0 0
        %1331 = vmatpush2.bf16.msra.mxu0 %v1310
        %1332 = vmatprep.subr.bf16.mxu0 0
        %1333 = vmatpush2.bf16.msra.mxu0 %v1309
        %1334 = vmatprep.subr.bf16.mxu0 0
        %1335 = vmatpush2.bf16.msra.mxu0 %v1308
        %1336 = vmatprep.subr.bf16.mxu0 0
        %1337 = vmatpush2.bf16.msra.mxu0 %v1307
        %1338 = vmatprep.subr.bf16.mxu0 0
        %1339 = vmatpush2.bf16.msra.mxu0 %v1306
        %1340 = vmatprep.subr.bf16.mxu0 0
        %1341 = vmatpush2.bf16.msra.mxu0 %v1305
        %1342 = vmatprep.subr.bf16.mxu0 0
        %1343 = vmatpush2.bf16.msra.mxu0 %v1304
        %1344 = vmatprep.mubr.bf16.mxu0 %v1259
        %1345 = vmatmul.mubr.bf16.gmra.mxu0 %v1258
        %v1346 = vpop.f32.mrf.mxu0
        %v1347 = vadd.f32 0.0, %v1346
        %v1348 = vpop.f32.mrf.mxu0
        %v1349 = vpop.f32.mrf.mxu0
        %v1350 = vadd.f32 0.0, %v1349
        %v1351 = vpop.f32.mrf.mxu0
        %1352 = vmatprep.mubr.bf16.mxu0 %v1261
        %1353 = vmatmul.mubr.bf16.gmra.mxu0 %v1260
        %v1354 = vpop.f32.mrf.mxu0
        %v1355 = vadd.f32 0.0, %v1354
        %v1356 = vpop.f32.mrf.mxu0
        %v1357 = vpop.f32.mrf.mxu0
        %v1358 = vadd.f32 0.0, %v1357
        %v1359 = vpop.f32.mrf.mxu0
        %1360 = vmatprep.mubr.bf16.mxu0 %v1263
        %1361 = vmatmul.mubr.bf16.gmra.mxu0 %v1262
        %v1362 = vpop.f32.mrf.mxu0
        %v1363 = vadd.f32 0.0, %v1362
        %v1364 = vpop.f32.mrf.mxu0
        %v1365 = vpop.f32.mrf.mxu0
        %v1366 = vadd.f32 0.0, %v1365
        %v1367 = vpop.f32.mrf.mxu0
        %1368 = vdwg.mxu0
        %v1369 = vadd.f32 %v1240, %v1347
        %v1370 = vadd.f32 %v1241, %v1350
        %v1371 = vadd.f32 %v1242, %v1355
        %v1372 = vadd.f32 %v1243, %v1358
        %v1373 = vadd.f32 %v1244, %v1363
        %v1374 = vadd.f32 %v1245, %v1366
        %1375 = vst [vmem:[#allocation4] sm:$0xff] %v1369
        %1376 = vst [vmem:[#allocation4 + $0x8] sm:$0xff] %v1370
        %1377 = vst [vmem:[#allocation4 + $0x10] sm:$0xff] %v1371
        %1378 = vst [vmem:[#allocation4 + $0x18] sm:$0xff] %v1372
        %1379 = vst [vmem:[#allocation4 + $0x20] sm:$0xff] %v1373
        %1380 = vst [vmem:[#allocation4 + $0x28] sm:$0xff] %v1374
        %p1381 = scmp.eq.s32.totalorder %s30, 1
        // Predicated region
        $region45: #{tpu_custom_call.1} parent=31 // pred_check
          %p1382 = pneg %p1381
        $region46: #{tpu_custom_call.1} parent=31 // pred_check_branch
          %1384 = sbr.rel (%p1382) target = $region48
        $region47: #{tpu_custom_call.1} parent=31 // pred_region
          %v1385 = vld [vmem:[#allocation4] sm:$0xff]
          %v1386 = vld [vmem:[#allocation4 + $0x8] sm:$0xff]
          %v1387 = vld [vmem:[#allocation4 + $0x10] sm:$0xff]
          %v1388 = vld [vmem:[#allocation4 + $0x18] sm:$0xff]
          %v1389 = vld [vmem:[#allocation4 + $0x20] sm:$0xff]
          %v1390 = vld [vmem:[#allocation4 + $0x28] sm:$0xff]
          %v1391 = vld [vmem:[#allocation10] sm:$0xff]
          %v1392 = vld [vmem:[#allocation10 + $0x8] sm:$0xff]
          %v1393 = vld [vmem:[#allocation10 + $0x10] sm:$0xff]
          %v1394 = vld [vmem:[#allocation10 + $0x18] sm:$0xff]
          %v1395 = vld [vmem:[#allocation10 + $0x20] sm:$0xff]
          %v1396 = vld [vmem:[#allocation10 + $0x28] sm:$0xff]
          %v1397 = vld [vmem:[#allocation10 + $0x30] sm:$0xff]
          %v1398 = vld [vmem:[#allocation10 + $0x38] sm:$0xff]
          %v1399 = vld [vmem:[#allocation10 + $0x40] sm:$0xff]
          %v1400 = vld [vmem:[#allocation10 + $0x48] sm:$0xff]
          %v1401 = vld [vmem:[#allocation10 + $0x50] sm:$0xff]
          %v1402 = vld [vmem:[#allocation10 + $0x58] sm:$0xff]
          %v1403 = vld [vmem:[#allocation10 + $0x60] sm:$0xff]
          %v1404 = vld [vmem:[#allocation10 + $0x68] sm:$0xff]
          %v1405 = vld [vmem:[#allocation10 + $0x70] sm:$0xff]
          %v1406 = vld [vmem:[#allocation10 + $0x78] sm:$0xff]
          %v1407 = vld [vmem:[%s4] sm:$0x1]
          %v1409 = vlaneseq
          %v1410 = vshrl.u32 %v1409, 7
          %v1411 = vsub.s32 0, %v1410
          %v1412 = vrot.slane %v1407, %v1411
          %1414 = vmatprep.subr.mxu0 0.0
          %1415 = vmatpush1.msra.mxu0 %v1406
          %1416 = vmatprep.subr.mxu0 0.0
          %1417 = vmatpush1.msra.mxu0 %v1405
          %1418 = vmatprep.subr.mxu0 0.0
          %1419 = vmatpush1.msra.mxu0 %v1404
          %1420 = vmatprep.subr.mxu0 0.0
          %1421 = vmatpush1.msra.mxu0 %v1403
          %1422 = vmatprep.subr.mxu0 0.0
          %1423 = vmatpush1.msra.mxu0 %v1402
          %1424 = vmatprep.subr.mxu0 0.0
          %1425 = vmatpush1.msra.mxu0 %v1401
          %1426 = vmatprep.subr.mxu0 0.0
          %1427 = vmatpush1.msra.mxu0 %v1400
          %1428 = vmatprep.subr.mxu0 0.0
          %1429 = vmatpush1.msra.mxu0 %v1399
          %1430 = vmatprep.subr.mxu0 0.0
          %1431 = vmatpush1.msra.mxu0 %v1398
          %1432 = vmatprep.subr.mxu0 0.0
          %1433 = vmatpush1.msra.mxu0 %v1397
          %1434 = vmatprep.subr.mxu0 0.0
          %1435 = vmatpush1.msra.mxu0 %v1396
          %1436 = vmatprep.subr.mxu0 0.0
          %1437 = vmatpush1.msra.mxu0 %v1395
          %1438 = vmatprep.subr.mxu0 0.0
          %1439 = vmatpush1.msra.mxu0 %v1394
          %1440 = vmatprep.subr.mxu0 0.0
          %1441 = vmatpush1.msra.mxu0 %v1393
          %1442 = vmatprep.subr.mxu0 0.0
          %1443 = vmatpush1.msra.mxu0 %v1392
          %1444 = vmatprep.subr.mxu0 0.0
          %1445 = vmatpush1.msra.mxu0 %v1391
          %1446 = vmatprep.subr.mxu0 0.0
          %1447 = vmatpush2.msra.mxu0 0.0
          %1448 = vmatprep.subr.mxu0 0.0
          %1449 = vmatpush2.msra.mxu0 0.0
          %1450 = vmatprep.subr.mxu0 0.0
          %1451 = vmatpush2.msra.mxu0 0.0
          %1452 = vmatprep.subr.mxu0 0.0
          %1453 = vmatpush2.msra.mxu0 0.0
          %1454 = vmatprep.subr.mxu0 0.0
          %1455 = vmatpush2.msra.mxu0 0.0
          %1456 = vmatprep.subr.mxu0 0.0
          %1457 = vmatpush2.msra.mxu0 0.0
          %1458 = vmatprep.subr.mxu0 0.0
          %1459 = vmatpush2.msra.mxu0 0.0
          %1460 = vmatprep.subr.mxu0 0.0
          %1461 = vmatpush2.msra.mxu0 0.0
          %1462 = vmatprep.subr.mxu0 0.0
          %1463 = vmatpush2.msra.mxu0 0.0
          %1464 = vmatprep.subr.mxu0 0.0
          %1465 = vmatpush2.msra.mxu0 0.0
          %1466 = vmatprep.subr.mxu0 0.0
          %1467 = vmatpush2.msra.mxu0 0.0
          %1468 = vmatprep.subr.mxu0 0.0
          %1469 = vmatpush2.msra.mxu0 0.0
          %1470 = vmatprep.subr.mxu0 0.0
          %1471 = vmatpush2.msra.mxu0 0.0
          %1472 = vmatprep.subr.mxu0 0.0
          %1473 = vmatpush2.msra.mxu0 0.0
          %1474 = vmatprep.subr.mxu0 0.0
          %1475 = vmatpush2.msra.mxu0 0.0
          %1476 = vmatprep.subr.mxu0 0.0
          %1477 = vmatpush2.msra.mxu0 0.0
          %1478 = vmatprep.mubr.f32.mxu0 0.0
          %1479 = vmatmul.mubr.f32.gmra.mxu0 %v1385
          %v1480 = vpop.f32.mrf.mxu0
          %v1481 = vadd.f32 %v1412, %v1480
          %v1482 = vpop.f32.mrf.mxu0
          %1483 = vmatprep.mubr.f32.mxu0 0.0
          %1484 = vmatmul.mubr.f32.gmra.mxu0 %v1386
          %v1485 = vpop.f32.mrf.mxu0
          %v1486 = vadd.f32 %v1412, %v1485
          %v1487 = vpop.f32.mrf.mxu0
          %1488 = vmatprep.mubr.f32.mxu0 0.0
          %1489 = vmatmul.mubr.f32.gmra.mxu0 %v1387
          %v1490 = vpop.f32.mrf.mxu0
          %v1491 = vadd.f32 %v1412, %v1490
          %v1492 = vpop.f32.mrf.mxu0
          %1493 = vmatprep.mubr.f32.mxu0 0.0
          %1494 = vmatmul.mubr.f32.gmra.mxu0 %v1388
          %v1495 = vpop.f32.mrf.mxu0
          %v1496 = vadd.f32 %v1412, %v1495
          %v1497 = vpop.f32.mrf.mxu0
          %1498 = vmatprep.mubr.f32.mxu0 0.0
          %1499 = vmatmul.mubr.f32.gmra.mxu0 %v1389
          %v1500 = vpop.f32.mrf.mxu0
          %v1501 = vadd.f32 %v1412, %v1500
          %v1502 = vpop.f32.mrf.mxu0
          %1503 = vmatprep.mubr.f32.mxu0 0.0
          %1504 = vmatmul.mubr.f32.gmra.mxu0 %v1390
          %v1505 = vpop.f32.mrf.mxu0
          %v1506 = vadd.f32 %v1412, %v1505
          %v1507 = vpop.f32.mrf.mxu0
          %1508 = vdwg.mxu0
          %v1509 = vmax.f32 %v1481, 0.0
          %v1510 = vmax.f32 %v1486, 0.0
          %v1511 = vmax.f32 %v1491, 0.0
          %v1512 = vmax.f32 %v1496, 0.0
          %v1513 = vmax.f32 %v1501, 0.0
          %v1514 = vmax.f32 %v1506, 0.0
          %1515 = vst [vmem:[#allocation12] sm:$0xff] %v1509
          %1516 = vst [vmem:[#allocation12 + $0x8] sm:$0xff] %v1510
          %1517 = vst [vmem:[#allocation12 + $0x10] sm:$0xff] %v1511
          %1518 = vst [vmem:[#allocation12 + $0x18] sm:$0xff] %v1512
          %1519 = vst [vmem:[#allocation12 + $0x20] sm:$0xff] %v1513
          %1520 = vst [vmem:[#allocation12 + $0x28] sm:$0xff] %v1514
        $region48: #{tpu_custom_call.1} parent=31 // pred_fallthru
          _
        // Predicated region
        $region49: #{tpu_custom_call.1} parent=31 // pred_check
          %p1521 = pneg %p123
        $region50: #{tpu_custom_call.1} parent=31 // pred_check_branch
          %1523 = sbr.rel (%p1521) target = $region52
        $region51: #{tpu_custom_call.1} parent=31 // pred_region
          %s1524 = smul.u32 6, %s29
          %s1526 = ssub.s32 768, 768
          %1527 = vsyncadd [#allocation9], %s1526
          %s1528 = smul.addr %s1524, 128
          %s1529 = scalar_lea.hbm %s5, %s1528
          %s1530 = sshll.u32 [#allocation12], 4
          %s1531 = int_to_ptr.vmem [resolvable:$true] %s1530
          %1536 = dma.vmem_to_hbm [thread:$0]  %s1531, 768, %s1529, [#allocation9], 128, 128, 8
        $region52: #{tpu_custom_call.1} parent=31 // pred_fallthru
          _
        // Predicated region
        $region53: #{tpu_custom_call.1} parent=31 // pred_check
          %p1537 = pneg %p123
        $region54: #{tpu_custom_call.1} parent=31 // pred_check_branch
          %1539 = sbr.rel (%p1537) target = $region56
        $region55: #{tpu_custom_call.1} parent=31 // pred_region
          %1540 = dma.done [#allocation9], 768
        $region56: #{tpu_custom_call.1} parent=31 // pred_fallthru
          _
      $region32: #{tpu_custom_call.1} parent=5 // pred_fallthru
        _
      %p1541 = scmp.le.s32.totalorder 2, %s20
      // Predicated region
      $region57: #{tpu_custom_call.1} parent=5 // pred_check
        %p1542 = pneg %p1541
      $region58: #{tpu_custom_call.1} parent=5 // pred_check_branch
        %1544 = sbr.rel (%p1542) target = $region60
      $region59: #{tpu_custom_call.1} parent=5 // pred_region
        %s1545 = ssub.s32 %s20, 2
      $region60: #{tpu_custom_call.1} parent=5 // pred_fallthru
        _
    $region6: #{tpu_custom_call.1} parent=1 // loop_footer
      %s24 = sadd.s32 1, %s20
    $region7: #{tpu_custom_call.1} parent=1 // loop_footer_branch
      %19 = sbr.rel target = $region3
    $region8: #{tpu_custom_call.1} parent=1 // loop_exit
      _
    %1546 = vsyncpa [#allocation8], 1
    %s1547 = scalar_lea.sflag [#allocation8], 1
    %1548 = vsyncpa %s1547, 1
    %1549 = vsyncpa [#allocation11], 1
    %1550 = vsyncpa [#allocation9], 1
    %s1551 = scalar_lea.sflag [#allocation9], 1
    %1552 = vsyncpa %s1551, 1
  %1553 = vsyncmov [#allocation3]
  %s1554 = vpop.sfrf %1553
  %p1555 = scmp.eq.s32.totalorder %s1554, 0
  %p1556 = pneg %p1555
  %1558 = shalt.err (%p1556)

// kernel: tpu_custom_call.1
$region0: #{tpu_custom_call.1}
  #allocation0 [shape = 'u32[]', space=smem, size = 0x4, offset = 0x4, fixed_abs, tag = 'smem constant byte address 0x4 - core index']
  #allocation1 [shape = 'u32[144,128]{1,0:T(1,128)}', space=vmem, size = 0x12000, scoped, tag = 'internal scratch']
  #allocation2 [shape = 'f32[48,256]{1,0:T(8,128)}', space=vmem, size = 0xc000, scoped, tag = 'scratch operand']
  #allocation3 [shape = 's32[1]{0}', space=sflag, size = 0x4, scoped, tag = 'scratch operand']
  #allocation4 [shape = 'f32[48,128]{1,0:T(8,128)}', space=vmem, size = 0x6000, scoped, tag = 'scratch operand']
  #allocation5 [shape = 's32[1]{0}', space=sflag, size = 0x4, scoped, tag = 'scoped memory for tpu_custom_call.1']
  #allocation6 [shape = 'u8[512]{0}', space=smem, size = 0x200, scoped, tag = 'prefetched SMEM operand 0']
  #allocation13 [shape = 's32[]', space=sflag, size = 0x4, offset = 0, fixed_abs, tag = 'sflag constant byte address 0x0 - dummy sync flag']
  #allocation14 [shape = 's32[]', space=sflag, size = 0x4, offset = 0, fixed_abs, tag = 'sflag constant byte address 0x0 - dummy sync flag']
  #allocation15 [shape = 's32[]', space=sflag, size = 0x4, offset = 0, fixed_abs, tag = 'sflag constant byte address 0x0 - dummy sync flag']
  #allocation16 [shape = 's32[]', space=sflag, size = 0x4, offset = 0, fixed_abs, tag = 'sflag constant byte address 0x0 - dummy sync flag']
  #allocation17 [shape = 's32[]', space=sflag, size = 0x4, offset = 0, fixed_abs, tag = 'sflag constant byte address 0x0 - dummy sync flag']
  #allocation18 [shape = 's32[]', space=sflag, size = 0x4, offset = 0, fixed_abs, tag = 'sflag constant byte address 0x0 - dummy sync flag']
  #allocation19 [shape = 's32[]', space=sflag, size = 0x4, offset = 0, fixed_abs, tag = 'sflag constant byte address 0x0 - dummy sync flag']
  #allocation20 [shape = 's32[]', space=sflag, size = 0x4, offset = 0, fixed_abs, tag = 'sflag constant byte address 0x0 - dummy sync flag']
  #allocation21 [shape = 's32[]', space=sflag, size = 0x4, offset = 0, fixed_abs, tag = 'sflag constant byte address 0x0 - dummy sync flag']
  #allocation22 [shape = 's32[]', space=sflag, size = 0x4, offset = 0, fixed_abs, tag = 'sflag constant byte address 0x0 - dummy sync flag']
  #allocation23 [shape = 's32[]', space=sflag, size = 0x4, offset = 0, fixed_abs, tag = 'sflag constant byte address 0x0 - dummy sync flag']
  #allocation24 [shape = 's32[]', space=sflag, size = 0x4, offset = 0, fixed_abs, tag = 'sflag constant byte address 0x0 - dummy sync flag']
  #allocation25 [shape = 's32[]', space=sflag, size = 0x4, offset = 0, fixed_abs, tag = 'sflag constant byte address 0x0 - dummy sync flag']
  #allocation26 [shape = 's32[]', space=sflag, size = 0x4, offset = 0, fixed_abs, tag = 'sflag constant byte address 0x0 - dummy sync flag']
  #allocation27 [shape = 's32[]', space=sflag, size = 0x4, offset = 0, fixed_abs, tag = 'sflag constant byte address 0x0 - dummy sync flag']
  #allocation28 [shape = 's32[]', space=sflag, size = 0x4, offset = 0, fixed_abs, tag = 'sflag constant byte address 0x0 - dummy sync flag']
  #allocation29 [shape = 's32[]', space=sflag, size = 0x4, offset = 0, fixed_abs, tag = 'sflag constant byte address 0x0 - dummy sync flag']
  #allocation30 [shape = 's32[]', space=sflag, size = 0x4, offset = 0, fixed_abs, tag = 'sflag constant byte address 0x0 - dummy sync flag']
  #allocation31 [shape = 's32[]', space=sflag, size = 0x4, offset = 0, fixed_abs, tag = 'sflag constant byte address 0x0 - dummy sync flag']
  #allocation32 [shape = 's32[]', space=sflag, size = 0x4, offset = 0, fixed_abs, tag = 'sflag constant byte address 0x0 - dummy sync flag']
  #allocation33 [shape = 's32[]', space=sflag, size = 0x4, offset = 0, fixed_abs, tag = 'sflag constant byte address 0x0 - dummy sync flag']
  #allocation34 [shape = 's32[]', space=sflag, size = 0x4, offset = 0, fixed_abs, tag = 'sflag constant byte address 0x0 - dummy sync flag']
  #allocation35 [shape = 's32[]', space=sflag, size = 0x4, offset = 0, fixed_abs, tag = 'sflag constant byte address 0x0 - dummy sync flag']
  #allocation36 [shape = 's32[]', space=sflag, size = 0x4, offset = 0, fixed_abs, tag = 'sflag constant byte address 0x0 - dummy sync flag']
  #allocation37 [shape = 's32[]', space=sflag, size = 0x4, offset = 0, fixed_abs, tag = 'sflag constant byte address 0x0 - dummy sync flag']
  #allocation38 [shape = 's32[]', space=sflag, size = 0x4, offset = 0, fixed_abs, tag = 'sflag constant byte address 0x0 - dummy sync flag']
  #allocation39 [shape = 's32[]', space=sflag, size = 0x4, offset = 0, fixed_abs, tag = 'sflag constant byte address 0x0 - dummy sync flag']
  #allocation40 [shape = 's32[]', space=sflag, size = 0x4, offset = 0, fixed_abs, tag = 'sflag constant byte address 0x0 - dummy sync flag']
  #allocation41 [shape = 's32[]', space=sflag, size = 0x4, offset = 0, fixed_abs, tag = 'sflag constant byte address 0x0 - dummy sync flag']
  #allocation42 [shape = 's32[]', space=sflag, size = 0x4, offset = 0, fixed_abs, tag = 'sflag constant byte address 0x0 - dummy sync flag']
  #allocation43 [shape = 's32[]', space=sflag, size = 0x4, offset = 0, fixed_abs, tag = 'sflag constant byte address 0x0 - dummy sync flag']
  #allocation44 [shape = 's32[]', space=sflag, size = 0x4, offset = 0, fixed_abs, tag = 'sflag constant byte address 0x0 - dummy sync flag']
  #allocation45 [shape = 's32[]', space=sflag, size = 0x4, offset = 0, fixed_abs, tag = 'sflag constant byte address 0x0 - dummy sync flag']
  #allocation46 [shape = 's32[]', space=sflag, size = 0x4, offset = 0, fixed_abs, tag = 'sflag constant byte address 0x0 - dummy sync flag']
  #allocation47 [shape = 's32[]', space=sflag, size = 0x4, offset = 0, fixed_abs, tag = 'sflag constant byte address 0x0 - dummy sync flag']
  #allocation48 [shape = 's32[]', space=sflag, size = 0x4, offset = 0, fixed_abs, tag = 'sflag constant byte address 0x0 - dummy sync flag']
  #allocation49 [shape = 's32[]', space=sflag, size = 0x4, offset = 0, fixed_abs, tag = 'sflag constant byte address 0x0 - dummy sync flag']
  #allocation50 [shape = 's32[]', space=sflag, size = 0x4, offset = 0, fixed_abs, tag = 'sflag constant byte address 0x0 - dummy sync flag']
  #allocation51 [shape = 's32[]', space=sflag, size = 0x4, offset = 0, fixed_abs, tag = 'sflag constant byte address 0x0 - dummy sync flag']
  #allocation52 [shape = 's32[]', space=sflag, size = 0x4, offset = 0, fixed_abs, tag = 'sflag constant byte address 0x0 - dummy sync flag']
  #allocation53 [shape = 's32[]', space=sflag, size = 0x4, offset = 0, fixed_abs, tag = 'sflag constant byte address 0x0 - dummy sync flag']
  #allocation54 [shape = 's32[]', space=sflag, size = 0x4, offset = 0, fixed_abs, tag = 'sflag constant byte address 0x0 - dummy sync flag']
  #allocation55 [shape = 's32[]', space=sflag, size = 0x4, offset = 0, fixed_abs, tag = 'sflag constant byte address 0x0 - dummy sync flag']
  #allocation56 [shape = 's32[]', space=sflag, size = 0x4, offset = 0, fixed_abs, tag = 'sflag constant byte address 0x0 - dummy sync flag']
  #allocation57 [shape = 's32[]', space=sflag, size = 0x4, offset = 0, fixed_abs, tag = 'sflag constant byte address 0x0 - dummy sync flag']
  #allocation58 [shape = 's32[]', space=sflag, size = 0x4, offset = 0, fixed_abs, tag = 'sflag constant byte address 0x0 - dummy sync flag']
  #allocation59 [shape = 's32[]', space=sflag, size = 0x4, offset = 0, fixed_abs, tag = 'sflag constant byte address 0x0 - dummy sync flag']
  #allocation60 [shape = 's32[]', space=sflag, size = 0x4, offset = 0, fixed_abs, tag = 'sflag constant byte address 0x0 - dummy sync flag']
  %s0 = inlined_call_operand.hbm [shape: s32[48], index: 0, kind: input, shape index: {}]
  %s1 = inlined_call_operand.hbm [shape: f32[512,512], index: 1, kind: input, shape index: {}]
  %s2 = inlined_call_operand.hbm [shape: f32[512,128], index: 2, kind: input, shape index: {}]
  %s3 = inlined_call_operand.hbm [shape: f32[128,128], index: 3, kind: input, shape index: {}]
  %s4 = inlined_call_operand.vmem [shape: f32[1,128], index: 4, kind: input, shape index: {}]
  %s5 = inlined_call_operand.hbm [shape: f32[48,128], index: 5, kind: output, shape index: {}]
  %s6 = sld [smem:[#allocation0]]
  $region61: #{tpu_custom_call.1} parent=0
    _
  %s8 = ssub.s32 1, %s6
  %s9 = scalar_select 0, %s8, %s6
  %11 = dma.hbm_to_smem %s0, 16, [#allocation6], [#allocation5]
  %12 = dma.done [#allocation5], 16
  %13 = sfence
  $region1: #{tpu_custom_call.1} parent=0
    #allocation7 [shape = 'u8[262144]{0}', space=vmem, size = 0x40000, scoped, tag = 'input window, operand 2']
    #allocation8 [shape = 's32[2]{0}', space=sflag, size = 0x8, scoped, tag = 'scoped memory for tpu_custom_call.1']
    #allocation9 [shape = 's32[2]{0}', space=sflag, size = 0x8, scoped, tag = 'scoped memory for tpu_custom_call.1']
    #allocation10 [shape = 'u8[65536]{0}', space=vmem, size = 0x10000, scoped, tag = 'input window, operand 3, single buffered']
    #allocation11 [shape = 's32[1]{0}', space=sflag, size = 0x4, scoped, tag = 'scoped memory for tpu_custom_call.1']
    #allocation12 [shape = 'u8[24576]{0}', space=vmem, size = 0x6000, scoped, tag = 'output window, operand 0, single buffered']
    %14 = vsyncpa [#allocation8], 0
    %s15 = scalar_lea.sflag [#allocation8], 1
    %16 = vsyncpa %s15, 0
    %17 = vsyncpa [#allocation11], 0
    %18 = vsyncpa [#allocation9], 0
    loop: start=0, step=1, limit=4
    $region2: #{tpu_custom_call.1} parent=1 // loop_pre_header
      _
    $region3: #{tpu_custom_call.1} parent=1 // loop_header
      %s20 = sphi 0, %s24
      %p21 = scmp.ge.s32.totalorder %s20, 4
      %s27 = sphi 0, %s39
      %s28 = sphi 0, %s35
      %s29 = sphi 0, %s27
      %s30 = sphi 0, %s28
      %s31 = sphi 0, %s29
      %s32 = sphi 0, %s30
      %s42 = sphi 0, %s44
      %s45 = sphi 0, %s42
      %s46 = sphi 0, %s45
      %s62 = sphi 0, %s46
      %s66 = sphi 0, %s66
      %s68 = sphi 0, %s66
      %s69 = sphi 0, %s68
      %s83 = sphi 0, %s69
      %s87 = sphi 0, %s87
      %s89 = sphi 0, %s87
      %s90 = sphi 0, %s89
      %s104 = sphi 0, %s90
      %s110 = sphi 0, %s112
      %s113 = sphi 0, %s110
      %s114 = sphi 0, %s113
      %s130 = sphi 0, %s114
    $region4: #{tpu_custom_call.1} parent=1 // loop_header_branch
      %23 = sbr.rel (%p21) target = $region8
    $region5: #{tpu_custom_call.1} parent=1 // loop_body
      %s25 = ssub.s32 %s20, 1
      %s26 = ssub.s32 %s20, 2
      %s33 = sadd.s32 1, %s28
      %p34 = scmp.ge.s32.totalorder %s33, 2
      %s35 = scalar_select %p34, 0, %s33
      %s36 = sadd.s32 1, %s27
      %s37 = scalar_select %p34, %s36, %s27
      %p38 = scmp.ge.s32.totalorder %s37, 1
      %s39 = scalar_select %p38, 0, %s37
      %s40 = ssub.s32 %s28, %s35
      %p41 = scmp.eq.s32.totalorder %s40, 0
      %s43 = sadd.s32 %s42, 1
      %s44 = scalar_select %p41, %s42, %s43
      %p47 = pneg %p41
      %p48 = scmp.eq.s32.totalorder %s20, 1
      %p49 = por %p47, %p48
      %p50 = scmp.ne.s32.totalorder %s42, %s45
      %p51 = scmp.eq.s32.totalorder %s20, 0
      %p52 = por %p50, %p51
      %p53 = scmp.ne.s32.totalorder %s42, %s45
      %p54 = scmp.eq.s32.totalorder %s25, 1
      %p55 = por %p53, %p54
      %p56 = scmp.ne.s32.totalorder %s45, %s46
      %p57 = scmp.eq.s32.totalorder %s25, 0
      %p58 = por %p56, %p57
      %p59 = scmp.ne.s32.totalorder %s45, %s46
      %p60 = scmp.eq.s32.totalorder %s26, 1
      %p61 = por %p59, %p60
      %p63 = scmp.ne.s32.totalorder %s46, %s62
      %p64 = scmp.eq.s32.totalorder %s26, 0
      %p65 = por %p63, %p64
      %s67 = sadd.s32 %s66, 1
      %p70 = scmp.eq.s32.totalorder %s20, 1
      %p71 = scmp.ne.s32.totalorder %s66, %s68
      %p72 = scmp.eq.s32.totalorder %s20, 0
      %p73 = por %p71, %p72
      %p74 = scmp.ne.s32.totalorder %s66, %s68
      %p75 = scmp.eq.s32.totalorder %s25, 1
      %p76 = por %p74, %p75
      %p77 = scmp.ne.s32.totalorder %s68, %s69
      %p78 = scmp.eq.s32.totalorder %s25, 0
      %p79 = por %p77, %p78
      %p80 = scmp.ne.s32.totalorder %s68, %s69
      %p81 = scmp.eq.s32.totalorder %s26, 1
      %p82 = por %p80, %p81
      %p84 = scmp.ne.s32.totalorder %s69, %s83
      %p85 = scmp.eq.s32.totalorder %s26, 0
      %p86 = por %p84, %p85
      %s88 = sadd.s32 %s87, 1
      %p91 = scmp.eq.s32.totalorder %s20, 1
      %p92 = scmp.ne.s32.totalorder %s87, %s89
      %p93 = scmp.eq.s32.totalorder %s20, 0
      %p94 = por %p92, %p93
      %p95 = scmp.ne.s32.totalorder %s87, %s89
      %p96 = scmp.eq.s32.totalorder %s25, 1
      %p97 = por %p95, %p96
      %p98 = scmp.ne.s32.totalorder %s89, %s90
      %p99 = scmp.eq.s32.totalorder %s25, 0
      %p100 = por %p98, %p99
      %p101 = scmp.ne.s32.totalorder %s89, %s90
      %p102 = scmp.eq.s32.totalorder %s26, 1
      %p103 = por %p101, %p102
      %p105 = scmp.ne.s32.totalorder %s90, %s104
      %p106 = scmp.eq.s32.totalorder %s26, 0
      %p107 = por %p105, %p106
      %s108 = ssub.s32 %s27, %s39
      %p109 = scmp.eq.s32.totalorder %s108, 0
      %s111 = sadd.s32 %s110, 1
      %s112 = scalar_select %p109, %s110, %s111
      %p115 = pneg %p109
      %p116 = scmp.eq.s32.totalorder %s20, 1
      %p117 = por %p115, %p116
      %p118 = scmp.ne.s32.totalorder %s110, %s113
      %p119 = scmp.eq.s32.totalorder %s20, 0
      %p120 = por %p118, %p119
      %p121 = scmp.ne.s32.totalorder %s110, %s113
      %p122 = scmp.eq.s32.totalorder %s25, 1
      %p123 = por %p121, %p122
      %p124 = scmp.ne.s32.totalorder %s113, %s114
      %p125 = scmp.eq.s32.totalorder %s25, 0
      %p126 = por %p124, %p125
      %p127 = scmp.ne.s32.totalorder %s113, %s114
      %p128 = scmp.eq.s32.totalorder %s26, 1
      %p129 = por %p127, %p128
      %p131 = scmp.ne.s32.totalorder %s114, %s130
      %p132 = scmp.eq.s32.totalorder %s26, 0
      %p133 = por %p131, %p132
      %p134 = scmp.le.s32.totalorder 1, %s20
      %p135 = scmp.lt.s32.totalorder %s20, 3
      %p136 = pnand %p134, %p135
      %p137 = pneg %p136
      // Predicated region
      $region9: #{tpu_custom_call.1} parent=5 // pred_check
        _
      $region10: #{tpu_custom_call.1} parent=5 // pred_check_branch
        %139 = sbr.rel (%p136) target = $region12
      $region11: #{tpu_custom_call.1} parent=5 // pred_region
        %s140 = ssub.s32 %s20, 1
        // Predicated region
        $region13: #{tpu_custom_call.1} parent=11 // pred_check
          %p141 = pneg %p79
        $region14: #{tpu_custom_call.1} parent=11 // pred_check_branch
          %143 = sbr.rel (%p141) target = $region16
        $region15: #{tpu_custom_call.1} parent=11 // pred_region
          %s145 = ssub.s32 2048, 2048
          %146 = vsyncadd [#allocation11], %s145
          %s147 = sshll.u32 [#allocation10], 4
          %s148 = int_to_ptr.vmem [resolvable:$true] %s147
          %153 = dma.hbm_to_vmem [thread:$0]  %s3, 2048, %s148, [#allocation11], 128, 128, 8
        $region16: #{tpu_custom_call.1} parent=11 // pred_fallthru
          _
        // Predicated region
        $region17: #{tpu_custom_call.1} parent=11 // pred_check
          %p154 = pneg %p100
        $region18: #{tpu_custom_call.1} parent=11 // pred_check_branch
          %156 = sbr.rel (%p154) target = $region20
        $region19: #{tpu_custom_call.1} parent=11 // pred_region
          _
        $region20: #{tpu_custom_call.1} parent=11 // pred_fallthru
          _
      $region12: #{tpu_custom_call.1} parent=5 // pred_fallthru
        _
      %p157 = scmp.lt.s32.totalorder %s20, 2
      // Predicated region
      $region21: #{tpu_custom_call.1} parent=5 // pred_check
        %p158 = pneg %p157
      $region22: #{tpu_custom_call.1} parent=5 // pred_check_branch
        %160 = sbr.rel (%p158) target = $region24
      $region23: #{tpu_custom_call.1} parent=5 // pred_region
        // Predicated region
        $region25: #{tpu_custom_call.1} parent=23 // pred_check
          %p161 = pneg %p52
        $region26: #{tpu_custom_call.1} parent=23 // pred_check_branch
          %163 = sbr.rel (%p161) target = $region28
        $region27: #{tpu_custom_call.1} parent=23 // pred_region
          %s164 = sand.u32 %s42, 1
          %s165 = scalar_lea.sflag [#allocation8], %s164
          %s166 = sand.u32 %s42, 1
          %s167 = smul.addr %s166, 256
          %s168 = scalar_lea.vmem [#allocation7], %s167
          %s169 = smul.u32 32, %s28
          %s171 = ssub.s32 4096, 4096
          %172 = vsyncadd %s165, %s171
          %s173 = smul.addr %s169, 128
          %s174 = scalar_lea.hbm %s2, %s173
          %s175 = sshll.u32 %s168, 4
          %s176 = int_to_ptr.vmem [resolvable:$true] %s175
          %181 = dma.hbm_to_vmem [thread:$0]  %s174, 4096, %s176, %s165, 128, 128, 8
        $region28: #{tpu_custom_call.1} parent=23 // pred_fallthru
          _
      $region24: #{tpu_custom_call.1} parent=5 // pred_fallthru
        _
      %p182 = scmp.le.s32.totalorder 1, %s20
      %p183 = scmp.lt.s32.totalorder %s20, 3
      %p184 = pnand %p182, %p183
      %p185 = pneg %p184
      // Predicated region
      $region29: #{tpu_custom_call.1} parent=5 // pred_check
        _
      $region30: #{tpu_custom_call.1} parent=5 // pred_check_branch
        %187 = sbr.rel (%p184) target = $region32
      $region31: #{tpu_custom_call.1} parent=5 // pred_region
        %s188 = ssub.s32 %s20, 1
        %s189 = sand.u32 %s45, 1
        %s190 = scalar_lea.sflag [#allocation8], %s189
        %s191 = sand.u32 %s45, 1
        %s192 = smul.addr %s191, 256
        %s193 = scalar_lea.vmem [#allocation7], %s192
        // Predicated region
        $region33: #{tpu_custom_call.1} parent=31 // pred_check
          %p194 = pneg %p58
        $region34: #{tpu_custom_call.1} parent=31 // pred_check_branch
          %196 = sbr.rel (%p194) target = $region36
        $region35: #{tpu_custom_call.1} parent=31 // pred_region
          %197 = dma.done %s190, 4096
        $region36: #{tpu_custom_call.1} parent=31 // pred_fallthru
          _
        // Predicated region
        $region37: #{tpu_custom_call.1} parent=31 // pred_check
          %p198 = pneg %p79
        $region38: #{tpu_custom_call.1} parent=31 // pred_check_branch
          %200 = sbr.rel (%p198) target = $region40
        $region39: #{tpu_custom_call.1} parent=31 // pred_region
          %201 = dma.done [#allocation11], 2048
        $region40: #{tpu_custom_call.1} parent=31 // pred_fallthru
          _
        %s202 = sand.u32 %s45, 1
        %s203 = scalar_lea.sflag [#allocation8], %s202
        %s204 = sand.u32 %s45, 1
        %s205 = smul.addr %s204, 256
        %s206 = scalar_lea.vmem [#allocation7], %s205
        %p207 = pneg %p58
        %p208 = pneg %p55
        %p209 = pneg %p79
        %p210 = pneg %p76
        %p211 = pneg %p100
        %p212 = pneg %p97
        %p213 = pneg %p126
        %p214 = pneg %p123
        %s215 = smul.u32 32, %s30
        %s216 = smul.u32 6, %s29
        %s218 = smul.u32 %s30, 256
        %s219 = smul.u32 %s29, 48
        %s220 = sld [smem:[#allocation6 + %s219]]
        %p221 = scmp.gt.s32.totalorder %s220, 0
        %s222 = scalar_select %p221, %s220, 0
        %p223 = scmp.lt.s32.totalorder %s222, 511
        %s224 = scalar_select %p223, %s222, 511
        %s225 = sshrl.u32 %s224, 3
        %s226 = sand.u32 %s224, 7
        %s227 = smul.u32 %s225, 32
        %s228 = sadd.s32 %s226, %s227
        %s229 = sshra.s32 %s218, 7
        %s230 = sand.u32 %s218, 127
        %s231 = smul.u32 %s229, 8
        %s232 = sadd.s32 %s231, %s228
        %s233 = smul.addr %s232, 16
        %s234 = scalar_lea.hbm %s1, %s233
        %s236 = sshll.u32 [#allocation2], 4
        %s237 = int_to_ptr.vmem [resolvable:$true] %s236
        %239 = dma.hbm_to_vmem [thread:$0]  %s234, 32, %s237, [#allocation3], 128, 128, 1
        %s240 = sadd.s32 %s219, 1
        %s241 = sld [smem:[#allocation6 + %s240]]
        %p242 = scmp.gt.s32.totalorder %s241, 0
        %s243 = scalar_select %p242, %s241, 0
        %p244 = scmp.lt.s32.totalorder %s243, 511
        %s245 = scalar_select %p244, %s243, 511
        %s246 = sshrl.u32 %s245, 3
        %s247 = sand.u32 %s245, 7
        %s248 = smul.u32 %s246, 32
        %s249 = sadd.s32 %s247, %s248
        %s250 = sadd.s32 %s231, %s249
        %s251 = smul.addr %s250, 16
        %s252 = scalar_lea.hbm %s1, %s251
        %s253 = scalar_lea.vmem [#allocation2], 1
        %s255 = sshll.u32 %s253, 4
        %s256 = int_to_ptr.vmem [resolvable:$true] %s255
        %258 = dma.hbm_to_vmem [thread:$0]  %s252, 32, %s256, [#allocation3], 128, 128, 1
        %s259 = sadd.s32 %s219, 2
        %s260 = sld [smem:[#allocation6 + %s259]]
        %p261 = scmp.gt.s32.totalorder %s260, 0
        %s262 = scalar_select %p261, %s260, 0
        %p263 = scmp.lt.s32.totalorder %s262, 511
        %s264 = scalar_select %p263, %s262, 511
        %s265 = sshrl.u32 %s264, 3
        %s266 = sand.u32 %s264, 7
        %s267 = smul.u32 %s265, 32
        %s268 = sadd.s32 %s266, %s267
        %s269 = sadd.s32 %s231, %s268
        %s270 = smul.addr %s269, 16
        %s271 = scalar_lea.hbm %s1, %s270
        %s272 = scalar_lea.vmem [#allocation2], 2
        %s274 = sshll.u32 %s272, 4
        %s275 = int_to_ptr.vmem [resolvable:$true] %s274
        %277 = dma.hbm_to_vmem [thread:$0]  %s271, 32, %s275, [#allocation3], 128, 128, 1
        %s278 = sadd.s32 %s219, 3
        %s279 = sld [smem:[#allocation6 + %s278]]
        %p280 = scmp.gt.s32.totalorder %s279, 0
        %s281 = scalar_select %p280, %s279, 0
        %p282 = scmp.lt.s32.totalorder %s281, 511
        %s283 = scalar_select %p282, %s281, 511
        %s284 = sshrl.u32 %s283, 3
        %s285 = sand.u32 %s283, 7
        %s286 = smul.u32 %s284, 32
        %s287 = sadd.s32 %s285, %s286
        %s288 = sadd.s32 %s231, %s287
        %s289 = smul.addr %s288, 16
        %s290 = scalar_lea.hbm %s1, %s289
        %s291 = scalar_lea.vmem [#allocation2], 3
        %s293 = sshll.u32 %s291, 4
        %s294 = int_to_ptr.vmem [resolvable:$true] %s293
        %296 = dma.hbm_to_vmem [thread:$0]  %s290, 32, %s294, [#allocation3], 128, 128, 1
        %s297 = sadd.s32 %s219, 4
        %s298 = sld [smem:[#allocation6 + %s297]]
        %p299 = scmp.gt.s32.totalorder %s298, 0
        %s300 = scalar_select %p299, %s298, 0
        %p301 = scmp.lt.s32.totalorder %s300, 511
        %s302 = scalar_select %p301, %s300, 511
        %s303 = sshrl.u32 %s302, 3
        %s304 = sand.u32 %s302, 7
        %s305 = smul.u32 %s303, 32
        %s306 = sadd.s32 %s304, %s305
        %s307 = sadd.s32 %s231, %s306
        %s308 = smul.addr %s307, 16
        %s309 = scalar_lea.hbm %s1, %s308
        %s310 = scalar_lea.vmem [#allocation2], 4
        %s312 = sshll.u32 %s310, 4
        %s313 = int_to_ptr.vmem [resolvable:$true] %s312
        %315 = dma.hbm_to_vmem [thread:$0]  %s309, 32, %s313, [#allocation3], 128, 128, 1
        %s316 = sadd.s32 %s219, 5
        %s317 = sld [smem:[#allocation6 + %s316]]
        %p318 = scmp.gt.s32.totalorder %s317, 0
        %s319 = scalar_select %p318, %s317, 0
        %p320 = scmp.lt.s32.totalorder %s319, 511
        %s321 = scalar_select %p320, %s319, 511
        %s322 = sshrl.u32 %s321, 3
        %s323 = sand.u32 %s321, 7
        %s324 = smul.u32 %s322, 32
        %s325 = sadd.s32 %s323, %s324
        %s326 = sadd.s32 %s231, %s325
        %s327 = smul.addr %s326, 16
        %s328 = scalar_lea.hbm %s1, %s327
        %s329 = scalar_lea.vmem [#allocation2], 5
        %s331 = sshll.u32 %s329, 4
        %s332 = int_to_ptr.vmem [resolvable:$true] %s331
        %334 = dma.hbm_to_vmem [thread:$0]  %s328, 32, %s332, [#allocation3], 128, 128, 1
        %s335 = sadd.s32 %s219, 6
        %s336 = sld [smem:[#allocation6 + %s335]]
        %p337 = scmp.gt.s32.totalorder %s336, 0
        %s338 = scalar_select %p337, %s336, 0
        %p339 = scmp.lt.s32.totalorder %s338, 511
        %s340 = scalar_select %p339, %s338, 511
        %s341 = sshrl.u32 %s340, 3
        %s342 = sand.u32 %s340, 7
        %s343 = smul.u32 %s341, 32
        %s344 = sadd.s32 %s342, %s343
        %s345 = sadd.s32 %s231, %s344
        %s346 = smul.addr %s345, 16
        %s347 = scalar_lea.hbm %s1, %s346
        %s348 = scalar_lea.vmem [#allocation2], 6
        %s350 = sshll.u32 %s348, 4
        %s351 = int_to_ptr.vmem [resolvable:$true] %s350
        %353 = dma.hbm_to_vmem [thread:$0]  %s347, 32, %s351, [#allocation3], 128, 128, 1
        %s354 = sadd.s32 %s219, 7
        %s355 = sld [smem:[#allocation6 + %s354]]
        %p356 = scmp.gt.s32.totalorder %s355, 0
        %s357 = scalar_select %p356, %s355, 0
        %p358 = scmp.lt.s32.totalorder %s357, 511
        %s359 = scalar_select %p358, %s357, 511
        %s360 = sshrl.u32 %s359, 3
        %s361 = sand.u32 %s359, 7
        %s362 = smul.u32 %s360, 32
        %s363 = sadd.s32 %s361, %s362
        %s364 = sadd.s32 %s231, %s363
        %s365 = smul.addr %s364, 16
        %s366 = scalar_lea.hbm %s1, %s365
        %s367 = scalar_lea.vmem [#allocation2], 7
        %s369 = sshll.u32 %s367, 4
        %s370 = int_to_ptr.vmem [resolvable:$true] %s369
        %372 = dma.hbm_to_vmem [thread:$0]  %s366, 32, %s370, [#allocation3], 128, 128, 1
        %s373 = sadd.s32 %s219, 8
        %s374 = sld [smem:[#allocation6 + %s373]]
        %p375 = scmp.gt.s32.totalorder %s374, 0
        %s376 = scalar_select %p375, %s374, 0
        %p377 = scmp.lt.s32.totalorder %s376, 511
        %s378 = scalar_select %p377, %s376, 511
        %s379 = sshrl.u32 %s378, 3
        %s380 = sand.u32 %s378, 7
        %s381 = smul.u32 %s379, 32
        %s382 = sadd.s32 %s380, %s381
        %s383 = sadd.s32 %s231, %s382
        %s384 = smul.addr %s383, 16
        %s385 = scalar_lea.hbm %s1, %s384
        %s386 = scalar_lea.vmem [#allocation2], 16
        %s388 = sshll.u32 %s386, 4
        %s389 = int_to_ptr.vmem [resolvable:$true] %s388
        %391 = dma.hbm_to_vmem [thread:$0]  %s385, 32, %s389, [#allocation3], 128, 128, 1
        %s392 = sadd.s32 %s219, 9
        %s393 = sld [smem:[#allocation6 + %s392]]
        %p394 = scmp.gt.s32.totalorder %s393, 0
        %s395 = scalar_select %p394, %s393, 0
        %p396 = scmp.lt.s32.totalorder %s395, 511
        %s397 = scalar_select %p396, %s395, 511
        %s398 = sshrl.u32 %s397, 3
        %s399 = sand.u32 %s397, 7
        %s400 = smul.u32 %s398, 32
        %s401 = sadd.s32 %s399, %s400
        %s402 = sadd.s32 %s231, %s401
        %s403 = smul.addr %s402, 16
        %s404 = scalar_lea.hbm %s1, %s403
        %s405 = scalar_lea.vmem [#allocation2], 17
        %s407 = sshll.u32 %s405, 4
        %s408 = int_to_ptr.vmem [resolvable:$true] %s407
        %410 = dma.hbm_to_vmem [thread:$0]  %s404, 32, %s408, [#allocation3], 128, 128, 1
        %s411 = sadd.s32 %s219, 10
        %s412 = sld [smem:[#allocation6 + %s411]]
        %p413 = scmp.gt.s32.totalorder %s412, 0
        %s414 = scalar_select %p413, %s412, 0
        %p415 = scmp.lt.s32.totalorder %s414, 511
        %s416 = scalar_select %p415, %s414, 511
        %s417 = sshrl.u32 %s416, 3
        %s418 = sand.u32 %s416, 7
        %s419 = smul.u32 %s417, 32
        %s420 = sadd.s32 %s418, %s419
        %s421 = sadd.s32 %s231, %s420
        %s422 = smul.addr %s421, 16
        %s423 = scalar_lea.hbm %s1, %s422
        %s424 = scalar_lea.vmem [#allocation2], 18
        %s426 = sshll.u32 %s424, 4
        %s427 = int_to_ptr.vmem [resolvable:$true] %s426
        %429 = dma.hbm_to_vmem [thread:$0]  %s423, 32, %s427, [#allocation3], 128, 128, 1
        %s430 = sadd.s32 %s219, 11
        %s431 = sld [smem:[#allocation6 + %s430]]
        %p432 = scmp.gt.s32.totalorder %s431, 0
        %s433 = scalar_select %p432, %s431, 0
        %p434 = scmp.lt.s32.totalorder %s433, 511
        %s435 = scalar_select %p434, %s433, 511
        %s436 = sshrl.u32 %s435, 3
        %s437 = sand.u32 %s435, 7
        %s438 = smul.u32 %s436, 32
        %s439 = sadd.s32 %s437, %s438
        %s440 = sadd.s32 %s231, %s439
        %s441 = smul.addr %s440, 16
        %s442 = scalar_lea.hbm %s1, %s441
        %s443 = scalar_lea.vmem [#allocation2], 19
        %s445 = sshll.u32 %s443, 4
        %s446 = int_to_ptr.vmem [resolvable:$true] %s445
        %448 = dma.hbm_to_vmem [thread:$0]  %s442, 32, %s446, [#allocation3], 128, 128, 1
        %s449 = sadd.s32 %s219, 12
        %s450 = sld [smem:[#allocation6 + %s449]]
        %p451 = scmp.gt.s32.totalorder %s450, 0
        %s452 = scalar_select %p451, %s450, 0
        %p453 = scmp.lt.s32.totalorder %s452, 511
        %s454 = scalar_select %p453, %s452, 511
        %s455 = sshrl.u32 %s454, 3
        %s456 = sand.u32 %s454, 7
        %s457 = smul.u32 %s455, 32
        %s458 = sadd.s32 %s456, %s457
        %s459 = sadd.s32 %s231, %s458
        %s460 = smul.addr %s459, 16
        %s461 = scalar_lea.hbm %s1, %s460
        %s462 = scalar_lea.vmem [#allocation2], 20
        %s464 = sshll.u32 %s462, 4
        %s465 = int_to_ptr.vmem [resolvable:$true] %s464
        %467 = dma.hbm_to_vmem [thread:$0]  %s461, 32, %s465, [#allocation3], 128, 128, 1
        %s468 = sadd.s32 %s219, 13
        %s469 = sld [smem:[#allocation6 + %s468]]
        %p470 = scmp.gt.s32.totalorder %s469, 0
        %s471 = scalar_select %p470, %s469, 0
        %p472 = scmp.lt.s32.totalorder %s471, 511
        %s473 = scalar_select %p472, %s471, 511
        %s474 = sshrl.u32 %s473, 3
        %s475 = sand.u32 %s473, 7
        %s476 = smul.u32 %s474, 32
        %s477 = sadd.s32 %s475, %s476
        %s478 = sadd.s32 %s231, %s477
        %s479 = smul.addr %s478, 16
        %s480 = scalar_lea.hbm %s1, %s479
        %s481 = scalar_lea.vmem [#allocation2], 21
        %s483 = sshll.u32 %s481, 4
        %s484 = int_to_ptr.vmem [resolvable:$true] %s483
        %486 = dma.hbm_to_vmem [thread:$0]  %s480, 32, %s484, [#allocation3], 128, 128, 1
        %s487 = sadd.s32 %s219, 14
        %s488 = sld [smem:[#allocation6 + %s487]]
        %p489 = scmp.gt.s32.totalorder %s488, 0
        %s490 = scalar_select %p489, %s488, 0
        %p491 = scmp.lt.s32.totalorder %s490, 511
        %s492 = scalar_select %p491, %s490, 511
        %s493 = sshrl.u32 %s492, 3
        %s494 = sand.u32 %s492, 7
        %s495 = smul.u32 %s493, 32
        %s496 = sadd.s32 %s494, %s495
        %s497 = sadd.s32 %s231, %s496
        %s498 = smul.addr %s497, 16
        %s499 = scalar_lea.hbm %s1, %s498
        %s500 = scalar_lea.vmem [#allocation2], 22
        %s502 = sshll.u32 %s500, 4
        %s503 = int_to_ptr.vmem [resolvable:$true] %s502
        %505 = dma.hbm_to_vmem [thread:$0]  %s499, 32, %s503, [#allocation3], 128, 128, 1
        %s506 = sadd.s32 %s219, 15
        %s507 = sld [smem:[#allocation6 + %s506]]
        %p508 = scmp.gt.s32.totalorder %s507, 0
        %s509 = scalar_select %p508, %s507, 0
        %p510 = scmp.lt.s32.totalorder %s509, 511
        %s511 = scalar_select %p510, %s509, 511
        %s512 = sshrl.u32 %s511, 3
        %s513 = sand.u32 %s511, 7
        %s514 = smul.u32 %s512, 32
        %s515 = sadd.s32 %s513, %s514
        %s516 = sadd.s32 %s231, %s515
        %s517 = smul.addr %s516, 16
        %s518 = scalar_lea.hbm %s1, %s517
        %s519 = scalar_lea.vmem [#allocation2], 23
        %s521 = sshll.u32 %s519, 4
        %s522 = int_to_ptr.vmem [resolvable:$true] %s521
        %524 = dma.hbm_to_vmem [thread:$0]  %s518, 32, %s522, [#allocation3], 128, 128, 1
        %s525 = sadd.s32 %s219, 16
        %s526 = sld [smem:[#allocation6 + %s525]]
        %p527 = scmp.gt.s32.totalorder %s526, 0
        %s528 = scalar_select %p527, %s526, 0
        %p529 = scmp.lt.s32.totalorder %s528, 511
        %s530 = scalar_select %p529, %s528, 511
        %s531 = sshrl.u32 %s530, 3
        %s532 = sand.u32 %s530, 7
        %s533 = smul.u32 %s531, 32
        %s534 = sadd.s32 %s532, %s533
        %s535 = sadd.s32 %s231, %s534
        %s536 = smul.addr %s535, 16
        %s537 = scalar_lea.hbm %s1, %s536
        %s538 = scalar_lea.vmem [#allocation2], 32
        %s540 = sshll.u32 %s538, 4
        %s541 = int_to_ptr.vmem [resolvable:$true] %s540
        %543 = dma.hbm_to_vmem [thread:$0]  %s537, 32, %s541, [#allocation3], 128, 128, 1
        %s544 = sadd.s32 %s219, 17
        %s545 = sld [smem:[#allocation6 + %s544]]
        %p546 = scmp.gt.s32.totalorder %s545, 0
        %s547 = scalar_select %p546, %s545, 0
        %p548 = scmp.lt.s32.totalorder %s547, 511
        %s549 = scalar_select %p548, %s547, 511
        %s550 = sshrl.u32 %s549, 3
        %s551 = sand.u32 %s549, 7
        %s552 = smul.u32 %s550, 32
        %s553 = sadd.s32 %s551, %s552
        %s554 = sadd.s32 %s231, %s553
        %s555 = smul.addr %s554, 16
        %s556 = scalar_lea.hbm %s1, %s555
        %s557 = scalar_lea.vmem [#allocation2], 33
        %s559 = sshll.u32 %s557, 4
        %s560 = int_to_ptr.vmem [resolvable:$true] %s559
        %562 = dma.hbm_to_vmem [thread:$0]  %s556, 32, %s560, [#allocation3], 128, 128, 1
        %s563 = sadd.s32 %s219, 18
        %s564 = sld [smem:[#allocation6 + %s563]]
        %p565 = scmp.gt.s32.totalorder %s564, 0
        %s566 = scalar_select %p565, %s564, 0
        %p567 = scmp.lt.s32.totalorder %s566, 511
        %s568 = scalar_select %p567, %s566, 511
        %s569 = sshrl.u32 %s568, 3
        %s570 = sand.u32 %s568, 7
        %s571 = smul.u32 %s569, 32
        %s572 = sadd.s32 %s570, %s571
        %s573 = sadd.s32 %s231, %s572
        %s574 = smul.addr %s573, 16
        %s575 = scalar_lea.hbm %s1, %s574
        %s576 = scalar_lea.vmem [#allocation2], 34
        %s578 = sshll.u32 %s576, 4
        %s579 = int_to_ptr.vmem [resolvable:$true] %s578
        %581 = dma.hbm_to_vmem [thread:$0]  %s575, 32, %s579, [#allocation3], 128, 128, 1
        %s582 = sadd.s32 %s219, 19
        %s583 = sld [smem:[#allocation6 + %s582]]
        %p584 = scmp.gt.s32.totalorder %s583, 0
        %s585 = scalar_select %p584, %s583, 0
        %p586 = scmp.lt.s32.totalorder %s585, 511
        %s587 = scalar_select %p586, %s585, 511
        %s588 = sshrl.u32 %s587, 3
        %s589 = sand.u32 %s587, 7
        %s590 = smul.u32 %s588, 32
        %s591 = sadd.s32 %s589, %s590
        %s592 = sadd.s32 %s231, %s591
        %s593 = smul.addr %s592, 16
        %s594 = scalar_lea.hbm %s1, %s593
        %s595 = scalar_lea.vmem [#allocation2], 35
        %s597 = sshll.u32 %s595, 4
        %s598 = int_to_ptr.vmem [resolvable:$true] %s597
        %600 = dma.hbm_to_vmem [thread:$0]  %s594, 32, %s598, [#allocation3], 128, 128, 1
        %s601 = sadd.s32 %s219, 20
        %s602 = sld [smem:[#allocation6 + %s601]]
        %p603 = scmp.gt.s32.totalorder %s602, 0
        %s604 = scalar_select %p603, %s602, 0
        %p605 = scmp.lt.s32.totalorder %s604, 511
        %s606 = scalar_select %p605, %s604, 511
        %s607 = sshrl.u32 %s606, 3
        %s608 = sand.u32 %s606, 7
        %s609 = smul.u32 %s607, 32
        %s610 = sadd.s32 %s608, %s609
        %s611 = sadd.s32 %s231, %s610
        %s612 = smul.addr %s611, 16
        %s613 = scalar_lea.hbm %s1, %s612
        %s614 = scalar_lea.vmem [#allocation2], 36
        %s616 = sshll.u32 %s614, 4
        %s617 = int_to_ptr.vmem [resolvable:$true] %s616
        %619 = dma.hbm_to_vmem [thread:$0]  %s613, 32, %s617, [#allocation3], 128, 128, 1
        %s620 = sadd.s32 %s219, 21
        %s621 = sld [smem:[#allocation6 + %s620]]
        %p622 = scmp.gt.s32.totalorder %s621, 0
        %s623 = scalar_select %p622, %s621, 0
        %p624 = scmp.lt.s32.totalorder %s623, 511
        %s625 = scalar_select %p624, %s623, 511
        %s626 = sshrl.u32 %s625, 3
        %s627 = sand.u32 %s625, 7
        %s628 = smul.u32 %s626, 32
        %s629 = sadd.s32 %s627, %s628
        %s630 = sadd.s32 %s231, %s629
        %s631 = smul.addr %s630, 16
        %s632 = scalar_lea.hbm %s1, %s631
        %s633 = scalar_lea.vmem [#allocation2], 37
        %s635 = sshll.u32 %s633, 4
        %s636 = int_to_ptr.vmem [resolvable:$true] %s635
        %638 = dma.hbm_to_vmem [thread:$0]  %s632, 32, %s636, [#allocation3], 128, 128, 1
        %s639 = sadd.s32 %s219, 22
        %s640 = sld [smem:[#allocation6 + %s639]]
        %p641 = scmp.gt.s32.totalorder %s640, 0
        %s642 = scalar_select %p641, %s640, 0
        %p643 = scmp.lt.s32.totalorder %s642, 511
        %s644 = scalar_select %p643, %s642, 511
        %s645 = sshrl.u32 %s644, 3
        %s646 = sand.u32 %s644, 7
        %s647 = smul.u32 %s645, 32
        %s648 = sadd.s32 %s646, %s647
        %s649 = sadd.s32 %s231, %s648
        %s650 = smul.addr %s649, 16
        %s651 = scalar_lea.hbm %s1, %s650
        %s652 = scalar_lea.vmem [#allocation2], 38
        %s654 = sshll.u32 %s652, 4
        %s655 = int_to_ptr.vmem [resolvable:$true] %s654
        %657 = dma.hbm_to_vmem [thread:$0]  %s651, 32, %s655, [#allocation3], 128, 128, 1
        %s658 = sadd.s32 %s219, 23
        %s659 = sld [smem:[#allocation6 + %s658]]
        %p660 = scmp.gt.s32.totalorder %s659, 0
        %s661 = scalar_select %p660, %s659, 0
        %p662 = scmp.lt.s32.totalorder %s661, 511
        %s663 = scalar_select %p662, %s661, 511
        %s664 = sshrl.u32 %s663, 3
        %s665 = sand.u32 %s663, 7
        %s666 = smul.u32 %s664, 32
        %s667 = sadd.s32 %s665, %s666
        %s668 = sadd.s32 %s231, %s667
        %s669 = smul.addr %s668, 16
        %s670 = scalar_lea.hbm %s1, %s669
        %s671 = scalar_lea.vmem [#allocation2], 39
        %s673 = sshll.u32 %s671, 4
        %s674 = int_to_ptr.vmem [resolvable:$true] %s673
        %676 = dma.hbm_to_vmem [thread:$0]  %s670, 32, %s674, [#allocation3], 128, 128, 1
        %s677 = sadd.s32 %s219, 24
        %s678 = sld [smem:[#allocation6 + %s677]]
        %p679 = scmp.gt.s32.totalorder %s678, 0
        %s680 = scalar_select %p679, %s678, 0
        %p681 = scmp.lt.s32.totalorder %s680, 511
        %s682 = scalar_select %p681, %s680, 511
        %s683 = sshrl.u32 %s682, 3
        %s684 = sand.u32 %s682, 7
        %s685 = smul.u32 %s683, 32
        %s686 = sadd.s32 %s684, %s685
        %s687 = sadd.s32 %s231, %s686
        %s688 = smul.addr %s687, 16
        %s689 = scalar_lea.hbm %s1, %s688
        %s690 = scalar_lea.vmem [#allocation2], 48
        %s692 = sshll.u32 %s690, 4
        %s693 = int_to_ptr.vmem [resolvable:$true] %s692
        %695 = dma.hbm_to_vmem [thread:$0]  %s689, 32, %s693, [#allocation3], 128, 128, 1
        %s696 = sadd.s32 %s219, 25
        %s697 = sld [smem:[#allocation6 + %s696]]
        %p698 = scmp.gt.s32.totalorder %s697, 0
        %s699 = scalar_select %p698, %s697, 0
        %p700 = scmp.lt.s32.totalorder %s699, 511
        %s701 = scalar_select %p700, %s699, 511
        %s702 = sshrl.u32 %s701, 3
        %s703 = sand.u32 %s701, 7
        %s704 = smul.u32 %s702, 32
        %s705 = sadd.s32 %s703, %s704
        %s706 = sadd.s32 %s231, %s705
        %s707 = smul.addr %s706, 16
        %s708 = scalar_lea.hbm %s1, %s707
        %s709 = scalar_lea.vmem [#allocation2], 49
        %s711 = sshll.u32 %s709, 4
        %s712 = int_to_ptr.vmem [resolvable:$true] %s711
        %714 = dma.hbm_to_vmem [thread:$0]  %s708, 32, %s712, [#allocation3], 128, 128, 1
        %s715 = sadd.s32 %s219, 26
        %s716 = sld [smem:[#allocation6 + %s715]]
        %p717 = scmp.gt.s32.totalorder %s716, 0
        %s718 = scalar_select %p717, %s716, 0
        %p719 = scmp.lt.s32.totalorder %s718, 511
        %s720 = scalar_select %p719, %s718, 511
        %s721 = sshrl.u32 %s720, 3
        %s722 = sand.u32 %s720, 7
        %s723 = smul.u32 %s721, 32
        %s724 = sadd.s32 %s722, %s723
        %s725 = sadd.s32 %s231, %s724
        %s726 = smul.addr %s725, 16
        %s727 = scalar_lea.hbm %s1, %s726
        %s728 = scalar_lea.vmem [#allocation2], 50
        %s730 = sshll.u32 %s728, 4
        %s731 = int_to_ptr.vmem [resolvable:$true] %s730
        %733 = dma.hbm_to_vmem [thread:$0]  %s727, 32, %s731, [#allocation3], 128, 128, 1
        %s734 = sadd.s32 %s219, 27
        %s735 = sld [smem:[#allocation6 + %s734]]
        %p736 = scmp.gt.s32.totalorder %s735, 0
        %s737 = scalar_select %p736, %s735, 0
        %p738 = scmp.lt.s32.totalorder %s737, 511
        %s739 = scalar_select %p738, %s737, 511
        %s740 = sshrl.u32 %s739, 3
        %s741 = sand.u32 %s739, 7
        %s742 = smul.u32 %s740, 32
        %s743 = sadd.s32 %s741, %s742
        %s744 = sadd.s32 %s231, %s743
        %s745 = smul.addr %s744, 16
        %s746 = scalar_lea.hbm %s1, %s745
        %s747 = scalar_lea.vmem [#allocation2], 51
        %s749 = sshll.u32 %s747, 4
        %s750 = int_to_ptr.vmem [resolvable:$true] %s749
        %752 = dma.hbm_to_vmem [thread:$0]  %s746, 32, %s750, [#allocation3], 128, 128, 1
        %s753 = sadd.s32 %s219, 28
        %s754 = sld [smem:[#allocation6 + %s753]]
        %p755 = scmp.gt.s32.totalorder %s754, 0
        %s756 = scalar_select %p755, %s754, 0
        %p757 = scmp.lt.s32.totalorder %s756, 511
        %s758 = scalar_select %p757, %s756, 511
        %s759 = sshrl.u32 %s758, 3
        %s760 = sand.u32 %s758, 7
        %s761 = smul.u32 %s759, 32
        %s762 = sadd.s32 %s760, %s761
        %s763 = sadd.s32 %s231, %s762
        %s764 = smul.addr %s763, 16
        %s765 = scalar_lea.hbm %s1, %s764
        %s766 = scalar_lea.vmem [#allocation2], 52
        %s768 = sshll.u32 %s766, 4
        %s769 = int_to_ptr.vmem [resolvable:$true] %s768
        %771 = dma.hbm_to_vmem [thread:$0]  %s765, 32, %s769, [#allocation3], 128, 128, 1
        %s772 = sadd.s32 %s219, 29
        %s773 = sld [smem:[#allocation6 + %s772]]
        %p774 = scmp.gt.s32.totalorder %s773, 0
        %s775 = scalar_select %p774, %s773, 0
        %p776 = scmp.lt.s32.totalorder %s775, 511
        %s777 = scalar_select %p776, %s775, 511
        %s778 = sshrl.u32 %s777, 3
        %s779 = sand.u32 %s777, 7
        %s780 = smul.u32 %s778, 32
        %s781 = sadd.s32 %s779, %s780
        %s782 = sadd.s32 %s231, %s781
        %s783 = smul.addr %s782, 16
        %s784 = scalar_lea.hbm %s1, %s783
        %s785 = scalar_lea.vmem [#allocation2], 53
        %s787 = sshll.u32 %s785, 4
        %s788 = int_to_ptr.vmem [resolvable:$true] %s787
        %790 = dma.hbm_to_vmem [thread:$0]  %s784, 32, %s788, [#allocation3], 128, 128, 1
        %s791 = sadd.s32 %s219, 30
        %s792 = sld [smem:[#allocation6 + %s791]]
        %p793 = scmp.gt.s32.totalorder %s792, 0
        %s794 = scalar_select %p793, %s792, 0
        %p795 = scmp.lt.s32.totalorder %s794, 511
        %s796 = scalar_select %p795, %s794, 511
        %s797 = sshrl.u32 %s796, 3
        %s798 = sand.u32 %s796, 7
        %s799 = smul.u32 %s797, 32
        %s800 = sadd.s32 %s798, %s799
        %s801 = sadd.s32 %s231, %s800
        %s802 = smul.addr %s801, 16
        %s803 = scalar_lea.hbm %s1, %s802
        %s804 = scalar_lea.vmem [#allocation2], 54
        %s806 = sshll.u32 %s804, 4
        %s807 = int_to_ptr.vmem [resolvable:$true] %s806
        %809 = dma.hbm_to_vmem [thread:$0]  %s803, 32, %s807, [#allocation3], 128, 128, 1
        %s810 = sadd.s32 %s219, 31
        %s811 = sld [smem:[#allocation6 + %s810]]
        %p812 = scmp.gt.s32.totalorder %s811, 0
        %s813 = scalar_select %p812, %s811, 0
        %p814 = scmp.lt.s32.totalorder %s813, 511
        %s815 = scalar_select %p814, %s813, 511
        %s816 = sshrl.u32 %s815, 3
        %s817 = sand.u32 %s815, 7
        %s818 = smul.u32 %s816, 32
        %s819 = sadd.s32 %s817, %s818
        %s820 = sadd.s32 %s231, %s819
        %s821 = smul.addr %s820, 16
        %s822 = scalar_lea.hbm %s1, %s821
        %s823 = scalar_lea.vmem [#allocation2], 55
        %s825 = sshll.u32 %s823, 4
        %s826 = int_to_ptr.vmem [resolvable:$true] %s825
        %828 = dma.hbm_to_vmem [thread:$0]  %s822, 32, %s826, [#allocation3], 128, 128, 1
        %s829 = sadd.s32 %s219, 32
        %s830 = sld [smem:[#allocation6 + %s829]]
        %p831 = scmp.gt.s32.totalorder %s830, 0
        %s832 = scalar_select %p831, %s830, 0
        %p833 = scmp.lt.s32.totalorder %s832, 511
        %s834 = scalar_select %p833, %s832, 511
        %s835 = sshrl.u32 %s834, 3
        %s836 = sand.u32 %s834, 7
        %s837 = smul.u32 %s835, 32
        %s838 = sadd.s32 %s836, %s837
        %s839 = sadd.s32 %s231, %s838
        %s840 = smul.addr %s839, 16
        %s841 = scalar_lea.hbm %s1, %s840
        %s842 = scalar_lea.vmem [#allocation2], 64
        %s844 = sshll.u32 %s842, 4
        %s845 = int_to_ptr.vmem [resolvable:$true] %s844
        %847 = dma.hbm_to_vmem [thread:$0]  %s841, 32, %s845, [#allocation3], 128, 128, 1
        %s848 = sadd.s32 %s219, 33
        %s849 = sld [smem:[#allocation6 + %s848]]
        %p850 = scmp.gt.s32.totalorder %s849, 0
        %s851 = scalar_select %p850, %s849, 0
        %p852 = scmp.lt.s32.totalorder %s851, 511
        %s853 = scalar_select %p852, %s851, 511
        %s854 = sshrl.u32 %s853, 3
        %s855 = sand.u32 %s853, 7
        %s856 = smul.u32 %s854, 32
        %s857 = sadd.s32 %s855, %s856
        %s858 = sadd.s32 %s231, %s857
        %s859 = smul.addr %s858, 16
        %s860 = scalar_lea.hbm %s1, %s859
        %s861 = scalar_lea.vmem [#allocation2], 65
        %s863 = sshll.u32 %s861, 4
        %s864 = int_to_ptr.vmem [resolvable:$true] %s863
        %866 = dma.hbm_to_vmem [thread:$0]  %s860, 32, %s864, [#allocation3], 128, 128, 1
        %s867 = sadd.s32 %s219, 34
        %s868 = sld [smem:[#allocation6 + %s867]]
        %p869 = scmp.gt.s32.totalorder %s868, 0
        %s870 = scalar_select %p869, %s868, 0
        %p871 = scmp.lt.s32.totalorder %s870, 511
        %s872 = scalar_select %p871, %s870, 511
        %s873 = sshrl.u32 %s872, 3
        %s874 = sand.u32 %s872, 7
        %s875 = smul.u32 %s873, 32
        %s876 = sadd.s32 %s874, %s875
        %s877 = sadd.s32 %s231, %s876
        %s878 = smul.addr %s877, 16
        %s879 = scalar_lea.hbm %s1, %s878
        %s880 = scalar_lea.vmem [#allocation2], 66
        %s882 = sshll.u32 %s880, 4
        %s883 = int_to_ptr.vmem [resolvable:$true] %s882
        %885 = dma.hbm_to_vmem [thread:$0]  %s879, 32, %s883, [#allocation3], 128, 128, 1
        %s886 = sadd.s32 %s219, 35
        %s887 = sld [smem:[#allocation6 + %s886]]
        %p888 = scmp.gt.s32.totalorder %s887, 0
        %s889 = scalar_select %p888, %s887, 0
        %p890 = scmp.lt.s32.totalorder %s889, 511
        %s891 = scalar_select %p890, %s889, 511
        %s892 = sshrl.u32 %s891, 3
        %s893 = sand.u32 %s891, 7
        %s894 = smul.u32 %s892, 32
        %s895 = sadd.s32 %s893, %s894
        %s896 = sadd.s32 %s231, %s895
        %s897 = smul.addr %s896, 16
        %s898 = scalar_lea.hbm %s1, %s897
        %s899 = scalar_lea.vmem [#allocation2], 67
        %s901 = sshll.u32 %s899, 4
        %s902 = int_to_ptr.vmem [resolvable:$true] %s901
        %904 = dma.hbm_to_vmem [thread:$0]  %s898, 32, %s902, [#allocation3], 128, 128, 1
        %s905 = sadd.s32 %s219, 36
        %s906 = sld [smem:[#allocation6 + %s905]]
        %p907 = scmp.gt.s32.totalorder %s906, 0
        %s908 = scalar_select %p907, %s906, 0
        %p909 = scmp.lt.s32.totalorder %s908, 511
        %s910 = scalar_select %p909, %s908, 511
        %s911 = sshrl.u32 %s910, 3
        %s912 = sand.u32 %s910, 7
        %s913 = smul.u32 %s911, 32
        %s914 = sadd.s32 %s912, %s913
        %s915 = sadd.s32 %s231, %s914
        %s916 = smul.addr %s915, 16
        %s917 = scalar_lea.hbm %s1, %s916
        %s918 = scalar_lea.vmem [#allocation2], 68
        %s920 = sshll.u32 %s918, 4
        %s921 = int_to_ptr.vmem [resolvable:$true] %s920
        %923 = dma.hbm_to_vmem [thread:$0]  %s917, 32, %s921, [#allocation3], 128, 128, 1
        %s924 = sadd.s32 %s219, 37
        %s925 = sld [smem:[#allocation6 + %s924]]
        %p926 = scmp.gt.s32.totalorder %s925, 0
        %s927 = scalar_select %p926, %s925, 0
        %p928 = scmp.lt.s32.totalorder %s927, 511
        %s929 = scalar_select %p928, %s927, 511
        %s930 = sshrl.u32 %s929, 3
        %s931 = sand.u32 %s929, 7
        %s932 = smul.u32 %s930, 32
        %s933 = sadd.s32 %s931, %s932
        %s934 = sadd.s32 %s231, %s933
        %s935 = smul.addr %s934, 16
        %s936 = scalar_lea.hbm %s1, %s935
        %s937 = scalar_lea.vmem [#allocation2], 69
        %s939 = sshll.u32 %s937, 4
        %s940 = int_to_ptr.vmem [resolvable:$true] %s939
        %942 = dma.hbm_to_vmem [thread:$0]  %s936, 32, %s940, [#allocation3], 128, 128, 1
        %s943 = sadd.s32 %s219, 38
        %s944 = sld [smem:[#allocation6 + %s943]]
        %p945 = scmp.gt.s32.totalorder %s944, 0
        %s946 = scalar_select %p945, %s944, 0
        %p947 = scmp.lt.s32.totalorder %s946, 511
        %s948 = scalar_select %p947, %s946, 511
        %s949 = sshrl.u32 %s948, 3
        %s950 = sand.u32 %s948, 7
        %s951 = smul.u32 %s949, 32
        %s952 = sadd.s32 %s950, %s951
        %s953 = sadd.s32 %s231, %s952
        %s954 = smul.addr %s953, 16
        %s955 = scalar_lea.hbm %s1, %s954
        %s956 = scalar_lea.vmem [#allocation2], 70
        %s958 = sshll.u32 %s956, 4
        %s959 = int_to_ptr.vmem [resolvable:$true] %s958
        %961 = dma.hbm_to_vmem [thread:$0]  %s955, 32, %s959, [#allocation3], 128, 128, 1
        %s962 = sadd.s32 %s219, 39
        %s963 = sld [smem:[#allocation6 + %s962]]
        %p964 = scmp.gt.s32.totalorder %s963, 0
        %s965 = scalar_select %p964, %s963, 0
        %p966 = scmp.lt.s32.totalorder %s965, 511
        %s967 = scalar_select %p966, %s965, 511
        %s968 = sshrl.u32 %s967, 3
        %s969 = sand.u32 %s967, 7
        %s970 = smul.u32 %s968, 32
        %s971 = sadd.s32 %s969, %s970
        %s972 = sadd.s32 %s231, %s971
        %s973 = smul.addr %s972, 16
        %s974 = scalar_lea.hbm %s1, %s973
        %s975 = scalar_lea.vmem [#allocation2], 71
        %s977 = sshll.u32 %s975, 4
        %s978 = int_to_ptr.vmem [resolvable:$true] %s977
        %980 = dma.hbm_to_vmem [thread:$0]  %s974, 32, %s978, [#allocation3], 128, 128, 1
        %s981 = sadd.s32 %s219, 40
        %s982 = sld [smem:[#allocation6 + %s981]]
        %p983 = scmp.gt.s32.totalorder %s982, 0
        %s984 = scalar_select %p983, %s982, 0
        %p985 = scmp.lt.s32.totalorder %s984, 511
        %s986 = scalar_select %p985, %s984, 511
        %s987 = sshrl.u32 %s986, 3
        %s988 = sand.u32 %s986, 7
        %s989 = smul.u32 %s987, 32
        %s990 = sadd.s32 %s988, %s989
        %s991 = sadd.s32 %s231, %s990
        %s992 = smul.addr %s991, 16
        %s993 = scalar_lea.hbm %s1, %s992
        %s994 = scalar_lea.vmem [#allocation2], 80
        %s996 = sshll.u32 %s994, 4
        %s997 = int_to_ptr.vmem [resolvable:$true] %s996
        %999 = dma.hbm_to_vmem [thread:$0]  %s993, 32, %s997, [#allocation3], 128, 128, 1
        %s1000 = sadd.s32 %s219, 41
        %s1001 = sld [smem:[#allocation6 + %s1000]]
        %p1002 = scmp.gt.s32.totalorder %s1001, 0
        %s1003 = scalar_select %p1002, %s1001, 0
        %p1004 = scmp.lt.s32.totalorder %s1003, 511
        %s1005 = scalar_select %p1004, %s1003, 511
        %s1006 = sshrl.u32 %s1005, 3
        %s1007 = sand.u32 %s1005, 7
        %s1008 = smul.u32 %s1006, 32
        %s1009 = sadd.s32 %s1007, %s1008
        %s1010 = sadd.s32 %s231, %s1009
        %s1011 = smul.addr %s1010, 16
        %s1012 = scalar_lea.hbm %s1, %s1011
        %s1013 = scalar_lea.vmem [#allocation2], 81
        %s1015 = sshll.u32 %s1013, 4
        %s1016 = int_to_ptr.vmem [resolvable:$true] %s1015
        %1018 = dma.hbm_to_vmem [thread:$0]  %s1012, 32, %s1016, [#allocation3], 128, 128, 1
        %s1019 = sadd.s32 %s219, 42
        %s1020 = sld [smem:[#allocation6 + %s1019]]
        %p1021 = scmp.gt.s32.totalorder %s1020, 0
        %s1022 = scalar_select %p1021, %s1020, 0
        %p1023 = scmp.lt.s32.totalorder %s1022, 511
        %s1024 = scalar_select %p1023, %s1022, 511
        %s1025 = sshrl.u32 %s1024, 3
        %s1026 = sand.u32 %s1024, 7
        %s1027 = smul.u32 %s1025, 32
        %s1028 = sadd.s32 %s1026, %s1027
        %s1029 = sadd.s32 %s231, %s1028
        %s1030 = smul.addr %s1029, 16
        %s1031 = scalar_lea.hbm %s1, %s1030
        %s1032 = scalar_lea.vmem [#allocation2], 82
        %s1034 = sshll.u32 %s1032, 4
        %s1035 = int_to_ptr.vmem [resolvable:$true] %s1034
        %1037 = dma.hbm_to_vmem [thread:$0]  %s1031, 32, %s1035, [#allocation3], 128, 128, 1
        %s1038 = sadd.s32 %s219, 43
        %s1039 = sld [smem:[#allocation6 + %s1038]]
        %p1040 = scmp.gt.s32.totalorder %s1039, 0
        %s1041 = scalar_select %p1040, %s1039, 0
        %p1042 = scmp.lt.s32.totalorder %s1041, 511
        %s1043 = scalar_select %p1042, %s1041, 511
        %s1044 = sshrl.u32 %s1043, 3
        %s1045 = sand.u32 %s1043, 7
        %s1046 = smul.u32 %s1044, 32
        %s1047 = sadd.s32 %s1045, %s1046
        %s1048 = sadd.s32 %s231, %s1047
        %s1049 = smul.addr %s1048, 16
        %s1050 = scalar_lea.hbm %s1, %s1049
        %s1051 = scalar_lea.vmem [#allocation2], 83
        %s1053 = sshll.u32 %s1051, 4
        %s1054 = int_to_ptr.vmem [resolvable:$true] %s1053
        %1056 = dma.hbm_to_vmem [thread:$0]  %s1050, 32, %s1054, [#allocation3], 128, 128, 1
        %s1057 = sadd.s32 %s219, 44
        %s1058 = sld [smem:[#allocation6 + %s1057]]
        %p1059 = scmp.gt.s32.totalorder %s1058, 0
        %s1060 = scalar_select %p1059, %s1058, 0
        %p1061 = scmp.lt.s32.totalorder %s1060, 511
        %s1062 = scalar_select %p1061, %s1060, 511
        %s1063 = sshrl.u32 %s1062, 3
        %s1064 = sand.u32 %s1062, 7
        %s1065 = smul.u32 %s1063, 32
        %s1066 = sadd.s32 %s1064, %s1065
        %s1067 = sadd.s32 %s231, %s1066
        %s1068 = smul.addr %s1067, 16
        %s1069 = scalar_lea.hbm %s1, %s1068
        %s1070 = scalar_lea.vmem [#allocation2], 84
        %s1072 = sshll.u32 %s1070, 4
        %s1073 = int_to_ptr.vmem [resolvable:$true] %s1072
        %1075 = dma.hbm_to_vmem [thread:$0]  %s1069, 32, %s1073, [#allocation3], 128, 128, 1
        %s1076 = sadd.s32 %s219, 45
        %s1077 = sld [smem:[#allocation6 + %s1076]]
        %p1078 = scmp.gt.s32.totalorder %s1077, 0
        %s1079 = scalar_select %p1078, %s1077, 0
        %p1080 = scmp.lt.s32.totalorder %s1079, 511
        %s1081 = scalar_select %p1080, %s1079, 511
        %s1082 = sshrl.u32 %s1081, 3
        %s1083 = sand.u32 %s1081, 7
        %s1084 = smul.u32 %s1082, 32
        %s1085 = sadd.s32 %s1083, %s1084
        %s1086 = sadd.s32 %s231, %s1085
        %s1087 = smul.addr %s1086, 16
        %s1088 = scalar_lea.hbm %s1, %s1087
        %s1089 = scalar_lea.vmem [#allocation2], 85
        %s1091 = sshll.u32 %s1089, 4
        %s1092 = int_to_ptr.vmem [resolvable:$true] %s1091
        %1094 = dma.hbm_to_vmem [thread:$0]  %s1088, 32, %s1092, [#allocation3], 128, 128, 1
        %s1095 = sadd.s32 %s219, 46
        %s1096 = sld [smem:[#allocation6 + %s1095]]
        %p1097 = scmp.gt.s32.totalorder %s1096, 0
        %s1098 = scalar_select %p1097, %s1096, 0
        %p1099 = scmp.lt.s32.totalorder %s1098, 511
        %s1100 = scalar_select %p1099, %s1098, 511
        %s1101 = sshrl.u32 %s1100, 3
        %s1102 = sand.u32 %s1100, 7
        %s1103 = smul.u32 %s1101, 32
        %s1104 = sadd.s32 %s1102, %s1103
        %s1105 = sadd.s32 %s231, %s1104
        %s1106 = smul.addr %s1105, 16
        %s1107 = scalar_lea.hbm %s1, %s1106
        %s1108 = scalar_lea.vmem [#allocation2], 86
        %s1110 = sshll.u32 %s1108, 4
        %s1111 = int_to_ptr.vmem [resolvable:$true] %s1110
        %1113 = dma.hbm_to_vmem [thread:$0]  %s1107, 32, %s1111, [#allocation3], 128, 128, 1
        %s1114 = sadd.s32 %s219, 47
        %s1115 = sld [smem:[#allocation6 + %s1114]]
        %p1116 = scmp.gt.s32.totalorder %s1115, 0
        %s1117 = scalar_select %p1116, %s1115, 0
        %p1118 = scmp.lt.s32.totalorder %s1117, 511
        %s1119 = scalar_select %p1118, %s1117, 511
        %s1120 = sshrl.u32 %s1119, 3
        %s1121 = sand.u32 %s1119, 7
        %s1122 = smul.u32 %s1120, 32
        %s1123 = sadd.s32 %s1121, %s1122
        %s1124 = sadd.s32 %s231, %s1123
        %s1125 = smul.addr %s1124, 16
        %s1126 = scalar_lea.hbm %s1, %s1125
        %s1127 = scalar_lea.vmem [#allocation2], 87
        %s1129 = sshll.u32 %s1127, 4
        %s1130 = int_to_ptr.vmem [resolvable:$true] %s1129
        %1132 = dma.hbm_to_vmem [thread:$0]  %s1126, 32, %s1130, [#allocation3], 128, 128, 1
        %p1133 = scmp.eq.s32.totalorder %s30, 0
        // Predicated region
        $region41: #{tpu_custom_call.1} parent=31 // pred_check
          %p1134 = pneg %p1133
        $region42: #{tpu_custom_call.1} parent=31 // pred_check_branch
          %1136 = sbr.rel (%p1134) target = $region44
        $region43: #{tpu_custom_call.1} parent=31 // pred_region
          %1137 = vst [vmem:[#allocation4] sm:$0xff] 0.0
          %1138 = vst [vmem:[#allocation4 + $0x8] sm:$0xff] 0.0
          %1139 = vst [vmem:[#allocation4 + $0x10] sm:$0xff] 0.0
          %1140 = vst [vmem:[#allocation4 + $0x18] sm:$0xff] 0.0
          %1141 = vst [vmem:[#allocation4 + $0x20] sm:$0xff] 0.0
          %1142 = vst [vmem:[#allocation4 + $0x28] sm:$0xff] 0.0
        $region44: #{tpu_custom_call.1} parent=31 // pred_fallthru
          _
        %s1143 = smul.u32 1, 2
        %s1144 = sshll.u32 %s1143, 4
        %1145 = dma.done [#allocation3], %s1144
        %s1146 = sshll.u32 %s1143, 4
        %1147 = dma.done [#allocation3], %s1146
        %s1148 = sshll.u32 %s1143, 4
        %1149 = dma.done [#allocation3], %s1148
        %s1150 = sshll.u32 %s1143, 4
        %1151 = dma.done [#allocation3], %s1150
        %s1152 = sshll.u32 %s1143, 4
        %1153 = dma.done [#allocation3], %s1152
        %s1154 = sshll.u32 %s1143, 4
        %1155 = dma.done [#allocation3], %s1154
        %s1156 = sshll.u32 %s1143, 4
        %1157 = dma.done [#allocation3], %s1156
        %s1158 = sshll.u32 %s1143, 4
        %1159 = dma.done [#allocation3], %s1158
        %s1160 = sshll.u32 %s1143, 4
        %1161 = dma.done [#allocation3], %s1160
        %s1162 = sshll.u32 %s1143, 4
        %1163 = dma.done [#allocation3], %s1162
        %s1164 = sshll.u32 %s1143, 4
        %1165 = dma.done [#allocation3], %s1164
        %s1166 = sshll.u32 %s1143, 4
        %1167 = dma.done [#allocation3], %s1166
        %s1168 = sshll.u32 %s1143, 4
        %1169 = dma.done [#allocation3], %s1168
        %s1170 = sshll.u32 %s1143, 4
        %1171 = dma.done [#allocation3], %s1170
        %s1172 = sshll.u32 %s1143, 4
        %1173 = dma.done [#allocation3], %s1172
        %s1174 = sshll.u32 %s1143, 4
        %1175 = dma.done [#allocation3], %s1174
        %s1176 = sshll.u32 %s1143, 4
        %1177 = dma.done [#allocation3], %s1176
        %s1178 = sshll.u32 %s1143, 4
        %1179 = dma.done [#allocation3], %s1178
        %s1180 = sshll.u32 %s1143, 4
        %1181 = dma.done [#allocation3], %s1180
        %s1182 = sshll.u32 %s1143, 4
        %1183 = dma.done [#allocation3], %s1182
        %s1184 = sshll.u32 %s1143, 4
        %1185 = dma.done [#allocation3], %s1184
        %s1186 = sshll.u32 %s1143, 4
        %1187 = dma.done [#allocation3], %s1186
        %s1188 = sshll.u32 %s1143, 4
        %1189 = dma.done [#allocation3], %s1188
        %s1190 = sshll.u32 %s1143, 4
        %1191 = dma.done [#allocation3], %s1190
        %s1192 = sshll.u32 %s1143, 4
        %1193 = dma.done [#allocation3], %s1192
        %s1194 = sshll.u32 %s1143, 4
        %1195 = dma.done [#allocation3], %s1194
        %s1196 = sshll.u32 %s1143, 4
        %1197 = dma.done [#allocation3], %s1196
        %s1198 = sshll.u32 %s1143, 4
        %1199 = dma.done [#allocation3], %s1198
        %s1200 = sshll.u32 %s1143, 4
        %1201 = dma.done [#allocation3], %s1200
        %s1202 = sshll.u32 %s1143, 4
        %1203 = dma.done [#allocation3], %s1202
        %s1204 = sshll.u32 %s1143, 4
        %1205 = dma.done [#allocation3], %s1204
        %s1206 = sshll.u32 %s1143, 4
        %1207 = dma.done [#allocation3], %s1206
        %s1208 = sshll.u32 %s1143, 4
        %1209 = dma.done [#allocation3], %s1208
        %s1210 = sshll.u32 %s1143, 4
        %1211 = dma.done [#allocation3], %s1210
        %s1212 = sshll.u32 %s1143, 4
        %1213 = dma.done [#allocation3], %s1212
        %s1214 = sshll.u32 %s1143, 4
        %1215 = dma.done [#allocation3], %s1214
        %s1216 = sshll.u32 %s1143, 4
        %1217 = dma.done [#allocation3], %s1216
        %s1218 = sshll.u32 %s1143, 4
        %1219 = dma.done [#allocation3], %s1218
        %s1220 = sshll.u32 %s1143, 4
        %1221 = dma.done [#allocation3], %s1220
        %s1222 = sshll.u32 %s1143, 4
        %1223 = dma.done [#allocation3], %s1222
        %s1224 = sshll.u32 %s1143, 4
        %1225 = dma.done [#allocation3], %s1224
        %s1226 = sshll.u32 %s1143, 4
        %1227 = dma.done [#allocation3], %s1226
        %s1228 = sshll.u32 %s1143, 4
        %1229 = dma.done [#allocation3], %s1228
        %s1230 = sshll.u32 %s1143, 4
        %1231 = dma.done [#allocation3], %s1230
        %s1232 = sshll.u32 %s1143, 4
        %1233 = dma.done [#allocation3], %s1232
        %s1234 = sshll.u32 %s1143, 4
        %1235 = dma.done [#allocation3], %s1234
        %s1236 = sshll.u32 %s1143, 4
        %1237 = dma.done [#allocation3], %s1236
        %s1238 = sshll.u32 %s1143, 4
        %1239 = dma.done [#allocation3], %s1238
        %v1240 = vld [vmem:[#allocation4] sm:$0xff]
        %v1241 = vld [vmem:[#allocation4 + $0x8] sm:$0xff]
        %v1242 = vld [vmem:[#allocation4 + $0x10] sm:$0xff]
        %v1243 = vld [vmem:[#allocation4 + $0x18] sm:$0xff]
        %v1244 = vld [vmem:[#allocation4 + $0x20] sm:$0xff]
        %v1245 = vld [vmem:[#allocation4 + $0x28] sm:$0xff]
        %v1246 = vld [vmem:[#allocation2] sm:$0xff]
        %v1247 = vld [vmem:[#allocation2 + $0x8] sm:$0xff]
        %v1248 = vld [vmem:[#allocation2 + $0x10] sm:$0xff]
        %v1249 = vld [vmem:[#allocation2 + $0x18] sm:$0xff]
        %v1250 = vld [vmem:[#allocation2 + $0x20] sm:$0xff]
        %v1251 = vld [vmem:[#allocation2 + $0x28] sm:$0xff]
        %v1252 = vld [vmem:[#allocation2 + $0x30] sm:$0xff]
        %v1253 = vld [vmem:[#allocation2 + $0x38] sm:$0xff]
        %v1254 = vld [vmem:[#allocation2 + $0x40] sm:$0xff]
        %v1255 = vld [vmem:[#allocation2 + $0x48] sm:$0xff]
        %v1256 = vld [vmem:[#allocation2 + $0x50] sm:$0xff]
        %v1257 = vld [vmem:[#allocation2 + $0x58] sm:$0xff]
        %v1258 = vpack.c.bf16 %v1248, %v1246
        %v1259 = vpack.c.bf16 %v1249, %v1247
        %v1260 = vpack.c.bf16 %v1252, %v1250
        %v1261 = vpack.c.bf16 %v1253, %v1251
        %v1262 = vpack.c.bf16 %v1256, %v1254
        %v1263 = vpack.c.bf16 %v1257, %v1255
        %v1264 = vld [vmem:[%s193] sm:$0xff]
        %v1265 = vld [vmem:[%s193 + $0x8] sm:$0xff]
        %v1266 = vld [vmem:[%s193 + $0x10] sm:$0xff]
        %v1267 = vld [vmem:[%s193 + $0x18] sm:$0xff]
        %v1268 = vld [vmem:[%s193 + $0x20] sm:$0xff]
        %v1269 = vld [vmem:[%s193 + $0x28] sm:$0xff]
        %v1270 = vld [vmem:[%s193 + $0x30] sm:$0xff]
        %v1271 = vld [vmem:[%s193 + $0x38] sm:$0xff]
        %v1272 = vld [vmem:[%s193 + $0x40] sm:$0xff]
        %v1273 = vld [vmem:[%s193 + $0x48] sm:$0xff]
        %v1274 = vld [vmem:[%s193 + $0x50] sm:$0xff]
        %v1275 = vld [vmem:[%s193 + $0x58] sm:$0xff]
        %v1276 = vld [vmem:[%s193 + $0x60] sm:$0xff]
        %v1277 = vld [vmem:[%s193 + $0x68] sm:$0xff]
        %v1278 = vld [vmem:[%s193 + $0x70] sm:$0xff]
        %v1279 = vld [vmem:[%s193 + $0x78] sm:$0xff]
        %v1280 = vld [vmem:[%s193 + $0x80] sm:$0xff]
        %v1281 = vld [vmem:[%s193 + $0x88] sm:$0xff]
        %v1282 = vld [vmem:[%s193 + $0x90] sm:$0xff]
        %v1283 = vld [vmem:[%s193 + $0x98] sm:$0xff]
        %v1284 = vld [vmem:[%s193 + $0xa0] sm:$0xff]
        %v1285 = vld [vmem:[%s193 + $0xa8] sm:$0xff]
        %v1286 = vld [vmem:[%s193 + $0xb0] sm:$0xff]
        %v1287 = vld [vmem:[%s193 + $0xb8] sm:$0xff]
        %v1288 = vld [vmem:[%s193 + $0xc0] sm:$0xff]
        %v1289 = vld [vmem:[%s193 + $0xc8] sm:$0xff]
        %v1290 = vld [vmem:[%s193 + $0xd0] sm:$0xff]
        %v1291 = vld [vmem:[%s193 + $0xd8] sm:$0xff]
        %v1292 = vld [vmem:[%s193 + $0xe0] sm:$0xff]
        %v1293 = vld [vmem:[%s193 + $0xe8] sm:$0xff]
        %v1294 = vld [vmem:[%s193 + $0xf0] sm:$0xff]
        %v1295 = vld [vmem:[%s193 + $0xf8] sm:$0xff]
        %v1296 = vpack.c.bf16 %v1265, %v1264
        %v1297 = vpack.c.bf16 %v1267, %v1266
        %v1298 = vpack.c.bf16 %v1269, %v1268
        %v1299 = vpack.c.bf16 %v1271, %v1270
        %v1300 = vpack.c.bf16 %v1273, %v1272
        %v1301 = vpack.c.bf16 %v1275, %v1274
        %v1302 = vpack.c.bf16 %v1277, %v1276
        %v1303 = vpack.c.bf16 %v1279, %v1278
        %v1304 = vpack.c.bf16 %v1281, %v1280
        %v1305 = vpack.c.bf16 %v1283, %v1282
        %v1306 = vpack.c.bf16 %v1285, %v1284
        %v1307 = vpack.c.bf16 %v1287, %v1286
        %v1308 = vpack.c.bf16 %v1289, %v1288
        %v1309 = vpack.c.bf16 %v1291, %v1290
        %v1310 = vpack.c.bf16 %v1293, %v1292
        %v1311 = vpack.c.bf16 %v1295, %v1294
        %1312 = vmatprep.subr.bf16.mxu0 0
        %1313 = vmatpush1.bf16.msra.mxu0 %v1303
        %1314 = vmatprep.subr.bf16.mxu0 0
        %1315 = vmatpush1.bf16.msra.mxu0 %v1302
        %1316 = vmatprep.subr.bf16.mxu0 0
        %1317 = vmatpush1.bf16.msra.mxu0 %v1301
        %1318 = vmatprep.subr.bf16.mxu0 0
        %1319 = vmatpush1.bf16.msra.mxu0 %v1300
        %1320 = vmatprep.subr.bf16.mxu0 0
        %1321 = vmatpush1.bf16.msra.mxu0 %v1299
        %1322 = vmatprep.subr.bf16.mxu0 0
        %1323 = vmatpush1.bf16.msra.mxu0 %v1298
        %1324 = vmatprep.subr.bf16.mxu0 0
        %1325 = vmatpush1.bf16.msra.mxu0 %v1297
        %1326 = vmatprep.subr.bf16.mxu0 0
        %1327 = vmatpush1.bf16.msra.mxu0 %v1296
        %1328 = vmatprep.subr.bf16.mxu0 0
        %1329 = vmatpush2.bf16.msra.mxu0 %v1311
        %1330 = vmatprep.subr.bf16.mxu0 0
        %1331 = vmatpush2.bf16.msra.mxu0 %v1310
        %1332 = vmatprep.subr.bf16.mxu0 0
        %1333 = vmatpush2.bf16.msra.mxu0 %v1309
        %1334 = vmatprep.subr.bf16.mxu0 0
        %1335 = vmatpush2.bf16.msra.mxu0 %v1308
        %1336 = vmatprep.subr.bf16.mxu0 0
        %1337 = vmatpush2.bf16.msra.mxu0 %v1307
        %1338 = vmatprep.subr.bf16.mxu0 0
        %1339 = vmatpush2.bf16.msra.mxu0 %v1306
        %1340 = vmatprep.subr.bf16.mxu0 0
        %1341 = vmatpush2.bf16.msra.mxu0 %v1305
        %1342 = vmatprep.subr.bf16.mxu0 0
        %1343 = vmatpush2.bf16.msra.mxu0 %v1304
        %1344 = vmatprep.mubr.bf16.mxu0 %v1259
        %1345 = vmatmul.mubr.bf16.gmra.mxu0 %v1258
        %v1346 = vpop.f32.mrf.mxu0
        %v1347 = vadd.f32 0.0, %v1346
        %v1348 = vpop.f32.mrf.mxu0
        %v1349 = vpop.f32.mrf.mxu0
        %v1350 = vadd.f32 0.0, %v1349
        %v1351 = vpop.f32.mrf.mxu0
        %1352 = vmatprep.mubr.bf16.mxu0 %v1261
        %1353 = vmatmul.mubr.bf16.gmra.mxu0 %v1260
        %v1354 = vpop.f32.mrf.mxu0
        %v1355 = vadd.f32 0.0, %v1354
        %v1356 = vpop.f32.mrf.mxu0
        %v1357 = vpop.f32.mrf.mxu0
        %v1358 = vadd.f32 0.0, %v1357
        %v1359 = vpop.f32.mrf.mxu0
        %1360 = vmatprep.mubr.bf16.mxu0 %v1263
        %1361 = vmatmul.mubr.bf16.gmra.mxu0 %v1262
        %v1362 = vpop.f32.mrf.mxu0
        %v1363 = vadd.f32 0.0, %v1362
        %v1364 = vpop.f32.mrf.mxu0
        %v1365 = vpop.f32.mrf.mxu0
        %v1366 = vadd.f32 0.0, %v1365
        %v1367 = vpop.f32.mrf.mxu0
        %1368 = vdwg.mxu0
        %v1369 = vadd.f32 %v1240, %v1347
        %v1370 = vadd.f32 %v1241, %v1350
        %v1371 = vadd.f32 %v1242, %v1355
        %v1372 = vadd.f32 %v1243, %v1358
        %v1373 = vadd.f32 %v1244, %v1363
        %v1374 = vadd.f32 %v1245, %v1366
        %1375 = vst [vmem:[#allocation4] sm:$0xff] %v1369
        %1376 = vst [vmem:[#allocation4 + $0x8] sm:$0xff] %v1370
        %1377 = vst [vmem:[#allocation4 + $0x10] sm:$0xff] %v1371
        %1378 = vst [vmem:[#allocation4 + $0x18] sm:$0xff] %v1372
        %1379 = vst [vmem:[#allocation4 + $0x20] sm:$0xff] %v1373
        %1380 = vst [vmem:[#allocation4 + $0x28] sm:$0xff] %v1374
        %p1381 = scmp.eq.s32.totalorder %s30, 1
        // Predicated region
        $region45: #{tpu_custom_call.1} parent=31 // pred_check
          %p1382 = pneg %p1381
        $region46: #{tpu_custom_call.1} parent=31 // pred_check_branch
          %1384 = sbr.rel (%p1382) target = $region48
        $region47: #{tpu_custom_call.1} parent=31 // pred_region
          %v1385 = vld [vmem:[#allocation4] sm:$0xff]
          %v1386 = vld [vmem:[#allocation4 + $0x8] sm:$0xff]
          %v1387 = vld [vmem:[#allocation4 + $0x10] sm:$0xff]
          %v1388 = vld [vmem:[#allocation4 + $0x18] sm:$0xff]
          %v1389 = vld [vmem:[#allocation4 + $0x20] sm:$0xff]
          %v1390 = vld [vmem:[#allocation4 + $0x28] sm:$0xff]
          %v1391 = vld [vmem:[#allocation10] sm:$0xff]
          %v1392 = vld [vmem:[#allocation10 + $0x8] sm:$0xff]
          %v1393 = vld [vmem:[#allocation10 + $0x10] sm:$0xff]
          %v1394 = vld [vmem:[#allocation10 + $0x18] sm:$0xff]
          %v1395 = vld [vmem:[#allocation10 + $0x20] sm:$0xff]
          %v1396 = vld [vmem:[#allocation10 + $0x28] sm:$0xff]
          %v1397 = vld [vmem:[#allocation10 + $0x30] sm:$0xff]
          %v1398 = vld [vmem:[#allocation10 + $0x38] sm:$0xff]
          %v1399 = vld [vmem:[#allocation10 + $0x40] sm:$0xff]
          %v1400 = vld [vmem:[#allocation10 + $0x48] sm:$0xff]
          %v1401 = vld [vmem:[#allocation10 + $0x50] sm:$0xff]
          %v1402 = vld [vmem:[#allocation10 + $0x58] sm:$0xff]
          %v1403 = vld [vmem:[#allocation10 + $0x60] sm:$0xff]
          %v1404 = vld [vmem:[#allocation10 + $0x68] sm:$0xff]
          %v1405 = vld [vmem:[#allocation10 + $0x70] sm:$0xff]
          %v1406 = vld [vmem:[#allocation10 + $0x78] sm:$0xff]
          %v1407 = vld [vmem:[%s4] sm:$0x1]
          %v1409 = vlaneseq
          %v1410 = vshrl.u32 %v1409, 7
          %v1411 = vsub.s32 0, %v1410
          %v1412 = vrot.slane %v1407, %v1411
          %1414 = vmatprep.subr.mxu0 0.0
          %1415 = vmatpush1.msra.mxu0 %v1406
          %1416 = vmatprep.subr.mxu0 0.0
          %1417 = vmatpush1.msra.mxu0 %v1405
          %1418 = vmatprep.subr.mxu0 0.0
          %1419 = vmatpush1.msra.mxu0 %v1404
          %1420 = vmatprep.subr.mxu0 0.0
          %1421 = vmatpush1.msra.mxu0 %v1403
          %1422 = vmatprep.subr.mxu0 0.0
          %1423 = vmatpush1.msra.mxu0 %v1402
          %1424 = vmatprep.subr.mxu0 0.0
          %1425 = vmatpush1.msra.mxu0 %v1401
          %1426 = vmatprep.subr.mxu0 0.0
          %1427 = vmatpush1.msra.mxu0 %v1400
          %1428 = vmatprep.subr.mxu0 0.0
          %1429 = vmatpush1.msra.mxu0 %v1399
          %1430 = vmatprep.subr.mxu0 0.0
          %1431 = vmatpush1.msra.mxu0 %v1398
          %1432 = vmatprep.subr.mxu0 0.0
          %1433 = vmatpush1.msra.mxu0 %v1397
          %1434 = vmatprep.subr.mxu0 0.0
          %1435 = vmatpush1.msra.mxu0 %v1396
          %1436 = vmatprep.subr.mxu0 0.0
          %1437 = vmatpush1.msra.mxu0 %v1395
          %1438 = vmatprep.subr.mxu0 0.0
          %1439 = vmatpush1.msra.mxu0 %v1394
          %1440 = vmatprep.subr.mxu0 0.0
          %1441 = vmatpush1.msra.mxu0 %v1393
          %1442 = vmatprep.subr.mxu0 0.0
          %1443 = vmatpush1.msra.mxu0 %v1392
          %1444 = vmatprep.subr.mxu0 0.0
          %1445 = vmatpush1.msra.mxu0 %v1391
          %1446 = vmatprep.subr.mxu0 0.0
          %1447 = vmatpush2.msra.mxu0 0.0
          %1448 = vmatprep.subr.mxu0 0.0
          %1449 = vmatpush2.msra.mxu0 0.0
          %1450 = vmatprep.subr.mxu0 0.0
          %1451 = vmatpush2.msra.mxu0 0.0
          %1452 = vmatprep.subr.mxu0 0.0
          %1453 = vmatpush2.msra.mxu0 0.0
          %1454 = vmatprep.subr.mxu0 0.0
          %1455 = vmatpush2.msra.mxu0 0.0
          %1456 = vmatprep.subr.mxu0 0.0
          %1457 = vmatpush2.msra.mxu0 0.0
          %1458 = vmatprep.subr.mxu0 0.0
          %1459 = vmatpush2.msra.mxu0 0.0
          %1460 = vmatprep.subr.mxu0 0.0
          %1461 = vmatpush2.msra.mxu0 0.0
          %1462 = vmatprep.subr.mxu0 0.0
          %1463 = vmatpush2.msra.mxu0 0.0
          %1464 = vmatprep.subr.mxu0 0.0
          %1465 = vmatpush2.msra.mxu0 0.0
          %1466 = vmatprep.subr.mxu0 0.0
          %1467 = vmatpush2.msra.mxu0 0.0
          %1468 = vmatprep.subr.mxu0 0.0
          %1469 = vmatpush2.msra.mxu0 0.0
          %1470 = vmatprep.subr.mxu0 0.0
          %1471 = vmatpush2.msra.mxu0 0.0
          %1472 = vmatprep.subr.mxu0 0.0
          %1473 = vmatpush2.msra.mxu0 0.0
          %1474 = vmatprep.subr.mxu0 0.0
          %1475 = vmatpush2.msra.mxu0 0.0
          %1476 = vmatprep.subr.mxu0 0.0
          %1477 = vmatpush2.msra.mxu0 0.0
          %1478 = vmatprep.mubr.f32.mxu0 0.0
          %1479 = vmatmul.mubr.f32.gmra.mxu0 %v1385
          %v1480 = vpop.f32.mrf.mxu0
          %v1481 = vadd.f32 %v1412, %v1480
          %v1482 = vpop.f32.mrf.mxu0
          %1483 = vmatprep.mubr.f32.mxu0 0.0
          %1484 = vmatmul.mubr.f32.gmra.mxu0 %v1386
          %v1485 = vpop.f32.mrf.mxu0
          %v1486 = vadd.f32 %v1412, %v1485
          %v1487 = vpop.f32.mrf.mxu0
          %1488 = vmatprep.mubr.f32.mxu0 0.0
          %1489 = vmatmul.mubr.f32.gmra.mxu0 %v1387
          %v1490 = vpop.f32.mrf.mxu0
          %v1491 = vadd.f32 %v1412, %v1490
          %v1492 = vpop.f32.mrf.mxu0
          %1493 = vmatprep.mubr.f32.mxu0 0.0
          %1494 = vmatmul.mubr.f32.gmra.mxu0 %v1388
          %v1495 = vpop.f32.mrf.mxu0
          %v1496 = vadd.f32 %v1412, %v1495
          %v1497 = vpop.f32.mrf.mxu0
          %1498 = vmatprep.mubr.f32.mxu0 0.0
          %1499 = vmatmul.mubr.f32.gmra.mxu0 %v1389
          %v1500 = vpop.f32.mrf.mxu0
          %v1501 = vadd.f32 %v1412, %v1500
          %v1502 = vpop.f32.mrf.mxu0
          %1503 = vmatprep.mubr.f32.mxu0 0.0
          %1504 = vmatmul.mubr.f32.gmra.mxu0 %v1390
          %v1505 = vpop.f32.mrf.mxu0
          %v1506 = vadd.f32 %v1412, %v1505
          %v1507 = vpop.f32.mrf.mxu0
          %1508 = vdwg.mxu0
          %v1509 = vmax.f32 %v1481, 0.0
          %v1510 = vmax.f32 %v1486, 0.0
          %v1511 = vmax.f32 %v1491, 0.0
          %v1512 = vmax.f32 %v1496, 0.0
          %v1513 = vmax.f32 %v1501, 0.0
          %v1514 = vmax.f32 %v1506, 0.0
          %1515 = vst [vmem:[#allocation12] sm:$0xff] %v1509
          %1516 = vst [vmem:[#allocation12 + $0x8] sm:$0xff] %v1510
          %1517 = vst [vmem:[#allocation12 + $0x10] sm:$0xff] %v1511
          %1518 = vst [vmem:[#allocation12 + $0x18] sm:$0xff] %v1512
          %1519 = vst [vmem:[#allocation12 + $0x20] sm:$0xff] %v1513
          %1520 = vst [vmem:[#allocation12 + $0x28] sm:$0xff] %v1514
        $region48: #{tpu_custom_call.1} parent=31 // pred_fallthru
          _
        // Predicated region
        $region49: #{tpu_custom_call.1} parent=31 // pred_check
          %p1521 = pneg %p123
        $region50: #{tpu_custom_call.1} parent=31 // pred_check_branch
          %1523 = sbr.rel (%p1521) target = $region52
        $region51: #{tpu_custom_call.1} parent=31 // pred_region
          %s1524 = smul.u32 6, %s29
          %s1526 = ssub.s32 768, 768
          %1527 = vsyncadd [#allocation9], %s1526
          %s1528 = smul.addr %s1524, 128
          %s1529 = scalar_lea.hbm %s5, %s1528
          %s1530 = sshll.u32 [#allocation12], 4
          %s1531 = int_to_ptr.vmem [resolvable:$true] %s1530
          %1536 = dma.vmem_to_hbm [thread:$0]  %s1531, 768, %s1529, [#allocation9], 128, 128, 8
        $region52: #{tpu_custom_call.1} parent=31 // pred_fallthru
          _
        // Predicated region
        $region53: #{tpu_custom_call.1} parent=31 // pred_check
          %p1537 = pneg %p123
        $region54: #{tpu_custom_call.1} parent=31 // pred_check_branch
          %1539 = sbr.rel (%p1537) target = $region56
        $region55: #{tpu_custom_call.1} parent=31 // pred_region
          %1540 = dma.done [#allocation9], 768
        $region56: #{tpu_custom_call.1} parent=31 // pred_fallthru
          _
      $region32: #{tpu_custom_call.1} parent=5 // pred_fallthru
        _
      %p1541 = scmp.le.s32.totalorder 2, %s20
      // Predicated region
      $region57: #{tpu_custom_call.1} parent=5 // pred_check
        %p1542 = pneg %p1541
      $region58: #{tpu_custom_call.1} parent=5 // pred_check_branch
        %1544 = sbr.rel (%p1542) target = $region60
      $region59: #{tpu_custom_call.1} parent=5 // pred_region
        %s1545 = ssub.s32 %s20, 2
      $region60: #{tpu_custom_call.1} parent=5 // pred_fallthru
        _
    $region6: #{tpu_custom_call.1} parent=1 // loop_footer
      %s24 = sadd.s32 1, %s20
    $region7: #{tpu_custom_call.1} parent=1 // loop_footer_branch
      %19 = sbr.rel target = $region3
    $region8: #{tpu_custom_call.1} parent=1 // loop_exit
      _
    %1546 = vsyncpa [#allocation8], 1
    %s1547 = scalar_lea.sflag [#allocation8], 1
    %1548 = vsyncpa %s1547, 1
    %1549 = vsyncpa [#allocation11], 1
    %1550 = vsyncpa [#allocation9], 1
    %s1551 = scalar_lea.sflag [#allocation9], 1
    %1552 = vsyncpa %s1551, 1
  %1553 = vsyncmov [#allocation3]
  %s1554 = vpop.sfrf %1553
  %p1555 = scmp.eq.s32.totalorder %s1554, 0
  %p1556 = pneg %p1555
  %1558 = shalt.err (%p1556)

</llo_original>
